<compile_context>
chip_gen: v7x
topology: tpu7x:2x2x1
jax: 0.10.0
libtpu: 0.0.40
codegen_flags: <defaults>
</compile_context>

<pallas_src>
import numpy as np

import jax
import jax.numpy as jnp
from jax.experimental import pallas as pl
from jax.experimental.pallas import tpu as pltpu


def _round_up(x, m):
    return (x + m - 1) // m * m


# ----------------------------------------------------------------------------
# Bilinear upsample helpers (PyTorch F.interpolate bilinear, align_corners=False).
# ----------------------------------------------------------------------------
def _upsample2x_nhwc(x):
    """Exact 2x bilinear upsample as a fixed 0.25/0.75 stencil (no gathers)."""
    n, h, w, c = x.shape
    xm = jnp.concatenate([x[:, :1], x[:, :-1]], axis=1)       # x[i-1], edge-clamped
    xp = jnp.concatenate([x[:, 1:], x[:, -1:]], axis=1)       # x[i+1], edge-clamped
    even = 0.25 * xm + 0.75 * x
    odd = 0.75 * x + 0.25 * xp
    r = jnp.stack([even, odd], axis=2).reshape(n, 2 * h, w, c)
    rm = jnp.concatenate([r[:, :, :1], r[:, :, :-1]], axis=2)
    rp = jnp.concatenate([r[:, :, 1:], r[:, :, -1:]], axis=2)
    even = 0.25 * rm + 0.75 * r
    odd = 0.75 * r + 0.25 * rp
    return jnp.stack([even, odd], axis=3).reshape(n, 2 * h, 2 * w, c)


def _bilinear_resize_nhwc(x, out_h, out_w):
    """General bilinear resize (align_corners=False) for the `addition` path when
    the target size is not exactly 2x.  Gather-based; only used as XLA glue."""
    n, in_h, in_w, c = x.shape

    def axis_coords(n_out, n_in):
        scale = n_in / n_out
        src = (jnp.arange(n_out, dtype=jnp.float32) + 0.5) * scale - 0.5
        i0 = jnp.floor(src)
        frac = src - i0
        lo = jnp.clip(i0, 0, n_in - 1).astype(jnp.int32)
        hi = jnp.clip(i0 + 1, 0, n_in - 1).astype(jnp.int32)
        return lo, hi, frac

    h_lo, h_hi, h_f = axis_coords(out_h, in_h)
    w_lo, w_hi, w_f = axis_coords(out_w, in_w)
    top = x[:, h_lo, :, :]
    bot = x[:, h_hi, :, :]
    rows = top + (bot - top) * h_f[None, :, None, None]
    left = rows[:, :, w_lo, :]
    right = rows[:, :, w_hi, :]
    return left + (right - left) * w_f[None, None, :, None]


# ----------------------------------------------------------------------------
# Pallas kernel: 3x3 conv (pad=1, BN scale pre-folded into weights) + bias + PReLU.
# One batch element per grid step; all channel dims lane-dense (multiple of 128).
# ----------------------------------------------------------------------------
def _conv_bias_prelu_kernel(x_ref, w_ref, bias_ref, alpha_ref, o_ref):
    # x_ref:     (1, H+2, Wp, Cp)  halo + width-aligned + channel-padded NHWC tile
    # w_ref:     (9, Cp, Kp)       conv weights (BN scale folded), tap-major (dy*3+dx)
    # bias_ref:  (1, Kp)           folded BatchNorm bias
    # alpha_ref: (1,)  in SMEM     PReLU slope
    # o_ref:     (1, H, W, Kp)     lane-dense output (Kp % 128 == 0)
    _, _, wp, cp = x_ref.shape
    _, h, w, kp = o_ref.shape
    flat = h * wp

    acc = jnp.zeros((h * w, kp), dtype=jnp.float32)
    for dy in range(3):
        # dy shift: slice along the major (H) axis only -- no relayout copy.
        slab = x_ref[0, dy:dy + h, :, :].reshape(flat, cp)
        for dx in range(3):
            # dx shift: XLU sublane rotate instead of a misaligned strided slice.
            shifted = slab if dx == 0 else pltpu.roll(slab, flat - dx, 0)
            patch = shifted.reshape(h, wp, cp)[:, :w, :].reshape(h * w, cp)
            acc = acc + jnp.dot(patch, w_ref[3 * dy + dx],
                                preferred_element_type=jnp.float32)

    y = acc + bias_ref[0].astype(jnp.float32)       # folded BatchNorm (eval mode)
    alpha = alpha_ref[0]
    y = jnp.where(y > 0, y, alpha * y)              # PReLU (single shared slope)
    o_ref[0] = y.reshape(h, w, kp).astype(o_ref.dtype)


def conv3x3_bn_prelu_nhwc(x_nhwc, w_hwio, bn_scale, bn_bias, prelu_alpha,
                          compute_dtype=jnp.float32):
    """Fused 3x3 conv (pad=1, no bias) + folded BN affine + PReLU, NHWC in/out."""
    n, h, w, cin = x_nhwc.shape
    cout = w_hwio.shape[-1]
    out_dtype = x_nhwc.dtype

    cin_p = _round_up(cin, 128)        # full-K MXU contraction
    cout_p = _round_up(cout, 128)      # lane-dense output stores
    wp = _round_up(w + 2, 8)           # sublane-aligned padded width

    # One fused pad: 1-px conv halo + width alignment + channel padding (zeros).
    x_pad = jnp.pad(x_nhwc.astype(compute_dtype),
                    ((0, 0), (1, 1), (1, wp - w - 1), (0, cin_p - cin)))

    # Fold the BN scale into the weights; pad channels; tap-major layout.
    w_folded = w_hwio * bn_scale.reshape(1, 1, 1, cout)
    w_p = jnp.pad(w_folded,
                  ((0, 0), (0, 0), (0, cin_p - cin), (0, cout_p - cout)))
    w_p = w_p.reshape(9, cin_p, cout_p).astype(compute_dtype)

    bias_p = jnp.pad(bn_bias.astype(jnp.float32),
                     (0, cout_p - cout)).reshape(1, cout_p)
    alpha1d = jnp.asarray(prelu_alpha, jnp.float32).reshape(1)

    # VMEM budget: double-buffered in/out blocks + weights + f32 acc + tap temporaries.
    isz = np.dtype(compute_dtype).itemsize
    in_blk = (h + 2) * wp * cin_p * isz
    out_blk = h * w * cout_p * x_nhwc.dtype.itemsize
    w_bytes = 9 * cin_p * cout_p * isz
    acc_bytes = h * w * cout_p * 4
    temps = 4 * h * wp * cin_p * max(isz, 4)
    vmem_limit = int(min(64 * 1024 * 1024,
                         max(16 * 1024 * 1024,
                             2 * (in_blk + out_blk) + w_bytes + acc_bytes + temps)))

    out = pl.pallas_call(
        _conv_bias_prelu_kernel,
        out_shape=jax.ShapeDtypeStruct((n, h, w, cout_p), out_dtype),
        grid_spec=pltpu.PrefetchScalarGridSpec(
            num_scalar_prefetch=0,
            grid=(n,),
            in_specs=[
                pl.BlockSpec((1, h + 2, wp, cin_p), lambda b: (b, 0, 0, 0)),
                pl.BlockSpec((9, cin_p, cout_p), lambda b: (0, 0, 0)),
                pl.BlockSpec((1, cout_p), lambda b: (0, 0)),
                pl.BlockSpec(memory_space=pltpu.SMEM),
            ],
            out_specs=pl.BlockSpec((1, h, w, cout_p), lambda b: (b, 0, 0, 0)),
        ),
        compiler_params=pltpu.CompilerParams(
            dimension_semantics=("parallel",),
            vmem_limit_bytes=vmem_limit),
        # TODO(synk): for production PSPNet sizes add a row-tiled grid axis (1-row
        # halo) so double-buffered blocks fit v7x's 64 MiB VMEM and both TCs stay busy.
    )(x_pad, w_p, bias_p, alpha1d)

    return out[..., :cout]                          # drop Cout lane padding


# ----------------------------------------------------------------------------
# PSPUpsample module (bn=True branch), parameters built deterministically.
# ----------------------------------------------------------------------------
class PSPUpsample:
    def __init__(self, in_channels, out_channels, key, bn=True,
                 compute_dtype=jnp.float32):
        # compute_dtype=jnp.bfloat16 is recommended on v6e/v7x (halves HBM traffic,
        # 2x MXU rate); kept f32 by default to match PyTorch numerics.
        self.compute_dtype = compute_dtype
        k_w, k_g, k_b, k_m, k_v = jax.random.split(key, 5)
        fan_in = in_channels * 9
        bound = 1.0 / (fan_in ** 0.5)
        # Conv weight, HWIO layout (3, 3, Cin, Cout)
        self.w = jax.random.uniform(
            k_w, (3, 3, in_channels, out_channels),
            minval=-bound, maxval=bound, dtype=jnp.float32)
        self.bn = bn
        self.eps = 1e-5
        if bn:
            self.gamma = jax.random.uniform(k_g, (out_channels,), minval=0.5, maxval=1.5)
            self.beta = jax.random.uniform(k_b, (out_channels,), minval=-0.5, maxval=0.5)
            self.running_mean = jax.random.uniform(k_m, (out_channels,),
                                                   minval=-0.5, maxval=0.5)
            self.running_var = jax.random.uniform(k_v, (out_channels,),
                                                  minval=0.5, maxval=1.5)
        self.prelu_alpha = 0.25  # nn.PReLU() default single parameter

        # Fold (inference-mode) BatchNorm into per-channel scale / bias.
        # TODO(synk): PyTorch in train() mode would use batch statistics; we use
        # running statistics (eval-mode semantics).
        if bn:
            scale = self.gamma / jnp.sqrt(self.running_var + self.eps)
            bias = self.beta - self.running_mean * scale
        else:
            scale = jnp.ones((out_channels,), jnp.float32)
            bias = jnp.zeros((out_channels,), jnp.float32)
        self.bn_scale = scale
        self.bn_bias = bias

    def __call__(self, x_nchw, addition=None):
        # x_nchw: (N, C, H, W) float32, matching PyTorch input layout.
        x = jnp.transpose(x_nchw, (0, 2, 3, 1))                 # -> NHWC
        if addition is not None:
            add = jnp.transpose(addition, (0, 2, 3, 1))
            th, tw = add.shape[1], add.shape[2]
            if th == 2 * x.shape[1] and tw == 2 * x.shape[2]:
                p = _upsample2x_nhwc(x)
            else:
                p = _bilinear_resize_nhwc(x, th, tw)
            p = jnp.concatenate([p, add], axis=-1)
        else:
            p = _upsample2x_nhwc(x)
        out = conv3x3_bn_prelu_nhwc(p, self.w, self.bn_scale, self.bn_bias,
                                    self.prelu_alpha,
                                    compute_dtype=self.compute_dtype)
        return jnp.transpose(out, (0, 3, 1, 2))                 # back to NCHW


def _reference_forward(module, x_nchw):
    """Pure-JAX/XLA reference of the same forward pass (self-check)."""
    x = jnp.transpose(x_nchw, (0, 2, 3, 1))
    p = _upsample2x_nhwc(x)
    y = jax.lax.conv_general_dilated(
        p, module.w, window_strides=(1, 1), padding=((1, 1), (1, 1)),
        dimension_numbers=("NHWC", "HWIO", "NHWC"),
        precision=jax.lax.Precision.HIGHEST)
    y = y * module.bn_scale + module.bn_bias
    y = jnp.where(y > 0, y, module.prelu_alpha * y)
    return jnp.transpose(y, (0, 3, 1, 2))


if __name__ == "__main__":
    key = jax.random.PRNGKey(0)
    k_x, k_params = jax.random.split(key)

    N, C_IN, H, W = 2, 4, 16, 16
    C_OUT = 8

    x = jax.random.normal(k_x, (N, C_IN, H, W), dtype=jnp.float32)
    module = PSPUpsample(C_IN, C_OUT, key=k_params, bn=True)

    forward = jax.jit(module.__call__)
    y = jax.block_until_ready(forward(x))           # (2, 8, 32, 32) NCHW

    assert y.shape == (N, C_OUT, 2 * H, 2 * W), y.shape
    assert bool(jnp.all(jnp.isfinite(y)))

    # Numerical self-check against a pure-XLA reference of the same math.
    y_ref = _reference_forward(module, x)
    max_err = float(jnp.max(jnp.abs(y - y_ref)))
    assert max_err < 2e-3, f"mismatch vs reference: {max_err}"

    print("KERNEL_OK")
</pallas_src>

<mosaic_0001>
module attributes {stable_mosaic.version = 11 : i64} {
  func.func @_conv_bias_prelu_kernel(%arg0: i32, %arg1: memref<1x34x40x128xf32, #tpu.memory_space<vmem>>, %arg2: memref<9x128x128xf32, #tpu.memory_space<vmem>>, %arg3: memref<1x128xf32, #tpu.memory_space<vmem>>, %arg4: memref<1xf32, #tpu.memory_space<smem>>, %arg5: memref<1x32x32x128xf32, #tpu.memory_space<vmem>>) attributes {dimension_semantics = [#tpu.dimension_semantics<parallel>], iteration_bounds = array<i64: 2>, scalar_prefetch = 0 : i64, scratch_operands = 0 : i64, tpu.core_type = #tpu.core_type<tc>, window_params = [{transform_indices = @transform_0, window_bounds = array<i64: 1, 34, 40, 128>}, {pipeline_mode = #tpu.pipeline_mode<synchronous>, transform_indices = @transform_1, window_bounds = array<i64: 9, 128, 128>}, {pipeline_mode = #tpu.pipeline_mode<synchronous>, transform_indices = @transform_2, window_bounds = array<i64: 1, 128>}, {transform_indices = @transform_3, window_bounds = array<i64: 1>}, {transform_indices = @transform_4, window_bounds = array<i64: 1, 32, 32, 128>}]} {
    %cst = arith.constant 0.000000e+00 : f32
    %0 = vector.broadcast %cst : f32 to vector<1024x128xf32>
    %c0 = arith.constant 0 : index
    %c0_0 = arith.constant 0 : index
    %c0_1 = arith.constant 0 : index
    %c0_2 = arith.constant 0 : index
    %1 = vector.load %arg1[%c0, %c0_0, %c0_1, %c0_2] : memref<1x34x40x128xf32, #tpu.memory_space<vmem>>, vector<1x32x40x128xf32>
    %2 = vector.shape_cast %1 : vector<1x32x40x128xf32> to vector<32x40x128xf32>
    %3 = vector.shape_cast %2 : vector<32x40x128xf32> to vector<1280x128xf32>
    %4 = vector.shape_cast %3 : vector<1280x128xf32> to vector<32x40x128xf32>
    %5 = vector.extract_strided_slice %4 {offsets = [0, 0, 0], sizes = [32, 32, 128], strides = [1, 1, 1]} : vector<32x40x128xf32> to vector<32x32x128xf32>
    %6 = vector.shape_cast %5 : vector<32x32x128xf32> to vector<1024x128xf32>
    %c0_3 = arith.constant 0 : index
    %c0_4 = arith.constant 0 : index
    %c0_5 = arith.constant 0 : index
    %7 = vector.load %arg2[%c0_3, %c0_4, %c0_5] : memref<9x128x128xf32, #tpu.memory_space<vmem>>, vector<1x128x128xf32>
    %8 = vector.shape_cast %7 : vector<1x128x128xf32> to vector<128x128xf32>
    %cst_6 = arith.constant dense<0.000000e+00> : vector<1024x128xf32>
    %9 = tpu.matmul %6, %8, %cst_6 {dimension_numbers = #tpu.dot_dimension_numbers<[1], [0], [0], [1], [0, 0, 1, 1], [], []>} : vector<1024x128xf32>, vector<128x128xf32>, vector<1024x128xf32> -> vector<1024x128xf32>
    %10 = arith.addf %0, %9 : vector<1024x128xf32>
    %c1279_i32 = arith.constant 1279 : i32
    %11 = tpu.dynamic_rotate %3 by %c1279_i32 dim 0 : vector<1280x128xf32>, i32 -> vector<1280x128xf32>
    %12 = vector.shape_cast %11 : vector<1280x128xf32> to vector<32x40x128xf32>
    %13 = vector.extract_strided_slice %12 {offsets = [0, 0, 0], sizes = [32, 32, 128], strides = [1, 1, 1]} : vector<32x40x128xf32> to vector<32x32x128xf32>
    %14 = vector.shape_cast %13 : vector<32x32x128xf32> to vector<1024x128xf32>
    %c1 = arith.constant 1 : index
    %c0_7 = arith.constant 0 : index
    %c0_8 = arith.constant 0 : index
    %15 = vector.load %arg2[%c1, %c0_7, %c0_8] : memref<9x128x128xf32, #tpu.memory_space<vmem>>, vector<1x128x128xf32>
    %16 = vector.shape_cast %15 : vector<1x128x128xf32> to vector<128x128xf32>
    %cst_9 = arith.constant dense<0.000000e+00> : vector<1024x128xf32>
    %17 = tpu.matmul %14, %16, %cst_9 {dimension_numbers = #tpu.dot_dimension_numbers<[1], [0], [0], [1], [0, 0, 1, 1], [], []>} : vector<1024x128xf32>, vector<128x128xf32>, vector<1024x128xf32> -> vector<1024x128xf32>
    %18 = arith.addf %10, %17 : vector<1024x128xf32>
    %c1278_i32 = arith.constant 1278 : i32
    %19 = tpu.dynamic_rotate %3 by %c1278_i32 dim 0 : vector<1280x128xf32>, i32 -> vector<1280x128xf32>
    %20 = vector.shape_cast %19 : vector<1280x128xf32> to vector<32x40x128xf32>
    %21 = vector.extract_strided_slice %20 {offsets = [0, 0, 0], sizes = [32, 32, 128], strides = [1, 1, 1]} : vector<32x40x128xf32> to vector<32x32x128xf32>
    %22 = vector.shape_cast %21 : vector<32x32x128xf32> to vector<1024x128xf32>
    %c2 = arith.constant 2 : index
    %c0_10 = arith.constant 0 : index
    %c0_11 = arith.constant 0 : index
    %23 = vector.load %arg2[%c2, %c0_10, %c0_11] : memref<9x128x128xf32, #tpu.memory_space<vmem>>, vector<1x128x128xf32>
    %24 = vector.shape_cast %23 : vector<1x128x128xf32> to vector<128x128xf32>
    %cst_12 = arith.constant dense<0.000000e+00> : vector<1024x128xf32>
    %25 = tpu.matmul %22, %24, %cst_12 {dimension_numbers = #tpu.dot_dimension_numbers<[1], [0], [0], [1], [0, 0, 1, 1], [], []>} : vector<1024x128xf32>, vector<128x128xf32>, vector<1024x128xf32> -> vector<1024x128xf32>
    %26 = arith.addf %18, %25 : vector<1024x128xf32>
    %c0_13 = arith.constant 0 : index
    %c1_14 = arith.constant 1 : index
    %c0_15 = arith.constant 0 : index
    %c0_16 = arith.constant 0 : index
    %27 = vector.load %arg1[%c0_13, %c1_14, %c0_15, %c0_16] : memref<1x34x40x128xf32, #tpu.memory_space<vmem>>, vector<1x32x40x128xf32>
    %28 = vector.shape_cast %27 : vector<1x32x40x128xf32> to vector<32x40x128xf32>
    %29 = vector.shape_cast %28 : vector<32x40x128xf32> to vector<1280x128xf32>
    %30 = vector.shape_cast %29 : vector<1280x128xf32> to vector<32x40x128xf32>
    %31 = vector.extract_strided_slice %30 {offsets = [0, 0, 0], sizes = [32, 32, 128], strides = [1, 1, 1]} : vector<32x40x128xf32> to vector<32x32x128xf32>
    %32 = vector.shape_cast %31 : vector<32x32x128xf32> to vector<1024x128xf32>
    %c3 = arith.constant 3 : index
    %c0_17 = arith.constant 0 : index
    %c0_18 = arith.constant 0 : index
    %33 = vector.load %arg2[%c3, %c0_17, %c0_18] : memref<9x128x128xf32, #tpu.memory_space<vmem>>, vector<1x128x128xf32>
    %34 = vector.shape_cast %33 : vector<1x128x128xf32> to vector<128x128xf32>
    %cst_19 = arith.constant dense<0.000000e+00> : vector<1024x128xf32>
    %35 = tpu.matmul %32, %34, %cst_19 {dimension_numbers = #tpu.dot_dimension_numbers<[1], [0], [0], [1], [0, 0, 1, 1], [], []>} : vector<1024x128xf32>, vector<128x128xf32>, vector<1024x128xf32> -> vector<1024x128xf32>
    %36 = arith.addf %26, %35 : vector<1024x128xf32>
    %c1279_i32_20 = arith.constant 1279 : i32
    %37 = tpu.dynamic_rotate %29 by %c1279_i32_20 dim 0 : vector<1280x128xf32>, i32 -> vector<1280x128xf32>
    %38 = vector.shape_cast %37 : vector<1280x128xf32> to vector<32x40x128xf32>
    %39 = vector.extract_strided_slice %38 {offsets = [0, 0, 0], sizes = [32, 32, 128], strides = [1, 1, 1]} : vector<32x40x128xf32> to vector<32x32x128xf32>
    %40 = vector.shape_cast %39 : vector<32x32x128xf32> to vector<1024x128xf32>
    %c4 = arith.constant 4 : index
    %c0_21 = arith.constant 0 : index
    %c0_22 = arith.constant 0 : index
    %41 = vector.load %arg2[%c4, %c0_21, %c0_22] : memref<9x128x128xf32, #tpu.memory_space<vmem>>, vector<1x128x128xf32>
    %42 = vector.shape_cast %41 : vector<1x128x128xf32> to vector<128x128xf32>
    %cst_23 = arith.constant dense<0.000000e+00> : vector<1024x128xf32>
    %43 = tpu.matmul %40, %42, %cst_23 {dimension_numbers = #tpu.dot_dimension_numbers<[1], [0], [0], [1], [0, 0, 1, 1], [], []>} : vector<1024x128xf32>, vector<128x128xf32>, vector<1024x128xf32> -> vector<1024x128xf32>
    %44 = arith.addf %36, %43 : vector<1024x128xf32>
    %c1278_i32_24 = arith.constant 1278 : i32
    %45 = tpu.dynamic_rotate %29 by %c1278_i32_24 dim 0 : vector<1280x128xf32>, i32 -> vector<1280x128xf32>
    %46 = vector.shape_cast %45 : vector<1280x128xf32> to vector<32x40x128xf32>
    %47 = vector.extract_strided_slice %46 {offsets = [0, 0, 0], sizes = [32, 32, 128], strides = [1, 1, 1]} : vector<32x40x128xf32> to vector<32x32x128xf32>
    %48 = vector.shape_cast %47 : vector<32x32x128xf32> to vector<1024x128xf32>
    %c5 = arith.constant 5 : index
    %c0_25 = arith.constant 0 : index
    %c0_26 = arith.constant 0 : index
    %49 = vector.load %arg2[%c5, %c0_25, %c0_26] : memref<9x128x128xf32, #tpu.memory_space<vmem>>, vector<1x128x128xf32>
    %50 = vector.shape_cast %49 : vector<1x128x128xf32> to vector<128x128xf32>
    %cst_27 = arith.constant dense<0.000000e+00> : vector<1024x128xf32>
    %51 = tpu.matmul %48, %50, %cst_27 {dimension_numbers = #tpu.dot_dimension_numbers<[1], [0], [0], [1], [0, 0, 1, 1], [], []>} : vector<1024x128xf32>, vector<128x128xf32>, vector<1024x128xf32> -> vector<1024x128xf32>
    %52 = arith.addf %44, %51 : vector<1024x128xf32>
    %c0_28 = arith.constant 0 : index
    %c2_29 = arith.constant 2 : index
    %c0_30 = arith.constant 0 : index
    %c0_31 = arith.constant 0 : index
    %53 = vector.load %arg1[%c0_28, %c2_29, %c0_30, %c0_31] : memref<1x34x40x128xf32, #tpu.memory_space<vmem>>, vector<1x32x40x128xf32>
    %54 = vector.shape_cast %53 : vector<1x32x40x128xf32> to vector<32x40x128xf32>
    %55 = vector.shape_cast %54 : vector<32x40x128xf32> to vector<1280x128xf32>
    %56 = vector.shape_cast %55 : vector<1280x128xf32> to vector<32x40x128xf32>
    %57 = vector.extract_strided_slice %56 {offsets = [0, 0, 0], sizes = [32, 32, 128], strides = [1, 1, 1]} : vector<32x40x128xf32> to vector<32x32x128xf32>
    %58 = vector.shape_cast %57 : vector<32x32x128xf32> to vector<1024x128xf32>
    %c6 = arith.constant 6 : index
    %c0_32 = arith.constant 0 : index
    %c0_33 = arith.constant 0 : index
    %59 = vector.load %arg2[%c6, %c0_32, %c0_33] : memref<9x128x128xf32, #tpu.memory_space<vmem>>, vector<1x128x128xf32>
    %60 = vector.shape_cast %59 : vector<1x128x128xf32> to vector<128x128xf32>
    %cst_34 = arith.constant dense<0.000000e+00> : vector<1024x128xf32>
    %61 = tpu.matmul %58, %60, %cst_34 {dimension_numbers = #tpu.dot_dimension_numbers<[1], [0], [0], [1], [0, 0, 1, 1], [], []>} : vector<1024x128xf32>, vector<128x128xf32>, vector<1024x128xf32> -> vector<1024x128xf32>
    %62 = arith.addf %52, %61 : vector<1024x128xf32>
    %c1279_i32_35 = arith.constant 1279 : i32
    %63 = tpu.dynamic_rotate %55 by %c1279_i32_35 dim 0 : vector<1280x128xf32>, i32 -> vector<1280x128xf32>
    %64 = vector.shape_cast %63 : vector<1280x128xf32> to vector<32x40x128xf32>
    %65 = vector.extract_strided_slice %64 {offsets = [0, 0, 0], sizes = [32, 32, 128], strides = [1, 1, 1]} : vector<32x40x128xf32> to vector<32x32x128xf32>
    %66 = vector.shape_cast %65 : vector<32x32x128xf32> to vector<1024x128xf32>
    %c7 = arith.constant 7 : index
    %c0_36 = arith.constant 0 : index
    %c0_37 = arith.constant 0 : index
    %67 = vector.load %arg2[%c7, %c0_36, %c0_37] : memref<9x128x128xf32, #tpu.memory_space<vmem>>, vector<1x128x128xf32>
    %68 = vector.shape_cast %67 : vector<1x128x128xf32> to vector<128x128xf32>
    %cst_38 = arith.constant dense<0.000000e+00> : vector<1024x128xf32>
    %69 = tpu.matmul %66, %68, %cst_38 {dimension_numbers = #tpu.dot_dimension_numbers<[1], [0], [0], [1], [0, 0, 1, 1], [], []>} : vector<1024x128xf32>, vector<128x128xf32>, vector<1024x128xf32> -> vector<1024x128xf32>
    %70 = arith.addf %62, %69 : vector<1024x128xf32>
    %c1278_i32_39 = arith.constant 1278 : i32
    %71 = tpu.dynamic_rotate %55 by %c1278_i32_39 dim 0 : vector<1280x128xf32>, i32 -> vector<1280x128xf32>
    %72 = vector.shape_cast %71 : vector<1280x128xf32> to vector<32x40x128xf32>
    %73 = vector.extract_strided_slice %72 {offsets = [0, 0, 0], sizes = [32, 32, 128], strides = [1, 1, 1]} : vector<32x40x128xf32> to vector<32x32x128xf32>
    %74 = vector.shape_cast %73 : vector<32x32x128xf32> to vector<1024x128xf32>
    %c8 = arith.constant 8 : index
    %c0_40 = arith.constant 0 : index
    %c0_41 = arith.constant 0 : index
    %75 = vector.load %arg2[%c8, %c0_40, %c0_41] : memref<9x128x128xf32, #tpu.memory_space<vmem>>, vector<1x128x128xf32>
    %76 = vector.shape_cast %75 : vector<1x128x128xf32> to vector<128x128xf32>
    %cst_42 = arith.constant dense<0.000000e+00> : vector<1024x128xf32>
    %77 = tpu.matmul %74, %76, %cst_42 {dimension_numbers = #tpu.dot_dimension_numbers<[1], [0], [0], [1], [0, 0, 1, 1], [], []>} : vector<1024x128xf32>, vector<128x128xf32>, vector<1024x128xf32> -> vector<1024x128xf32>
    %78 = arith.addf %70, %77 : vector<1024x128xf32>
    %c0_43 = arith.constant 0 : index
    %c0_44 = arith.constant 0 : index
    %79 = vector.load %arg3[%c0_43, %c0_44] : memref<1x128xf32, #tpu.memory_space<vmem>>, vector<1x128xf32>
    %80 = vector.shape_cast %79 : vector<1x128xf32> to vector<128xf32>
    %81 = vector.shape_cast %80 : vector<128xf32> to vector<1x128xf32>
    %82 = vector.broadcast %81 : vector<1x128xf32> to vector<1024x128xf32>
    %83 = arith.addf %78, %82 : vector<1024x128xf32>
    %c0_45 = arith.constant 0 : index
    %84 = memref.load %arg4[%c0_45] : memref<1xf32, #tpu.memory_space<smem>>
    %cst_46 = arith.constant 0.000000e+00 : f32
    %85 = vector.broadcast %cst_46 : f32 to vector<1024x128xf32>
    %86 = arith.cmpf ogt, %83, %85 : vector<1024x128xf32>
    %87 = vector.broadcast %84 : f32 to vector<1024x128xf32>
    %88 = arith.mulf %87, %83 : vector<1024x128xf32>
    %89 = arith.select %86, %83, %88 : vector<1024x128xi1>, vector<1024x128xf32>
    %90 = vector.shape_cast %89 : vector<1024x128xf32> to vector<32x32x128xf32>
    %c0_47 = arith.constant 0 : index
    %c0_48 = arith.constant 0 : index
    %c0_49 = arith.constant 0 : index
    %c0_50 = arith.constant 0 : index
    %91 = vector.load %arg5[%c0_47, %c0_48, %c0_49, %c0_50] : memref<1x32x32x128xf32, #tpu.memory_space<vmem>>, vector<1x32x32x128xf32>
    %92 = vector.shape_cast %91 : vector<1x32x32x128xf32> to vector<32x32x128xf32>
    %93 = vector.shape_cast %90 : vector<32x32x128xf32> to vector<1x32x32x128xf32>
    tpu.vector_store %arg5[%c0_47, %c0_48, %c0_49, %c0_50], %93 {strides = array<i32>} : memref<1x32x32x128xf32, #tpu.memory_space<vmem>>, vector<1x32x32x128xf32>,
    return
  }
  func.func @transform_0(%arg0: i32) -> (i32, i32, i32, i32) {
    %c0_i32 = arith.constant 0 : i32
    %c0_i32_0 = arith.constant 0 : i32
    %c0_i32_1 = arith.constant 0 : i32
    %c0_i32_2 = arith.constant 0 : i32
    return %arg0, %c0_i32, %c0_i32_0, %c0_i32_1 : i32, i32, i32, i32
  }
  func.func @transform_1(%arg0: i32) -> (i32, i32, i32) {
    %c0_i32 = arith.constant 0 : i32
    %c0_i32_0 = arith.constant 0 : i32
    %c0_i32_1 = arith.constant 0 : i32
    %c0_i32_2 = arith.constant 0 : i32
    return %c0_i32, %c0_i32_0, %c0_i32_1 : i32, i32, i32
  }
  func.func @transform_2(%arg0: i32) -> (i32, i32) {
    %c0_i32 = arith.constant 0 : i32
    %c0_i32_0 = arith.constant 0 : i32
    %c0_i32_1 = arith.constant 0 : i32
    return %c0_i32, %c0_i32_0 : i32, i32
  }
  func.func @transform_3(%arg0: i32) -> i32 {
    %c0_i32 = arith.constant 0 : i32
    %c0_i32_0 = arith.constant 0 : i32
    return %c0_i32 : i32
  }
  func.func @transform_4(%arg0: i32) -> (i32, i32, i32, i32) {
    %c0_i32 = arith.constant 0 : i32
    %c0_i32_0 = arith.constant 0 : i32
    %c0_i32_1 = arith.constant 0 : i32
    %c0_i32_2 = arith.constant 0 : i32
    return %arg0, %c0_i32, %c0_i32_0, %c0_i32_1 : i32, i32, i32, i32
  }
}

</mosaic_0001>

<llo_original>
// kernel: a_call__.1
$region0: #{a_call__.1}
  #allocation0 [shape = 'u32[]', space=smem, size = 0x4, offset = 0x4, fixed_abs, tag = 'smem constant byte address 0x4 - core index']
  #allocation1 [shape = 'u32[144,128]{1,0:T(1,128)}', space=vmem, size = 0x12000, scoped, tag = 'internal scratch']
  #allocation2 [shape = 'f32[1]{0:T(128)S(6)}', space=smem, size = 0x200, scoped, tag = 'scoped memory for a_call__.1']
  %s0 = inlined_call_operand.vmem [shape: f32[2,34,40,128], index: 0, kind: input, shape index: {}]
  %s1 = inlined_call_operand.vmem [shape: f32[9,128,128], index: 1, kind: input, shape index: {}]
  %s2 = inlined_call_operand.vmem [shape: f32[1,128], index: 2, kind: input, shape index: {}]
  %s3 = inlined_call_operand.<no memory space> [shape: f32[1], index: 3, kind: input, shape index: {}]
  %s4 = inlined_call_operand.vmem [shape: f32[2,32,32,128], index: 4, kind: output, shape index: {}]
  %s5 = sld [smem:[#allocation0]]
  $region49: #{a_call__.1} parent=0
    _
  %s7 = ssub.s32 1, %s5
  %s8 = scalar_select 0, %s7, %s5
  %9 = sst [smem:[#allocation2]] %s3
  loop: start=0, step=1, limit=4
  $region2: #{a_call__.1} parent=0 // loop_pre_header
    _
  $region3: #{a_call__.1} parent=0 // loop_header
    %s11 = sphi 0, %s15
    %p12 = scmp.ge.s32.totalorder %s11, 4
    %s21 = sphi 0, %s23
    %s24 = sphi 0, %s21
    %s25 = sphi 0, %s24
    %s41 = sphi 0, %s25
    %s45 = sphi 0, %s45
    %s47 = sphi 0, %s45
    %s48 = sphi 0, %s47
    %s62 = sphi 0, %s48
    %s66 = sphi 0, %s66
    %s68 = sphi 0, %s66
    %s69 = sphi 0, %s68
    %s83 = sphi 0, %s69
    %s87 = sphi 0, %s87
    %s89 = sphi 0, %s87
    %s90 = sphi 0, %s89
    %s104 = sphi 0, %s90
    %s110 = sphi 0, %s112
    %s113 = sphi 0, %s110
    %s114 = sphi 0, %s113
    %s130 = sphi 0, %s114
  $region4: #{a_call__.1} parent=0 // loop_header_branch
    %14 = sbr.rel (%p12) target = $region8
  $region5: #{a_call__.1} parent=0 // loop_body
    %s16 = ssub.s32 %s11, 1
    %s17 = ssub.s32 %s11, 2
    %s18 = sadd.s32 %s11, 1
    %s19 = ssub.s32 %s11, %s18
    %p20 = scmp.eq.s32.totalorder %s19, 0
    %s22 = sadd.s32 %s21, 1
    %s23 = scalar_select %p20, %s21, %s22
    %p26 = pneg %p20
    %p27 = scmp.eq.s32.totalorder %s11, 1
    %p28 = por %p26, %p27
    %p29 = scmp.ne.s32.totalorder %s21, %s24
    %p30 = scmp.eq.s32.totalorder %s11, 0
    %p31 = por %p29, %p30
    %p32 = scmp.ne.s32.totalorder %s21, %s24
    %p33 = scmp.eq.s32.totalorder %s16, 1
    %p34 = por %p32, %p33
    %p35 = scmp.ne.s32.totalorder %s24, %s25
    %p36 = scmp.eq.s32.totalorder %s16, 0
    %p37 = por %p35, %p36
    %p38 = scmp.ne.s32.totalorder %s24, %s25
    %p39 = scmp.eq.s32.totalorder %s17, 1
    %p40 = por %p38, %p39
    %p42 = scmp.ne.s32.totalorder %s25, %s41
    %p43 = scmp.eq.s32.totalorder %s17, 0
    %p44 = por %p42, %p43
    %s46 = sadd.s32 %s45, 1
    %p49 = scmp.eq.s32.totalorder %s11, 1
    %p50 = scmp.ne.s32.totalorder %s45, %s47
    %p51 = scmp.eq.s32.totalorder %s11, 0
    %p52 = por %p50, %p51
    %p53 = scmp.ne.s32.totalorder %s45, %s47
    %p54 = scmp.eq.s32.totalorder %s16, 1
    %p55 = por %p53, %p54
    %p56 = scmp.ne.s32.totalorder %s47, %s48
    %p57 = scmp.eq.s32.totalorder %s16, 0
    %p58 = por %p56, %p57
    %p59 = scmp.ne.s32.totalorder %s47, %s48
    %p60 = scmp.eq.s32.totalorder %s17, 1
    %p61 = por %p59, %p60
    %p63 = scmp.ne.s32.totalorder %s48, %s62
    %p64 = scmp.eq.s32.totalorder %s17, 0
    %p65 = por %p63, %p64
    %s67 = sadd.s32 %s66, 1
    %p70 = scmp.eq.s32.totalorder %s11, 1
    %p71 = scmp.ne.s32.totalorder %s66, %s68
    %p72 = scmp.eq.s32.totalorder %s11, 0
    %p73 = por %p71, %p72
    %p74 = scmp.ne.s32.totalorder %s66, %s68
    %p75 = scmp.eq.s32.totalorder %s16, 1
    %p76 = por %p74, %p75
    %p77 = scmp.ne.s32.totalorder %s68, %s69
    %p78 = scmp.eq.s32.totalorder %s16, 0
    %p79 = por %p77, %p78
    %p80 = scmp.ne.s32.totalorder %s68, %s69
    %p81 = scmp.eq.s32.totalorder %s17, 1
    %p82 = por %p80, %p81
    %p84 = scmp.ne.s32.totalorder %s69, %s83
    %p85 = scmp.eq.s32.totalorder %s17, 0
    %p86 = por %p84, %p85
    %s88 = sadd.s32 %s87, 1
    %p91 = scmp.eq.s32.totalorder %s11, 1
    %p92 = scmp.ne.s32.totalorder %s87, %s89
    %p93 = scmp.eq.s32.totalorder %s11, 0
    %p94 = por %p92, %p93
    %p95 = scmp.ne.s32.totalorder %s87, %s89
    %p96 = scmp.eq.s32.totalorder %s16, 1
    %p97 = por %p95, %p96
    %p98 = scmp.ne.s32.totalorder %s89, %s90
    %p99 = scmp.eq.s32.totalorder %s16, 0
    %p100 = por %p98, %p99
    %p101 = scmp.ne.s32.totalorder %s89, %s90
    %p102 = scmp.eq.s32.totalorder %s17, 1
    %p103 = por %p101, %p102
    %p105 = scmp.ne.s32.totalorder %s90, %s104
    %p106 = scmp.eq.s32.totalorder %s17, 0
    %p107 = por %p105, %p106
    %s108 = ssub.s32 %s11, %s18
    %p109 = scmp.eq.s32.totalorder %s108, 0
    %s111 = sadd.s32 %s110, 1
    %s112 = scalar_select %p109, %s110, %s111
    %p115 = pneg %p109
    %p116 = scmp.eq.s32.totalorder %s11, 1
    %p117 = por %p115, %p116
    %p118 = scmp.ne.s32.totalorder %s110, %s113
    %p119 = scmp.eq.s32.totalorder %s11, 0
    %p120 = por %p118, %p119
    %p121 = scmp.ne.s32.totalorder %s110, %s113
    %p122 = scmp.eq.s32.totalorder %s16, 1
    %p123 = por %p121, %p122
    %p124 = scmp.ne.s32.totalorder %s113, %s114
    %p125 = scmp.eq.s32.totalorder %s16, 0
    %p126 = por %p124, %p125
    %p127 = scmp.ne.s32.totalorder %s113, %s114
    %p128 = scmp.eq.s32.totalorder %s17, 1
    %p129 = por %p127, %p128
    %p131 = scmp.ne.s32.totalorder %s114, %s130
    %p132 = scmp.eq.s32.totalorder %s17, 0
    %p133 = por %p131, %p132
    %p134 = scmp.le.s32.totalorder 1, %s11
    %p135 = scmp.lt.s32.totalorder %s11, 3
    %p136 = pnand %p134, %p135
    %p137 = pneg %p136
    // Predicated region
    $region9: #{a_call__.1} parent=5 // pred_check
      _
    $region10: #{a_call__.1} parent=5 // pred_check_branch
      %139 = sbr.rel (%p136) target = $region12
    $region11: #{a_call__.1} parent=5 // pred_region
      %s140 = ssub.s32 %s11, 1
      // Predicated region
      $region13: #{a_call__.1} parent=11 // pred_check
        %p141 = pneg %p58
      $region14: #{a_call__.1} parent=11 // pred_check_branch
        %143 = sbr.rel (%p141) target = $region16
      $region15: #{a_call__.1} parent=11 // pred_region
        _
      $region16: #{a_call__.1} parent=11 // pred_fallthru
        _
      // Predicated region
      $region17: #{a_call__.1} parent=11 // pred_check
        %p144 = pneg %p79
      $region18: #{a_call__.1} parent=11 // pred_check_branch
        %146 = sbr.rel (%p144) target = $region20
      $region19: #{a_call__.1} parent=11 // pred_region
        _
      $region20: #{a_call__.1} parent=11 // pred_fallthru
        _
      // Predicated region
      $region21: #{a_call__.1} parent=11 // pred_check
        %p147 = pneg %p100
      $region22: #{a_call__.1} parent=11 // pred_check_branch
        %149 = sbr.rel (%p147) target = $region24
      $region23: #{a_call__.1} parent=11 // pred_region
        _
      $region24: #{a_call__.1} parent=11 // pred_fallthru
        _
    $region12: #{a_call__.1} parent=5 // pred_fallthru
      _
    %p150 = scmp.lt.s32.totalorder %s11, 2
    // Predicated region
    $region25: #{a_call__.1} parent=5 // pred_check
      %p151 = pneg %p150
    $region26: #{a_call__.1} parent=5 // pred_check_branch
      %153 = sbr.rel (%p151) target = $region28
    $region27: #{a_call__.1} parent=5 // pred_region
      // Predicated region
      $region29: #{a_call__.1} parent=27 // pred_check
        %p154 = pneg %p31
      $region30: #{a_call__.1} parent=27 // pred_check_branch
        %156 = sbr.rel (%p154) target = $region32
      $region31: #{a_call__.1} parent=27 // pred_region
        %p157 = scmp.lt.s32.totalorder %s11, 1
        %s158 = scalar_select %p157, %s11, 1
        %s159 = smul.addr %s158, 170
        %s160 = smul.addr %s159, 8
        %s161 = scalar_lea.vmem %s0, %s160
      $region32: #{a_call__.1} parent=27 // pred_fallthru
        _
    $region28: #{a_call__.1} parent=5 // pred_fallthru
      _
    %p162 = scmp.le.s32.totalorder 1, %s11
    %p163 = scmp.lt.s32.totalorder %s11, 3
    %p164 = pnand %p162, %p163
    %p165 = pneg %p164
    // Predicated region
    $region33: #{a_call__.1} parent=5 // pred_check
      _
    $region34: #{a_call__.1} parent=5 // pred_check_branch
      %167 = sbr.rel (%p164) target = $region36
    $region35: #{a_call__.1} parent=5 // pred_region
      %s168 = ssub.s32 %s11, 1
      %p169 = scmp.lt.s32.totalorder %s16, 1
      %s170 = scalar_select %p169, %s16, 1
      %s171 = smul.addr %s170, 170
      %s172 = smul.addr %s171, 8
      %s173 = scalar_lea.vmem %s0, %s172
      %p174 = pneg %p37
      %p175 = pneg %p34
      %p176 = pneg %p58
      %p177 = pneg %p55
      %p178 = pneg %p79
      %p179 = pneg %p76
      %p180 = pneg %p100
      %p181 = pneg %p97
      %p182 = pneg %p126
      %p183 = pneg %p123
      %p184 = scmp.lt.s32.totalorder %s16, 1
      %s185 = scalar_select %p184, %s16, 1
      %s186 = smul.addr %s185, 128
      %s187 = smul.addr %s186, 8
      %s188 = scalar_lea.vmem %s4, %s187
      %p189 = scmp.lt.s32.totalorder %s16, 1
      %s190 = scalar_select %p189, %s16, 1
      %s191 = smul.addr %s190, 170
      %s192 = smul.addr %s191, 8
      %s193 = scalar_lea.vmem %s0, %s192
      %p194 = scmp.lt.s32.totalorder %s16, 1
      %s195 = scalar_select %p194, %s16, 1
      %s196 = smul.addr %s195, 128
      %s197 = smul.addr %s196, 8
      %s198 = scalar_lea.vmem %s4, %s197
      %v199 = vld [vmem:[%s193] sm:$0xff]
      %v200 = vld [vmem:[%s193 + $0x8] sm:$0xff]
      %v201 = vld [vmem:[%s193 + $0x10] sm:$0xff]
      %v202 = vld [vmem:[%s193 + $0x18] sm:$0xff]
      %v203 = vld [vmem:[%s193 + $0x20] sm:$0xff]
      %v204 = vld [vmem:[%s193 + $0x28] sm:$0xff]
      %v205 = vld [vmem:[%s193 + $0x30] sm:$0xff]
      %v206 = vld [vmem:[%s193 + $0x38] sm:$0xff]
      %v207 = vld [vmem:[%s193 + $0x40] sm:$0xff]
      %v208 = vld [vmem:[%s193 + $0x48] sm:$0xff]
      %v209 = vld [vmem:[%s193 + $0x50] sm:$0xff]
      %v210 = vld [vmem:[%s193 + $0x58] sm:$0xff]
      %v211 = vld [vmem:[%s193 + $0x60] sm:$0xff]
      %v212 = vld [vmem:[%s193 + $0x68] sm:$0xff]
      %v213 = vld [vmem:[%s193 + $0x70] sm:$0xff]
      %v214 = vld [vmem:[%s193 + $0x78] sm:$0xff]
      %v215 = vld [vmem:[%s193 + $0x80] sm:$0xff]
      %v216 = vld [vmem:[%s193 + $0x88] sm:$0xff]
      %v217 = vld [vmem:[%s193 + $0x90] sm:$0xff]
      %v218 = vld [vmem:[%s193 + $0x98] sm:$0xff]
      %v219 = vld [vmem:[%s193 + $0xa0] sm:$0xff]
      %v220 = vld [vmem:[%s193 + $0xa8] sm:$0xff]
      %v221 = vld [vmem:[%s193 + $0xb0] sm:$0xff]
      %v222 = vld [vmem:[%s193 + $0xb8] sm:$0xff]
      %v223 = vld [vmem:[%s193 + $0xc0] sm:$0xff]
      %v224 = vld [vmem:[%s193 + $0xc8] sm:$0xff]
      %v225 = vld [vmem:[%s193 + $0xd0] sm:$0xff]
      %v226 = vld [vmem:[%s193 + $0xd8] sm:$0xff]
      %v227 = vld [vmem:[%s193 + $0xe0] sm:$0xff]
      %v228 = vld [vmem:[%s193 + $0xe8] sm:$0xff]
      %v229 = vld [vmem:[%s193 + $0xf0] sm:$0xff]
      %v230 = vld [vmem:[%s193 + $0xf8] sm:$0xff]
      %v231 = vld [vmem:[%s193 + $0x100] sm:$0xff]
      %v232 = vld [vmem:[%s193 + $0x108] sm:$0xff]
      %v233 = vld [vmem:[%s193 + $0x110] sm:$0xff]
      %v234 = vld [vmem:[%s193 + $0x118] sm:$0xff]
      %v235 = vld [vmem:[%s193 + $0x120] sm:$0xff]
      %v236 = vld [vmem:[%s193 + $0x128] sm:$0xff]
      %v237 = vld [vmem:[%s193 + $0x130] sm:$0xff]
      %v238 = vld [vmem:[%s193 + $0x138] sm:$0xff]
      %v239 = vld [vmem:[%s193 + $0x140] sm:$0xff]
      %v240 = vld [vmem:[%s193 + $0x148] sm:$0xff]
      %v241 = vld [vmem:[%s193 + $0x150] sm:$0xff]
      %v242 = vld [vmem:[%s193 + $0x158] sm:$0xff]
      %v243 = vld [vmem:[%s193 + $0x160] sm:$0xff]
      %v244 = vld [vmem:[%s193 + $0x168] sm:$0xff]
      %v245 = vld [vmem:[%s193 + $0x170] sm:$0xff]
      %v246 = vld [vmem:[%s193 + $0x178] sm:$0xff]
      %v247 = vld [vmem:[%s193 + $0x180] sm:$0xff]
      %v248 = vld [vmem:[%s193 + $0x188] sm:$0xff]
      %v249 = vld [vmem:[%s193 + $0x190] sm:$0xff]
      %v250 = vld [vmem:[%s193 + $0x198] sm:$0xff]
      %v251 = vld [vmem:[%s193 + $0x1a0] sm:$0xff]
      %v252 = vld [vmem:[%s193 + $0x1a8] sm:$0xff]
      %v253 = vld [vmem:[%s193 + $0x1b0] sm:$0xff]
      %v254 = vld [vmem:[%s193 + $0x1b8] sm:$0xff]
      %v255 = vld [vmem:[%s193 + $0x1c0] sm:$0xff]
      %v256 = vld [vmem:[%s193 + $0x1c8] sm:$0xff]
      %v257 = vld [vmem:[%s193 + $0x1d0] sm:$0xff]
      %v258 = vld [vmem:[%s193 + $0x1d8] sm:$0xff]
      %v259 = vld [vmem:[%s193 + $0x1e0] sm:$0xff]
      %v260 = vld [vmem:[%s193 + $0x1e8] sm:$0xff]
      %v261 = vld [vmem:[%s193 + $0x1f0] sm:$0xff]
      %v262 = vld [vmem:[%s193 + $0x1f8] sm:$0xff]
      %v263 = vld [vmem:[%s193 + $0x200] sm:$0xff]
      %v264 = vld [vmem:[%s193 + $0x208] sm:$0xff]
      %v265 = vld [vmem:[%s193 + $0x210] sm:$0xff]
      %v266 = vld [vmem:[%s193 + $0x218] sm:$0xff]
      %v267 = vld [vmem:[%s193 + $0x220] sm:$0xff]
      %v268 = vld [vmem:[%s193 + $0x228] sm:$0xff]
      %v269 = vld [vmem:[%s193 + $0x230] sm:$0xff]
      %v270 = vld [vmem:[%s193 + $0x238] sm:$0xff]
      %v271 = vld [vmem:[%s193 + $0x240] sm:$0xff]
      %v272 = vld [vmem:[%s193 + $0x248] sm:$0xff]
      %v273 = vld [vmem:[%s193 + $0x250] sm:$0xff]
      %v274 = vld [vmem:[%s193 + $0x258] sm:$0xff]
      %v275 = vld [vmem:[%s193 + $0x260] sm:$0xff]
      %v276 = vld [vmem:[%s193 + $0x268] sm:$0xff]
      %v277 = vld [vmem:[%s193 + $0x270] sm:$0xff]
      %v278 = vld [vmem:[%s193 + $0x278] sm:$0xff]
      %v279 = vld [vmem:[%s193 + $0x280] sm:$0xff]
      %v280 = vld [vmem:[%s193 + $0x288] sm:$0xff]
      %v281 = vld [vmem:[%s193 + $0x290] sm:$0xff]
      %v282 = vld [vmem:[%s193 + $0x298] sm:$0xff]
      %v283 = vld [vmem:[%s193 + $0x2a0] sm:$0xff]
      %v284 = vld [vmem:[%s193 + $0x2a8] sm:$0xff]
      %v285 = vld [vmem:[%s193 + $0x2b0] sm:$0xff]
      %v286 = vld [vmem:[%s193 + $0x2b8] sm:$0xff]
      %v287 = vld [vmem:[%s193 + $0x2c0] sm:$0xff]
      %v288 = vld [vmem:[%s193 + $0x2c8] sm:$0xff]
      %v289 = vld [vmem:[%s193 + $0x2d0] sm:$0xff]
      %v290 = vld [vmem:[%s193 + $0x2d8] sm:$0xff]
      %v291 = vld [vmem:[%s193 + $0x2e0] sm:$0xff]
      %v292 = vld [vmem:[%s193 + $0x2e8] sm:$0xff]
      %v293 = vld [vmem:[%s193 + $0x2f0] sm:$0xff]
      %v294 = vld [vmem:[%s193 + $0x2f8] sm:$0xff]
      %v295 = vld [vmem:[%s193 + $0x300] sm:$0xff]
      %v296 = vld [vmem:[%s193 + $0x308] sm:$0xff]
      %v297 = vld [vmem:[%s193 + $0x310] sm:$0xff]
      %v298 = vld [vmem:[%s193 + $0x318] sm:$0xff]
      %v299 = vld [vmem:[%s193 + $0x320] sm:$0xff]
      %v300 = vld [vmem:[%s193 + $0x328] sm:$0xff]
      %v301 = vld [vmem:[%s193 + $0x330] sm:$0xff]
      %v302 = vld [vmem:[%s193 + $0x338] sm:$0xff]
      %v303 = vld [vmem:[%s193 + $0x340] sm:$0xff]
      %v304 = vld [vmem:[%s193 + $0x348] sm:$0xff]
      %v305 = vld [vmem:[%s193 + $0x350] sm:$0xff]
      %v306 = vld [vmem:[%s193 + $0x358] sm:$0xff]
      %v307 = vld [vmem:[%s193 + $0x360] sm:$0xff]
      %v308 = vld [vmem:[%s193 + $0x368] sm:$0xff]
      %v309 = vld [vmem:[%s193 + $0x370] sm:$0xff]
      %v310 = vld [vmem:[%s193 + $0x378] sm:$0xff]
      %v311 = vld [vmem:[%s193 + $0x380] sm:$0xff]
      %v312 = vld [vmem:[%s193 + $0x388] sm:$0xff]
      %v313 = vld [vmem:[%s193 + $0x390] sm:$0xff]
      %v314 = vld [vmem:[%s193 + $0x398] sm:$0xff]
      %v315 = vld [vmem:[%s193 + $0x3a0] sm:$0xff]
      %v316 = vld [vmem:[%s193 + $0x3a8] sm:$0xff]
      %v317 = vld [vmem:[%s193 + $0x3b0] sm:$0xff]
      %v318 = vld [vmem:[%s193 + $0x3b8] sm:$0xff]
      %v319 = vld [vmem:[%s193 + $0x3c0] sm:$0xff]
      %v320 = vld [vmem:[%s193 + $0x3c8] sm:$0xff]
      %v321 = vld [vmem:[%s193 + $0x3d0] sm:$0xff]
      %v322 = vld [vmem:[%s193 + $0x3d8] sm:$0xff]
      %v323 = vld [vmem:[%s193 + $0x3e0] sm:$0xff]
      %v324 = vld [vmem:[%s193 + $0x3e8] sm:$0xff]
      %v325 = vld [vmem:[%s193 + $0x3f0] sm:$0xff]
      %v326 = vld [vmem:[%s193 + $0x3f8] sm:$0xff]
      %v327 = vld [vmem:[%s193 + $0x400] sm:$0xff]
      %v328 = vld [vmem:[%s193 + $0x408] sm:$0xff]
      %v329 = vld [vmem:[%s193 + $0x410] sm:$0xff]
      %v330 = vld [vmem:[%s193 + $0x418] sm:$0xff]
      %v331 = vld [vmem:[%s193 + $0x420] sm:$0xff]
      %v332 = vld [vmem:[%s193 + $0x428] sm:$0xff]
      %v333 = vld [vmem:[%s193 + $0x430] sm:$0xff]
      %v334 = vld [vmem:[%s193 + $0x438] sm:$0xff]
      %v335 = vld [vmem:[%s193 + $0x440] sm:$0xff]
      %v336 = vld [vmem:[%s193 + $0x448] sm:$0xff]
      %v337 = vld [vmem:[%s193 + $0x450] sm:$0xff]
      %v338 = vld [vmem:[%s193 + $0x458] sm:$0xff]
      %v339 = vld [vmem:[%s193 + $0x460] sm:$0xff]
      %v340 = vld [vmem:[%s193 + $0x468] sm:$0xff]
      %v341 = vld [vmem:[%s193 + $0x470] sm:$0xff]
      %v342 = vld [vmem:[%s193 + $0x478] sm:$0xff]
      %v343 = vld [vmem:[%s193 + $0x480] sm:$0xff]
      %v344 = vld [vmem:[%s193 + $0x488] sm:$0xff]
      %v345 = vld [vmem:[%s193 + $0x490] sm:$0xff]
      %v346 = vld [vmem:[%s193 + $0x498] sm:$0xff]
      %v347 = vld [vmem:[%s193 + $0x4a0] sm:$0xff]
      %v348 = vld [vmem:[%s193 + $0x4a8] sm:$0xff]
      %v349 = vld [vmem:[%s193 + $0x4b0] sm:$0xff]
      %v350 = vld [vmem:[%s193 + $0x4b8] sm:$0xff]
      %v351 = vld [vmem:[%s193 + $0x4c0] sm:$0xff]
      %v352 = vld [vmem:[%s193 + $0x4c8] sm:$0xff]
      %v353 = vld [vmem:[%s193 + $0x4d0] sm:$0xff]
      %v354 = vld [vmem:[%s193 + $0x4d8] sm:$0xff]
      %v355 = vld [vmem:[%s193 + $0x4e0] sm:$0xff]
      %v356 = vld [vmem:[%s193 + $0x4e8] sm:$0xff]
      %v357 = vld [vmem:[%s193 + $0x4f0] sm:$0xff]
      %v358 = vld [vmem:[%s193 + $0x4f8] sm:$0xff]
      %v359 = vld [vmem:[%s1] sm:$0xff]
      %v360 = vld [vmem:[%s1 + $0x8] sm:$0xff]
      %v361 = vld [vmem:[%s1 + $0x10] sm:$0xff]
      %v362 = vld [vmem:[%s1 + $0x18] sm:$0xff]
      %v363 = vld [vmem:[%s1 + $0x20] sm:$0xff]
      %v364 = vld [vmem:[%s1 + $0x28] sm:$0xff]
      %v365 = vld [vmem:[%s1 + $0x30] sm:$0xff]
      %v366 = vld [vmem:[%s1 + $0x38] sm:$0xff]
      %v367 = vld [vmem:[%s1 + $0x40] sm:$0xff]
      %v368 = vld [vmem:[%s1 + $0x48] sm:$0xff]
      %v369 = vld [vmem:[%s1 + $0x50] sm:$0xff]
      %v370 = vld [vmem:[%s1 + $0x58] sm:$0xff]
      %v371 = vld [vmem:[%s1 + $0x60] sm:$0xff]
      %v372 = vld [vmem:[%s1 + $0x68] sm:$0xff]
      %v373 = vld [vmem:[%s1 + $0x70] sm:$0xff]
      %v374 = vld [vmem:[%s1 + $0x78] sm:$0xff]
      %v375 = vrot.slane %v199, 1
      %v376 = vrot.slane %v200, 1
      %v377 = vrot.slane %v201, 1
      %v378 = vrot.slane %v202, 1
      %v379 = vrot.slane %v203, 1
      %v380 = vrot.slane %v204, 1
      %v381 = vrot.slane %v205, 1
      %v382 = vrot.slane %v206, 1
      %v383 = vrot.slane %v207, 1
      %v384 = vrot.slane %v208, 1
      %v385 = vrot.slane %v209, 1
      %v386 = vrot.slane %v210, 1
      %v387 = vrot.slane %v211, 1
      %v388 = vrot.slane %v212, 1
      %v389 = vrot.slane %v213, 1
      %v390 = vrot.slane %v214, 1
      %v391 = vrot.slane %v215, 1
      %v392 = vrot.slane %v216, 1
      %v393 = vrot.slane %v217, 1
      %v394 = vrot.slane %v218, 1
      %v395 = vrot.slane %v219, 1
      %v396 = vrot.slane %v220, 1
      %v397 = vrot.slane %v221, 1
      %v398 = vrot.slane %v222, 1
      %v399 = vrot.slane %v223, 1
      %v400 = vrot.slane %v224, 1
      %v401 = vrot.slane %v225, 1
      %v402 = vrot.slane %v226, 1
      %v403 = vrot.slane %v227, 1
      %v404 = vrot.slane %v228, 1
      %v405 = vrot.slane %v229, 1
      %v406 = vrot.slane %v230, 1
      %v407 = vrot.slane %v231, 1
      %v408 = vrot.slane %v232, 1
      %v409 = vrot.slane %v233, 1
      %v410 = vrot.slane %v234, 1
      %v411 = vrot.slane %v235, 1
      %v412 = vrot.slane %v236, 1
      %v413 = vrot.slane %v237, 1
      %v414 = vrot.slane %v238, 1
      %v415 = vrot.slane %v239, 1
      %v416 = vrot.slane %v240, 1
      %v417 = vrot.slane %v241, 1
      %v418 = vrot.slane %v242, 1
      %v419 = vrot.slane %v243, 1
      %v420 = vrot.slane %v244, 1
      %v421 = vrot.slane %v245, 1
      %v422 = vrot.slane %v246, 1
      %v423 = vrot.slane %v247, 1
      %v424 = vrot.slane %v248, 1
      %v425 = vrot.slane %v249, 1
      %v426 = vrot.slane %v250, 1
      %v427 = vrot.slane %v251, 1
      %v428 = vrot.slane %v252, 1
      %v429 = vrot.slane %v253, 1
      %v430 = vrot.slane %v254, 1
      %v431 = vrot.slane %v255, 1
      %v432 = vrot.slane %v256, 1
      %v433 = vrot.slane %v257, 1
      %v434 = vrot.slane %v258, 1
      %v435 = vrot.slane %v259, 1
      %v436 = vrot.slane %v260, 1
      %v437 = vrot.slane %v261, 1
      %v438 = vrot.slane %v262, 1
      %v439 = vrot.slane %v263, 1
      %v440 = vrot.slane %v264, 1
      %v441 = vrot.slane %v265, 1
      %v442 = vrot.slane %v266, 1
      %v443 = vrot.slane %v267, 1
      %v444 = vrot.slane %v268, 1
      %v445 = vrot.slane %v269, 1
      %v446 = vrot.slane %v270, 1
      %v447 = vrot.slane %v271, 1
      %v448 = vrot.slane %v272, 1
      %v449 = vrot.slane %v273, 1
      %v450 = vrot.slane %v274, 1
      %v451 = vrot.slane %v275, 1
      %v452 = vrot.slane %v276, 1
      %v453 = vrot.slane %v277, 1
      %v454 = vrot.slane %v278, 1
      %v455 = vrot.slane %v279, 1
      %v456 = vrot.slane %v280, 1
      %v457 = vrot.slane %v281, 1
      %v458 = vrot.slane %v282, 1
      %v459 = vrot.slane %v283, 1
      %v460 = vrot.slane %v284, 1
      %v461 = vrot.slane %v285, 1
      %v462 = vrot.slane %v286, 1
      %v463 = vrot.slane %v287, 1
      %v464 = vrot.slane %v288, 1
      %v465 = vrot.slane %v289, 1
      %v466 = vrot.slane %v290, 1
      %v467 = vrot.slane %v291, 1
      %v468 = vrot.slane %v292, 1
      %v469 = vrot.slane %v293, 1
      %v470 = vrot.slane %v294, 1
      %v471 = vrot.slane %v295, 1
      %v472 = vrot.slane %v296, 1
      %v473 = vrot.slane %v297, 1
      %v474 = vrot.slane %v298, 1
      %v475 = vrot.slane %v299, 1
      %v476 = vrot.slane %v300, 1
      %v477 = vrot.slane %v301, 1
      %v478 = vrot.slane %v302, 1
      %v479 = vrot.slane %v303, 1
      %v480 = vrot.slane %v304, 1
      %v481 = vrot.slane %v305, 1
      %v482 = vrot.slane %v306, 1
      %v483 = vrot.slane %v307, 1
      %v484 = vrot.slane %v308, 1
      %v485 = vrot.slane %v309, 1
      %v486 = vrot.slane %v310, 1
      %v487 = vrot.slane %v311, 1
      %v488 = vrot.slane %v312, 1
      %v489 = vrot.slane %v313, 1
      %v490 = vrot.slane %v314, 1
      %v491 = vrot.slane %v315, 1
      %v492 = vrot.slane %v316, 1
      %v493 = vrot.slane %v317, 1
      %v494 = vrot.slane %v318, 1
      %v495 = vrot.slane %v319, 1
      %v496 = vrot.slane %v320, 1
      %v497 = vrot.slane %v321, 1
      %v498 = vrot.slane %v322, 1
      %v499 = vrot.slane %v323, 1
      %v500 = vrot.slane %v324, 1
      %v501 = vrot.slane %v325, 1
      %v502 = vrot.slane %v326, 1
      %v503 = vrot.slane %v327, 1
      %v504 = vrot.slane %v328, 1
      %v505 = vrot.slane %v329, 1
      %v506 = vrot.slane %v330, 1
      %v507 = vrot.slane %v331, 1
      %v508 = vrot.slane %v332, 1
      %v509 = vrot.slane %v333, 1
      %v510 = vrot.slane %v334, 1
      %v511 = vrot.slane %v335, 1
      %v512 = vrot.slane %v336, 1
      %v513 = vrot.slane %v337, 1
      %v514 = vrot.slane %v338, 1
      %v515 = vrot.slane %v339, 1
      %v516 = vrot.slane %v340, 1
      %v517 = vrot.slane %v341, 1
      %v518 = vrot.slane %v342, 1
      %v519 = vrot.slane %v343, 1
      %v520 = vrot.slane %v344, 1
      %v521 = vrot.slane %v345, 1
      %v522 = vrot.slane %v346, 1
      %v523 = vrot.slane %v347, 1
      %v524 = vrot.slane %v348, 1
      %v525 = vrot.slane %v349, 1
      %v526 = vrot.slane %v350, 1
      %v527 = vrot.slane %v351, 1
      %v528 = vrot.slane %v352, 1
      %v529 = vrot.slane %v353, 1
      %v530 = vrot.slane %v354, 1
      %v531 = vrot.slane %v355, 1
      %v532 = vrot.slane %v356, 1
      %v533 = vrot.slane %v357, 1
      %v534 = vrot.slane %v358, 1
      %v535 = vlaneseq
      %v536 = vshrl.u32 %v535, 7
      %vm537 = vcmp.lt.s32.totalorder %v536, 7
      %v538 = vsel %vm537, %v533, %v534
      %v539 = vsel %vm537, %v532, %v533
      %v540 = vsel %vm537, %v531, %v532
      %v541 = vsel %vm537, %v530, %v531
      %v542 = vsel %vm537, %v528, %v529
      %v543 = vsel %vm537, %v527, %v528
      %v544 = vsel %vm537, %v526, %v527
      %v545 = vsel %vm537, %v525, %v526
      %v546 = vsel %vm537, %v523, %v524
      %v547 = vsel %vm537, %v522, %v523
      %v548 = vsel %vm537, %v521, %v522
      %v549 = vsel %vm537, %v520, %v521
      %v550 = vsel %vm537, %v518, %v519
      %v551 = vsel %vm537, %v517, %v518
      %v552 = vsel %vm537, %v516, %v517
      %v553 = vsel %vm537, %v515, %v516
      %v554 = vsel %vm537, %v513, %v514
      %v555 = vsel %vm537, %v512, %v513
      %v556 = vsel %vm537, %v511, %v512
      %v557 = vsel %vm537, %v510, %v511
      %v558 = vsel %vm537, %v508, %v509
      %v559 = vsel %vm537, %v507, %v508
      %v560 = vsel %vm537, %v506, %v507
      %v561 = vsel %vm537, %v505, %v506
      %v562 = vsel %vm537, %v503, %v504
      %v563 = vsel %vm537, %v502, %v503
      %v564 = vsel %vm537, %v501, %v502
      %v565 = vsel %vm537, %v500, %v501
      %v566 = vsel %vm537, %v498, %v499
      %v567 = vsel %vm537, %v497, %v498
      %v568 = vsel %vm537, %v496, %v497
      %v569 = vsel %vm537, %v495, %v496
      %v570 = vsel %vm537, %v493, %v494
      %v571 = vsel %vm537, %v492, %v493
      %v572 = vsel %vm537, %v491, %v492
      %v573 = vsel %vm537, %v490, %v491
      %v574 = vsel %vm537, %v488, %v489
      %v575 = vsel %vm537, %v487, %v488
      %v576 = vsel %vm537, %v486, %v487
      %v577 = vsel %vm537, %v485, %v486
      %v578 = vsel %vm537, %v483, %v484
      %v579 = vsel %vm537, %v482, %v483
      %v580 = vsel %vm537, %v481, %v482
      %v581 = vsel %vm537, %v480, %v481
      %v582 = vsel %vm537, %v478, %v479
      %v583 = vsel %vm537, %v477, %v478
      %v584 = vsel %vm537, %v476, %v477
      %v585 = vsel %vm537, %v475, %v476
      %v586 = vsel %vm537, %v473, %v474
      %v587 = vsel %vm537, %v472, %v473
      %v588 = vsel %vm537, %v471, %v472
      %v589 = vsel %vm537, %v470, %v471
      %v590 = vsel %vm537, %v468, %v469
      %v591 = vsel %vm537, %v467, %v468
      %v592 = vsel %vm537, %v466, %v467
      %v593 = vsel %vm537, %v465, %v466
      %v594 = vsel %vm537, %v463, %v464
      %v595 = vsel %vm537, %v462, %v463
      %v596 = vsel %vm537, %v461, %v462
      %v597 = vsel %vm537, %v460, %v461
      %v598 = vsel %vm537, %v458, %v459
      %v599 = vsel %vm537, %v457, %v458
      %v600 = vsel %vm537, %v456, %v457
      %v601 = vsel %vm537, %v455, %v456
      %v602 = vsel %vm537, %v453, %v454
      %v603 = vsel %vm537, %v452, %v453
      %v604 = vsel %vm537, %v451, %v452
      %v605 = vsel %vm537, %v450, %v451
      %v606 = vsel %vm537, %v448, %v449
      %v607 = vsel %vm537, %v447, %v448
      %v608 = vsel %vm537, %v446, %v447
      %v609 = vsel %vm537, %v445, %v446
      %v610 = vsel %vm537, %v443, %v444
      %v611 = vsel %vm537, %v442, %v443
      %v612 = vsel %vm537, %v441, %v442
      %v613 = vsel %vm537, %v440, %v441
      %v614 = vsel %vm537, %v438, %v439
      %v615 = vsel %vm537, %v437, %v438
      %v616 = vsel %vm537, %v436, %v437
      %v617 = vsel %vm537, %v435, %v436
      %v618 = vsel %vm537, %v433, %v434
      %v619 = vsel %vm537, %v432, %v433
      %v620 = vsel %vm537, %v431, %v432
      %v621 = vsel %vm537, %v430, %v431
      %v622 = vsel %vm537, %v428, %v429
      %v623 = vsel %vm537, %v427, %v428
      %v624 = vsel %vm537, %v426, %v427
      %v625 = vsel %vm537, %v425, %v426
      %v626 = vsel %vm537, %v423, %v424
      %v627 = vsel %vm537, %v422, %v423
      %v628 = vsel %vm537, %v421, %v422
      %v629 = vsel %vm537, %v420, %v421
      %v630 = vsel %vm537, %v418, %v419
      %v631 = vsel %vm537, %v417, %v418
      %v632 = vsel %vm537, %v416, %v417
      %v633 = vsel %vm537, %v415, %v416
      %v634 = vsel %vm537, %v413, %v414
      %v635 = vsel %vm537, %v412, %v413
      %v636 = vsel %vm537, %v411, %v412
      %v637 = vsel %vm537, %v410, %v411
      %v638 = vsel %vm537, %v408, %v409
      %v639 = vsel %vm537, %v407, %v408
      %v640 = vsel %vm537, %v406, %v407
      %v641 = vsel %vm537, %v405, %v406
      %v642 = vsel %vm537, %v403, %v404
      %v643 = vsel %vm537, %v402, %v403
      %v644 = vsel %vm537, %v401, %v402
      %v645 = vsel %vm537, %v400, %v401
      %v646 = vsel %vm537, %v398, %v399
      %v647 = vsel %vm537, %v397, %v398
      %v648 = vsel %vm537, %v396, %v397
      %v649 = vsel %vm537, %v395, %v396
      %v650 = vsel %vm537, %v393, %v394
      %v651 = vsel %vm537, %v392, %v393
      %v652 = vsel %vm537, %v391, %v392
      %v653 = vsel %vm537, %v390, %v391
      %v654 = vsel %vm537, %v388, %v389
      %v655 = vsel %vm537, %v387, %v388
      %v656 = vsel %vm537, %v386, %v387
      %v657 = vsel %vm537, %v385, %v386
      %v658 = vsel %vm537, %v383, %v384
      %v659 = vsel %vm537, %v382, %v383
      %v660 = vsel %vm537, %v381, %v382
      %v661 = vsel %vm537, %v380, %v381
      %v662 = vsel %vm537, %v378, %v379
      %v663 = vsel %vm537, %v377, %v378
      %v664 = vsel %vm537, %v376, %v377
      %v665 = vsel %vm537, %v375, %v376
      %s666 = scalar_lea.vmem %s1, 128
      %v667 = vld [vmem:[%s666] sm:$0xff]
      %v668 = vld [vmem:[%s666 + $0x8] sm:$0xff]
      %v669 = vld [vmem:[%s666 + $0x10] sm:$0xff]
      %v670 = vld [vmem:[%s666 + $0x18] sm:$0xff]
      %v671 = vld [vmem:[%s666 + $0x20] sm:$0xff]
      %v672 = vld [vmem:[%s666 + $0x28] sm:$0xff]
      %v673 = vld [vmem:[%s666 + $0x30] sm:$0xff]
      %v674 = vld [vmem:[%s666 + $0x38] sm:$0xff]
      %v675 = vld [vmem:[%s666 + $0x40] sm:$0xff]
      %v676 = vld [vmem:[%s666 + $0x48] sm:$0xff]
      %v677 = vld [vmem:[%s666 + $0x50] sm:$0xff]
      %v678 = vld [vmem:[%s666 + $0x58] sm:$0xff]
      %v679 = vld [vmem:[%s666 + $0x60] sm:$0xff]
      %v680 = vld [vmem:[%s666 + $0x68] sm:$0xff]
      %v681 = vld [vmem:[%s666 + $0x70] sm:$0xff]
      %v682 = vld [vmem:[%s666 + $0x78] sm:$0xff]
      %683 = vmatprep.subr.mxu0 0.0
      %684 = vmatpush1.msra.mxu0 %v667
      %685 = vmatprep.subr.mxu0 0.0
      %686 = vmatpush1.msra.mxu0 %v668
      %687 = vmatprep.subr.mxu0 0.0
      %688 = vmatpush1.msra.mxu0 %v669
      %689 = vmatprep.subr.mxu0 0.0
      %690 = vmatpush1.msra.mxu0 %v670
      %691 = vmatprep.subr.mxu0 0.0
      %692 = vmatpush1.msra.mxu0 %v671
      %693 = vmatprep.subr.mxu0 0.0
      %694 = vmatpush1.msra.mxu0 %v672
      %695 = vmatprep.subr.mxu0 0.0
      %696 = vmatpush1.msra.mxu0 %v673
      %697 = vmatprep.subr.mxu0 0.0
      %698 = vmatpush1.msra.mxu0 %v674
      %699 = vmatprep.subr.mxu0 0.0
      %700 = vmatpush1.msra.mxu0 %v675
      %701 = vmatprep.subr.mxu0 0.0
      %702 = vmatpush1.msra.mxu0 %v676
      %703 = vmatprep.subr.mxu0 0.0
      %704 = vmatpush1.msra.mxu0 %v677
      %705 = vmatprep.subr.mxu0 0.0
      %706 = vmatpush1.msra.mxu0 %v678
      %707 = vmatprep.subr.mxu0 0.0
      %708 = vmatpush1.msra.mxu0 %v679
      %709 = vmatprep.subr.mxu0 0.0
      %710 = vmatpush1.msra.mxu0 %v680
      %711 = vmatprep.subr.mxu0 0.0
      %712 = vmatpush1.msra.mxu0 %v681
      %713 = vmatprep.subr.mxu0 0.0
      %714 = vmatpush1.msra.mxu0 %v682
      %715 = vmatprep.subr.mxu0 0.0
      %716 = vmatpush1.msra.mxu0 0.0
      %717 = vmatprep.subr.mxu0 0.0
      %718 = vmatpush1.msra.mxu0 0.0
      %719 = vmatprep.subr.mxu0 0.0
      %720 = vmatpush1.msra.mxu0 0.0
      %721 = vmatprep.subr.mxu0 0.0
      %722 = vmatpush1.msra.mxu0 0.0
      %723 = vmatprep.subr.mxu0 0.0
      %724 = vmatpush1.msra.mxu0 0.0
      %725 = vmatprep.subr.mxu0 0.0
      %726 = vmatpush1.msra.mxu0 0.0
      %727 = vmatprep.subr.mxu0 0.0
      %728 = vmatpush1.msra.mxu0 0.0
      %729 = vmatprep.subr.mxu0 0.0
      %730 = vmatpush1.msra.mxu0 0.0
      %731 = vmatprep.subr.mxu0 0.0
      %732 = vmatpush1.msra.mxu0 0.0
      %733 = vmatprep.subr.mxu0 0.0
      %734 = vmatpush1.msra.mxu0 0.0
      %735 = vmatprep.subr.mxu0 0.0
      %736 = vmatpush1.msra.mxu0 0.0
      %737 = vmatprep.subr.mxu0 0.0
      %738 = vmatpush1.msra.mxu0 0.0
      %739 = vmatprep.subr.mxu0 0.0
      %740 = vmatpush1.msra.mxu0 0.0
      %741 = vmatprep.subr.mxu0 0.0
      %742 = vmatpush1.msra.mxu0 0.0
      %743 = vmatprep.subr.mxu0 0.0
      %744 = vmatpush1.msra.mxu0 0.0
      %745 = vmatprep.subr.mxu0 0.0
      %746 = vmatpush1.msra.mxu0 0.0
      %747 = vmatprep.mubr.f32.mxu0 0.0
      %748 = vmatmul.mubr.f32.gmra.mrb[0].mxu0 %v665
      %v749 = vpop.f32.mrb[0].mxu0
      %v750 = vadd.f32 0.0, %v749
      %v751 = vpop.f32.mrb[0].mxu0
      %752 = vmatprep.mubr.f32.mxu0 0.0
      %753 = vmatmul.mubr.f32.gmra.mrb[0].mxu0 %v664
      %v754 = vpop.f32.mrb[0].mxu0
      %v755 = vadd.f32 0.0, %v754
      %v756 = vpop.f32.mrb[0].mxu0
      %757 = vmatprep.mubr.f32.mxu0 0.0
      %758 = vmatmul.mubr.f32.gmra.mrb[0].mxu0 %v663
      %v759 = vpop.f32.mrb[0].mxu0
      %v760 = vadd.f32 0.0, %v759
      %v761 = vpop.f32.mrb[0].mxu0
      %762 = vmatprep.mubr.f32.mxu0 0.0
      %763 = vmatmul.mubr.f32.gmra.mrb[0].mxu0 %v662
      %v764 = vpop.f32.mrb[0].mxu0
      %v765 = vadd.f32 0.0, %v764
      %v766 = vpop.f32.mrb[0].mxu0
      %767 = vmatprep.mubr.f32.mxu0 0.0
      %768 = vmatmul.mubr.f32.gmra.mrb[0].mxu0 %v661
      %v769 = vpop.f32.mrb[0].mxu0
      %v770 = vadd.f32 0.0, %v769
      %v771 = vpop.f32.mrb[0].mxu0
      %772 = vmatprep.mubr.f32.mxu0 0.0
      %773 = vmatmul.mubr.f32.gmra.mrb[0].mxu0 %v660
      %v774 = vpop.f32.mrb[0].mxu0
      %v775 = vadd.f32 0.0, %v774
      %v776 = vpop.f32.mrb[0].mxu0
      %777 = vmatprep.mubr.f32.mxu0 0.0
      %778 = vmatmul.mubr.f32.gmra.mrb[0].mxu0 %v659
      %v779 = vpop.f32.mrb[0].mxu0
      %v780 = vadd.f32 0.0, %v779
      %v781 = vpop.f32.mrb[0].mxu0
      %782 = vmatprep.mubr.f32.mxu0 0.0
      %783 = vmatmul.mubr.f32.gmra.mrb[0].mxu0 %v658
      %v784 = vpop.f32.mrb[0].mxu0
      %v785 = vadd.f32 0.0, %v784
      %v786 = vpop.f32.mrb[0].mxu0
      %787 = vmatprep.mubr.f32.mxu0 0.0
      %788 = vmatmul.mubr.f32.gmra.mrb[0].mxu0 %v657
      %v789 = vpop.f32.mrb[0].mxu0
      %v790 = vadd.f32 0.0, %v789
      %v791 = vpop.f32.mrb[0].mxu0
      %792 = vmatprep.mubr.f32.mxu0 0.0
      %793 = vmatmul.mubr.f32.gmra.mrb[0].mxu0 %v656
      %v794 = vpop.f32.mrb[0].mxu0
      %v795 = vadd.f32 0.0, %v794
      %v796 = vpop.f32.mrb[0].mxu0
      %797 = vmatprep.mubr.f32.mxu0 0.0
      %798 = vmatmul.mubr.f32.gmra.mrb[0].mxu0 %v655
      %v799 = vpop.f32.mrb[0].mxu0
      %v800 = vadd.f32 0.0, %v799
      %v801 = vpop.f32.mrb[0].mxu0
      %802 = vmatprep.mubr.f32.mxu0 0.0
      %803 = vmatmul.mubr.f32.gmra.mrb[0].mxu0 %v654
      %v804 = vpop.f32.mrb[0].mxu0
      %v805 = vadd.f32 0.0, %v804
      %v806 = vpop.f32.mrb[0].mxu0
      %807 = vmatprep.mubr.f32.mxu0 0.0
      %808 = vmatmul.mubr.f32.gmra.mrb[0].mxu0 %v653
      %v809 = vpop.f32.mrb[0].mxu0
      %v810 = vadd.f32 0.0, %v809
      %v811 = vpop.f32.mrb[0].mxu0
      %812 = vmatprep.mubr.f32.mxu0 0.0
      %813 = vmatmul.mubr.f32.gmra.mrb[0].mxu0 %v652
      %v814 = vpop.f32.mrb[0].mxu0
      %v815 = vadd.f32 0.0, %v814
      %v816 = vpop.f32.mrb[0].mxu0
      %817 = vmatprep.mubr.f32.mxu0 0.0
      %818 = vmatmul.mubr.f32.gmra.mrb[0].mxu0 %v651
      %v819 = vpop.f32.mrb[0].mxu0
      %v820 = vadd.f32 0.0, %v819
      %v821 = vpop.f32.mrb[0].mxu0
      %822 = vmatprep.mubr.f32.mxu0 0.0
      %823 = vmatmul.mubr.f32.gmra.mrb[0].mxu0 %v650
      %v824 = vpop.f32.mrb[0].mxu0
      %v825 = vadd.f32 0.0, %v824
      %v826 = vpop.f32.mrb[0].mxu0
      %827 = vmatprep.mubr.f32.mxu0 0.0
      %828 = vmatmul.mubr.f32.gmra.mrb[0].mxu0 %v649
      %v829 = vpop.f32.mrb[0].mxu0
      %v830 = vadd.f32 0.0, %v829
      %v831 = vpop.f32.mrb[0].mxu0
      %832 = vmatprep.mubr.f32.mxu0 0.0
      %833 = vmatmul.mubr.f32.gmra.mrb[0].mxu0 %v648
      %v834 = vpop.f32.mrb[0].mxu0
      %v835 = vadd.f32 0.0, %v834
      %v836 = vpop.f32.mrb[0].mxu0
      %837 = vmatprep.mubr.f32.mxu0 0.0
      %838 = vmatmul.mubr.f32.gmra.mrb[0].mxu0 %v647
      %v839 = vpop.f32.mrb[0].mxu0
      %v840 = vadd.f32 0.0, %v839
      %v841 = vpop.f32.mrb[0].mxu0
      %842 = vmatprep.mubr.f32.mxu0 0.0
      %843 = vmatmul.mubr.f32.gmra.mrb[0].mxu0 %v646
      %v844 = vpop.f32.mrb[0].mxu0
      %v845 = vadd.f32 0.0, %v844
      %v846 = vpop.f32.mrb[0].mxu0
      %847 = vmatprep.mubr.f32.mxu0 0.0
      %848 = vmatmul.mubr.f32.gmra.mrb[0].mxu0 %v645
      %v849 = vpop.f32.mrb[0].mxu0
      %v850 = vadd.f32 0.0, %v849
      %v851 = vpop.f32.mrb[0].mxu0
      %852 = vmatprep.mubr.f32.mxu0 0.0
      %853 = vmatmul.mubr.f32.gmra.mrb[0].mxu0 %v644
      %v854 = vpop.f32.mrb[0].mxu0
      %v855 = vadd.f32 0.0, %v854
      %v856 = vpop.f32.mrb[0].mxu0
      %857 = vmatprep.mubr.f32.mxu0 0.0
      %858 = vmatmul.mubr.f32.gmra.mrb[0].mxu0 %v643
      %v859 = vpop.f32.mrb[0].mxu0
      %v860 = vadd.f32 0.0, %v859
      %v861 = vpop.f32.mrb[0].mxu0
      %862 = vmatprep.mubr.f32.mxu0 0.0
      %863 = vmatmul.mubr.f32.gmra.mrb[0].mxu0 %v642
      %v864 = vpop.f32.mrb[0].mxu0
      %v865 = vadd.f32 0.0, %v864
      %v866 = vpop.f32.mrb[0].mxu0
      %867 = vmatprep.mubr.f32.mxu0 0.0
      %868 = vmatmul.mubr.f32.gmra.mrb[0].mxu0 %v641
      %v869 = vpop.f32.mrb[0].mxu0
      %v870 = vadd.f32 0.0, %v869
      %v871 = vpop.f32.mrb[0].mxu0
      %872 = vmatprep.mubr.f32.mxu0 0.0
      %873 = vmatmul.mubr.f32.gmra.mrb[0].mxu0 %v640
      %v874 = vpop.f32.mrb[0].mxu0
      %v875 = vadd.f32 0.0, %v874
      %v876 = vpop.f32.mrb[0].mxu0
      %877 = vmatprep.mubr.f32.mxu0 0.0
      %878 = vmatmul.mubr.f32.gmra.mrb[0].mxu0 %v639
      %v879 = vpop.f32.mrb[0].mxu0
      %v880 = vadd.f32 0.0, %v879
      %v881 = vpop.f32.mrb[0].mxu0
      %882 = vmatprep.mubr.f32.mxu0 0.0
      %883 = vmatmul.mubr.f32.gmra.mrb[0].mxu0 %v638
      %v884 = vpop.f32.mrb[0].mxu0
      %v885 = vadd.f32 0.0, %v884
      %v886 = vpop.f32.mrb[0].mxu0
      %887 = vmatprep.mubr.f32.mxu0 0.0
      %888 = vmatmul.mubr.f32.gmra.mrb[0].mxu0 %v637
      %v889 = vpop.f32.mrb[0].mxu0
      %v890 = vadd.f32 0.0, %v889
      %v891 = vpop.f32.mrb[0].mxu0
      %892 = vmatprep.mubr.f32.mxu0 0.0
      %893 = vmatmul.mubr.f32.gmra.mrb[0].mxu0 %v636
      %v894 = vpop.f32.mrb[0].mxu0
      %v895 = vadd.f32 0.0, %v894
      %v896 = vpop.f32.mrb[0].mxu0
      %897 = vmatprep.mubr.f32.mxu0 0.0
      %898 = vmatmul.mubr.f32.gmra.mrb[0].mxu0 %v635
      %v899 = vpop.f32.mrb[0].mxu0
      %v900 = vadd.f32 0.0, %v899
      %v901 = vpop.f32.mrb[0].mxu0
      %902 = vmatprep.mubr.f32.mxu0 0.0
      %903 = vmatmul.mubr.f32.gmra.mrb[0].mxu0 %v634
      %v904 = vpop.f32.mrb[0].mxu0
      %v905 = vadd.f32 0.0, %v904
      %v906 = vpop.f32.mrb[0].mxu0
      %907 = vmatprep.mubr.f32.mxu0 0.0
      %908 = vmatmul.mubr.f32.gmra.mrb[0].mxu0 %v633
      %v909 = vpop.f32.mrb[0].mxu0
      %v910 = vadd.f32 0.0, %v909
      %v911 = vpop.f32.mrb[0].mxu0
      %912 = vmatprep.mubr.f32.mxu0 0.0
      %913 = vmatmul.mubr.f32.gmra.mrb[0].mxu0 %v632
      %v914 = vpop.f32.mrb[0].mxu0
      %v915 = vadd.f32 0.0, %v914
      %v916 = vpop.f32.mrb[0].mxu0
      %917 = vmatprep.mubr.f32.mxu0 0.0
      %918 = vmatmul.mubr.f32.gmra.mrb[0].mxu0 %v631
      %v919 = vpop.f32.mrb[0].mxu0
      %v920 = vadd.f32 0.0, %v919
      %v921 = vpop.f32.mrb[0].mxu0
      %922 = vmatprep.mubr.f32.mxu0 0.0
      %923 = vmatmul.mubr.f32.gmra.mrb[0].mxu0 %v630
      %v924 = vpop.f32.mrb[0].mxu0
      %v925 = vadd.f32 0.0, %v924
      %v926 = vpop.f32.mrb[0].mxu0
      %927 = vmatprep.mubr.f32.mxu0 0.0
      %928 = vmatmul.mubr.f32.gmra.mrb[0].mxu0 %v629
      %v929 = vpop.f32.mrb[0].mxu0
      %v930 = vadd.f32 0.0, %v929
      %v931 = vpop.f32.mrb[0].mxu0
      %932 = vmatprep.mubr.f32.mxu0 0.0
      %933 = vmatmul.mubr.f32.gmra.mrb[0].mxu0 %v628
      %v934 = vpop.f32.mrb[0].mxu0
      %v935 = vadd.f32 0.0, %v934
      %v936 = vpop.f32.mrb[0].mxu0
      %937 = vmatprep.mubr.f32.mxu0 0.0
      %938 = vmatmul.mubr.f32.gmra.mrb[0].mxu0 %v627
      %v939 = vpop.f32.mrb[0].mxu0
      %v940 = vadd.f32 0.0, %v939
      %v941 = vpop.f32.mrb[0].mxu0
      %942 = vmatprep.mubr.f32.mxu0 0.0
      %943 = vmatmul.mubr.f32.gmra.mrb[0].mxu0 %v626
      %v944 = vpop.f32.mrb[0].mxu0
      %v945 = vadd.f32 0.0, %v944
      %v946 = vpop.f32.mrb[0].mxu0
      %947 = vmatprep.mubr.f32.mxu0 0.0
      %948 = vmatmul.mubr.f32.gmra.mrb[0].mxu0 %v625
      %v949 = vpop.f32.mrb[0].mxu0
      %v950 = vadd.f32 0.0, %v949
      %v951 = vpop.f32.mrb[0].mxu0
      %952 = vmatprep.mubr.f32.mxu0 0.0
      %953 = vmatmul.mubr.f32.gmra.mrb[0].mxu0 %v624
      %v954 = vpop.f32.mrb[0].mxu0
      %v955 = vadd.f32 0.0, %v954
      %v956 = vpop.f32.mrb[0].mxu0
      %957 = vmatprep.mubr.f32.mxu0 0.0
      %958 = vmatmul.mubr.f32.gmra.mrb[0].mxu0 %v623
      %v959 = vpop.f32.mrb[0].mxu0
      %v960 = vadd.f32 0.0, %v959
      %v961 = vpop.f32.mrb[0].mxu0
      %962 = vmatprep.mubr.f32.mxu0 0.0
      %963 = vmatmul.mubr.f32.gmra.mrb[0].mxu0 %v622
      %v964 = vpop.f32.mrb[0].mxu0
      %v965 = vadd.f32 0.0, %v964
      %v966 = vpop.f32.mrb[0].mxu0
      %967 = vmatprep.mubr.f32.mxu0 0.0
      %968 = vmatmul.mubr.f32.gmra.mrb[0].mxu0 %v621
      %v969 = vpop.f32.mrb[0].mxu0
      %v970 = vadd.f32 0.0, %v969
      %v971 = vpop.f32.mrb[0].mxu0
      %972 = vmatprep.mubr.f32.mxu0 0.0
      %973 = vmatmul.mubr.f32.gmra.mrb[0].mxu0 %v620
      %v974 = vpop.f32.mrb[0].mxu0
      %v975 = vadd.f32 0.0, %v974
      %v976 = vpop.f32.mrb[0].mxu0
      %977 = vmatprep.mubr.f32.mxu0 0.0
      %978 = vmatmul.mubr.f32.gmra.mrb[0].mxu0 %v619
      %v979 = vpop.f32.mrb[0].mxu0
      %v980 = vadd.f32 0.0, %v979
      %v981 = vpop.f32.mrb[0].mxu0
      %982 = vmatprep.mubr.f32.mxu0 0.0
      %983 = vmatmul.mubr.f32.gmra.mrb[0].mxu0 %v618
      %v984 = vpop.f32.mrb[0].mxu0
      %v985 = vadd.f32 0.0, %v984
      %v986 = vpop.f32.mrb[0].mxu0
      %987 = vmatprep.mubr.f32.mxu0 0.0
      %988 = vmatmul.mubr.f32.gmra.mrb[0].mxu0 %v617
      %v989 = vpop.f32.mrb[0].mxu0
      %v990 = vadd.f32 0.0, %v989
      %v991 = vpop.f32.mrb[0].mxu0
      %992 = vmatprep.mubr.f32.mxu0 0.0
      %993 = vmatmul.mubr.f32.gmra.mrb[0].mxu0 %v616
      %v994 = vpop.f32.mrb[0].mxu0
      %v995 = vadd.f32 0.0, %v994
      %v996 = vpop.f32.mrb[0].mxu0
      %997 = vmatprep.mubr.f32.mxu0 0.0
      %998 = vmatmul.mubr.f32.gmra.mrb[0].mxu0 %v615
      %v999 = vpop.f32.mrb[0].mxu0
      %v1000 = vadd.f32 0.0, %v999
      %v1001 = vpop.f32.mrb[0].mxu0
      %1002 = vmatprep.mubr.f32.mxu0 0.0
      %1003 = vmatmul.mubr.f32.gmra.mrb[0].mxu0 %v614
      %v1004 = vpop.f32.mrb[0].mxu0
      %v1005 = vadd.f32 0.0, %v1004
      %v1006 = vpop.f32.mrb[0].mxu0
      %1007 = vmatprep.mubr.f32.mxu0 0.0
      %1008 = vmatmul.mubr.f32.gmra.mrb[0].mxu0 %v613
      %v1009 = vpop.f32.mrb[0].mxu0
      %v1010 = vadd.f32 0.0, %v1009
      %v1011 = vpop.f32.mrb[0].mxu0
      %1012 = vmatprep.mubr.f32.mxu0 0.0
      %1013 = vmatmul.mubr.f32.gmra.mrb[0].mxu0 %v612
      %v1014 = vpop.f32.mrb[0].mxu0
      %v1015 = vadd.f32 0.0, %v1014
      %v1016 = vpop.f32.mrb[0].mxu0
      %1017 = vmatprep.mubr.f32.mxu0 0.0
      %1018 = vmatmul.mubr.f32.gmra.mrb[0].mxu0 %v611
      %v1019 = vpop.f32.mrb[0].mxu0
      %v1020 = vadd.f32 0.0, %v1019
      %v1021 = vpop.f32.mrb[0].mxu0
      %1022 = vmatprep.mubr.f32.mxu0 0.0
      %1023 = vmatmul.mubr.f32.gmra.mrb[0].mxu0 %v610
      %v1024 = vpop.f32.mrb[0].mxu0
      %v1025 = vadd.f32 0.0, %v1024
      %v1026 = vpop.f32.mrb[0].mxu0
      %1027 = vmatprep.mubr.f32.mxu0 0.0
      %1028 = vmatmul.mubr.f32.gmra.mrb[0].mxu0 %v609
      %v1029 = vpop.f32.mrb[0].mxu0
      %v1030 = vadd.f32 0.0, %v1029
      %v1031 = vpop.f32.mrb[0].mxu0
      %1032 = vmatprep.mubr.f32.mxu0 0.0
      %1033 = vmatmul.mubr.f32.gmra.mrb[0].mxu0 %v608
      %v1034 = vpop.f32.mrb[0].mxu0
      %v1035 = vadd.f32 0.0, %v1034
      %v1036 = vpop.f32.mrb[0].mxu0
      %1037 = vmatprep.mubr.f32.mxu0 0.0
      %1038 = vmatmul.mubr.f32.gmra.mrb[0].mxu0 %v607
      %v1039 = vpop.f32.mrb[0].mxu0
      %v1040 = vadd.f32 0.0, %v1039
      %v1041 = vpop.f32.mrb[0].mxu0
      %1042 = vmatprep.mubr.f32.mxu0 0.0
      %1043 = vmatmul.mubr.f32.gmra.mrb[0].mxu0 %v606
      %v1044 = vpop.f32.mrb[0].mxu0
      %v1045 = vadd.f32 0.0, %v1044
      %v1046 = vpop.f32.mrb[0].mxu0
      %1047 = vmatprep.mubr.f32.mxu0 0.0
      %1048 = vmatmul.mubr.f32.gmra.mrb[0].mxu0 %v605
      %v1049 = vpop.f32.mrb[0].mxu0
      %v1050 = vadd.f32 0.0, %v1049
      %v1051 = vpop.f32.mrb[0].mxu0
      %1052 = vmatprep.mubr.f32.mxu0 0.0
      %1053 = vmatmul.mubr.f32.gmra.mrb[0].mxu0 %v604
      %v1054 = vpop.f32.mrb[0].mxu0
      %v1055 = vadd.f32 0.0, %v1054
      %v1056 = vpop.f32.mrb[0].mxu0
      %1057 = vmatprep.mubr.f32.mxu0 0.0
      %1058 = vmatmul.mubr.f32.gmra.mrb[0].mxu0 %v603
      %v1059 = vpop.f32.mrb[0].mxu0
      %v1060 = vadd.f32 0.0, %v1059
      %v1061 = vpop.f32.mrb[0].mxu0
      %1062 = vmatprep.mubr.f32.mxu0 0.0
      %1063 = vmatmul.mubr.f32.gmra.mrb[0].mxu0 %v602
      %v1064 = vpop.f32.mrb[0].mxu0
      %v1065 = vadd.f32 0.0, %v1064
      %v1066 = vpop.f32.mrb[0].mxu0
      %1067 = vmatprep.mubr.f32.mxu0 0.0
      %1068 = vmatmul.mubr.f32.gmra.mrb[0].mxu0 %v601
      %v1069 = vpop.f32.mrb[0].mxu0
      %v1070 = vadd.f32 0.0, %v1069
      %v1071 = vpop.f32.mrb[0].mxu0
      %1072 = vmatprep.mubr.f32.mxu0 0.0
      %1073 = vmatmul.mubr.f32.gmra.mrb[0].mxu0 %v600
      %v1074 = vpop.f32.mrb[0].mxu0
      %v1075 = vadd.f32 0.0, %v1074
      %v1076 = vpop.f32.mrb[0].mxu0
      %1077 = vmatprep.mubr.f32.mxu0 0.0
      %1078 = vmatmul.mubr.f32.gmra.mrb[0].mxu0 %v599
      %v1079 = vpop.f32.mrb[0].mxu0
      %v1080 = vadd.f32 0.0, %v1079
      %v1081 = vpop.f32.mrb[0].mxu0
      %1082 = vmatprep.mubr.f32.mxu0 0.0
      %1083 = vmatmul.mubr.f32.gmra.mrb[0].mxu0 %v598
      %v1084 = vpop.f32.mrb[0].mxu0
      %v1085 = vadd.f32 0.0, %v1084
      %v1086 = vpop.f32.mrb[0].mxu0
      %1087 = vmatprep.mubr.f32.mxu0 0.0
      %1088 = vmatmul.mubr.f32.gmra.mrb[0].mxu0 %v597
      %v1089 = vpop.f32.mrb[0].mxu0
      %v1090 = vadd.f32 0.0, %v1089
      %v1091 = vpop.f32.mrb[0].mxu0
      %1092 = vmatprep.mubr.f32.mxu0 0.0
      %1093 = vmatmul.mubr.f32.gmra.mrb[0].mxu0 %v596
      %v1094 = vpop.f32.mrb[0].mxu0
      %v1095 = vadd.f32 0.0, %v1094
      %v1096 = vpop.f32.mrb[0].mxu0
      %1097 = vmatprep.mubr.f32.mxu0 0.0
      %1098 = vmatmul.mubr.f32.gmra.mrb[0].mxu0 %v595
      %v1099 = vpop.f32.mrb[0].mxu0
      %v1100 = vadd.f32 0.0, %v1099
      %v1101 = vpop.f32.mrb[0].mxu0
      %1102 = vmatprep.mubr.f32.mxu0 0.0
      %1103 = vmatmul.mubr.f32.gmra.mrb[0].mxu0 %v594
      %v1104 = vpop.f32.mrb[0].mxu0
      %v1105 = vadd.f32 0.0, %v1104
      %v1106 = vpop.f32.mrb[0].mxu0
      %1107 = vmatprep.mubr.f32.mxu0 0.0
      %1108 = vmatmul.mubr.f32.gmra.mrb[0].mxu0 %v593
      %v1109 = vpop.f32.mrb[0].mxu0
      %v1110 = vadd.f32 0.0, %v1109
      %v1111 = vpop.f32.mrb[0].mxu0
      %1112 = vmatprep.mubr.f32.mxu0 0.0
      %1113 = vmatmul.mubr.f32.gmra.mrb[0].mxu0 %v592
      %v1114 = vpop.f32.mrb[0].mxu0
      %v1115 = vadd.f32 0.0, %v1114
      %v1116 = vpop.f32.mrb[0].mxu0
      %1117 = vmatprep.mubr.f32.mxu0 0.0
      %1118 = vmatmul.mubr.f32.gmra.mrb[0].mxu0 %v591
      %v1119 = vpop.f32.mrb[0].mxu0
      %v1120 = vadd.f32 0.0, %v1119
      %v1121 = vpop.f32.mrb[0].mxu0
      %1122 = vmatprep.mubr.f32.mxu0 0.0
      %1123 = vmatmul.mubr.f32.gmra.mrb[0].mxu0 %v590
      %v1124 = vpop.f32.mrb[0].mxu0
      %v1125 = vadd.f32 0.0, %v1124
      %v1126 = vpop.f32.mrb[0].mxu0
      %1127 = vmatprep.mubr.f32.mxu0 0.0
      %1128 = vmatmul.mubr.f32.gmra.mrb[0].mxu0 %v589
      %v1129 = vpop.f32.mrb[0].mxu0
      %v1130 = vadd.f32 0.0, %v1129
      %v1131 = vpop.f32.mrb[0].mxu0
      %1132 = vmatprep.mubr.f32.mxu0 0.0
      %1133 = vmatmul.mubr.f32.gmra.mrb[0].mxu0 %v588
      %v1134 = vpop.f32.mrb[0].mxu0
      %v1135 = vadd.f32 0.0, %v1134
      %v1136 = vpop.f32.mrb[0].mxu0
      %1137 = vmatprep.mubr.f32.mxu0 0.0
      %1138 = vmatmul.mubr.f32.gmra.mrb[0].mxu0 %v587
      %v1139 = vpop.f32.mrb[0].mxu0
      %v1140 = vadd.f32 0.0, %v1139
      %v1141 = vpop.f32.mrb[0].mxu0
      %1142 = vmatprep.mubr.f32.mxu0 0.0
      %1143 = vmatmul.mubr.f32.gmra.mrb[0].mxu0 %v586
      %v1144 = vpop.f32.mrb[0].mxu0
      %v1145 = vadd.f32 0.0, %v1144
      %v1146 = vpop.f32.mrb[0].mxu0
      %1147 = vmatprep.mubr.f32.mxu0 0.0
      %1148 = vmatmul.mubr.f32.gmra.mrb[0].mxu0 %v585
      %v1149 = vpop.f32.mrb[0].mxu0
      %v1150 = vadd.f32 0.0, %v1149
      %v1151 = vpop.f32.mrb[0].mxu0
      %1152 = vmatprep.mubr.f32.mxu0 0.0
      %1153 = vmatmul.mubr.f32.gmra.mrb[0].mxu0 %v584
      %v1154 = vpop.f32.mrb[0].mxu0
      %v1155 = vadd.f32 0.0, %v1154
      %v1156 = vpop.f32.mrb[0].mxu0
      %1157 = vmatprep.mubr.f32.mxu0 0.0
      %1158 = vmatmul.mubr.f32.gmra.mrb[0].mxu0 %v583
      %v1159 = vpop.f32.mrb[0].mxu0
      %v1160 = vadd.f32 0.0, %v1159
      %v1161 = vpop.f32.mrb[0].mxu0
      %1162 = vmatprep.mubr.f32.mxu0 0.0
      %1163 = vmatmul.mubr.f32.gmra.mrb[0].mxu0 %v582
      %v1164 = vpop.f32.mrb[0].mxu0
      %v1165 = vadd.f32 0.0, %v1164
      %v1166 = vpop.f32.mrb[0].mxu0
      %1167 = vmatprep.mubr.f32.mxu0 0.0
      %1168 = vmatmul.mubr.f32.gmra.mrb[0].mxu0 %v581
      %v1169 = vpop.f32.mrb[0].mxu0
      %v1170 = vadd.f32 0.0, %v1169
      %v1171 = vpop.f32.mrb[0].mxu0
      %1172 = vmatprep.mubr.f32.mxu0 0.0
      %1173 = vmatmul.mubr.f32.gmra.mrb[0].mxu0 %v580
      %v1174 = vpop.f32.mrb[0].mxu0
      %v1175 = vadd.f32 0.0, %v1174
      %v1176 = vpop.f32.mrb[0].mxu0
      %1177 = vmatprep.mubr.f32.mxu0 0.0
      %1178 = vmatmul.mubr.f32.gmra.mrb[0].mxu0 %v579
      %v1179 = vpop.f32.mrb[0].mxu0
      %v1180 = vadd.f32 0.0, %v1179
      %v1181 = vpop.f32.mrb[0].mxu0
      %1182 = vmatprep.mubr.f32.mxu0 0.0
      %1183 = vmatmul.mubr.f32.gmra.mrb[0].mxu0 %v578
      %v1184 = vpop.f32.mrb[0].mxu0
      %v1185 = vadd.f32 0.0, %v1184
      %v1186 = vpop.f32.mrb[0].mxu0
      %1187 = vmatprep.mubr.f32.mxu0 0.0
      %1188 = vmatmul.mubr.f32.gmra.mrb[0].mxu0 %v577
      %v1189 = vpop.f32.mrb[0].mxu0
      %v1190 = vadd.f32 0.0, %v1189
      %v1191 = vpop.f32.mrb[0].mxu0
      %1192 = vmatprep.mubr.f32.mxu0 0.0
      %1193 = vmatmul.mubr.f32.gmra.mrb[0].mxu0 %v576
      %v1194 = vpop.f32.mrb[0].mxu0
      %v1195 = vadd.f32 0.0, %v1194
      %v1196 = vpop.f32.mrb[0].mxu0
      %1197 = vmatprep.mubr.f32.mxu0 0.0
      %1198 = vmatmul.mubr.f32.gmra.mrb[0].mxu0 %v575
      %v1199 = vpop.f32.mrb[0].mxu0
      %v1200 = vadd.f32 0.0, %v1199
      %v1201 = vpop.f32.mrb[0].mxu0
      %1202 = vmatprep.mubr.f32.mxu0 0.0
      %1203 = vmatmul.mubr.f32.gmra.mrb[0].mxu0 %v574
      %v1204 = vpop.f32.mrb[0].mxu0
      %v1205 = vadd.f32 0.0, %v1204
      %v1206 = vpop.f32.mrb[0].mxu0
      %1207 = vmatprep.mubr.f32.mxu0 0.0
      %1208 = vmatmul.mubr.f32.gmra.mrb[0].mxu0 %v573
      %v1209 = vpop.f32.mrb[0].mxu0
      %v1210 = vadd.f32 0.0, %v1209
      %v1211 = vpop.f32.mrb[0].mxu0
      %1212 = vmatprep.mubr.f32.mxu0 0.0
      %1213 = vmatmul.mubr.f32.gmra.mrb[0].mxu0 %v572
      %v1214 = vpop.f32.mrb[0].mxu0
      %v1215 = vadd.f32 0.0, %v1214
      %v1216 = vpop.f32.mrb[0].mxu0
      %1217 = vmatprep.mubr.f32.mxu0 0.0
      %1218 = vmatmul.mubr.f32.gmra.mrb[0].mxu0 %v571
      %v1219 = vpop.f32.mrb[0].mxu0
      %v1220 = vadd.f32 0.0, %v1219
      %v1221 = vpop.f32.mrb[0].mxu0
      %1222 = vmatprep.mubr.f32.mxu0 0.0
      %1223 = vmatmul.mubr.f32.gmra.mrb[0].mxu0 %v570
      %v1224 = vpop.f32.mrb[0].mxu0
      %v1225 = vadd.f32 0.0, %v1224
      %v1226 = vpop.f32.mrb[0].mxu0
      %1227 = vmatprep.mubr.f32.mxu0 0.0
      %1228 = vmatmul.mubr.f32.gmra.mrb[0].mxu0 %v569
      %v1229 = vpop.f32.mrb[0].mxu0
      %v1230 = vadd.f32 0.0, %v1229
      %v1231 = vpop.f32.mrb[0].mxu0
      %1232 = vmatprep.mubr.f32.mxu0 0.0
      %1233 = vmatmul.mubr.f32.gmra.mrb[0].mxu0 %v568
      %v1234 = vpop.f32.mrb[0].mxu0
      %v1235 = vadd.f32 0.0, %v1234
      %v1236 = vpop.f32.mrb[0].mxu0
      %1237 = vmatprep.mubr.f32.mxu0 0.0
      %1238 = vmatmul.mubr.f32.gmra.mrb[0].mxu0 %v567
      %v1239 = vpop.f32.mrb[0].mxu0
      %v1240 = vadd.f32 0.0, %v1239
      %v1241 = vpop.f32.mrb[0].mxu0
      %1242 = vmatprep.mubr.f32.mxu0 0.0
      %1243 = vmatmul.mubr.f32.gmra.mrb[0].mxu0 %v566
      %v1244 = vpop.f32.mrb[0].mxu0
      %v1245 = vadd.f32 0.0, %v1244
      %v1246 = vpop.f32.mrb[0].mxu0
      %1247 = vmatprep.mubr.f32.mxu0 0.0
      %1248 = vmatmul.mubr.f32.gmra.mrb[0].mxu0 %v565
      %v1249 = vpop.f32.mrb[0].mxu0
      %v1250 = vadd.f32 0.0, %v1249
      %v1251 = vpop.f32.mrb[0].mxu0
      %1252 = vmatprep.mubr.f32.mxu0 0.0
      %1253 = vmatmul.mubr.f32.gmra.mrb[0].mxu0 %v564
      %v1254 = vpop.f32.mrb[0].mxu0
      %v1255 = vadd.f32 0.0, %v1254
      %v1256 = vpop.f32.mrb[0].mxu0
      %1257 = vmatprep.mubr.f32.mxu0 0.0
      %1258 = vmatmul.mubr.f32.gmra.mrb[0].mxu0 %v563
      %v1259 = vpop.f32.mrb[0].mxu0
      %v1260 = vadd.f32 0.0, %v1259
      %v1261 = vpop.f32.mrb[0].mxu0
      %1262 = vmatprep.mubr.f32.mxu0 0.0
      %1263 = vmatmul.mubr.f32.gmra.mrb[0].mxu0 %v562
      %v1264 = vpop.f32.mrb[0].mxu0
      %v1265 = vadd.f32 0.0, %v1264
      %v1266 = vpop.f32.mrb[0].mxu0
      %1267 = vmatprep.mubr.f32.mxu0 0.0
      %1268 = vmatmul.mubr.f32.gmra.mrb[0].mxu0 %v561
      %v1269 = vpop.f32.mrb[0].mxu0
      %v1270 = vadd.f32 0.0, %v1269
      %v1271 = vpop.f32.mrb[0].mxu0
      %1272 = vmatprep.mubr.f32.mxu0 0.0
      %1273 = vmatmul.mubr.f32.gmra.mrb[0].mxu0 %v560
      %v1274 = vpop.f32.mrb[0].mxu0
      %v1275 = vadd.f32 0.0, %v1274
      %v1276 = vpop.f32.mrb[0].mxu0
      %1277 = vmatprep.mubr.f32.mxu0 0.0
      %1278 = vmatmul.mubr.f32.gmra.mrb[0].mxu0 %v559
      %v1279 = vpop.f32.mrb[0].mxu0
      %v1280 = vadd.f32 0.0, %v1279
      %v1281 = vpop.f32.mrb[0].mxu0
      %1282 = vmatprep.mubr.f32.mxu0 0.0
      %1283 = vmatmul.mubr.f32.gmra.mrb[0].mxu0 %v558
      %v1284 = vpop.f32.mrb[0].mxu0
      %v1285 = vadd.f32 0.0, %v1284
      %v1286 = vpop.f32.mrb[0].mxu0
      %1287 = vmatprep.mubr.f32.mxu0 0.0
      %1288 = vmatmul.mubr.f32.gmra.mrb[0].mxu0 %v557
      %v1289 = vpop.f32.mrb[0].mxu0
      %v1290 = vadd.f32 0.0, %v1289
      %v1291 = vpop.f32.mrb[0].mxu0
      %1292 = vmatprep.mubr.f32.mxu0 0.0
      %1293 = vmatmul.mubr.f32.gmra.mrb[0].mxu0 %v556
      %v1294 = vpop.f32.mrb[0].mxu0
      %v1295 = vadd.f32 0.0, %v1294
      %v1296 = vpop.f32.mrb[0].mxu0
      %1297 = vmatprep.mubr.f32.mxu0 0.0
      %1298 = vmatmul.mubr.f32.gmra.mrb[0].mxu0 %v555
      %v1299 = vpop.f32.mrb[0].mxu0
      %v1300 = vadd.f32 0.0, %v1299
      %v1301 = vpop.f32.mrb[0].mxu0
      %1302 = vmatprep.mubr.f32.mxu0 0.0
      %1303 = vmatmul.mubr.f32.gmra.mrb[0].mxu0 %v554
      %v1304 = vpop.f32.mrb[0].mxu0
      %v1305 = vadd.f32 0.0, %v1304
      %v1306 = vpop.f32.mrb[0].mxu0
      %1307 = vmatprep.mubr.f32.mxu0 0.0
      %1308 = vmatmul.mubr.f32.gmra.mrb[0].mxu0 %v553
      %v1309 = vpop.f32.mrb[0].mxu0
      %v1310 = vadd.f32 0.0, %v1309
      %v1311 = vpop.f32.mrb[0].mxu0
      %1312 = vmatprep.mubr.f32.mxu0 0.0
      %1313 = vmatmul.mubr.f32.gmra.mrb[0].mxu0 %v552
      %v1314 = vpop.f32.mrb[0].mxu0
      %v1315 = vadd.f32 0.0, %v1314
      %v1316 = vpop.f32.mrb[0].mxu0
      %1317 = vmatprep.mubr.f32.mxu0 0.0
      %1318 = vmatmul.mubr.f32.gmra.mrb[0].mxu0 %v551
      %v1319 = vpop.f32.mrb[0].mxu0
      %v1320 = vadd.f32 0.0, %v1319
      %v1321 = vpop.f32.mrb[0].mxu0
      %1322 = vmatprep.mubr.f32.mxu0 0.0
      %1323 = vmatmul.mubr.f32.gmra.mrb[0].mxu0 %v550
      %v1324 = vpop.f32.mrb[0].mxu0
      %v1325 = vadd.f32 0.0, %v1324
      %v1326 = vpop.f32.mrb[0].mxu0
      %1327 = vmatprep.mubr.f32.mxu0 0.0
      %1328 = vmatmul.mubr.f32.gmra.mrb[0].mxu0 %v549
      %v1329 = vpop.f32.mrb[0].mxu0
      %v1330 = vadd.f32 0.0, %v1329
      %v1331 = vpop.f32.mrb[0].mxu0
      %1332 = vmatprep.mubr.f32.mxu0 0.0
      %1333 = vmatmul.mubr.f32.gmra.mrb[0].mxu0 %v548
      %v1334 = vpop.f32.mrb[0].mxu0
      %v1335 = vadd.f32 0.0, %v1334
      %v1336 = vpop.f32.mrb[0].mxu0
      %1337 = vmatprep.mubr.f32.mxu0 0.0
      %1338 = vmatmul.mubr.f32.gmra.mrb[0].mxu0 %v547
      %v1339 = vpop.f32.mrb[0].mxu0
      %v1340 = vadd.f32 0.0, %v1339
      %v1341 = vpop.f32.mrb[0].mxu0
      %1342 = vmatprep.mubr.f32.mxu0 0.0
      %1343 = vmatmul.mubr.f32.gmra.mrb[0].mxu0 %v546
      %v1344 = vpop.f32.mrb[0].mxu0
      %v1345 = vadd.f32 0.0, %v1344
      %v1346 = vpop.f32.mrb[0].mxu0
      %1347 = vmatprep.mubr.f32.mxu0 0.0
      %1348 = vmatmul.mubr.f32.gmra.mrb[0].mxu0 %v545
      %v1349 = vpop.f32.mrb[0].mxu0
      %v1350 = vadd.f32 0.0, %v1349
      %v1351 = vpop.f32.mrb[0].mxu0
      %1352 = vmatprep.mubr.f32.mxu0 0.0
      %1353 = vmatmul.mubr.f32.gmra.mrb[0].mxu0 %v544
      %v1354 = vpop.f32.mrb[0].mxu0
      %v1355 = vadd.f32 0.0, %v1354
      %v1356 = vpop.f32.mrb[0].mxu0
      %1357 = vmatprep.mubr.f32.mxu0 0.0
      %1358 = vmatmul.mubr.f32.gmra.mrb[0].mxu0 %v543
      %v1359 = vpop.f32.mrb[0].mxu0
      %v1360 = vadd.f32 0.0, %v1359
      %v1361 = vpop.f32.mrb[0].mxu0
      %1362 = vmatprep.mubr.f32.mxu0 0.0
      %1363 = vmatmul.mubr.f32.gmra.mrb[0].mxu0 %v542
      %v1364 = vpop.f32.mrb[0].mxu0
      %v1365 = vadd.f32 0.0, %v1364
      %v1366 = vpop.f32.mrb[0].mxu0
      %1367 = vmatprep.mubr.f32.mxu0 0.0
      %1368 = vmatmul.mubr.f32.gmra.mrb[0].mxu0 %v541
      %v1369 = vpop.f32.mrb[0].mxu0
      %v1370 = vadd.f32 0.0, %v1369
      %v1371 = vpop.f32.mrb[0].mxu0
      %1372 = vmatprep.mubr.f32.mxu0 0.0
      %1373 = vmatmul.mubr.f32.gmra.mrb[0].mxu0 %v540
      %v1374 = vpop.f32.mrb[0].mxu0
      %v1375 = vadd.f32 0.0, %v1374
      %v1376 = vpop.f32.mrb[0].mxu0
      %1377 = vmatprep.mubr.f32.mxu0 0.0
      %1378 = vmatmul.mubr.f32.gmra.mrb[0].mxu0 %v539
      %v1379 = vpop.f32.mrb[0].mxu0
      %v1380 = vadd.f32 0.0, %v1379
      %v1381 = vpop.f32.mrb[0].mxu0
      %1382 = vmatprep.mubr.f32.mxu0 0.0
      %1383 = vmatmul.mubr.f32.gmra.mrb[0].mxu0 %v538
      %v1384 = vpop.f32.mrb[0].mxu0
      %v1385 = vadd.f32 0.0, %v1384
      %v1386 = vpop.f32.mrb[0].mxu0
      %1387 = vdwg.mxu0
      %1388 = vmatprep.subr.mxu0 0.0
      %1389 = vmatpush1.msra.mxu0 %v359
      %1390 = vmatprep.subr.mxu0 0.0
      %1391 = vmatpush1.msra.mxu0 %v360
      %1392 = vmatprep.subr.mxu0 0.0
      %1393 = vmatpush1.msra.mxu0 %v361
      %1394 = vmatprep.subr.mxu0 0.0
      %1395 = vmatpush1.msra.mxu0 %v362
      %1396 = vmatprep.subr.mxu0 0.0
      %1397 = vmatpush1.msra.mxu0 %v363
      %1398 = vmatprep.subr.mxu0 0.0
      %1399 = vmatpush1.msra.mxu0 %v364
      %1400 = vmatprep.subr.mxu0 0.0
      %1401 = vmatpush1.msra.mxu0 %v365
      %1402 = vmatprep.subr.mxu0 0.0
      %1403 = vmatpush1.msra.mxu0 %v366
      %1404 = vmatprep.subr.mxu0 0.0
      %1405 = vmatpush1.msra.mxu0 %v367
      %1406 = vmatprep.subr.mxu0 0.0
      %1407 = vmatpush1.msra.mxu0 %v368
      %1408 = vmatprep.subr.mxu0 0.0
      %1409 = vmatpush1.msra.mxu0 %v369
      %1410 = vmatprep.subr.mxu0 0.0
      %1411 = vmatpush1.msra.mxu0 %v370
      %1412 = vmatprep.subr.mxu0 0.0
      %1413 = vmatpush1.msra.mxu0 %v371
      %1414 = vmatprep.subr.mxu0 0.0
      %1415 = vmatpush1.msra.mxu0 %v372
      %1416 = vmatprep.subr.mxu0 0.0
      %1417 = vmatpush1.msra.mxu0 %v373
      %1418 = vmatprep.subr.mxu0 0.0
      %1419 = vmatpush1.msra.mxu0 %v374
      %1420 = vmatprep.subr.mxu0 0.0
      %1421 = vmatpush1.msra.mxu0 0.0
      %1422 = vmatprep.subr.mxu0 0.0
      %1423 = vmatpush1.msra.mxu0 0.0
      %1424 = vmatprep.subr.mxu0 0.0
      %1425 = vmatpush1.msra.mxu0 0.0
      %1426 = vmatprep.subr.mxu0 0.0
      %1427 = vmatpush1.msra.mxu0 0.0
      %1428 = vmatprep.subr.mxu0 0.0
      %1429 = vmatpush1.msra.mxu0 0.0
      %1430 = vmatprep.subr.mxu0 0.0
      %1431 = vmatpush1.msra.mxu0 0.0
      %1432 = vmatprep.subr.mxu0 0.0
      %1433 = vmatpush1.msra.mxu0 0.0
      %1434 = vmatprep.subr.mxu0 0.0
      %1435 = vmatpush1.msra.mxu0 0.0
      %1436 = vmatprep.subr.mxu0 0.0
      %1437 = vmatpush1.msra.mxu0 0.0
      %1438 = vmatprep.subr.mxu0 0.0
      %1439 = vmatpush1.msra.mxu0 0.0
      %1440 = vmatprep.subr.mxu0 0.0
      %1441 = vmatpush1.msra.mxu0 0.0
      %1442 = vmatprep.subr.mxu0 0.0
      %1443 = vmatpush1.msra.mxu0 0.0
      %1444 = vmatprep.subr.mxu0 0.0
      %1445 = vmatpush1.msra.mxu0 0.0
      %1446 = vmatprep.subr.mxu0 0.0
      %1447 = vmatpush1.msra.mxu0 0.0
      %1448 = vmatprep.subr.mxu0 0.0
      %1449 = vmatpush1.msra.mxu0 0.0
      %1450 = vmatprep.subr.mxu0 0.0
      %1451 = vmatpush1.msra.mxu0 0.0
      %1452 = vmatprep.mubr.f32.mxu0 0.0
      %1453 = vmatmul.mubr.f32.gmra.mrb[0].mxu0 %v199
      %v1454 = vpop.f32.mrb[0].mxu0
      %v1455 = vadd.f32 %v750, %v1454
      %v1456 = vpop.f32.mrb[0].mxu0
      %1457 = vmatprep.mubr.f32.mxu0 0.0
      %1458 = vmatmul.mubr.f32.gmra.mrb[0].mxu0 %v200
      %v1459 = vpop.f32.mrb[0].mxu0
      %v1460 = vadd.f32 %v755, %v1459
      %v1461 = vpop.f32.mrb[0].mxu0
      %1462 = vmatprep.mubr.f32.mxu0 0.0
      %1463 = vmatmul.mubr.f32.gmra.mrb[0].mxu0 %v201
      %v1464 = vpop.f32.mrb[0].mxu0
      %v1465 = vadd.f32 %v760, %v1464
      %v1466 = vpop.f32.mrb[0].mxu0
      %1467 = vmatprep.mubr.f32.mxu0 0.0
      %1468 = vmatmul.mubr.f32.gmra.mrb[0].mxu0 %v202
      %v1469 = vpop.f32.mrb[0].mxu0
      %v1470 = vadd.f32 %v765, %v1469
      %v1471 = vpop.f32.mrb[0].mxu0
      %1472 = vmatprep.mubr.f32.mxu0 0.0
      %1473 = vmatmul.mubr.f32.gmra.mrb[0].mxu0 %v204
      %v1474 = vpop.f32.mrb[0].mxu0
      %v1475 = vadd.f32 %v770, %v1474
      %v1476 = vpop.f32.mrb[0].mxu0
      %1477 = vmatprep.mubr.f32.mxu0 0.0
      %1478 = vmatmul.mubr.f32.gmra.mrb[0].mxu0 %v205
      %v1479 = vpop.f32.mrb[0].mxu0
      %v1480 = vadd.f32 %v775, %v1479
      %v1481 = vpop.f32.mrb[0].mxu0
      %1482 = vmatprep.mubr.f32.mxu0 0.0
      %1483 = vmatmul.mubr.f32.gmra.mrb[0].mxu0 %v206
      %v1484 = vpop.f32.mrb[0].mxu0
      %v1485 = vadd.f32 %v780, %v1484
      %v1486 = vpop.f32.mrb[0].mxu0
      %1487 = vmatprep.mubr.f32.mxu0 0.0
      %1488 = vmatmul.mubr.f32.gmra.mrb[0].mxu0 %v207
      %v1489 = vpop.f32.mrb[0].mxu0
      %v1490 = vadd.f32 %v785, %v1489
      %v1491 = vpop.f32.mrb[0].mxu0
      %1492 = vmatprep.mubr.f32.mxu0 0.0
      %1493 = vmatmul.mubr.f32.gmra.mrb[0].mxu0 %v209
      %v1494 = vpop.f32.mrb[0].mxu0
      %v1495 = vadd.f32 %v790, %v1494
      %v1496 = vpop.f32.mrb[0].mxu0
      %1497 = vmatprep.mubr.f32.mxu0 0.0
      %1498 = vmatmul.mubr.f32.gmra.mrb[0].mxu0 %v210
      %v1499 = vpop.f32.mrb[0].mxu0
      %v1500 = vadd.f32 %v795, %v1499
      %v1501 = vpop.f32.mrb[0].mxu0
      %1502 = vmatprep.mubr.f32.mxu0 0.0
      %1503 = vmatmul.mubr.f32.gmra.mrb[0].mxu0 %v211
      %v1504 = vpop.f32.mrb[0].mxu0
      %v1505 = vadd.f32 %v800, %v1504
      %v1506 = vpop.f32.mrb[0].mxu0
      %1507 = vmatprep.mubr.f32.mxu0 0.0
      %1508 = vmatmul.mubr.f32.gmra.mrb[0].mxu0 %v212
      %v1509 = vpop.f32.mrb[0].mxu0
      %v1510 = vadd.f32 %v805, %v1509
      %v1511 = vpop.f32.mrb[0].mxu0
      %1512 = vmatprep.mubr.f32.mxu0 0.0
      %1513 = vmatmul.mubr.f32.gmra.mrb[0].mxu0 %v214
      %v1514 = vpop.f32.mrb[0].mxu0
      %v1515 = vadd.f32 %v810, %v1514
      %v1516 = vpop.f32.mrb[0].mxu0
      %1517 = vmatprep.mubr.f32.mxu0 0.0
      %1518 = vmatmul.mubr.f32.gmra.mrb[0].mxu0 %v215
      %v1519 = vpop.f32.mrb[0].mxu0
      %v1520 = vadd.f32 %v815, %v1519
      %v1521 = vpop.f32.mrb[0].mxu0
      %1522 = vmatprep.mubr.f32.mxu0 0.0
      %1523 = vmatmul.mubr.f32.gmra.mrb[0].mxu0 %v216
      %v1524 = vpop.f32.mrb[0].mxu0
      %v1525 = vadd.f32 %v820, %v1524
      %v1526 = vpop.f32.mrb[0].mxu0
      %1527 = vmatprep.mubr.f32.mxu0 0.0
      %1528 = vmatmul.mubr.f32.gmra.mrb[0].mxu0 %v217
      %v1529 = vpop.f32.mrb[0].mxu0
      %v1530 = vadd.f32 %v825, %v1529
      %v1531 = vpop.f32.mrb[0].mxu0
      %1532 = vmatprep.mubr.f32.mxu0 0.0
      %1533 = vmatmul.mubr.f32.gmra.mrb[0].mxu0 %v219
      %v1534 = vpop.f32.mrb[0].mxu0
      %v1535 = vadd.f32 %v830, %v1534
      %v1536 = vpop.f32.mrb[0].mxu0
      %1537 = vmatprep.mubr.f32.mxu0 0.0
      %1538 = vmatmul.mubr.f32.gmra.mrb[0].mxu0 %v220
      %v1539 = vpop.f32.mrb[0].mxu0
      %v1540 = vadd.f32 %v835, %v1539
      %v1541 = vpop.f32.mrb[0].mxu0
      %1542 = vmatprep.mubr.f32.mxu0 0.0
      %1543 = vmatmul.mubr.f32.gmra.mrb[0].mxu0 %v221
      %v1544 = vpop.f32.mrb[0].mxu0
      %v1545 = vadd.f32 %v840, %v1544
      %v1546 = vpop.f32.mrb[0].mxu0
      %1547 = vmatprep.mubr.f32.mxu0 0.0
      %1548 = vmatmul.mubr.f32.gmra.mrb[0].mxu0 %v222
      %v1549 = vpop.f32.mrb[0].mxu0
      %v1550 = vadd.f32 %v845, %v1549
      %v1551 = vpop.f32.mrb[0].mxu0
      %1552 = vmatprep.mubr.f32.mxu0 0.0
      %1553 = vmatmul.mubr.f32.gmra.mrb[0].mxu0 %v224
      %v1554 = vpop.f32.mrb[0].mxu0
      %v1555 = vadd.f32 %v850, %v1554
      %v1556 = vpop.f32.mrb[0].mxu0
      %1557 = vmatprep.mubr.f32.mxu0 0.0
      %1558 = vmatmul.mubr.f32.gmra.mrb[0].mxu0 %v225
      %v1559 = vpop.f32.mrb[0].mxu0
      %v1560 = vadd.f32 %v855, %v1559
      %v1561 = vpop.f32.mrb[0].mxu0
      %1562 = vmatprep.mubr.f32.mxu0 0.0
      %1563 = vmatmul.mubr.f32.gmra.mrb[0].mxu0 %v226
      %v1564 = vpop.f32.mrb[0].mxu0
      %v1565 = vadd.f32 %v860, %v1564
      %v1566 = vpop.f32.mrb[0].mxu0
      %1567 = vmatprep.mubr.f32.mxu0 0.0
      %1568 = vmatmul.mubr.f32.gmra.mrb[0].mxu0 %v227
      %v1569 = vpop.f32.mrb[0].mxu0
      %v1570 = vadd.f32 %v865, %v1569
      %v1571 = vpop.f32.mrb[0].mxu0
      %1572 = vmatprep.mubr.f32.mxu0 0.0
      %1573 = vmatmul.mubr.f32.gmra.mrb[0].mxu0 %v229
      %v1574 = vpop.f32.mrb[0].mxu0
      %v1575 = vadd.f32 %v870, %v1574
      %v1576 = vpop.f32.mrb[0].mxu0
      %1577 = vmatprep.mubr.f32.mxu0 0.0
      %1578 = vmatmul.mubr.f32.gmra.mrb[0].mxu0 %v230
      %v1579 = vpop.f32.mrb[0].mxu0
      %v1580 = vadd.f32 %v875, %v1579
      %v1581 = vpop.f32.mrb[0].mxu0
      %1582 = vmatprep.mubr.f32.mxu0 0.0
      %1583 = vmatmul.mubr.f32.gmra.mrb[0].mxu0 %v231
      %v1584 = vpop.f32.mrb[0].mxu0
      %v1585 = vadd.f32 %v880, %v1584
      %v1586 = vpop.f32.mrb[0].mxu0
      %1587 = vmatprep.mubr.f32.mxu0 0.0
      %1588 = vmatmul.mubr.f32.gmra.mrb[0].mxu0 %v232
      %v1589 = vpop.f32.mrb[0].mxu0
      %v1590 = vadd.f32 %v885, %v1589
      %v1591 = vpop.f32.mrb[0].mxu0
      %1592 = vmatprep.mubr.f32.mxu0 0.0
      %1593 = vmatmul.mubr.f32.gmra.mrb[0].mxu0 %v234
      %v1594 = vpop.f32.mrb[0].mxu0
      %v1595 = vadd.f32 %v890, %v1594
      %v1596 = vpop.f32.mrb[0].mxu0
      %1597 = vmatprep.mubr.f32.mxu0 0.0
      %1598 = vmatmul.mubr.f32.gmra.mrb[0].mxu0 %v235
      %v1599 = vpop.f32.mrb[0].mxu0
      %v1600 = vadd.f32 %v895, %v1599
      %v1601 = vpop.f32.mrb[0].mxu0
      %1602 = vmatprep.mubr.f32.mxu0 0.0
      %1603 = vmatmul.mubr.f32.gmra.mrb[0].mxu0 %v236
      %v1604 = vpop.f32.mrb[0].mxu0
      %v1605 = vadd.f32 %v900, %v1604
      %v1606 = vpop.f32.mrb[0].mxu0
      %1607 = vmatprep.mubr.f32.mxu0 0.0
      %1608 = vmatmul.mubr.f32.gmra.mrb[0].mxu0 %v237
      %v1609 = vpop.f32.mrb[0].mxu0
      %v1610 = vadd.f32 %v905, %v1609
      %v1611 = vpop.f32.mrb[0].mxu0
      %1612 = vmatprep.mubr.f32.mxu0 0.0
      %1613 = vmatmul.mubr.f32.gmra.mrb[0].mxu0 %v239
      %v1614 = vpop.f32.mrb[0].mxu0
      %v1615 = vadd.f32 %v910, %v1614
      %v1616 = vpop.f32.mrb[0].mxu0
      %1617 = vmatprep.mubr.f32.mxu0 0.0
      %1618 = vmatmul.mubr.f32.gmra.mrb[0].mxu0 %v240
      %v1619 = vpop.f32.mrb[0].mxu0
      %v1620 = vadd.f32 %v915, %v1619
      %v1621 = vpop.f32.mrb[0].mxu0
      %1622 = vmatprep.mubr.f32.mxu0 0.0
      %1623 = vmatmul.mubr.f32.gmra.mrb[0].mxu0 %v241
      %v1624 = vpop.f32.mrb[0].mxu0
      %v1625 = vadd.f32 %v920, %v1624
      %v1626 = vpop.f32.mrb[0].mxu0
      %1627 = vmatprep.mubr.f32.mxu0 0.0
      %1628 = vmatmul.mubr.f32.gmra.mrb[0].mxu0 %v242
      %v1629 = vpop.f32.mrb[0].mxu0
      %v1630 = vadd.f32 %v925, %v1629
      %v1631 = vpop.f32.mrb[0].mxu0
      %1632 = vmatprep.mubr.f32.mxu0 0.0
      %1633 = vmatmul.mubr.f32.gmra.mrb[0].mxu0 %v244
      %v1634 = vpop.f32.mrb[0].mxu0
      %v1635 = vadd.f32 %v930, %v1634
      %v1636 = vpop.f32.mrb[0].mxu0
      %1637 = vmatprep.mubr.f32.mxu0 0.0
      %1638 = vmatmul.mubr.f32.gmra.mrb[0].mxu0 %v245
      %v1639 = vpop.f32.mrb[0].mxu0
      %v1640 = vadd.f32 %v935, %v1639
      %v1641 = vpop.f32.mrb[0].mxu0
      %1642 = vmatprep.mubr.f32.mxu0 0.0
      %1643 = vmatmul.mubr.f32.gmra.mrb[0].mxu0 %v246
      %v1644 = vpop.f32.mrb[0].mxu0
      %v1645 = vadd.f32 %v940, %v1644
      %v1646 = vpop.f32.mrb[0].mxu0
      %1647 = vmatprep.mubr.f32.mxu0 0.0
      %1648 = vmatmul.mubr.f32.gmra.mrb[0].mxu0 %v247
      %v1649 = vpop.f32.mrb[0].mxu0
      %v1650 = vadd.f32 %v945, %v1649
      %v1651 = vpop.f32.mrb[0].mxu0
      %1652 = vmatprep.mubr.f32.mxu0 0.0
      %1653 = vmatmul.mubr.f32.gmra.mrb[0].mxu0 %v249
      %v1654 = vpop.f32.mrb[0].mxu0
      %v1655 = vadd.f32 %v950, %v1654
      %v1656 = vpop.f32.mrb[0].mxu0
      %1657 = vmatprep.mubr.f32.mxu0 0.0
      %1658 = vmatmul.mubr.f32.gmra.mrb[0].mxu0 %v250
      %v1659 = vpop.f32.mrb[0].mxu0
      %v1660 = vadd.f32 %v955, %v1659
      %v1661 = vpop.f32.mrb[0].mxu0
      %1662 = vmatprep.mubr.f32.mxu0 0.0
      %1663 = vmatmul.mubr.f32.gmra.mrb[0].mxu0 %v251
      %v1664 = vpop.f32.mrb[0].mxu0
      %v1665 = vadd.f32 %v960, %v1664
      %v1666 = vpop.f32.mrb[0].mxu0
      %1667 = vmatprep.mubr.f32.mxu0 0.0
      %1668 = vmatmul.mubr.f32.gmra.mrb[0].mxu0 %v252
      %v1669 = vpop.f32.mrb[0].mxu0
      %v1670 = vadd.f32 %v965, %v1669
      %v1671 = vpop.f32.mrb[0].mxu0
      %1672 = vmatprep.mubr.f32.mxu0 0.0
      %1673 = vmatmul.mubr.f32.gmra.mrb[0].mxu0 %v254
      %v1674 = vpop.f32.mrb[0].mxu0
      %v1675 = vadd.f32 %v970, %v1674
      %v1676 = vpop.f32.mrb[0].mxu0
      %1677 = vmatprep.mubr.f32.mxu0 0.0
      %1678 = vmatmul.mubr.f32.gmra.mrb[0].mxu0 %v255
      %v1679 = vpop.f32.mrb[0].mxu0
      %v1680 = vadd.f32 %v975, %v1679
      %v1681 = vpop.f32.mrb[0].mxu0
      %1682 = vmatprep.mubr.f32.mxu0 0.0
      %1683 = vmatmul.mubr.f32.gmra.mrb[0].mxu0 %v256
      %v1684 = vpop.f32.mrb[0].mxu0
      %v1685 = vadd.f32 %v980, %v1684
      %v1686 = vpop.f32.mrb[0].mxu0
      %1687 = vmatprep.mubr.f32.mxu0 0.0
      %1688 = vmatmul.mubr.f32.gmra.mrb[0].mxu0 %v257
      %v1689 = vpop.f32.mrb[0].mxu0
      %v1690 = vadd.f32 %v985, %v1689
      %v1691 = vpop.f32.mrb[0].mxu0
      %1692 = vmatprep.mubr.f32.mxu0 0.0
      %1693 = vmatmul.mubr.f32.gmra.mrb[0].mxu0 %v259
      %v1694 = vpop.f32.mrb[0].mxu0
      %v1695 = vadd.f32 %v990, %v1694
      %v1696 = vpop.f32.mrb[0].mxu0
      %1697 = vmatprep.mubr.f32.mxu0 0.0
      %1698 = vmatmul.mubr.f32.gmra.mrb[0].mxu0 %v260
      %v1699 = vpop.f32.mrb[0].mxu0
      %v1700 = vadd.f32 %v995, %v1699
      %v1701 = vpop.f32.mrb[0].mxu0
      %1702 = vmatprep.mubr.f32.mxu0 0.0
      %1703 = vmatmul.mubr.f32.gmra.mrb[0].mxu0 %v261
      %v1704 = vpop.f32.mrb[0].mxu0
      %v1705 = vadd.f32 %v1000, %v1704
      %v1706 = vpop.f32.mrb[0].mxu0
      %1707 = vmatprep.mubr.f32.mxu0 0.0
      %1708 = vmatmul.mubr.f32.gmra.mrb[0].mxu0 %v262
      %v1709 = vpop.f32.mrb[0].mxu0
      %v1710 = vadd.f32 %v1005, %v1709
      %v1711 = vpop.f32.mrb[0].mxu0
      %1712 = vmatprep.mubr.f32.mxu0 0.0
      %1713 = vmatmul.mubr.f32.gmra.mrb[0].mxu0 %v264
      %v1714 = vpop.f32.mrb[0].mxu0
      %v1715 = vadd.f32 %v1010, %v1714
      %v1716 = vpop.f32.mrb[0].mxu0
      %1717 = vmatprep.mubr.f32.mxu0 0.0
      %1718 = vmatmul.mubr.f32.gmra.mrb[0].mxu0 %v265
      %v1719 = vpop.f32.mrb[0].mxu0
      %v1720 = vadd.f32 %v1015, %v1719
      %v1721 = vpop.f32.mrb[0].mxu0
      %1722 = vmatprep.mubr.f32.mxu0 0.0
      %1723 = vmatmul.mubr.f32.gmra.mrb[0].mxu0 %v266
      %v1724 = vpop.f32.mrb[0].mxu0
      %v1725 = vadd.f32 %v1020, %v1724
      %v1726 = vpop.f32.mrb[0].mxu0
      %1727 = vmatprep.mubr.f32.mxu0 0.0
      %1728 = vmatmul.mubr.f32.gmra.mrb[0].mxu0 %v267
      %v1729 = vpop.f32.mrb[0].mxu0
      %v1730 = vadd.f32 %v1025, %v1729
      %v1731 = vpop.f32.mrb[0].mxu0
      %1732 = vmatprep.mubr.f32.mxu0 0.0
      %1733 = vmatmul.mubr.f32.gmra.mrb[0].mxu0 %v269
      %v1734 = vpop.f32.mrb[0].mxu0
      %v1735 = vadd.f32 %v1030, %v1734
      %v1736 = vpop.f32.mrb[0].mxu0
      %1737 = vmatprep.mubr.f32.mxu0 0.0
      %1738 = vmatmul.mubr.f32.gmra.mrb[0].mxu0 %v270
      %v1739 = vpop.f32.mrb[0].mxu0
      %v1740 = vadd.f32 %v1035, %v1739
      %v1741 = vpop.f32.mrb[0].mxu0
      %1742 = vmatprep.mubr.f32.mxu0 0.0
      %1743 = vmatmul.mubr.f32.gmra.mrb[0].mxu0 %v271
      %v1744 = vpop.f32.mrb[0].mxu0
      %v1745 = vadd.f32 %v1040, %v1744
      %v1746 = vpop.f32.mrb[0].mxu0
      %1747 = vmatprep.mubr.f32.mxu0 0.0
      %1748 = vmatmul.mubr.f32.gmra.mrb[0].mxu0 %v272
      %v1749 = vpop.f32.mrb[0].mxu0
      %v1750 = vadd.f32 %v1045, %v1749
      %v1751 = vpop.f32.mrb[0].mxu0
      %1752 = vmatprep.mubr.f32.mxu0 0.0
      %1753 = vmatmul.mubr.f32.gmra.mrb[0].mxu0 %v274
      %v1754 = vpop.f32.mrb[0].mxu0
      %v1755 = vadd.f32 %v1050, %v1754
      %v1756 = vpop.f32.mrb[0].mxu0
      %1757 = vmatprep.mubr.f32.mxu0 0.0
      %1758 = vmatmul.mubr.f32.gmra.mrb[0].mxu0 %v275
      %v1759 = vpop.f32.mrb[0].mxu0
      %v1760 = vadd.f32 %v1055, %v1759
      %v1761 = vpop.f32.mrb[0].mxu0
      %1762 = vmatprep.mubr.f32.mxu0 0.0
      %1763 = vmatmul.mubr.f32.gmra.mrb[0].mxu0 %v276
      %v1764 = vpop.f32.mrb[0].mxu0
      %v1765 = vadd.f32 %v1060, %v1764
      %v1766 = vpop.f32.mrb[0].mxu0
      %1767 = vmatprep.mubr.f32.mxu0 0.0
      %1768 = vmatmul.mubr.f32.gmra.mrb[0].mxu0 %v277
      %v1769 = vpop.f32.mrb[0].mxu0
      %v1770 = vadd.f32 %v1065, %v1769
      %v1771 = vpop.f32.mrb[0].mxu0
      %1772 = vmatprep.mubr.f32.mxu0 0.0
      %1773 = vmatmul.mubr.f32.gmra.mrb[0].mxu0 %v279
      %v1774 = vpop.f32.mrb[0].mxu0
      %v1775 = vadd.f32 %v1070, %v1774
      %v1776 = vpop.f32.mrb[0].mxu0
      %1777 = vmatprep.mubr.f32.mxu0 0.0
      %1778 = vmatmul.mubr.f32.gmra.mrb[0].mxu0 %v280
      %v1779 = vpop.f32.mrb[0].mxu0
      %v1780 = vadd.f32 %v1075, %v1779
      %v1781 = vpop.f32.mrb[0].mxu0
      %1782 = vmatprep.mubr.f32.mxu0 0.0
      %1783 = vmatmul.mubr.f32.gmra.mrb[0].mxu0 %v281
      %v1784 = vpop.f32.mrb[0].mxu0
      %v1785 = vadd.f32 %v1080, %v1784
      %v1786 = vpop.f32.mrb[0].mxu0
      %1787 = vmatprep.mubr.f32.mxu0 0.0
      %1788 = vmatmul.mubr.f32.gmra.mrb[0].mxu0 %v282
      %v1789 = vpop.f32.mrb[0].mxu0
      %v1790 = vadd.f32 %v1085, %v1789
      %v1791 = vpop.f32.mrb[0].mxu0
      %1792 = vmatprep.mubr.f32.mxu0 0.0
      %1793 = vmatmul.mubr.f32.gmra.mrb[0].mxu0 %v284
      %v1794 = vpop.f32.mrb[0].mxu0
      %v1795 = vadd.f32 %v1090, %v1794
      %v1796 = vpop.f32.mrb[0].mxu0
      %1797 = vmatprep.mubr.f32.mxu0 0.0
      %1798 = vmatmul.mubr.f32.gmra.mrb[0].mxu0 %v285
      %v1799 = vpop.f32.mrb[0].mxu0
      %v1800 = vadd.f32 %v1095, %v1799
      %v1801 = vpop.f32.mrb[0].mxu0
      %1802 = vmatprep.mubr.f32.mxu0 0.0
      %1803 = vmatmul.mubr.f32.gmra.mrb[0].mxu0 %v286
      %v1804 = vpop.f32.mrb[0].mxu0
      %v1805 = vadd.f32 %v1100, %v1804
      %v1806 = vpop.f32.mrb[0].mxu0
      %1807 = vmatprep.mubr.f32.mxu0 0.0
      %1808 = vmatmul.mubr.f32.gmra.mrb[0].mxu0 %v287
      %v1809 = vpop.f32.mrb[0].mxu0
      %v1810 = vadd.f32 %v1105, %v1809
      %v1811 = vpop.f32.mrb[0].mxu0
      %1812 = vmatprep.mubr.f32.mxu0 0.0
      %1813 = vmatmul.mubr.f32.gmra.mrb[0].mxu0 %v289
      %v1814 = vpop.f32.mrb[0].mxu0
      %v1815 = vadd.f32 %v1110, %v1814
      %v1816 = vpop.f32.mrb[0].mxu0
      %1817 = vmatprep.mubr.f32.mxu0 0.0
      %1818 = vmatmul.mubr.f32.gmra.mrb[0].mxu0 %v290
      %v1819 = vpop.f32.mrb[0].mxu0
      %v1820 = vadd.f32 %v1115, %v1819
      %v1821 = vpop.f32.mrb[0].mxu0
      %1822 = vmatprep.mubr.f32.mxu0 0.0
      %1823 = vmatmul.mubr.f32.gmra.mrb[0].mxu0 %v291
      %v1824 = vpop.f32.mrb[0].mxu0
      %v1825 = vadd.f32 %v1120, %v1824
      %v1826 = vpop.f32.mrb[0].mxu0
      %1827 = vmatprep.mubr.f32.mxu0 0.0
      %1828 = vmatmul.mubr.f32.gmra.mrb[0].mxu0 %v292
      %v1829 = vpop.f32.mrb[0].mxu0
      %v1830 = vadd.f32 %v1125, %v1829
      %v1831 = vpop.f32.mrb[0].mxu0
      %1832 = vmatprep.mubr.f32.mxu0 0.0
      %1833 = vmatmul.mubr.f32.gmra.mrb[0].mxu0 %v294
      %v1834 = vpop.f32.mrb[0].mxu0
      %v1835 = vadd.f32 %v1130, %v1834
      %v1836 = vpop.f32.mrb[0].mxu0
      %1837 = vmatprep.mubr.f32.mxu0 0.0
      %1838 = vmatmul.mubr.f32.gmra.mrb[0].mxu0 %v295
      %v1839 = vpop.f32.mrb[0].mxu0
      %v1840 = vadd.f32 %v1135, %v1839
      %v1841 = vpop.f32.mrb[0].mxu0
      %1842 = vmatprep.mubr.f32.mxu0 0.0
      %1843 = vmatmul.mubr.f32.gmra.mrb[0].mxu0 %v296
      %v1844 = vpop.f32.mrb[0].mxu0
      %v1845 = vadd.f32 %v1140, %v1844
      %v1846 = vpop.f32.mrb[0].mxu0
      %1847 = vmatprep.mubr.f32.mxu0 0.0
      %1848 = vmatmul.mubr.f32.gmra.mrb[0].mxu0 %v297
      %v1849 = vpop.f32.mrb[0].mxu0
      %v1850 = vadd.f32 %v1145, %v1849
      %v1851 = vpop.f32.mrb[0].mxu0
      %1852 = vmatprep.mubr.f32.mxu0 0.0
      %1853 = vmatmul.mubr.f32.gmra.mrb[0].mxu0 %v299
      %v1854 = vpop.f32.mrb[0].mxu0
      %v1855 = vadd.f32 %v1150, %v1854
      %v1856 = vpop.f32.mrb[0].mxu0
      %1857 = vmatprep.mubr.f32.mxu0 0.0
      %1858 = vmatmul.mubr.f32.gmra.mrb[0].mxu0 %v300
      %v1859 = vpop.f32.mrb[0].mxu0
      %v1860 = vadd.f32 %v1155, %v1859
      %v1861 = vpop.f32.mrb[0].mxu0
      %1862 = vmatprep.mubr.f32.mxu0 0.0
      %1863 = vmatmul.mubr.f32.gmra.mrb[0].mxu0 %v301
      %v1864 = vpop.f32.mrb[0].mxu0
      %v1865 = vadd.f32 %v1160, %v1864
      %v1866 = vpop.f32.mrb[0].mxu0
      %1867 = vmatprep.mubr.f32.mxu0 0.0
      %1868 = vmatmul.mubr.f32.gmra.mrb[0].mxu0 %v302
      %v1869 = vpop.f32.mrb[0].mxu0
      %v1870 = vadd.f32 %v1165, %v1869
      %v1871 = vpop.f32.mrb[0].mxu0
      %1872 = vmatprep.mubr.f32.mxu0 0.0
      %1873 = vmatmul.mubr.f32.gmra.mrb[0].mxu0 %v304
      %v1874 = vpop.f32.mrb[0].mxu0
      %v1875 = vadd.f32 %v1170, %v1874
      %v1876 = vpop.f32.mrb[0].mxu0
      %1877 = vmatprep.mubr.f32.mxu0 0.0
      %1878 = vmatmul.mubr.f32.gmra.mrb[0].mxu0 %v305
      %v1879 = vpop.f32.mrb[0].mxu0
      %v1880 = vadd.f32 %v1175, %v1879
      %v1881 = vpop.f32.mrb[0].mxu0
      %1882 = vmatprep.mubr.f32.mxu0 0.0
      %1883 = vmatmul.mubr.f32.gmra.mrb[0].mxu0 %v306
      %v1884 = vpop.f32.mrb[0].mxu0
      %v1885 = vadd.f32 %v1180, %v1884
      %v1886 = vpop.f32.mrb[0].mxu0
      %1887 = vmatprep.mubr.f32.mxu0 0.0
      %1888 = vmatmul.mubr.f32.gmra.mrb[0].mxu0 %v307
      %v1889 = vpop.f32.mrb[0].mxu0
      %v1890 = vadd.f32 %v1185, %v1889
      %v1891 = vpop.f32.mrb[0].mxu0
      %1892 = vmatprep.mubr.f32.mxu0 0.0
      %1893 = vmatmul.mubr.f32.gmra.mrb[0].mxu0 %v309
      %v1894 = vpop.f32.mrb[0].mxu0
      %v1895 = vadd.f32 %v1190, %v1894
      %v1896 = vpop.f32.mrb[0].mxu0
      %1897 = vmatprep.mubr.f32.mxu0 0.0
      %1898 = vmatmul.mubr.f32.gmra.mrb[0].mxu0 %v310
      %v1899 = vpop.f32.mrb[0].mxu0
      %v1900 = vadd.f32 %v1195, %v1899
      %v1901 = vpop.f32.mrb[0].mxu0
      %1902 = vmatprep.mubr.f32.mxu0 0.0
      %1903 = vmatmul.mubr.f32.gmra.mrb[0].mxu0 %v311
      %v1904 = vpop.f32.mrb[0].mxu0
      %v1905 = vadd.f32 %v1200, %v1904
      %v1906 = vpop.f32.mrb[0].mxu0
      %1907 = vmatprep.mubr.f32.mxu0 0.0
      %1908 = vmatmul.mubr.f32.gmra.mrb[0].mxu0 %v312
      %v1909 = vpop.f32.mrb[0].mxu0
      %v1910 = vadd.f32 %v1205, %v1909
      %v1911 = vpop.f32.mrb[0].mxu0
      %1912 = vmatprep.mubr.f32.mxu0 0.0
      %1913 = vmatmul.mubr.f32.gmra.mrb[0].mxu0 %v314
      %v1914 = vpop.f32.mrb[0].mxu0
      %v1915 = vadd.f32 %v1210, %v1914
      %v1916 = vpop.f32.mrb[0].mxu0
      %1917 = vmatprep.mubr.f32.mxu0 0.0
      %1918 = vmatmul.mubr.f32.gmra.mrb[0].mxu0 %v315
      %v1919 = vpop.f32.mrb[0].mxu0
      %v1920 = vadd.f32 %v1215, %v1919
      %v1921 = vpop.f32.mrb[0].mxu0
      %1922 = vmatprep.mubr.f32.mxu0 0.0
      %1923 = vmatmul.mubr.f32.gmra.mrb[0].mxu0 %v316
      %v1924 = vpop.f32.mrb[0].mxu0
      %v1925 = vadd.f32 %v1220, %v1924
      %v1926 = vpop.f32.mrb[0].mxu0
      %1927 = vmatprep.mubr.f32.mxu0 0.0
      %1928 = vmatmul.mubr.f32.gmra.mrb[0].mxu0 %v317
      %v1929 = vpop.f32.mrb[0].mxu0
      %v1930 = vadd.f32 %v1225, %v1929
      %v1931 = vpop.f32.mrb[0].mxu0
      %1932 = vmatprep.mubr.f32.mxu0 0.0
      %1933 = vmatmul.mubr.f32.gmra.mrb[0].mxu0 %v319
      %v1934 = vpop.f32.mrb[0].mxu0
      %v1935 = vadd.f32 %v1230, %v1934
      %v1936 = vpop.f32.mrb[0].mxu0
      %1937 = vmatprep.mubr.f32.mxu0 0.0
      %1938 = vmatmul.mubr.f32.gmra.mrb[0].mxu0 %v320
      %v1939 = vpop.f32.mrb[0].mxu0
      %v1940 = vadd.f32 %v1235, %v1939
      %v1941 = vpop.f32.mrb[0].mxu0
      %1942 = vmatprep.mubr.f32.mxu0 0.0
      %1943 = vmatmul.mubr.f32.gmra.mrb[0].mxu0 %v321
      %v1944 = vpop.f32.mrb[0].mxu0
      %v1945 = vadd.f32 %v1240, %v1944
      %v1946 = vpop.f32.mrb[0].mxu0
      %1947 = vmatprep.mubr.f32.mxu0 0.0
      %1948 = vmatmul.mubr.f32.gmra.mrb[0].mxu0 %v322
      %v1949 = vpop.f32.mrb[0].mxu0
      %v1950 = vadd.f32 %v1245, %v1949
      %v1951 = vpop.f32.mrb[0].mxu0
      %1952 = vmatprep.mubr.f32.mxu0 0.0
      %1953 = vmatmul.mubr.f32.gmra.mrb[0].mxu0 %v324
      %v1954 = vpop.f32.mrb[0].mxu0
      %v1955 = vadd.f32 %v1250, %v1954
      %v1956 = vpop.f32.mrb[0].mxu0
      %1957 = vmatprep.mubr.f32.mxu0 0.0
      %1958 = vmatmul.mubr.f32.gmra.mrb[0].mxu0 %v325
      %v1959 = vpop.f32.mrb[0].mxu0
      %v1960 = vadd.f32 %v1255, %v1959
      %v1961 = vpop.f32.mrb[0].mxu0
      %1962 = vmatprep.mubr.f32.mxu0 0.0
      %1963 = vmatmul.mubr.f32.gmra.mrb[0].mxu0 %v326
      %v1964 = vpop.f32.mrb[0].mxu0
      %v1965 = vadd.f32 %v1260, %v1964
      %v1966 = vpop.f32.mrb[0].mxu0
      %1967 = vmatprep.mubr.f32.mxu0 0.0
      %1968 = vmatmul.mubr.f32.gmra.mrb[0].mxu0 %v327
      %v1969 = vpop.f32.mrb[0].mxu0
      %v1970 = vadd.f32 %v1265, %v1969
      %v1971 = vpop.f32.mrb[0].mxu0
      %1972 = vmatprep.mubr.f32.mxu0 0.0
      %1973 = vmatmul.mubr.f32.gmra.mrb[0].mxu0 %v329
      %v1974 = vpop.f32.mrb[0].mxu0
      %v1975 = vadd.f32 %v1270, %v1974
      %v1976 = vpop.f32.mrb[0].mxu0
      %1977 = vmatprep.mubr.f32.mxu0 0.0
      %1978 = vmatmul.mubr.f32.gmra.mrb[0].mxu0 %v330
      %v1979 = vpop.f32.mrb[0].mxu0
      %v1980 = vadd.f32 %v1275, %v1979
      %v1981 = vpop.f32.mrb[0].mxu0
      %1982 = vmatprep.mubr.f32.mxu0 0.0
      %1983 = vmatmul.mubr.f32.gmra.mrb[0].mxu0 %v331
      %v1984 = vpop.f32.mrb[0].mxu0
      %v1985 = vadd.f32 %v1280, %v1984
      %v1986 = vpop.f32.mrb[0].mxu0
      %1987 = vmatprep.mubr.f32.mxu0 0.0
      %1988 = vmatmul.mubr.f32.gmra.mrb[0].mxu0 %v332
      %v1989 = vpop.f32.mrb[0].mxu0
      %v1990 = vadd.f32 %v1285, %v1989
      %v1991 = vpop.f32.mrb[0].mxu0
      %1992 = vmatprep.mubr.f32.mxu0 0.0
      %1993 = vmatmul.mubr.f32.gmra.mrb[0].mxu0 %v334
      %v1994 = vpop.f32.mrb[0].mxu0
      %v1995 = vadd.f32 %v1290, %v1994
      %v1996 = vpop.f32.mrb[0].mxu0
      %1997 = vmatprep.mubr.f32.mxu0 0.0
      %1998 = vmatmul.mubr.f32.gmra.mrb[0].mxu0 %v335
      %v1999 = vpop.f32.mrb[0].mxu0
      %v2000 = vadd.f32 %v1295, %v1999
      %v2001 = vpop.f32.mrb[0].mxu0
      %2002 = vmatprep.mubr.f32.mxu0 0.0
      %2003 = vmatmul.mubr.f32.gmra.mrb[0].mxu0 %v336
      %v2004 = vpop.f32.mrb[0].mxu0
      %v2005 = vadd.f32 %v1300, %v2004
      %v2006 = vpop.f32.mrb[0].mxu0
      %2007 = vmatprep.mubr.f32.mxu0 0.0
      %2008 = vmatmul.mubr.f32.gmra.mrb[0].mxu0 %v337
      %v2009 = vpop.f32.mrb[0].mxu0
      %v2010 = vadd.f32 %v1305, %v2009
      %v2011 = vpop.f32.mrb[0].mxu0
      %2012 = vmatprep.mubr.f32.mxu0 0.0
      %2013 = vmatmul.mubr.f32.gmra.mrb[0].mxu0 %v339
      %v2014 = vpop.f32.mrb[0].mxu0
      %v2015 = vadd.f32 %v1310, %v2014
      %v2016 = vpop.f32.mrb[0].mxu0
      %2017 = vmatprep.mubr.f32.mxu0 0.0
      %2018 = vmatmul.mubr.f32.gmra.mrb[0].mxu0 %v340
      %v2019 = vpop.f32.mrb[0].mxu0
      %v2020 = vadd.f32 %v1315, %v2019
      %v2021 = vpop.f32.mrb[0].mxu0
      %2022 = vmatprep.mubr.f32.mxu0 0.0
      %2023 = vmatmul.mubr.f32.gmra.mrb[0].mxu0 %v341
      %v2024 = vpop.f32.mrb[0].mxu0
      %v2025 = vadd.f32 %v1320, %v2024
      %v2026 = vpop.f32.mrb[0].mxu0
      %2027 = vmatprep.mubr.f32.mxu0 0.0
      %2028 = vmatmul.mubr.f32.gmra.mrb[0].mxu0 %v342
      %v2029 = vpop.f32.mrb[0].mxu0
      %v2030 = vadd.f32 %v1325, %v2029
      %v2031 = vpop.f32.mrb[0].mxu0
      %2032 = vmatprep.mubr.f32.mxu0 0.0
      %2033 = vmatmul.mubr.f32.gmra.mrb[0].mxu0 %v344
      %v2034 = vpop.f32.mrb[0].mxu0
      %v2035 = vadd.f32 %v1330, %v2034
      %v2036 = vpop.f32.mrb[0].mxu0
      %2037 = vmatprep.mubr.f32.mxu0 0.0
      %2038 = vmatmul.mubr.f32.gmra.mrb[0].mxu0 %v345
      %v2039 = vpop.f32.mrb[0].mxu0
      %v2040 = vadd.f32 %v1335, %v2039
      %v2041 = vpop.f32.mrb[0].mxu0
      %2042 = vmatprep.mubr.f32.mxu0 0.0
      %2043 = vmatmul.mubr.f32.gmra.mrb[0].mxu0 %v346
      %v2044 = vpop.f32.mrb[0].mxu0
      %v2045 = vadd.f32 %v1340, %v2044
      %v2046 = vpop.f32.mrb[0].mxu0
      %2047 = vmatprep.mubr.f32.mxu0 0.0
      %2048 = vmatmul.mubr.f32.gmra.mrb[0].mxu0 %v347
      %v2049 = vpop.f32.mrb[0].mxu0
      %v2050 = vadd.f32 %v1345, %v2049
      %v2051 = vpop.f32.mrb[0].mxu0
      %2052 = vmatprep.mubr.f32.mxu0 0.0
      %2053 = vmatmul.mubr.f32.gmra.mrb[0].mxu0 %v349
      %v2054 = vpop.f32.mrb[0].mxu0
      %v2055 = vadd.f32 %v1350, %v2054
      %v2056 = vpop.f32.mrb[0].mxu0
      %2057 = vmatprep.mubr.f32.mxu0 0.0
      %2058 = vmatmul.mubr.f32.gmra.mrb[0].mxu0 %v350
      %v2059 = vpop.f32.mrb[0].mxu0
      %v2060 = vadd.f32 %v1355, %v2059
      %v2061 = vpop.f32.mrb[0].mxu0
      %2062 = vmatprep.mubr.f32.mxu0 0.0
      %2063 = vmatmul.mubr.f32.gmra.mrb[0].mxu0 %v351
      %v2064 = vpop.f32.mrb[0].mxu0
      %v2065 = vadd.f32 %v1360, %v2064
      %v2066 = vpop.f32.mrb[0].mxu0
      %2067 = vmatprep.mubr.f32.mxu0 0.0
      %2068 = vmatmul.mubr.f32.gmra.mrb[0].mxu0 %v352
      %v2069 = vpop.f32.mrb[0].mxu0
      %v2070 = vadd.f32 %v1365, %v2069
      %v2071 = vpop.f32.mrb[0].mxu0
      %2072 = vmatprep.mubr.f32.mxu0 0.0
      %2073 = vmatmul.mubr.f32.gmra.mrb[0].mxu0 %v354
      %v2074 = vpop.f32.mrb[0].mxu0
      %v2075 = vadd.f32 %v1370, %v2074
      %v2076 = vpop.f32.mrb[0].mxu0
      %2077 = vmatprep.mubr.f32.mxu0 0.0
      %2078 = vmatmul.mubr.f32.gmra.mrb[0].mxu0 %v355
      %v2079 = vpop.f32.mrb[0].mxu0
      %v2080 = vadd.f32 %v1375, %v2079
      %v2081 = vpop.f32.mrb[0].mxu0
      %2082 = vmatprep.mubr.f32.mxu0 0.0
      %2083 = vmatmul.mubr.f32.gmra.mrb[0].mxu0 %v356
      %v2084 = vpop.f32.mrb[0].mxu0
      %v2085 = vadd.f32 %v1380, %v2084
      %v2086 = vpop.f32.mrb[0].mxu0
      %2087 = vmatprep.mubr.f32.mxu0 0.0
      %2088 = vmatmul.mubr.f32.gmra.mrb[0].mxu0 %v357
      %v2089 = vpop.f32.mrb[0].mxu0
      %v2090 = vadd.f32 %v1385, %v2089
      %v2091 = vpop.f32.mrb[0].mxu0
      %2092 = vdwg.mxu0
      %v2093 = vrot.slane %v199, 2
      %v2094 = vrot.slane %v200, 2
      %v2095 = vrot.slane %v201, 2
      %v2096 = vrot.slane %v202, 2
      %v2097 = vrot.slane %v203, 2
      %v2098 = vrot.slane %v204, 2
      %v2099 = vrot.slane %v205, 2
      %v2100 = vrot.slane %v206, 2
      %v2101 = vrot.slane %v207, 2
      %v2102 = vrot.slane %v208, 2
      %v2103 = vrot.slane %v209, 2
      %v2104 = vrot.slane %v210, 2
      %v2105 = vrot.slane %v211, 2
      %v2106 = vrot.slane %v212, 2
      %v2107 = vrot.slane %v213, 2
      %v2108 = vrot.slane %v214, 2
      %v2109 = vrot.slane %v215, 2
      %v2110 = vrot.slane %v216, 2
      %v2111 = vrot.slane %v217, 2
      %v2112 = vrot.slane %v218, 2
      %v2113 = vrot.slane %v219, 2
      %v2114 = vrot.slane %v220, 2
      %v2115 = vrot.slane %v221, 2
      %v2116 = vrot.slane %v222, 2
      %v2117 = vrot.slane %v223, 2
      %v2118 = vrot.slane %v224, 2
      %v2119 = vrot.slane %v225, 2
      %v2120 = vrot.slane %v226, 2
      %v2121 = vrot.slane %v227, 2
      %v2122 = vrot.slane %v228, 2
      %v2123 = vrot.slane %v229, 2
      %v2124 = vrot.slane %v230, 2
      %v2125 = vrot.slane %v231, 2
      %v2126 = vrot.slane %v232, 2
      %v2127 = vrot.slane %v233, 2
      %v2128 = vrot.slane %v234, 2
      %v2129 = vrot.slane %v235, 2
      %v2130 = vrot.slane %v236, 2
      %v2131 = vrot.slane %v237, 2
      %v2132 = vrot.slane %v238, 2
      %v2133 = vrot.slane %v239, 2
      %v2134 = vrot.slane %v240, 2
      %v2135 = vrot.slane %v241, 2
      %v2136 = vrot.slane %v242, 2
      %v2137 = vrot.slane %v243, 2
      %v2138 = vrot.slane %v244, 2
      %v2139 = vrot.slane %v245, 2
      %v2140 = vrot.slane %v246, 2
      %v2141 = vrot.slane %v247, 2
      %v2142 = vrot.slane %v248, 2
      %v2143 = vrot.slane %v249, 2
      %v2144 = vrot.slane %v250, 2
      %v2145 = vrot.slane %v251, 2
      %v2146 = vrot.slane %v252, 2
      %v2147 = vrot.slane %v253, 2
      %v2148 = vrot.slane %v254, 2
      %v2149 = vrot.slane %v255, 2
      %v2150 = vrot.slane %v256, 2
      %v2151 = vrot.slane %v257, 2
      %v2152 = vrot.slane %v258, 2
      %v2153 = vrot.slane %v259, 2
      %v2154 = vrot.slane %v260, 2
      %v2155 = vrot.slane %v261, 2
      %v2156 = vrot.slane %v262, 2
      %v2157 = vrot.slane %v263, 2
      %v2158 = vrot.slane %v264, 2
      %v2159 = vrot.slane %v265, 2
      %v2160 = vrot.slane %v266, 2
      %v2161 = vrot.slane %v267, 2
      %v2162 = vrot.slane %v268, 2
      %v2163 = vrot.slane %v269, 2
      %v2164 = vrot.slane %v270, 2
      %v2165 = vrot.slane %v271, 2
      %v2166 = vrot.slane %v272, 2
      %v2167 = vrot.slane %v273, 2
      %v2168 = vrot.slane %v274, 2
      %v2169 = vrot.slane %v275, 2
      %v2170 = vrot.slane %v276, 2
      %v2171 = vrot.slane %v277, 2
      %v2172 = vrot.slane %v278, 2
      %v2173 = vrot.slane %v279, 2
      %v2174 = vrot.slane %v280, 2
      %v2175 = vrot.slane %v281, 2
      %v2176 = vrot.slane %v282, 2
      %v2177 = vrot.slane %v283, 2
      %v2178 = vrot.slane %v284, 2
      %v2179 = vrot.slane %v285, 2
      %v2180 = vrot.slane %v286, 2
      %v2181 = vrot.slane %v287, 2
      %v2182 = vrot.slane %v288, 2
      %v2183 = vrot.slane %v289, 2
      %v2184 = vrot.slane %v290, 2
      %v2185 = vrot.slane %v291, 2
      %v2186 = vrot.slane %v292, 2
      %v2187 = vrot.slane %v293, 2
      %v2188 = vrot.slane %v294, 2
      %v2189 = vrot.slane %v295, 2
      %v2190 = vrot.slane %v296, 2
      %v2191 = vrot.slane %v297, 2
      %v2192 = vrot.slane %v298, 2
      %v2193 = vrot.slane %v299, 2
      %v2194 = vrot.slane %v300, 2
      %v2195 = vrot.slane %v301, 2
      %v2196 = vrot.slane %v302, 2
      %v2197 = vrot.slane %v303, 2
      %v2198 = vrot.slane %v304, 2
      %v2199 = vrot.slane %v305, 2
      %v2200 = vrot.slane %v306, 2
      %v2201 = vrot.slane %v307, 2
      %v2202 = vrot.slane %v308, 2
      %v2203 = vrot.slane %v309, 2
      %v2204 = vrot.slane %v310, 2
      %v2205 = vrot.slane %v311, 2
      %v2206 = vrot.slane %v312, 2
      %v2207 = vrot.slane %v313, 2
      %v2208 = vrot.slane %v314, 2
      %v2209 = vrot.slane %v315, 2
      %v2210 = vrot.slane %v316, 2
      %v2211 = vrot.slane %v317, 2
      %v2212 = vrot.slane %v318, 2
      %v2213 = vrot.slane %v319, 2
      %v2214 = vrot.slane %v320, 2
      %v2215 = vrot.slane %v321, 2
      %v2216 = vrot.slane %v322, 2
      %v2217 = vrot.slane %v323, 2
      %v2218 = vrot.slane %v324, 2
      %v2219 = vrot.slane %v325, 2
      %v2220 = vrot.slane %v326, 2
      %v2221 = vrot.slane %v327, 2
      %v2222 = vrot.slane %v328, 2
      %v2223 = vrot.slane %v329, 2
      %v2224 = vrot.slane %v330, 2
      %v2225 = vrot.slane %v331, 2
      %v2226 = vrot.slane %v332, 2
      %v2227 = vrot.slane %v333, 2
      %v2228 = vrot.slane %v334, 2
      %v2229 = vrot.slane %v335, 2
      %v2230 = vrot.slane %v336, 2
      %v2231 = vrot.slane %v337, 2
      %v2232 = vrot.slane %v338, 2
      %v2233 = vrot.slane %v339, 2
      %v2234 = vrot.slane %v340, 2
      %v2235 = vrot.slane %v341, 2
      %v2236 = vrot.slane %v342, 2
      %v2237 = vrot.slane %v343, 2
      %v2238 = vrot.slane %v344, 2
      %v2239 = vrot.slane %v345, 2
      %v2240 = vrot.slane %v346, 2
      %v2241 = vrot.slane %v347, 2
      %v2242 = vrot.slane %v348, 2
      %v2243 = vrot.slane %v349, 2
      %v2244 = vrot.slane %v350, 2
      %v2245 = vrot.slane %v351, 2
      %v2246 = vrot.slane %v352, 2
      %v2247 = vrot.slane %v353, 2
      %v2248 = vrot.slane %v354, 2
      %v2249 = vrot.slane %v355, 2
      %v2250 = vrot.slane %v356, 2
      %v2251 = vrot.slane %v357, 2
      %v2252 = vrot.slane %v358, 2
      %vm2253 = vcmp.lt.s32.totalorder %v536, 6
      %v2254 = vsel %vm2253, %v2251, %v2252
      %v2255 = vsel %vm2253, %v2250, %v2251
      %v2256 = vsel %vm2253, %v2249, %v2250
      %v2257 = vsel %vm2253, %v2248, %v2249
      %v2258 = vsel %vm2253, %v2246, %v2247
      %v2259 = vsel %vm2253, %v2245, %v2246
      %v2260 = vsel %vm2253, %v2244, %v2245
      %v2261 = vsel %vm2253, %v2243, %v2244
      %v2262 = vsel %vm2253, %v2241, %v2242
      %v2263 = vsel %vm2253, %v2240, %v2241
      %v2264 = vsel %vm2253, %v2239, %v2240
      %v2265 = vsel %vm2253, %v2238, %v2239
      %v2266 = vsel %vm2253, %v2236, %v2237
      %v2267 = vsel %vm2253, %v2235, %v2236
      %v2268 = vsel %vm2253, %v2234, %v2235
      %v2269 = vsel %vm2253, %v2233, %v2234
      %v2270 = vsel %vm2253, %v2231, %v2232
      %v2271 = vsel %vm2253, %v2230, %v2231
      %v2272 = vsel %vm2253, %v2229, %v2230
      %v2273 = vsel %vm2253, %v2228, %v2229
      %v2274 = vsel %vm2253, %v2226, %v2227
      %v2275 = vsel %vm2253, %v2225, %v2226
      %v2276 = vsel %vm2253, %v2224, %v2225
      %v2277 = vsel %vm2253, %v2223, %v2224
      %v2278 = vsel %vm2253, %v2221, %v2222
      %v2279 = vsel %vm2253, %v2220, %v2221
      %v2280 = vsel %vm2253, %v2219, %v2220
      %v2281 = vsel %vm2253, %v2218, %v2219
      %v2282 = vsel %vm2253, %v2216, %v2217
      %v2283 = vsel %vm2253, %v2215, %v2216
      %v2284 = vsel %vm2253, %v2214, %v2215
      %v2285 = vsel %vm2253, %v2213, %v2214
      %v2286 = vsel %vm2253, %v2211, %v2212
      %v2287 = vsel %vm2253, %v2210, %v2211
      %v2288 = vsel %vm2253, %v2209, %v2210
      %v2289 = vsel %vm2253, %v2208, %v2209
      %v2290 = vsel %vm2253, %v2206, %v2207
      %v2291 = vsel %vm2253, %v2205, %v2206
      %v2292 = vsel %vm2253, %v2204, %v2205
      %v2293 = vsel %vm2253, %v2203, %v2204
      %v2294 = vsel %vm2253, %v2201, %v2202
      %v2295 = vsel %vm2253, %v2200, %v2201
      %v2296 = vsel %vm2253, %v2199, %v2200
      %v2297 = vsel %vm2253, %v2198, %v2199
      %v2298 = vsel %vm2253, %v2196, %v2197
      %v2299 = vsel %vm2253, %v2195, %v2196
      %v2300 = vsel %vm2253, %v2194, %v2195
      %v2301 = vsel %vm2253, %v2193, %v2194
      %v2302 = vsel %vm2253, %v2191, %v2192
      %v2303 = vsel %vm2253, %v2190, %v2191
      %v2304 = vsel %vm2253, %v2189, %v2190
      %v2305 = vsel %vm2253, %v2188, %v2189
      %v2306 = vsel %vm2253, %v2186, %v2187
      %v2307 = vsel %vm2253, %v2185, %v2186
      %v2308 = vsel %vm2253, %v2184, %v2185
      %v2309 = vsel %vm2253, %v2183, %v2184
      %v2310 = vsel %vm2253, %v2181, %v2182
      %v2311 = vsel %vm2253, %v2180, %v2181
      %v2312 = vsel %vm2253, %v2179, %v2180
      %v2313 = vsel %vm2253, %v2178, %v2179
      %v2314 = vsel %vm2253, %v2176, %v2177
      %v2315 = vsel %vm2253, %v2175, %v2176
      %v2316 = vsel %vm2253, %v2174, %v2175
      %v2317 = vsel %vm2253, %v2173, %v2174
      %v2318 = vsel %vm2253, %v2171, %v2172
      %v2319 = vsel %vm2253, %v2170, %v2171
      %v2320 = vsel %vm2253, %v2169, %v2170
      %v2321 = vsel %vm2253, %v2168, %v2169
      %v2322 = vsel %vm2253, %v2166, %v2167
      %v2323 = vsel %vm2253, %v2165, %v2166
      %v2324 = vsel %vm2253, %v2164, %v2165
      %v2325 = vsel %vm2253, %v2163, %v2164
      %v2326 = vsel %vm2253, %v2161, %v2162
      %v2327 = vsel %vm2253, %v2160, %v2161
      %v2328 = vsel %vm2253, %v2159, %v2160
      %v2329 = vsel %vm2253, %v2158, %v2159
      %v2330 = vsel %vm2253, %v2156, %v2157
      %v2331 = vsel %vm2253, %v2155, %v2156
      %v2332 = vsel %vm2253, %v2154, %v2155
      %v2333 = vsel %vm2253, %v2153, %v2154
      %v2334 = vsel %vm2253, %v2151, %v2152
      %v2335 = vsel %vm2253, %v2150, %v2151
      %v2336 = vsel %vm2253, %v2149, %v2150
      %v2337 = vsel %vm2253, %v2148, %v2149
      %v2338 = vsel %vm2253, %v2146, %v2147
      %v2339 = vsel %vm2253, %v2145, %v2146
      %v2340 = vsel %vm2253, %v2144, %v2145
      %v2341 = vsel %vm2253, %v2143, %v2144
      %v2342 = vsel %vm2253, %v2141, %v2142
      %v2343 = vsel %vm2253, %v2140, %v2141
      %v2344 = vsel %vm2253, %v2139, %v2140
      %v2345 = vsel %vm2253, %v2138, %v2139
      %v2346 = vsel %vm2253, %v2136, %v2137
      %v2347 = vsel %vm2253, %v2135, %v2136
      %v2348 = vsel %vm2253, %v2134, %v2135
      %v2349 = vsel %vm2253, %v2133, %v2134
      %v2350 = vsel %vm2253, %v2131, %v2132
      %v2351 = vsel %vm2253, %v2130, %v2131
      %v2352 = vsel %vm2253, %v2129, %v2130
      %v2353 = vsel %vm2253, %v2128, %v2129
      %v2354 = vsel %vm2253, %v2126, %v2127
      %v2355 = vsel %vm2253, %v2125, %v2126
      %v2356 = vsel %vm2253, %v2124, %v2125
      %v2357 = vsel %vm2253, %v2123, %v2124
      %v2358 = vsel %vm2253, %v2121, %v2122
      %v2359 = vsel %vm2253, %v2120, %v2121
      %v2360 = vsel %vm2253, %v2119, %v2120
      %v2361 = vsel %vm2253, %v2118, %v2119
      %v2362 = vsel %vm2253, %v2116, %v2117
      %v2363 = vsel %vm2253, %v2115, %v2116
      %v2364 = vsel %vm2253, %v2114, %v2115
      %v2365 = vsel %vm2253, %v2113, %v2114
      %v2366 = vsel %vm2253, %v2111, %v2112
      %v2367 = vsel %vm2253, %v2110, %v2111
      %v2368 = vsel %vm2253, %v2109, %v2110
      %v2369 = vsel %vm2253, %v2108, %v2109
      %v2370 = vsel %vm2253, %v2106, %v2107
      %v2371 = vsel %vm2253, %v2105, %v2106
      %v2372 = vsel %vm2253, %v2104, %v2105
      %v2373 = vsel %vm2253, %v2103, %v2104
      %v2374 = vsel %vm2253, %v2101, %v2102
      %v2375 = vsel %vm2253, %v2100, %v2101
      %v2376 = vsel %vm2253, %v2099, %v2100
      %v2377 = vsel %vm2253, %v2098, %v2099
      %v2378 = vsel %vm2253, %v2096, %v2097
      %v2379 = vsel %vm2253, %v2095, %v2096
      %v2380 = vsel %vm2253, %v2094, %v2095
      %v2381 = vsel %vm2253, %v2093, %v2094
      %s2382 = scalar_lea.vmem %s1, 256
      %v2383 = vld [vmem:[%s2382] sm:$0xff]
      %v2384 = vld [vmem:[%s2382 + $0x8] sm:$0xff]
      %v2385 = vld [vmem:[%s2382 + $0x10] sm:$0xff]
      %v2386 = vld [vmem:[%s2382 + $0x18] sm:$0xff]
      %v2387 = vld [vmem:[%s2382 + $0x20] sm:$0xff]
      %v2388 = vld [vmem:[%s2382 + $0x28] sm:$0xff]
      %v2389 = vld [vmem:[%s2382 + $0x30] sm:$0xff]
      %v2390 = vld [vmem:[%s2382 + $0x38] sm:$0xff]
      %v2391 = vld [vmem:[%s2382 + $0x40] sm:$0xff]
      %v2392 = vld [vmem:[%s2382 + $0x48] sm:$0xff]
      %v2393 = vld [vmem:[%s2382 + $0x50] sm:$0xff]
      %v2394 = vld [vmem:[%s2382 + $0x58] sm:$0xff]
      %v2395 = vld [vmem:[%s2382 + $0x60] sm:$0xff]
      %v2396 = vld [vmem:[%s2382 + $0x68] sm:$0xff]
      %v2397 = vld [vmem:[%s2382 + $0x70] sm:$0xff]
      %v2398 = vld [vmem:[%s2382 + $0x78] sm:$0xff]
      %2399 = vmatprep.subr.mxu0 0.0
      %2400 = vmatpush1.msra.mxu0 %v2383
      %2401 = vmatprep.subr.mxu0 0.0
      %2402 = vmatpush1.msra.mxu0 %v2384
      %2403 = vmatprep.subr.mxu0 0.0
      %2404 = vmatpush1.msra.mxu0 %v2385
      %2405 = vmatprep.subr.mxu0 0.0
      %2406 = vmatpush1.msra.mxu0 %v2386
      %2407 = vmatprep.subr.mxu0 0.0
      %2408 = vmatpush1.msra.mxu0 %v2387
      %2409 = vmatprep.subr.mxu0 0.0
      %2410 = vmatpush1.msra.mxu0 %v2388
      %2411 = vmatprep.subr.mxu0 0.0
      %2412 = vmatpush1.msra.mxu0 %v2389
      %2413 = vmatprep.subr.mxu0 0.0
      %2414 = vmatpush1.msra.mxu0 %v2390
      %2415 = vmatprep.subr.mxu0 0.0
      %2416 = vmatpush1.msra.mxu0 %v2391
      %2417 = vmatprep.subr.mxu0 0.0
      %2418 = vmatpush1.msra.mxu0 %v2392
      %2419 = vmatprep.subr.mxu0 0.0
      %2420 = vmatpush1.msra.mxu0 %v2393
      %2421 = vmatprep.subr.mxu0 0.0
      %2422 = vmatpush1.msra.mxu0 %v2394
      %2423 = vmatprep.subr.mxu0 0.0
      %2424 = vmatpush1.msra.mxu0 %v2395
      %2425 = vmatprep.subr.mxu0 0.0
      %2426 = vmatpush1.msra.mxu0 %v2396
      %2427 = vmatprep.subr.mxu0 0.0
      %2428 = vmatpush1.msra.mxu0 %v2397
      %2429 = vmatprep.subr.mxu0 0.0
      %2430 = vmatpush1.msra.mxu0 %v2398
      %2431 = vmatprep.subr.mxu0 0.0
      %2432 = vmatpush1.msra.mxu0 0.0
      %2433 = vmatprep.subr.mxu0 0.0
      %2434 = vmatpush1.msra.mxu0 0.0
      %2435 = vmatprep.subr.mxu0 0.0
      %2436 = vmatpush1.msra.mxu0 0.0
      %2437 = vmatprep.subr.mxu0 0.0
      %2438 = vmatpush1.msra.mxu0 0.0
      %2439 = vmatprep.subr.mxu0 0.0
      %2440 = vmatpush1.msra.mxu0 0.0
      %2441 = vmatprep.subr.mxu0 0.0
      %2442 = vmatpush1.msra.mxu0 0.0
      %2443 = vmatprep.subr.mxu0 0.0
      %2444 = vmatpush1.msra.mxu0 0.0
      %2445 = vmatprep.subr.mxu0 0.0
      %2446 = vmatpush1.msra.mxu0 0.0
      %2447 = vmatprep.subr.mxu0 0.0
      %2448 = vmatpush1.msra.mxu0 0.0
      %2449 = vmatprep.subr.mxu0 0.0
      %2450 = vmatpush1.msra.mxu0 0.0
      %2451 = vmatprep.subr.mxu0 0.0
      %2452 = vmatpush1.msra.mxu0 0.0
      %2453 = vmatprep.subr.mxu0 0.0
      %2454 = vmatpush1.msra.mxu0 0.0
      %2455 = vmatprep.subr.mxu0 0.0
      %2456 = vmatpush1.msra.mxu0 0.0
      %2457 = vmatprep.subr.mxu0 0.0
      %2458 = vmatpush1.msra.mxu0 0.0
      %2459 = vmatprep.subr.mxu0 0.0
      %2460 = vmatpush1.msra.mxu0 0.0
      %2461 = vmatprep.subr.mxu0 0.0
      %2462 = vmatpush1.msra.mxu0 0.0
      %2463 = vmatprep.mubr.f32.mxu0 0.0
      %2464 = vmatmul.mubr.f32.gmra.mrb[0].mxu0 %v2381
      %v2465 = vpop.f32.mrb[0].mxu0
      %v2466 = vadd.f32 0.0, %v2465
      %v2467 = vpop.f32.mrb[0].mxu0
      %2468 = vmatprep.mubr.f32.mxu0 0.0
      %2469 = vmatmul.mubr.f32.gmra.mrb[0].mxu0 %v2380
      %v2470 = vpop.f32.mrb[0].mxu0
      %v2471 = vadd.f32 0.0, %v2470
      %v2472 = vpop.f32.mrb[0].mxu0
      %2473 = vmatprep.mubr.f32.mxu0 0.0
      %2474 = vmatmul.mubr.f32.gmra.mrb[0].mxu0 %v2379
      %v2475 = vpop.f32.mrb[0].mxu0
      %v2476 = vadd.f32 0.0, %v2475
      %v2477 = vpop.f32.mrb[0].mxu0
      %2478 = vmatprep.mubr.f32.mxu0 0.0
      %2479 = vmatmul.mubr.f32.gmra.mrb[0].mxu0 %v2378
      %v2480 = vpop.f32.mrb[0].mxu0
      %v2481 = vadd.f32 0.0, %v2480
      %v2482 = vpop.f32.mrb[0].mxu0
      %2483 = vmatprep.mubr.f32.mxu0 0.0
      %2484 = vmatmul.mubr.f32.gmra.mrb[0].mxu0 %v2377
      %v2485 = vpop.f32.mrb[0].mxu0
      %v2486 = vadd.f32 0.0, %v2485
      %v2487 = vpop.f32.mrb[0].mxu0
      %2488 = vmatprep.mubr.f32.mxu0 0.0
      %2489 = vmatmul.mubr.f32.gmra.mrb[0].mxu0 %v2376
      %v2490 = vpop.f32.mrb[0].mxu0
      %v2491 = vadd.f32 0.0, %v2490
      %v2492 = vpop.f32.mrb[0].mxu0
      %2493 = vmatprep.mubr.f32.mxu0 0.0
      %2494 = vmatmul.mubr.f32.gmra.mrb[0].mxu0 %v2375
      %v2495 = vpop.f32.mrb[0].mxu0
      %v2496 = vadd.f32 0.0, %v2495
      %v2497 = vpop.f32.mrb[0].mxu0
      %2498 = vmatprep.mubr.f32.mxu0 0.0
      %2499 = vmatmul.mubr.f32.gmra.mrb[0].mxu0 %v2374
      %v2500 = vpop.f32.mrb[0].mxu0
      %v2501 = vadd.f32 0.0, %v2500
      %v2502 = vpop.f32.mrb[0].mxu0
      %2503 = vmatprep.mubr.f32.mxu0 0.0
      %2504 = vmatmul.mubr.f32.gmra.mrb[0].mxu0 %v2373
      %v2505 = vpop.f32.mrb[0].mxu0
      %v2506 = vadd.f32 0.0, %v2505
      %v2507 = vpop.f32.mrb[0].mxu0
      %2508 = vmatprep.mubr.f32.mxu0 0.0
      %2509 = vmatmul.mubr.f32.gmra.mrb[0].mxu0 %v2372
      %v2510 = vpop.f32.mrb[0].mxu0
      %v2511 = vadd.f32 0.0, %v2510
      %v2512 = vpop.f32.mrb[0].mxu0
      %2513 = vmatprep.mubr.f32.mxu0 0.0
      %2514 = vmatmul.mubr.f32.gmra.mrb[0].mxu0 %v2371
      %v2515 = vpop.f32.mrb[0].mxu0
      %v2516 = vadd.f32 0.0, %v2515
      %v2517 = vpop.f32.mrb[0].mxu0
      %2518 = vmatprep.mubr.f32.mxu0 0.0
      %2519 = vmatmul.mubr.f32.gmra.mrb[0].mxu0 %v2370
      %v2520 = vpop.f32.mrb[0].mxu0
      %v2521 = vadd.f32 0.0, %v2520
      %v2522 = vpop.f32.mrb[0].mxu0
      %2523 = vmatprep.mubr.f32.mxu0 0.0
      %2524 = vmatmul.mubr.f32.gmra.mrb[0].mxu0 %v2369
      %v2525 = vpop.f32.mrb[0].mxu0
      %v2526 = vadd.f32 0.0, %v2525
      %v2527 = vpop.f32.mrb[0].mxu0
      %2528 = vmatprep.mubr.f32.mxu0 0.0
      %2529 = vmatmul.mubr.f32.gmra.mrb[0].mxu0 %v2368
      %v2530 = vpop.f32.mrb[0].mxu0
      %v2531 = vadd.f32 0.0, %v2530
      %v2532 = vpop.f32.mrb[0].mxu0
      %2533 = vmatprep.mubr.f32.mxu0 0.0
      %2534 = vmatmul.mubr.f32.gmra.mrb[0].mxu0 %v2367
      %v2535 = vpop.f32.mrb[0].mxu0
      %v2536 = vadd.f32 0.0, %v2535
      %v2537 = vpop.f32.mrb[0].mxu0
      %2538 = vmatprep.mubr.f32.mxu0 0.0
      %2539 = vmatmul.mubr.f32.gmra.mrb[0].mxu0 %v2366
      %v2540 = vpop.f32.mrb[0].mxu0
      %v2541 = vadd.f32 0.0, %v2540
      %v2542 = vpop.f32.mrb[0].mxu0
      %2543 = vmatprep.mubr.f32.mxu0 0.0
      %2544 = vmatmul.mubr.f32.gmra.mrb[0].mxu0 %v2365
      %v2545 = vpop.f32.mrb[0].mxu0
      %v2546 = vadd.f32 0.0, %v2545
      %v2547 = vpop.f32.mrb[0].mxu0
      %2548 = vmatprep.mubr.f32.mxu0 0.0
      %2549 = vmatmul.mubr.f32.gmra.mrb[0].mxu0 %v2364
      %v2550 = vpop.f32.mrb[0].mxu0
      %v2551 = vadd.f32 0.0, %v2550
      %v2552 = vpop.f32.mrb[0].mxu0
      %2553 = vmatprep.mubr.f32.mxu0 0.0
      %2554 = vmatmul.mubr.f32.gmra.mrb[0].mxu0 %v2363
      %v2555 = vpop.f32.mrb[0].mxu0
      %v2556 = vadd.f32 0.0, %v2555
      %v2557 = vpop.f32.mrb[0].mxu0
      %2558 = vmatprep.mubr.f32.mxu0 0.0
      %2559 = vmatmul.mubr.f32.gmra.mrb[0].mxu0 %v2362
      %v2560 = vpop.f32.mrb[0].mxu0
      %v2561 = vadd.f32 0.0, %v2560
      %v2562 = vpop.f32.mrb[0].mxu0
      %2563 = vmatprep.mubr.f32.mxu0 0.0
      %2564 = vmatmul.mubr.f32.gmra.mrb[0].mxu0 %v2361
      %v2565 = vpop.f32.mrb[0].mxu0
      %v2566 = vadd.f32 0.0, %v2565
      %v2567 = vpop.f32.mrb[0].mxu0
      %2568 = vmatprep.mubr.f32.mxu0 0.0
      %2569 = vmatmul.mubr.f32.gmra.mrb[0].mxu0 %v2360
      %v2570 = vpop.f32.mrb[0].mxu0
      %v2571 = vadd.f32 0.0, %v2570
      %v2572 = vpop.f32.mrb[0].mxu0
      %2573 = vmatprep.mubr.f32.mxu0 0.0
      %2574 = vmatmul.mubr.f32.gmra.mrb[0].mxu0 %v2359
      %v2575 = vpop.f32.mrb[0].mxu0
      %v2576 = vadd.f32 0.0, %v2575
      %v2577 = vpop.f32.mrb[0].mxu0
      %2578 = vmatprep.mubr.f32.mxu0 0.0
      %2579 = vmatmul.mubr.f32.gmra.mrb[0].mxu0 %v2358
      %v2580 = vpop.f32.mrb[0].mxu0
      %v2581 = vadd.f32 0.0, %v2580
      %v2582 = vpop.f32.mrb[0].mxu0
      %2583 = vmatprep.mubr.f32.mxu0 0.0
      %2584 = vmatmul.mubr.f32.gmra.mrb[0].mxu0 %v2357
      %v2585 = vpop.f32.mrb[0].mxu0
      %v2586 = vadd.f32 0.0, %v2585
      %v2587 = vpop.f32.mrb[0].mxu0
      %2588 = vmatprep.mubr.f32.mxu0 0.0
      %2589 = vmatmul.mubr.f32.gmra.mrb[0].mxu0 %v2356
      %v2590 = vpop.f32.mrb[0].mxu0
      %v2591 = vadd.f32 0.0, %v2590
      %v2592 = vpop.f32.mrb[0].mxu0
      %2593 = vmatprep.mubr.f32.mxu0 0.0
      %2594 = vmatmul.mubr.f32.gmra.mrb[0].mxu0 %v2355
      %v2595 = vpop.f32.mrb[0].mxu0
      %v2596 = vadd.f32 0.0, %v2595
      %v2597 = vpop.f32.mrb[0].mxu0
      %2598 = vmatprep.mubr.f32.mxu0 0.0
      %2599 = vmatmul.mubr.f32.gmra.mrb[0].mxu0 %v2354
      %v2600 = vpop.f32.mrb[0].mxu0
      %v2601 = vadd.f32 0.0, %v2600
      %v2602 = vpop.f32.mrb[0].mxu0
      %2603 = vmatprep.mubr.f32.mxu0 0.0
      %2604 = vmatmul.mubr.f32.gmra.mrb[0].mxu0 %v2353
      %v2605 = vpop.f32.mrb[0].mxu0
      %v2606 = vadd.f32 0.0, %v2605
      %v2607 = vpop.f32.mrb[0].mxu0
      %2608 = vmatprep.mubr.f32.mxu0 0.0
      %2609 = vmatmul.mubr.f32.gmra.mrb[0].mxu0 %v2352
      %v2610 = vpop.f32.mrb[0].mxu0
      %v2611 = vadd.f32 0.0, %v2610
      %v2612 = vpop.f32.mrb[0].mxu0
      %2613 = vmatprep.mubr.f32.mxu0 0.0
      %2614 = vmatmul.mubr.f32.gmra.mrb[0].mxu0 %v2351
      %v2615 = vpop.f32.mrb[0].mxu0
      %v2616 = vadd.f32 0.0, %v2615
      %v2617 = vpop.f32.mrb[0].mxu0
      %2618 = vmatprep.mubr.f32.mxu0 0.0
      %2619 = vmatmul.mubr.f32.gmra.mrb[0].mxu0 %v2350
      %v2620 = vpop.f32.mrb[0].mxu0
      %v2621 = vadd.f32 0.0, %v2620
      %v2622 = vpop.f32.mrb[0].mxu0
      %2623 = vmatprep.mubr.f32.mxu0 0.0
      %2624 = vmatmul.mubr.f32.gmra.mrb[0].mxu0 %v2349
      %v2625 = vpop.f32.mrb[0].mxu0
      %v2626 = vadd.f32 0.0, %v2625
      %v2627 = vpop.f32.mrb[0].mxu0
      %2628 = vmatprep.mubr.f32.mxu0 0.0
      %2629 = vmatmul.mubr.f32.gmra.mrb[0].mxu0 %v2348
      %v2630 = vpop.f32.mrb[0].mxu0
      %v2631 = vadd.f32 0.0, %v2630
      %v2632 = vpop.f32.mrb[0].mxu0
      %2633 = vmatprep.mubr.f32.mxu0 0.0
      %2634 = vmatmul.mubr.f32.gmra.mrb[0].mxu0 %v2347
      %v2635 = vpop.f32.mrb[0].mxu0
      %v2636 = vadd.f32 0.0, %v2635
      %v2637 = vpop.f32.mrb[0].mxu0
      %2638 = vmatprep.mubr.f32.mxu0 0.0
      %2639 = vmatmul.mubr.f32.gmra.mrb[0].mxu0 %v2346
      %v2640 = vpop.f32.mrb[0].mxu0
      %v2641 = vadd.f32 0.0, %v2640
      %v2642 = vpop.f32.mrb[0].mxu0
      %2643 = vmatprep.mubr.f32.mxu0 0.0
      %2644 = vmatmul.mubr.f32.gmra.mrb[0].mxu0 %v2345
      %v2645 = vpop.f32.mrb[0].mxu0
      %v2646 = vadd.f32 0.0, %v2645
      %v2647 = vpop.f32.mrb[0].mxu0
      %2648 = vmatprep.mubr.f32.mxu0 0.0
      %2649 = vmatmul.mubr.f32.gmra.mrb[0].mxu0 %v2344
      %v2650 = vpop.f32.mrb[0].mxu0
      %v2651 = vadd.f32 0.0, %v2650
      %v2652 = vpop.f32.mrb[0].mxu0
      %2653 = vmatprep.mubr.f32.mxu0 0.0
      %2654 = vmatmul.mubr.f32.gmra.mrb[0].mxu0 %v2343
      %v2655 = vpop.f32.mrb[0].mxu0
      %v2656 = vadd.f32 0.0, %v2655
      %v2657 = vpop.f32.mrb[0].mxu0
      %2658 = vmatprep.mubr.f32.mxu0 0.0
      %2659 = vmatmul.mubr.f32.gmra.mrb[0].mxu0 %v2342
      %v2660 = vpop.f32.mrb[0].mxu0
      %v2661 = vadd.f32 0.0, %v2660
      %v2662 = vpop.f32.mrb[0].mxu0
      %2663 = vmatprep.mubr.f32.mxu0 0.0
      %2664 = vmatmul.mubr.f32.gmra.mrb[0].mxu0 %v2341
      %v2665 = vpop.f32.mrb[0].mxu0
      %v2666 = vadd.f32 0.0, %v2665
      %v2667 = vpop.f32.mrb[0].mxu0
      %2668 = vmatprep.mubr.f32.mxu0 0.0
      %2669 = vmatmul.mubr.f32.gmra.mrb[0].mxu0 %v2340
      %v2670 = vpop.f32.mrb[0].mxu0
      %v2671 = vadd.f32 0.0, %v2670
      %v2672 = vpop.f32.mrb[0].mxu0
      %2673 = vmatprep.mubr.f32.mxu0 0.0
      %2674 = vmatmul.mubr.f32.gmra.mrb[0].mxu0 %v2339
      %v2675 = vpop.f32.mrb[0].mxu0
      %v2676 = vadd.f32 0.0, %v2675
      %v2677 = vpop.f32.mrb[0].mxu0
      %2678 = vmatprep.mubr.f32.mxu0 0.0
      %2679 = vmatmul.mubr.f32.gmra.mrb[0].mxu0 %v2338
      %v2680 = vpop.f32.mrb[0].mxu0
      %v2681 = vadd.f32 0.0, %v2680
      %v2682 = vpop.f32.mrb[0].mxu0
      %2683 = vmatprep.mubr.f32.mxu0 0.0
      %2684 = vmatmul.mubr.f32.gmra.mrb[0].mxu0 %v2337
      %v2685 = vpop.f32.mrb[0].mxu0
      %v2686 = vadd.f32 0.0, %v2685
      %v2687 = vpop.f32.mrb[0].mxu0
      %2688 = vmatprep.mubr.f32.mxu0 0.0
      %2689 = vmatmul.mubr.f32.gmra.mrb[0].mxu0 %v2336
      %v2690 = vpop.f32.mrb[0].mxu0
      %v2691 = vadd.f32 0.0, %v2690
      %v2692 = vpop.f32.mrb[0].mxu0
      %2693 = vmatprep.mubr.f32.mxu0 0.0
      %2694 = vmatmul.mubr.f32.gmra.mrb[0].mxu0 %v2335
      %v2695 = vpop.f32.mrb[0].mxu0
      %v2696 = vadd.f32 0.0, %v2695
      %v2697 = vpop.f32.mrb[0].mxu0
      %2698 = vmatprep.mubr.f32.mxu0 0.0
      %2699 = vmatmul.mubr.f32.gmra.mrb[0].mxu0 %v2334
      %v2700 = vpop.f32.mrb[0].mxu0
      %v2701 = vadd.f32 0.0, %v2700
      %v2702 = vpop.f32.mrb[0].mxu0
      %2703 = vmatprep.mubr.f32.mxu0 0.0
      %2704 = vmatmul.mubr.f32.gmra.mrb[0].mxu0 %v2333
      %v2705 = vpop.f32.mrb[0].mxu0
      %v2706 = vadd.f32 0.0, %v2705
      %v2707 = vpop.f32.mrb[0].mxu0
      %2708 = vmatprep.mubr.f32.mxu0 0.0
      %2709 = vmatmul.mubr.f32.gmra.mrb[0].mxu0 %v2332
      %v2710 = vpop.f32.mrb[0].mxu0
      %v2711 = vadd.f32 0.0, %v2710
      %v2712 = vpop.f32.mrb[0].mxu0
      %2713 = vmatprep.mubr.f32.mxu0 0.0
      %2714 = vmatmul.mubr.f32.gmra.mrb[0].mxu0 %v2331
      %v2715 = vpop.f32.mrb[0].mxu0
      %v2716 = vadd.f32 0.0, %v2715
      %v2717 = vpop.f32.mrb[0].mxu0
      %2718 = vmatprep.mubr.f32.mxu0 0.0
      %2719 = vmatmul.mubr.f32.gmra.mrb[0].mxu0 %v2330
      %v2720 = vpop.f32.mrb[0].mxu0
      %v2721 = vadd.f32 0.0, %v2720
      %v2722 = vpop.f32.mrb[0].mxu0
      %2723 = vmatprep.mubr.f32.mxu0 0.0
      %2724 = vmatmul.mubr.f32.gmra.mrb[0].mxu0 %v2329
      %v2725 = vpop.f32.mrb[0].mxu0
      %v2726 = vadd.f32 0.0, %v2725
      %v2727 = vpop.f32.mrb[0].mxu0
      %2728 = vmatprep.mubr.f32.mxu0 0.0
      %2729 = vmatmul.mubr.f32.gmra.mrb[0].mxu0 %v2328
      %v2730 = vpop.f32.mrb[0].mxu0
      %v2731 = vadd.f32 0.0, %v2730
      %v2732 = vpop.f32.mrb[0].mxu0
      %2733 = vmatprep.mubr.f32.mxu0 0.0
      %2734 = vmatmul.mubr.f32.gmra.mrb[0].mxu0 %v2327
      %v2735 = vpop.f32.mrb[0].mxu0
      %v2736 = vadd.f32 0.0, %v2735
      %v2737 = vpop.f32.mrb[0].mxu0
      %2738 = vmatprep.mubr.f32.mxu0 0.0
      %2739 = vmatmul.mubr.f32.gmra.mrb[0].mxu0 %v2326
      %v2740 = vpop.f32.mrb[0].mxu0
      %v2741 = vadd.f32 0.0, %v2740
      %v2742 = vpop.f32.mrb[0].mxu0
      %2743 = vmatprep.mubr.f32.mxu0 0.0
      %2744 = vmatmul.mubr.f32.gmra.mrb[0].mxu0 %v2325
      %v2745 = vpop.f32.mrb[0].mxu0
      %v2746 = vadd.f32 0.0, %v2745
      %v2747 = vpop.f32.mrb[0].mxu0
      %2748 = vmatprep.mubr.f32.mxu0 0.0
      %2749 = vmatmul.mubr.f32.gmra.mrb[0].mxu0 %v2324
      %v2750 = vpop.f32.mrb[0].mxu0
      %v2751 = vadd.f32 0.0, %v2750
      %v2752 = vpop.f32.mrb[0].mxu0
      %2753 = vmatprep.mubr.f32.mxu0 0.0
      %2754 = vmatmul.mubr.f32.gmra.mrb[0].mxu0 %v2323
      %v2755 = vpop.f32.mrb[0].mxu0
      %v2756 = vadd.f32 0.0, %v2755
      %v2757 = vpop.f32.mrb[0].mxu0
      %2758 = vmatprep.mubr.f32.mxu0 0.0
      %2759 = vmatmul.mubr.f32.gmra.mrb[0].mxu0 %v2322
      %v2760 = vpop.f32.mrb[0].mxu0
      %v2761 = vadd.f32 0.0, %v2760
      %v2762 = vpop.f32.mrb[0].mxu0
      %2763 = vmatprep.mubr.f32.mxu0 0.0
      %2764 = vmatmul.mubr.f32.gmra.mrb[0].mxu0 %v2321
      %v2765 = vpop.f32.mrb[0].mxu0
      %v2766 = vadd.f32 0.0, %v2765
      %v2767 = vpop.f32.mrb[0].mxu0
      %2768 = vmatprep.mubr.f32.mxu0 0.0
      %2769 = vmatmul.mubr.f32.gmra.mrb[0].mxu0 %v2320
      %v2770 = vpop.f32.mrb[0].mxu0
      %v2771 = vadd.f32 0.0, %v2770
      %v2772 = vpop.f32.mrb[0].mxu0
      %2773 = vmatprep.mubr.f32.mxu0 0.0
      %2774 = vmatmul.mubr.f32.gmra.mrb[0].mxu0 %v2319
      %v2775 = vpop.f32.mrb[0].mxu0
      %v2776 = vadd.f32 0.0, %v2775
      %v2777 = vpop.f32.mrb[0].mxu0
      %2778 = vmatprep.mubr.f32.mxu0 0.0
      %2779 = vmatmul.mubr.f32.gmra.mrb[0].mxu0 %v2318
      %v2780 = vpop.f32.mrb[0].mxu0
      %v2781 = vadd.f32 0.0, %v2780
      %v2782 = vpop.f32.mrb[0].mxu0
      %2783 = vmatprep.mubr.f32.mxu0 0.0
      %2784 = vmatmul.mubr.f32.gmra.mrb[0].mxu0 %v2317
      %v2785 = vpop.f32.mrb[0].mxu0
      %v2786 = vadd.f32 0.0, %v2785
      %v2787 = vpop.f32.mrb[0].mxu0
      %2788 = vmatprep.mubr.f32.mxu0 0.0
      %2789 = vmatmul.mubr.f32.gmra.mrb[0].mxu0 %v2316
      %v2790 = vpop.f32.mrb[0].mxu0
      %v2791 = vadd.f32 0.0, %v2790
      %v2792 = vpop.f32.mrb[0].mxu0
      %2793 = vmatprep.mubr.f32.mxu0 0.0
      %2794 = vmatmul.mubr.f32.gmra.mrb[0].mxu0 %v2315
      %v2795 = vpop.f32.mrb[0].mxu0
      %v2796 = vadd.f32 0.0, %v2795
      %v2797 = vpop.f32.mrb[0].mxu0
      %2798 = vmatprep.mubr.f32.mxu0 0.0
      %2799 = vmatmul.mubr.f32.gmra.mrb[0].mxu0 %v2314
      %v2800 = vpop.f32.mrb[0].mxu0
      %v2801 = vadd.f32 0.0, %v2800
      %v2802 = vpop.f32.mrb[0].mxu0
      %2803 = vmatprep.mubr.f32.mxu0 0.0
      %2804 = vmatmul.mubr.f32.gmra.mrb[0].mxu0 %v2313
      %v2805 = vpop.f32.mrb[0].mxu0
      %v2806 = vadd.f32 0.0, %v2805
      %v2807 = vpop.f32.mrb[0].mxu0
      %2808 = vmatprep.mubr.f32.mxu0 0.0
      %2809 = vmatmul.mubr.f32.gmra.mrb[0].mxu0 %v2312
      %v2810 = vpop.f32.mrb[0].mxu0
      %v2811 = vadd.f32 0.0, %v2810
      %v2812 = vpop.f32.mrb[0].mxu0
      %2813 = vmatprep.mubr.f32.mxu0 0.0
      %2814 = vmatmul.mubr.f32.gmra.mrb[0].mxu0 %v2311
      %v2815 = vpop.f32.mrb[0].mxu0
      %v2816 = vadd.f32 0.0, %v2815
      %v2817 = vpop.f32.mrb[0].mxu0
      %2818 = vmatprep.mubr.f32.mxu0 0.0
      %2819 = vmatmul.mubr.f32.gmra.mrb[0].mxu0 %v2310
      %v2820 = vpop.f32.mrb[0].mxu0
      %v2821 = vadd.f32 0.0, %v2820
      %v2822 = vpop.f32.mrb[0].mxu0
      %2823 = vmatprep.mubr.f32.mxu0 0.0
      %2824 = vmatmul.mubr.f32.gmra.mrb[0].mxu0 %v2309
      %v2825 = vpop.f32.mrb[0].mxu0
      %v2826 = vadd.f32 0.0, %v2825
      %v2827 = vpop.f32.mrb[0].mxu0
      %2828 = vmatprep.mubr.f32.mxu0 0.0
      %2829 = vmatmul.mubr.f32.gmra.mrb[0].mxu0 %v2308
      %v2830 = vpop.f32.mrb[0].mxu0
      %v2831 = vadd.f32 0.0, %v2830
      %v2832 = vpop.f32.mrb[0].mxu0
      %2833 = vmatprep.mubr.f32.mxu0 0.0
      %2834 = vmatmul.mubr.f32.gmra.mrb[0].mxu0 %v2307
      %v2835 = vpop.f32.mrb[0].mxu0
      %v2836 = vadd.f32 0.0, %v2835
      %v2837 = vpop.f32.mrb[0].mxu0
      %2838 = vmatprep.mubr.f32.mxu0 0.0
      %2839 = vmatmul.mubr.f32.gmra.mrb[0].mxu0 %v2306
      %v2840 = vpop.f32.mrb[0].mxu0
      %v2841 = vadd.f32 0.0, %v2840
      %v2842 = vpop.f32.mrb[0].mxu0
      %2843 = vmatprep.mubr.f32.mxu0 0.0
      %2844 = vmatmul.mubr.f32.gmra.mrb[0].mxu0 %v2305
      %v2845 = vpop.f32.mrb[0].mxu0
      %v2846 = vadd.f32 0.0, %v2845
      %v2847 = vpop.f32.mrb[0].mxu0
      %2848 = vmatprep.mubr.f32.mxu0 0.0
      %2849 = vmatmul.mubr.f32.gmra.mrb[0].mxu0 %v2304
      %v2850 = vpop.f32.mrb[0].mxu0
      %v2851 = vadd.f32 0.0, %v2850
      %v2852 = vpop.f32.mrb[0].mxu0
      %2853 = vmatprep.mubr.f32.mxu0 0.0
      %2854 = vmatmul.mubr.f32.gmra.mrb[0].mxu0 %v2303
      %v2855 = vpop.f32.mrb[0].mxu0
      %v2856 = vadd.f32 0.0, %v2855
      %v2857 = vpop.f32.mrb[0].mxu0
      %2858 = vmatprep.mubr.f32.mxu0 0.0
      %2859 = vmatmul.mubr.f32.gmra.mrb[0].mxu0 %v2302
      %v2860 = vpop.f32.mrb[0].mxu0
      %v2861 = vadd.f32 0.0, %v2860
      %v2862 = vpop.f32.mrb[0].mxu0
      %2863 = vmatprep.mubr.f32.mxu0 0.0
      %2864 = vmatmul.mubr.f32.gmra.mrb[0].mxu0 %v2301
      %v2865 = vpop.f32.mrb[0].mxu0
      %v2866 = vadd.f32 0.0, %v2865
      %v2867 = vpop.f32.mrb[0].mxu0
      %2868 = vmatprep.mubr.f32.mxu0 0.0
      %2869 = vmatmul.mubr.f32.gmra.mrb[0].mxu0 %v2300
      %v2870 = vpop.f32.mrb[0].mxu0
      %v2871 = vadd.f32 0.0, %v2870
      %v2872 = vpop.f32.mrb[0].mxu0
      %2873 = vmatprep.mubr.f32.mxu0 0.0
      %2874 = vmatmul.mubr.f32.gmra.mrb[0].mxu0 %v2299
      %v2875 = vpop.f32.mrb[0].mxu0
      %v2876 = vadd.f32 0.0, %v2875
      %v2877 = vpop.f32.mrb[0].mxu0
      %2878 = vmatprep.mubr.f32.mxu0 0.0
      %2879 = vmatmul.mubr.f32.gmra.mrb[0].mxu0 %v2298
      %v2880 = vpop.f32.mrb[0].mxu0
      %v2881 = vadd.f32 0.0, %v2880
      %v2882 = vpop.f32.mrb[0].mxu0
      %2883 = vmatprep.mubr.f32.mxu0 0.0
      %2884 = vmatmul.mubr.f32.gmra.mrb[0].mxu0 %v2297
      %v2885 = vpop.f32.mrb[0].mxu0
      %v2886 = vadd.f32 0.0, %v2885
      %v2887 = vpop.f32.mrb[0].mxu0
      %2888 = vmatprep.mubr.f32.mxu0 0.0
      %2889 = vmatmul.mubr.f32.gmra.mrb[0].mxu0 %v2296
      %v2890 = vpop.f32.mrb[0].mxu0
      %v2891 = vadd.f32 0.0, %v2890
      %v2892 = vpop.f32.mrb[0].mxu0
      %2893 = vmatprep.mubr.f32.mxu0 0.0
      %2894 = vmatmul.mubr.f32.gmra.mrb[0].mxu0 %v2295
      %v2895 = vpop.f32.mrb[0].mxu0
      %v2896 = vadd.f32 0.0, %v2895
      %v2897 = vpop.f32.mrb[0].mxu0
      %2898 = vmatprep.mubr.f32.mxu0 0.0
      %2899 = vmatmul.mubr.f32.gmra.mrb[0].mxu0 %v2294
      %v2900 = vpop.f32.mrb[0].mxu0
      %v2901 = vadd.f32 0.0, %v2900
      %v2902 = vpop.f32.mrb[0].mxu0
      %2903 = vmatprep.mubr.f32.mxu0 0.0
      %2904 = vmatmul.mubr.f32.gmra.mrb[0].mxu0 %v2293
      %v2905 = vpop.f32.mrb[0].mxu0
      %v2906 = vadd.f32 0.0, %v2905
      %v2907 = vpop.f32.mrb[0].mxu0
      %2908 = vmatprep.mubr.f32.mxu0 0.0
      %2909 = vmatmul.mubr.f32.gmra.mrb[0].mxu0 %v2292
      %v2910 = vpop.f32.mrb[0].mxu0
      %v2911 = vadd.f32 0.0, %v2910
      %v2912 = vpop.f32.mrb[0].mxu0
      %2913 = vmatprep.mubr.f32.mxu0 0.0
      %2914 = vmatmul.mubr.f32.gmra.mrb[0].mxu0 %v2291
      %v2915 = vpop.f32.mrb[0].mxu0
      %v2916 = vadd.f32 0.0, %v2915
      %v2917 = vpop.f32.mrb[0].mxu0
      %2918 = vmatprep.mubr.f32.mxu0 0.0
      %2919 = vmatmul.mubr.f32.gmra.mrb[0].mxu0 %v2290
      %v2920 = vpop.f32.mrb[0].mxu0
      %v2921 = vadd.f32 0.0, %v2920
      %v2922 = vpop.f32.mrb[0].mxu0
      %2923 = vmatprep.mubr.f32.mxu0 0.0
      %2924 = vmatmul.mubr.f32.gmra.mrb[0].mxu0 %v2289
      %v2925 = vpop.f32.mrb[0].mxu0
      %v2926 = vadd.f32 0.0, %v2925
      %v2927 = vpop.f32.mrb[0].mxu0
      %2928 = vmatprep.mubr.f32.mxu0 0.0
      %2929 = vmatmul.mubr.f32.gmra.mrb[0].mxu0 %v2288
      %v2930 = vpop.f32.mrb[0].mxu0
      %v2931 = vadd.f32 0.0, %v2930
      %v2932 = vpop.f32.mrb[0].mxu0
      %2933 = vmatprep.mubr.f32.mxu0 0.0
      %2934 = vmatmul.mubr.f32.gmra.mrb[0].mxu0 %v2287
      %v2935 = vpop.f32.mrb[0].mxu0
      %v2936 = vadd.f32 0.0, %v2935
      %v2937 = vpop.f32.mrb[0].mxu0
      %2938 = vmatprep.mubr.f32.mxu0 0.0
      %2939 = vmatmul.mubr.f32.gmra.mrb[0].mxu0 %v2286
      %v2940 = vpop.f32.mrb[0].mxu0
      %v2941 = vadd.f32 0.0, %v2940
      %v2942 = vpop.f32.mrb[0].mxu0
      %2943 = vmatprep.mubr.f32.mxu0 0.0
      %2944 = vmatmul.mubr.f32.gmra.mrb[0].mxu0 %v2285
      %v2945 = vpop.f32.mrb[0].mxu0
      %v2946 = vadd.f32 0.0, %v2945
      %v2947 = vpop.f32.mrb[0].mxu0
      %2948 = vmatprep.mubr.f32.mxu0 0.0
      %2949 = vmatmul.mubr.f32.gmra.mrb[0].mxu0 %v2284
      %v2950 = vpop.f32.mrb[0].mxu0
      %v2951 = vadd.f32 0.0, %v2950
      %v2952 = vpop.f32.mrb[0].mxu0
      %2953 = vmatprep.mubr.f32.mxu0 0.0
      %2954 = vmatmul.mubr.f32.gmra.mrb[0].mxu0 %v2283
      %v2955 = vpop.f32.mrb[0].mxu0
      %v2956 = vadd.f32 0.0, %v2955
      %v2957 = vpop.f32.mrb[0].mxu0
      %2958 = vmatprep.mubr.f32.mxu0 0.0
      %2959 = vmatmul.mubr.f32.gmra.mrb[0].mxu0 %v2282
      %v2960 = vpop.f32.mrb[0].mxu0
      %v2961 = vadd.f32 0.0, %v2960
      %v2962 = vpop.f32.mrb[0].mxu0
      %2963 = vmatprep.mubr.f32.mxu0 0.0
      %2964 = vmatmul.mubr.f32.gmra.mrb[0].mxu0 %v2281
      %v2965 = vpop.f32.mrb[0].mxu0
      %v2966 = vadd.f32 0.0, %v2965
      %v2967 = vpop.f32.mrb[0].mxu0
      %2968 = vmatprep.mubr.f32.mxu0 0.0
      %2969 = vmatmul.mubr.f32.gmra.mrb[0].mxu0 %v2280
      %v2970 = vpop.f32.mrb[0].mxu0
      %v2971 = vadd.f32 0.0, %v2970
      %v2972 = vpop.f32.mrb[0].mxu0
      %2973 = vmatprep.mubr.f32.mxu0 0.0
      %2974 = vmatmul.mubr.f32.gmra.mrb[0].mxu0 %v2279
      %v2975 = vpop.f32.mrb[0].mxu0
      %v2976 = vadd.f32 0.0, %v2975
      %v2977 = vpop.f32.mrb[0].mxu0
      %2978 = vmatprep.mubr.f32.mxu0 0.0
      %2979 = vmatmul.mubr.f32.gmra.mrb[0].mxu0 %v2278
      %v2980 = vpop.f32.mrb[0].mxu0
      %v2981 = vadd.f32 0.0, %v2980
      %v2982 = vpop.f32.mrb[0].mxu0
      %2983 = vmatprep.mubr.f32.mxu0 0.0
      %2984 = vmatmul.mubr.f32.gmra.mrb[0].mxu0 %v2277
      %v2985 = vpop.f32.mrb[0].mxu0
      %v2986 = vadd.f32 0.0, %v2985
      %v2987 = vpop.f32.mrb[0].mxu0
      %2988 = vmatprep.mubr.f32.mxu0 0.0
      %2989 = vmatmul.mubr.f32.gmra.mrb[0].mxu0 %v2276
      %v2990 = vpop.f32.mrb[0].mxu0
      %v2991 = vadd.f32 0.0, %v2990
      %v2992 = vpop.f32.mrb[0].mxu0
      %2993 = vmatprep.mubr.f32.mxu0 0.0
      %2994 = vmatmul.mubr.f32.gmra.mrb[0].mxu0 %v2275
      %v2995 = vpop.f32.mrb[0].mxu0
      %v2996 = vadd.f32 0.0, %v2995
      %v2997 = vpop.f32.mrb[0].mxu0
      %2998 = vmatprep.mubr.f32.mxu0 0.0
      %2999 = vmatmul.mubr.f32.gmra.mrb[0].mxu0 %v2274
      %v3000 = vpop.f32.mrb[0].mxu0
      %v3001 = vadd.f32 0.0, %v3000
      %v3002 = vpop.f32.mrb[0].mxu0
      %3003 = vmatprep.mubr.f32.mxu0 0.0
      %3004 = vmatmul.mubr.f32.gmra.mrb[0].mxu0 %v2273
      %v3005 = vpop.f32.mrb[0].mxu0
      %v3006 = vadd.f32 0.0, %v3005
      %v3007 = vpop.f32.mrb[0].mxu0
      %3008 = vmatprep.mubr.f32.mxu0 0.0
      %3009 = vmatmul.mubr.f32.gmra.mrb[0].mxu0 %v2272
      %v3010 = vpop.f32.mrb[0].mxu0
      %v3011 = vadd.f32 0.0, %v3010
      %v3012 = vpop.f32.mrb[0].mxu0
      %3013 = vmatprep.mubr.f32.mxu0 0.0
      %3014 = vmatmul.mubr.f32.gmra.mrb[0].mxu0 %v2271
      %v3015 = vpop.f32.mrb[0].mxu0
      %v3016 = vadd.f32 0.0, %v3015
      %v3017 = vpop.f32.mrb[0].mxu0
      %3018 = vmatprep.mubr.f32.mxu0 0.0
      %3019 = vmatmul.mubr.f32.gmra.mrb[0].mxu0 %v2270
      %v3020 = vpop.f32.mrb[0].mxu0
      %v3021 = vadd.f32 0.0, %v3020
      %v3022 = vpop.f32.mrb[0].mxu0
      %3023 = vmatprep.mubr.f32.mxu0 0.0
      %3024 = vmatmul.mubr.f32.gmra.mrb[0].mxu0 %v2269
      %v3025 = vpop.f32.mrb[0].mxu0
      %v3026 = vadd.f32 0.0, %v3025
      %v3027 = vpop.f32.mrb[0].mxu0
      %3028 = vmatprep.mubr.f32.mxu0 0.0
      %3029 = vmatmul.mubr.f32.gmra.mrb[0].mxu0 %v2268
      %v3030 = vpop.f32.mrb[0].mxu0
      %v3031 = vadd.f32 0.0, %v3030
      %v3032 = vpop.f32.mrb[0].mxu0
      %3033 = vmatprep.mubr.f32.mxu0 0.0
      %3034 = vmatmul.mubr.f32.gmra.mrb[0].mxu0 %v2267
      %v3035 = vpop.f32.mrb[0].mxu0
      %v3036 = vadd.f32 0.0, %v3035
      %v3037 = vpop.f32.mrb[0].mxu0
      %3038 = vmatprep.mubr.f32.mxu0 0.0
      %3039 = vmatmul.mubr.f32.gmra.mrb[0].mxu0 %v2266
      %v3040 = vpop.f32.mrb[0].mxu0
      %v3041 = vadd.f32 0.0, %v3040
      %v3042 = vpop.f32.mrb[0].mxu0
      %3043 = vmatprep.mubr.f32.mxu0 0.0
      %3044 = vmatmul.mubr.f32.gmra.mrb[0].mxu0 %v2265
      %v3045 = vpop.f32.mrb[0].mxu0
      %v3046 = vadd.f32 0.0, %v3045
      %v3047 = vpop.f32.mrb[0].mxu0
      %3048 = vmatprep.mubr.f32.mxu0 0.0
      %3049 = vmatmul.mubr.f32.gmra.mrb[0].mxu0 %v2264
      %v3050 = vpop.f32.mrb[0].mxu0
      %v3051 = vadd.f32 0.0, %v3050
      %v3052 = vpop.f32.mrb[0].mxu0
      %3053 = vmatprep.mubr.f32.mxu0 0.0
      %3054 = vmatmul.mubr.f32.gmra.mrb[0].mxu0 %v2263
      %v3055 = vpop.f32.mrb[0].mxu0
      %v3056 = vadd.f32 0.0, %v3055
      %v3057 = vpop.f32.mrb[0].mxu0
      %3058 = vmatprep.mubr.f32.mxu0 0.0
      %3059 = vmatmul.mubr.f32.gmra.mrb[0].mxu0 %v2262
      %v3060 = vpop.f32.mrb[0].mxu0
      %v3061 = vadd.f32 0.0, %v3060
      %v3062 = vpop.f32.mrb[0].mxu0
      %3063 = vmatprep.mubr.f32.mxu0 0.0
      %3064 = vmatmul.mubr.f32.gmra.mrb[0].mxu0 %v2261
      %v3065 = vpop.f32.mrb[0].mxu0
      %v3066 = vadd.f32 0.0, %v3065
      %v3067 = vpop.f32.mrb[0].mxu0
      %3068 = vmatprep.mubr.f32.mxu0 0.0
      %3069 = vmatmul.mubr.f32.gmra.mrb[0].mxu0 %v2260
      %v3070 = vpop.f32.mrb[0].mxu0
      %v3071 = vadd.f32 0.0, %v3070
      %v3072 = vpop.f32.mrb[0].mxu0
      %3073 = vmatprep.mubr.f32.mxu0 0.0
      %3074 = vmatmul.mubr.f32.gmra.mrb[0].mxu0 %v2259
      %v3075 = vpop.f32.mrb[0].mxu0
      %v3076 = vadd.f32 0.0, %v3075
      %v3077 = vpop.f32.mrb[0].mxu0
      %3078 = vmatprep.mubr.f32.mxu0 0.0
      %3079 = vmatmul.mubr.f32.gmra.mrb[0].mxu0 %v2258
      %v3080 = vpop.f32.mrb[0].mxu0
      %v3081 = vadd.f32 0.0, %v3080
      %v3082 = vpop.f32.mrb[0].mxu0
      %3083 = vmatprep.mubr.f32.mxu0 0.0
      %3084 = vmatmul.mubr.f32.gmra.mrb[0].mxu0 %v2257
      %v3085 = vpop.f32.mrb[0].mxu0
      %v3086 = vadd.f32 0.0, %v3085
      %v3087 = vpop.f32.mrb[0].mxu0
      %3088 = vmatprep.mubr.f32.mxu0 0.0
      %3089 = vmatmul.mubr.f32.gmra.mrb[0].mxu0 %v2256
      %v3090 = vpop.f32.mrb[0].mxu0
      %v3091 = vadd.f32 0.0, %v3090
      %v3092 = vpop.f32.mrb[0].mxu0
      %3093 = vmatprep.mubr.f32.mxu0 0.0
      %3094 = vmatmul.mubr.f32.gmra.mrb[0].mxu0 %v2255
      %v3095 = vpop.f32.mrb[0].mxu0
      %v3096 = vadd.f32 0.0, %v3095
      %v3097 = vpop.f32.mrb[0].mxu0
      %3098 = vmatprep.mubr.f32.mxu0 0.0
      %3099 = vmatmul.mubr.f32.gmra.mrb[0].mxu0 %v2254
      %v3100 = vpop.f32.mrb[0].mxu0
      %v3101 = vadd.f32 0.0, %v3100
      %v3102 = vpop.f32.mrb[0].mxu0
      %3103 = vdwg.mxu0
      %v3104 = vadd.f32 %v1455, %v2466
      %v3105 = vadd.f32 %v1460, %v2471
      %v3106 = vadd.f32 %v1465, %v2476
      %v3107 = vadd.f32 %v1470, %v2481
      %v3108 = vadd.f32 %v1475, %v2486
      %v3109 = vadd.f32 %v1480, %v2491
      %v3110 = vadd.f32 %v1485, %v2496
      %v3111 = vadd.f32 %v1490, %v2501
      %v3112 = vadd.f32 %v1495, %v2506
      %v3113 = vadd.f32 %v1500, %v2511
      %v3114 = vadd.f32 %v1505, %v2516
      %v3115 = vadd.f32 %v1510, %v2521
      %v3116 = vadd.f32 %v1515, %v2526
      %v3117 = vadd.f32 %v1520, %v2531
      %v3118 = vadd.f32 %v1525, %v2536
      %v3119 = vadd.f32 %v1530, %v2541
      %v3120 = vadd.f32 %v1535, %v2546
      %v3121 = vadd.f32 %v1540, %v2551
      %v3122 = vadd.f32 %v1545, %v2556
      %v3123 = vadd.f32 %v1550, %v2561
      %v3124 = vadd.f32 %v1555, %v2566
      %v3125 = vadd.f32 %v1560, %v2571
      %v3126 = vadd.f32 %v1565, %v2576
      %v3127 = vadd.f32 %v1570, %v2581
      %v3128 = vadd.f32 %v1575, %v2586
      %v3129 = vadd.f32 %v1580, %v2591
      %v3130 = vadd.f32 %v1585, %v2596
      %v3131 = vadd.f32 %v1590, %v2601
      %v3132 = vadd.f32 %v1595, %v2606
      %v3133 = vadd.f32 %v1600, %v2611
      %v3134 = vadd.f32 %v1605, %v2616
      %v3135 = vadd.f32 %v1610, %v2621
      %v3136 = vadd.f32 %v1615, %v2626
      %v3137 = vadd.f32 %v1620, %v2631
      %v3138 = vadd.f32 %v1625, %v2636
      %v3139 = vadd.f32 %v1630, %v2641
      %v3140 = vadd.f32 %v1635, %v2646
      %v3141 = vadd.f32 %v1640, %v2651
      %v3142 = vadd.f32 %v1645, %v2656
      %v3143 = vadd.f32 %v1650, %v2661
      %v3144 = vadd.f32 %v1655, %v2666
      %v3145 = vadd.f32 %v1660, %v2671
      %v3146 = vadd.f32 %v1665, %v2676
      %v3147 = vadd.f32 %v1670, %v2681
      %v3148 = vadd.f32 %v1675, %v2686
      %v3149 = vadd.f32 %v1680, %v2691
      %v3150 = vadd.f32 %v1685, %v2696
      %v3151 = vadd.f32 %v1690, %v2701
      %v3152 = vadd.f32 %v1695, %v2706
      %v3153 = vadd.f32 %v1700, %v2711
      %v3154 = vadd.f32 %v1705, %v2716
      %v3155 = vadd.f32 %v1710, %v2721
      %v3156 = vadd.f32 %v1715, %v2726
      %v3157 = vadd.f32 %v1720, %v2731
      %v3158 = vadd.f32 %v1725, %v2736
      %v3159 = vadd.f32 %v1730, %v2741
      %v3160 = vadd.f32 %v1735, %v2746
      %v3161 = vadd.f32 %v1740, %v2751
      %v3162 = vadd.f32 %v1745, %v2756
      %v3163 = vadd.f32 %v1750, %v2761
      %v3164 = vadd.f32 %v1755, %v2766
      %v3165 = vadd.f32 %v1760, %v2771
      %v3166 = vadd.f32 %v1765, %v2776
      %v3167 = vadd.f32 %v1770, %v2781
      %v3168 = vadd.f32 %v1775, %v2786
      %v3169 = vadd.f32 %v1780, %v2791
      %v3170 = vadd.f32 %v1785, %v2796
      %v3171 = vadd.f32 %v1790, %v2801
      %v3172 = vadd.f32 %v1795, %v2806
      %v3173 = vadd.f32 %v1800, %v2811
      %v3174 = vadd.f32 %v1805, %v2816
      %v3175 = vadd.f32 %v1810, %v2821
      %v3176 = vadd.f32 %v1815, %v2826
      %v3177 = vadd.f32 %v1820, %v2831
      %v3178 = vadd.f32 %v1825, %v2836
      %v3179 = vadd.f32 %v1830, %v2841
      %v3180 = vadd.f32 %v1835, %v2846
      %v3181 = vadd.f32 %v1840, %v2851
      %v3182 = vadd.f32 %v1845, %v2856
      %v3183 = vadd.f32 %v1850, %v2861
      %v3184 = vadd.f32 %v1855, %v2866
      %v3185 = vadd.f32 %v1860, %v2871
      %v3186 = vadd.f32 %v1865, %v2876
      %v3187 = vadd.f32 %v1870, %v2881
      %v3188 = vadd.f32 %v1875, %v2886
      %v3189 = vadd.f32 %v1880, %v2891
      %v3190 = vadd.f32 %v1885, %v2896
      %v3191 = vadd.f32 %v1890, %v2901
      %v3192 = vadd.f32 %v1895, %v2906
      %v3193 = vadd.f32 %v1900, %v2911
      %v3194 = vadd.f32 %v1905, %v2916
      %v3195 = vadd.f32 %v1910, %v2921
      %v3196 = vadd.f32 %v1915, %v2926
      %v3197 = vadd.f32 %v1920, %v2931
      %v3198 = vadd.f32 %v1925, %v2936
      %v3199 = vadd.f32 %v1930, %v2941
      %v3200 = vadd.f32 %v1935, %v2946
      %v3201 = vadd.f32 %v1940, %v2951
      %v3202 = vadd.f32 %v1945, %v2956
      %v3203 = vadd.f32 %v1950, %v2961
      %v3204 = vadd.f32 %v1955, %v2966
      %v3205 = vadd.f32 %v1960, %v2971
      %v3206 = vadd.f32 %v1965, %v2976
      %v3207 = vadd.f32 %v1970, %v2981
      %v3208 = vadd.f32 %v1975, %v2986
      %v3209 = vadd.f32 %v1980, %v2991
      %v3210 = vadd.f32 %v1985, %v2996
      %v3211 = vadd.f32 %v1990, %v3001
      %v3212 = vadd.f32 %v1995, %v3006
      %v3213 = vadd.f32 %v2000, %v3011
      %v3214 = vadd.f32 %v2005, %v3016
      %v3215 = vadd.f32 %v2010, %v3021
      %v3216 = vadd.f32 %v2015, %v3026
      %v3217 = vadd.f32 %v2020, %v3031
      %v3218 = vadd.f32 %v2025, %v3036
      %v3219 = vadd.f32 %v2030, %v3041
      %v3220 = vadd.f32 %v2035, %v3046
      %v3221 = vadd.f32 %v2040, %v3051
      %v3222 = vadd.f32 %v2045, %v3056
      %v3223 = vadd.f32 %v2050, %v3061
      %v3224 = vadd.f32 %v2055, %v3066
      %v3225 = vadd.f32 %v2060, %v3071
      %v3226 = vadd.f32 %v2065, %v3076
      %v3227 = vadd.f32 %v2070, %v3081
      %v3228 = vadd.f32 %v2075, %v3086
      %v3229 = vadd.f32 %v2080, %v3091
      %v3230 = vadd.f32 %v2085, %v3096
      %v3231 = vadd.f32 %v2090, %v3101
      %s3232 = scalar_lea.vmem %s193, 40
      %v3233 = vld [vmem:[%s3232] sm:$0xff]
      %v3234 = vld [vmem:[%s3232 + $0x8] sm:$0xff]
      %v3235 = vld [vmem:[%s3232 + $0x10] sm:$0xff]
      %v3236 = vld [vmem:[%s3232 + $0x18] sm:$0xff]
      %v3237 = vld [vmem:[%s3232 + $0x20] sm:$0xff]
      %v3238 = vld [vmem:[%s3232 + $0x28] sm:$0xff]
      %v3239 = vld [vmem:[%s3232 + $0x30] sm:$0xff]
      %v3240 = vld [vmem:[%s3232 + $0x38] sm:$0xff]
      %v3241 = vld [vmem:[%s3232 + $0x40] sm:$0xff]
      %v3242 = vld [vmem:[%s3232 + $0x48] sm:$0xff]
      %v3243 = vld [vmem:[%s3232 + $0x50] sm:$0xff]
      %v3244 = vld [vmem:[%s3232 + $0x58] sm:$0xff]
      %v3245 = vld [vmem:[%s3232 + $0x60] sm:$0xff]
      %v3246 = vld [vmem:[%s3232 + $0x68] sm:$0xff]
      %v3247 = vld [vmem:[%s3232 + $0x70] sm:$0xff]
      %v3248 = vld [vmem:[%s3232 + $0x78] sm:$0xff]
      %v3249 = vld [vmem:[%s3232 + $0x80] sm:$0xff]
      %v3250 = vld [vmem:[%s3232 + $0x88] sm:$0xff]
      %v3251 = vld [vmem:[%s3232 + $0x90] sm:$0xff]
      %v3252 = vld [vmem:[%s3232 + $0x98] sm:$0xff]
      %v3253 = vld [vmem:[%s3232 + $0xa0] sm:$0xff]
      %v3254 = vld [vmem:[%s3232 + $0xa8] sm:$0xff]
      %v3255 = vld [vmem:[%s3232 + $0xb0] sm:$0xff]
      %v3256 = vld [vmem:[%s3232 + $0xb8] sm:$0xff]
      %v3257 = vld [vmem:[%s3232 + $0xc0] sm:$0xff]
      %v3258 = vld [vmem:[%s3232 + $0xc8] sm:$0xff]
      %v3259 = vld [vmem:[%s3232 + $0xd0] sm:$0xff]
      %v3260 = vld [vmem:[%s3232 + $0xd8] sm:$0xff]
      %v3261 = vld [vmem:[%s3232 + $0xe0] sm:$0xff]
      %v3262 = vld [vmem:[%s3232 + $0xe8] sm:$0xff]
      %v3263 = vld [vmem:[%s3232 + $0xf0] sm:$0xff]
      %v3264 = vld [vmem:[%s3232 + $0xf8] sm:$0xff]
      %v3265 = vld [vmem:[%s3232 + $0x100] sm:$0xff]
      %v3266 = vld [vmem:[%s3232 + $0x108] sm:$0xff]
      %v3267 = vld [vmem:[%s3232 + $0x110] sm:$0xff]
      %v3268 = vld [vmem:[%s3232 + $0x118] sm:$0xff]
      %v3269 = vld [vmem:[%s3232 + $0x120] sm:$0xff]
      %v3270 = vld [vmem:[%s3232 + $0x128] sm:$0xff]
      %v3271 = vld [vmem:[%s3232 + $0x130] sm:$0xff]
      %v3272 = vld [vmem:[%s3232 + $0x138] sm:$0xff]
      %v3273 = vld [vmem:[%s3232 + $0x140] sm:$0xff]
      %v3274 = vld [vmem:[%s3232 + $0x148] sm:$0xff]
      %v3275 = vld [vmem:[%s3232 + $0x150] sm:$0xff]
      %v3276 = vld [vmem:[%s3232 + $0x158] sm:$0xff]
      %v3277 = vld [vmem:[%s3232 + $0x160] sm:$0xff]
      %v3278 = vld [vmem:[%s3232 + $0x168] sm:$0xff]
      %v3279 = vld [vmem:[%s3232 + $0x170] sm:$0xff]
      %v3280 = vld [vmem:[%s3232 + $0x178] sm:$0xff]
      %v3281 = vld [vmem:[%s3232 + $0x180] sm:$0xff]
      %v3282 = vld [vmem:[%s3232 + $0x188] sm:$0xff]
      %v3283 = vld [vmem:[%s3232 + $0x190] sm:$0xff]
      %v3284 = vld [vmem:[%s3232 + $0x198] sm:$0xff]
      %v3285 = vld [vmem:[%s3232 + $0x1a0] sm:$0xff]
      %v3286 = vld [vmem:[%s3232 + $0x1a8] sm:$0xff]
      %v3287 = vld [vmem:[%s3232 + $0x1b0] sm:$0xff]
      %v3288 = vld [vmem:[%s3232 + $0x1b8] sm:$0xff]
      %v3289 = vld [vmem:[%s3232 + $0x1c0] sm:$0xff]
      %v3290 = vld [vmem:[%s3232 + $0x1c8] sm:$0xff]
      %v3291 = vld [vmem:[%s3232 + $0x1d0] sm:$0xff]
      %v3292 = vld [vmem:[%s3232 + $0x1d8] sm:$0xff]
      %v3293 = vld [vmem:[%s3232 + $0x1e0] sm:$0xff]
      %v3294 = vld [vmem:[%s3232 + $0x1e8] sm:$0xff]
      %v3295 = vld [vmem:[%s3232 + $0x1f0] sm:$0xff]
      %v3296 = vld [vmem:[%s3232 + $0x1f8] sm:$0xff]
      %v3297 = vld [vmem:[%s3232 + $0x200] sm:$0xff]
      %v3298 = vld [vmem:[%s3232 + $0x208] sm:$0xff]
      %v3299 = vld [vmem:[%s3232 + $0x210] sm:$0xff]
      %v3300 = vld [vmem:[%s3232 + $0x218] sm:$0xff]
      %v3301 = vld [vmem:[%s3232 + $0x220] sm:$0xff]
      %v3302 = vld [vmem:[%s3232 + $0x228] sm:$0xff]
      %v3303 = vld [vmem:[%s3232 + $0x230] sm:$0xff]
      %v3304 = vld [vmem:[%s3232 + $0x238] sm:$0xff]
      %v3305 = vld [vmem:[%s3232 + $0x240] sm:$0xff]
      %v3306 = vld [vmem:[%s3232 + $0x248] sm:$0xff]
      %v3307 = vld [vmem:[%s3232 + $0x250] sm:$0xff]
      %v3308 = vld [vmem:[%s3232 + $0x258] sm:$0xff]
      %v3309 = vld [vmem:[%s3232 + $0x260] sm:$0xff]
      %v3310 = vld [vmem:[%s3232 + $0x268] sm:$0xff]
      %v3311 = vld [vmem:[%s3232 + $0x270] sm:$0xff]
      %v3312 = vld [vmem:[%s3232 + $0x278] sm:$0xff]
      %v3313 = vld [vmem:[%s3232 + $0x280] sm:$0xff]
      %v3314 = vld [vmem:[%s3232 + $0x288] sm:$0xff]
      %v3315 = vld [vmem:[%s3232 + $0x290] sm:$0xff]
      %v3316 = vld [vmem:[%s3232 + $0x298] sm:$0xff]
      %v3317 = vld [vmem:[%s3232 + $0x2a0] sm:$0xff]
      %v3318 = vld [vmem:[%s3232 + $0x2a8] sm:$0xff]
      %v3319 = vld [vmem:[%s3232 + $0x2b0] sm:$0xff]
      %v3320 = vld [vmem:[%s3232 + $0x2b8] sm:$0xff]
      %v3321 = vld [vmem:[%s3232 + $0x2c0] sm:$0xff]
      %v3322 = vld [vmem:[%s3232 + $0x2c8] sm:$0xff]
      %v3323 = vld [vmem:[%s3232 + $0x2d0] sm:$0xff]
      %v3324 = vld [vmem:[%s3232 + $0x2d8] sm:$0xff]
      %v3325 = vld [vmem:[%s3232 + $0x2e0] sm:$0xff]
      %v3326 = vld [vmem:[%s3232 + $0x2e8] sm:$0xff]
      %v3327 = vld [vmem:[%s3232 + $0x2f0] sm:$0xff]
      %v3328 = vld [vmem:[%s3232 + $0x2f8] sm:$0xff]
      %v3329 = vld [vmem:[%s3232 + $0x300] sm:$0xff]
      %v3330 = vld [vmem:[%s3232 + $0x308] sm:$0xff]
      %v3331 = vld [vmem:[%s3232 + $0x310] sm:$0xff]
      %v3332 = vld [vmem:[%s3232 + $0x318] sm:$0xff]
      %v3333 = vld [vmem:[%s3232 + $0x320] sm:$0xff]
      %v3334 = vld [vmem:[%s3232 + $0x328] sm:$0xff]
      %v3335 = vld [vmem:[%s3232 + $0x330] sm:$0xff]
      %v3336 = vld [vmem:[%s3232 + $0x338] sm:$0xff]
      %v3337 = vld [vmem:[%s3232 + $0x340] sm:$0xff]
      %v3338 = vld [vmem:[%s3232 + $0x348] sm:$0xff]
      %v3339 = vld [vmem:[%s3232 + $0x350] sm:$0xff]
      %v3340 = vld [vmem:[%s3232 + $0x358] sm:$0xff]
      %v3341 = vld [vmem:[%s3232 + $0x360] sm:$0xff]
      %v3342 = vld [vmem:[%s3232 + $0x368] sm:$0xff]
      %v3343 = vld [vmem:[%s3232 + $0x370] sm:$0xff]
      %v3344 = vld [vmem:[%s3232 + $0x378] sm:$0xff]
      %v3345 = vld [vmem:[%s3232 + $0x380] sm:$0xff]
      %v3346 = vld [vmem:[%s3232 + $0x388] sm:$0xff]
      %v3347 = vld [vmem:[%s3232 + $0x390] sm:$0xff]
      %v3348 = vld [vmem:[%s3232 + $0x398] sm:$0xff]
      %v3349 = vld [vmem:[%s3232 + $0x3a0] sm:$0xff]
      %v3350 = vld [vmem:[%s3232 + $0x3a8] sm:$0xff]
      %v3351 = vld [vmem:[%s3232 + $0x3b0] sm:$0xff]
      %v3352 = vld [vmem:[%s3232 + $0x3b8] sm:$0xff]
      %v3353 = vld [vmem:[%s3232 + $0x3c0] sm:$0xff]
      %v3354 = vld [vmem:[%s3232 + $0x3c8] sm:$0xff]
      %v3355 = vld [vmem:[%s3232 + $0x3d0] sm:$0xff]
      %v3356 = vld [vmem:[%s3232 + $0x3d8] sm:$0xff]
      %v3357 = vld [vmem:[%s3232 + $0x3e0] sm:$0xff]
      %v3358 = vld [vmem:[%s3232 + $0x3e8] sm:$0xff]
      %v3359 = vld [vmem:[%s3232 + $0x3f0] sm:$0xff]
      %v3360 = vld [vmem:[%s3232 + $0x3f8] sm:$0xff]
      %v3361 = vld [vmem:[%s3232 + $0x400] sm:$0xff]
      %v3362 = vld [vmem:[%s3232 + $0x408] sm:$0xff]
      %v3363 = vld [vmem:[%s3232 + $0x410] sm:$0xff]
      %v3364 = vld [vmem:[%s3232 + $0x418] sm:$0xff]
      %v3365 = vld [vmem:[%s3232 + $0x420] sm:$0xff]
      %v3366 = vld [vmem:[%s3232 + $0x428] sm:$0xff]
      %v3367 = vld [vmem:[%s3232 + $0x430] sm:$0xff]
      %v3368 = vld [vmem:[%s3232 + $0x438] sm:$0xff]
      %v3369 = vld [vmem:[%s3232 + $0x440] sm:$0xff]
      %v3370 = vld [vmem:[%s3232 + $0x448] sm:$0xff]
      %v3371 = vld [vmem:[%s3232 + $0x450] sm:$0xff]
      %v3372 = vld [vmem:[%s3232 + $0x458] sm:$0xff]
      %v3373 = vld [vmem:[%s3232 + $0x460] sm:$0xff]
      %v3374 = vld [vmem:[%s3232 + $0x468] sm:$0xff]
      %v3375 = vld [vmem:[%s3232 + $0x470] sm:$0xff]
      %v3376 = vld [vmem:[%s3232 + $0x478] sm:$0xff]
      %v3377 = vld [vmem:[%s3232 + $0x480] sm:$0xff]
      %v3378 = vld [vmem:[%s3232 + $0x488] sm:$0xff]
      %v3379 = vld [vmem:[%s3232 + $0x490] sm:$0xff]
      %v3380 = vld [vmem:[%s3232 + $0x498] sm:$0xff]
      %v3381 = vld [vmem:[%s3232 + $0x4a0] sm:$0xff]
      %v3382 = vld [vmem:[%s3232 + $0x4a8] sm:$0xff]
      %v3383 = vld [vmem:[%s3232 + $0x4b0] sm:$0xff]
      %v3384 = vld [vmem:[%s3232 + $0x4b8] sm:$0xff]
      %v3385 = vld [vmem:[%s3232 + $0x4c0] sm:$0xff]
      %v3386 = vld [vmem:[%s3232 + $0x4c8] sm:$0xff]
      %v3387 = vld [vmem:[%s3232 + $0x4d0] sm:$0xff]
      %v3388 = vld [vmem:[%s3232 + $0x4d8] sm:$0xff]
      %v3389 = vld [vmem:[%s3232 + $0x4e0] sm:$0xff]
      %v3390 = vld [vmem:[%s3232 + $0x4e8] sm:$0xff]
      %v3391 = vld [vmem:[%s3232 + $0x4f0] sm:$0xff]
      %v3392 = vld [vmem:[%s3232 + $0x4f8] sm:$0xff]
      %s3393 = scalar_lea.vmem %s1, 384
      %v3394 = vld [vmem:[%s3393] sm:$0xff]
      %v3395 = vld [vmem:[%s3393 + $0x8] sm:$0xff]
      %v3396 = vld [vmem:[%s3393 + $0x10] sm:$0xff]
      %v3397 = vld [vmem:[%s3393 + $0x18] sm:$0xff]
      %v3398 = vld [vmem:[%s3393 + $0x20] sm:$0xff]
      %v3399 = vld [vmem:[%s3393 + $0x28] sm:$0xff]
      %v3400 = vld [vmem:[%s3393 + $0x30] sm:$0xff]
      %v3401 = vld [vmem:[%s3393 + $0x38] sm:$0xff]
      %v3402 = vld [vmem:[%s3393 + $0x40] sm:$0xff]
      %v3403 = vld [vmem:[%s3393 + $0x48] sm:$0xff]
      %v3404 = vld [vmem:[%s3393 + $0x50] sm:$0xff]
      %v3405 = vld [vmem:[%s3393 + $0x58] sm:$0xff]
      %v3406 = vld [vmem:[%s3393 + $0x60] sm:$0xff]
      %v3407 = vld [vmem:[%s3393 + $0x68] sm:$0xff]
      %v3408 = vld [vmem:[%s3393 + $0x70] sm:$0xff]
      %v3409 = vld [vmem:[%s3393 + $0x78] sm:$0xff]
      %3410 = vmatprep.subr.mxu0 0.0
      %3411 = vmatpush1.msra.mxu0 %v3394
      %3412 = vmatprep.subr.mxu0 0.0
      %3413 = vmatpush1.msra.mxu0 %v3395
      %3414 = vmatprep.subr.mxu0 0.0
      %3415 = vmatpush1.msra.mxu0 %v3396
      %3416 = vmatprep.subr.mxu0 0.0
      %3417 = vmatpush1.msra.mxu0 %v3397
      %3418 = vmatprep.subr.mxu0 0.0
      %3419 = vmatpush1.msra.mxu0 %v3398
      %3420 = vmatprep.subr.mxu0 0.0
      %3421 = vmatpush1.msra.mxu0 %v3399
      %3422 = vmatprep.subr.mxu0 0.0
      %3423 = vmatpush1.msra.mxu0 %v3400
      %3424 = vmatprep.subr.mxu0 0.0
      %3425 = vmatpush1.msra.mxu0 %v3401
      %3426 = vmatprep.subr.mxu0 0.0
      %3427 = vmatpush1.msra.mxu0 %v3402
      %3428 = vmatprep.subr.mxu0 0.0
      %3429 = vmatpush1.msra.mxu0 %v3403
      %3430 = vmatprep.subr.mxu0 0.0
      %3431 = vmatpush1.msra.mxu0 %v3404
      %3432 = vmatprep.subr.mxu0 0.0
      %3433 = vmatpush1.msra.mxu0 %v3405
      %3434 = vmatprep.subr.mxu0 0.0
      %3435 = vmatpush1.msra.mxu0 %v3406
      %3436 = vmatprep.subr.mxu0 0.0
      %3437 = vmatpush1.msra.mxu0 %v3407
      %3438 = vmatprep.subr.mxu0 0.0
      %3439 = vmatpush1.msra.mxu0 %v3408
      %3440 = vmatprep.subr.mxu0 0.0
      %3441 = vmatpush1.msra.mxu0 %v3409
      %3442 = vmatprep.subr.mxu0 0.0
      %3443 = vmatpush1.msra.mxu0 0.0
      %3444 = vmatprep.subr.mxu0 0.0
      %3445 = vmatpush1.msra.mxu0 0.0
      %3446 = vmatprep.subr.mxu0 0.0
      %3447 = vmatpush1.msra.mxu0 0.0
      %3448 = vmatprep.subr.mxu0 0.0
      %3449 = vmatpush1.msra.mxu0 0.0
      %3450 = vmatprep.subr.mxu0 0.0
      %3451 = vmatpush1.msra.mxu0 0.0
      %3452 = vmatprep.subr.mxu0 0.0
      %3453 = vmatpush1.msra.mxu0 0.0
      %3454 = vmatprep.subr.mxu0 0.0
      %3455 = vmatpush1.msra.mxu0 0.0
      %3456 = vmatprep.subr.mxu0 0.0
      %3457 = vmatpush1.msra.mxu0 0.0
      %3458 = vmatprep.subr.mxu0 0.0
      %3459 = vmatpush1.msra.mxu0 0.0
      %3460 = vmatprep.subr.mxu0 0.0
      %3461 = vmatpush1.msra.mxu0 0.0
      %3462 = vmatprep.subr.mxu0 0.0
      %3463 = vmatpush1.msra.mxu0 0.0
      %3464 = vmatprep.subr.mxu0 0.0
      %3465 = vmatpush1.msra.mxu0 0.0
      %3466 = vmatprep.subr.mxu0 0.0
      %3467 = vmatpush1.msra.mxu0 0.0
      %3468 = vmatprep.subr.mxu0 0.0
      %3469 = vmatpush1.msra.mxu0 0.0
      %3470 = vmatprep.subr.mxu0 0.0
      %3471 = vmatpush1.msra.mxu0 0.0
      %3472 = vmatprep.subr.mxu0 0.0
      %3473 = vmatpush1.msra.mxu0 0.0
      %3474 = vmatprep.mubr.f32.mxu0 0.0
      %3475 = vmatmul.mubr.f32.gmra.mrb[0].mxu0 %v3233
      %v3476 = vpop.f32.mrb[0].mxu0
      %v3477 = vadd.f32 0.0, %v3476
      %v3478 = vpop.f32.mrb[0].mxu0
      %3479 = vmatprep.mubr.f32.mxu0 0.0
      %3480 = vmatmul.mubr.f32.gmra.mrb[0].mxu0 %v3234
      %v3481 = vpop.f32.mrb[0].mxu0
      %v3482 = vadd.f32 0.0, %v3481
      %v3483 = vpop.f32.mrb[0].mxu0
      %3484 = vmatprep.mubr.f32.mxu0 0.0
      %3485 = vmatmul.mubr.f32.gmra.mrb[0].mxu0 %v3235
      %v3486 = vpop.f32.mrb[0].mxu0
      %v3487 = vadd.f32 0.0, %v3486
      %v3488 = vpop.f32.mrb[0].mxu0
      %3489 = vmatprep.mubr.f32.mxu0 0.0
      %3490 = vmatmul.mubr.f32.gmra.mrb[0].mxu0 %v3236
      %v3491 = vpop.f32.mrb[0].mxu0
      %v3492 = vadd.f32 0.0, %v3491
      %v3493 = vpop.f32.mrb[0].mxu0
      %3494 = vmatprep.mubr.f32.mxu0 0.0
      %3495 = vmatmul.mubr.f32.gmra.mrb[0].mxu0 %v3238
      %v3496 = vpop.f32.mrb[0].mxu0
      %v3497 = vadd.f32 0.0, %v3496
      %v3498 = vpop.f32.mrb[0].mxu0
      %3499 = vmatprep.mubr.f32.mxu0 0.0
      %3500 = vmatmul.mubr.f32.gmra.mrb[0].mxu0 %v3239
      %v3501 = vpop.f32.mrb[0].mxu0
      %v3502 = vadd.f32 0.0, %v3501
      %v3503 = vpop.f32.mrb[0].mxu0
      %3504 = vmatprep.mubr.f32.mxu0 0.0
      %3505 = vmatmul.mubr.f32.gmra.mrb[0].mxu0 %v3240
      %v3506 = vpop.f32.mrb[0].mxu0
      %v3507 = vadd.f32 0.0, %v3506
      %v3508 = vpop.f32.mrb[0].mxu0
      %3509 = vmatprep.mubr.f32.mxu0 0.0
      %3510 = vmatmul.mubr.f32.gmra.mrb[0].mxu0 %v3241
      %v3511 = vpop.f32.mrb[0].mxu0
      %v3512 = vadd.f32 0.0, %v3511
      %v3513 = vpop.f32.mrb[0].mxu0
      %3514 = vmatprep.mubr.f32.mxu0 0.0
      %3515 = vmatmul.mubr.f32.gmra.mrb[0].mxu0 %v3243
      %v3516 = vpop.f32.mrb[0].mxu0
      %v3517 = vadd.f32 0.0, %v3516
      %v3518 = vpop.f32.mrb[0].mxu0
      %3519 = vmatprep.mubr.f32.mxu0 0.0
      %3520 = vmatmul.mubr.f32.gmra.mrb[0].mxu0 %v3244
      %v3521 = vpop.f32.mrb[0].mxu0
      %v3522 = vadd.f32 0.0, %v3521
      %v3523 = vpop.f32.mrb[0].mxu0
      %3524 = vmatprep.mubr.f32.mxu0 0.0
      %3525 = vmatmul.mubr.f32.gmra.mrb[0].mxu0 %v3245
      %v3526 = vpop.f32.mrb[0].mxu0
      %v3527 = vadd.f32 0.0, %v3526
      %v3528 = vpop.f32.mrb[0].mxu0
      %3529 = vmatprep.mubr.f32.mxu0 0.0
      %3530 = vmatmul.mubr.f32.gmra.mrb[0].mxu0 %v3246
      %v3531 = vpop.f32.mrb[0].mxu0
      %v3532 = vadd.f32 0.0, %v3531
      %v3533 = vpop.f32.mrb[0].mxu0
      %3534 = vmatprep.mubr.f32.mxu0 0.0
      %3535 = vmatmul.mubr.f32.gmra.mrb[0].mxu0 %v3248
      %v3536 = vpop.f32.mrb[0].mxu0
      %v3537 = vadd.f32 0.0, %v3536
      %v3538 = vpop.f32.mrb[0].mxu0
      %3539 = vmatprep.mubr.f32.mxu0 0.0
      %3540 = vmatmul.mubr.f32.gmra.mrb[0].mxu0 %v3249
      %v3541 = vpop.f32.mrb[0].mxu0
      %v3542 = vadd.f32 0.0, %v3541
      %v3543 = vpop.f32.mrb[0].mxu0
      %3544 = vmatprep.mubr.f32.mxu0 0.0
      %3545 = vmatmul.mubr.f32.gmra.mrb[0].mxu0 %v3250
      %v3546 = vpop.f32.mrb[0].mxu0
      %v3547 = vadd.f32 0.0, %v3546
      %v3548 = vpop.f32.mrb[0].mxu0
      %3549 = vmatprep.mubr.f32.mxu0 0.0
      %3550 = vmatmul.mubr.f32.gmra.mrb[0].mxu0 %v3251
      %v3551 = vpop.f32.mrb[0].mxu0
      %v3552 = vadd.f32 0.0, %v3551
      %v3553 = vpop.f32.mrb[0].mxu0
      %3554 = vmatprep.mubr.f32.mxu0 0.0
      %3555 = vmatmul.mubr.f32.gmra.mrb[0].mxu0 %v3253
      %v3556 = vpop.f32.mrb[0].mxu0
      %v3557 = vadd.f32 0.0, %v3556
      %v3558 = vpop.f32.mrb[0].mxu0
      %3559 = vmatprep.mubr.f32.mxu0 0.0
      %3560 = vmatmul.mubr.f32.gmra.mrb[0].mxu0 %v3254
      %v3561 = vpop.f32.mrb[0].mxu0
      %v3562 = vadd.f32 0.0, %v3561
      %v3563 = vpop.f32.mrb[0].mxu0
      %3564 = vmatprep.mubr.f32.mxu0 0.0
      %3565 = vmatmul.mubr.f32.gmra.mrb[0].mxu0 %v3255
      %v3566 = vpop.f32.mrb[0].mxu0
      %v3567 = vadd.f32 0.0, %v3566
      %v3568 = vpop.f32.mrb[0].mxu0
      %3569 = vmatprep.mubr.f32.mxu0 0.0
      %3570 = vmatmul.mubr.f32.gmra.mrb[0].mxu0 %v3256
      %v3571 = vpop.f32.mrb[0].mxu0
      %v3572 = vadd.f32 0.0, %v3571
      %v3573 = vpop.f32.mrb[0].mxu0
      %3574 = vmatprep.mubr.f32.mxu0 0.0
      %3575 = vmatmul.mubr.f32.gmra.mrb[0].mxu0 %v3258
      %v3576 = vpop.f32.mrb[0].mxu0
      %v3577 = vadd.f32 0.0, %v3576
      %v3578 = vpop.f32.mrb[0].mxu0
      %3579 = vmatprep.mubr.f32.mxu0 0.0
      %3580 = vmatmul.mubr.f32.gmra.mrb[0].mxu0 %v3259
      %v3581 = vpop.f32.mrb[0].mxu0
      %v3582 = vadd.f32 0.0, %v3581
      %v3583 = vpop.f32.mrb[0].mxu0
      %3584 = vmatprep.mubr.f32.mxu0 0.0
      %3585 = vmatmul.mubr.f32.gmra.mrb[0].mxu0 %v3260
      %v3586 = vpop.f32.mrb[0].mxu0
      %v3587 = vadd.f32 0.0, %v3586
      %v3588 = vpop.f32.mrb[0].mxu0
      %3589 = vmatprep.mubr.f32.mxu0 0.0
      %3590 = vmatmul.mubr.f32.gmra.mrb[0].mxu0 %v3261
      %v3591 = vpop.f32.mrb[0].mxu0
      %v3592 = vadd.f32 0.0, %v3591
      %v3593 = vpop.f32.mrb[0].mxu0
      %3594 = vmatprep.mubr.f32.mxu0 0.0
      %3595 = vmatmul.mubr.f32.gmra.mrb[0].mxu0 %v3263
      %v3596 = vpop.f32.mrb[0].mxu0
      %v3597 = vadd.f32 0.0, %v3596
      %v3598 = vpop.f32.mrb[0].mxu0
      %3599 = vmatprep.mubr.f32.mxu0 0.0
      %3600 = vmatmul.mubr.f32.gmra.mrb[0].mxu0 %v3264
      %v3601 = vpop.f32.mrb[0].mxu0
      %v3602 = vadd.f32 0.0, %v3601
      %v3603 = vpop.f32.mrb[0].mxu0
      %3604 = vmatprep.mubr.f32.mxu0 0.0
      %3605 = vmatmul.mubr.f32.gmra.mrb[0].mxu0 %v3265
      %v3606 = vpop.f32.mrb[0].mxu0
      %v3607 = vadd.f32 0.0, %v3606
      %v3608 = vpop.f32.mrb[0].mxu0
      %3609 = vmatprep.mubr.f32.mxu0 0.0
      %3610 = vmatmul.mubr.f32.gmra.mrb[0].mxu0 %v3266
      %v3611 = vpop.f32.mrb[0].mxu0
      %v3612 = vadd.f32 0.0, %v3611
      %v3613 = vpop.f32.mrb[0].mxu0
      %3614 = vmatprep.mubr.f32.mxu0 0.0
      %3615 = vmatmul.mubr.f32.gmra.mrb[0].mxu0 %v3268
      %v3616 = vpop.f32.mrb[0].mxu0
      %v3617 = vadd.f32 0.0, %v3616
      %v3618 = vpop.f32.mrb[0].mxu0
      %3619 = vmatprep.mubr.f32.mxu0 0.0
      %3620 = vmatmul.mubr.f32.gmra.mrb[0].mxu0 %v3269
      %v3621 = vpop.f32.mrb[0].mxu0
      %v3622 = vadd.f32 0.0, %v3621
      %v3623 = vpop.f32.mrb[0].mxu0
      %3624 = vmatprep.mubr.f32.mxu0 0.0
      %3625 = vmatmul.mubr.f32.gmra.mrb[0].mxu0 %v3270
      %v3626 = vpop.f32.mrb[0].mxu0
      %v3627 = vadd.f32 0.0, %v3626
      %v3628 = vpop.f32.mrb[0].mxu0
      %3629 = vmatprep.mubr.f32.mxu0 0.0
      %3630 = vmatmul.mubr.f32.gmra.mrb[0].mxu0 %v3271
      %v3631 = vpop.f32.mrb[0].mxu0
      %v3632 = vadd.f32 0.0, %v3631
      %v3633 = vpop.f32.mrb[0].mxu0
      %3634 = vmatprep.mubr.f32.mxu0 0.0
      %3635 = vmatmul.mubr.f32.gmra.mrb[0].mxu0 %v3273
      %v3636 = vpop.f32.mrb[0].mxu0
      %v3637 = vadd.f32 0.0, %v3636
      %v3638 = vpop.f32.mrb[0].mxu0
      %3639 = vmatprep.mubr.f32.mxu0 0.0
      %3640 = vmatmul.mubr.f32.gmra.mrb[0].mxu0 %v3274
      %v3641 = vpop.f32.mrb[0].mxu0
      %v3642 = vadd.f32 0.0, %v3641
      %v3643 = vpop.f32.mrb[0].mxu0
      %3644 = vmatprep.mubr.f32.mxu0 0.0
      %3645 = vmatmul.mubr.f32.gmra.mrb[0].mxu0 %v3275
      %v3646 = vpop.f32.mrb[0].mxu0
      %v3647 = vadd.f32 0.0, %v3646
      %v3648 = vpop.f32.mrb[0].mxu0
      %3649 = vmatprep.mubr.f32.mxu0 0.0
      %3650 = vmatmul.mubr.f32.gmra.mrb[0].mxu0 %v3276
      %v3651 = vpop.f32.mrb[0].mxu0
      %v3652 = vadd.f32 0.0, %v3651
      %v3653 = vpop.f32.mrb[0].mxu0
      %3654 = vmatprep.mubr.f32.mxu0 0.0
      %3655 = vmatmul.mubr.f32.gmra.mrb[0].mxu0 %v3278
      %v3656 = vpop.f32.mrb[0].mxu0
      %v3657 = vadd.f32 0.0, %v3656
      %v3658 = vpop.f32.mrb[0].mxu0
      %3659 = vmatprep.mubr.f32.mxu0 0.0
      %3660 = vmatmul.mubr.f32.gmra.mrb[0].mxu0 %v3279
      %v3661 = vpop.f32.mrb[0].mxu0
      %v3662 = vadd.f32 0.0, %v3661
      %v3663 = vpop.f32.mrb[0].mxu0
      %3664 = vmatprep.mubr.f32.mxu0 0.0
      %3665 = vmatmul.mubr.f32.gmra.mrb[0].mxu0 %v3280
      %v3666 = vpop.f32.mrb[0].mxu0
      %v3667 = vadd.f32 0.0, %v3666
      %v3668 = vpop.f32.mrb[0].mxu0
      %3669 = vmatprep.mubr.f32.mxu0 0.0
      %3670 = vmatmul.mubr.f32.gmra.mrb[0].mxu0 %v3281
      %v3671 = vpop.f32.mrb[0].mxu0
      %v3672 = vadd.f32 0.0, %v3671
      %v3673 = vpop.f32.mrb[0].mxu0
      %3674 = vmatprep.mubr.f32.mxu0 0.0
      %3675 = vmatmul.mubr.f32.gmra.mrb[0].mxu0 %v3283
      %v3676 = vpop.f32.mrb[0].mxu0
      %v3677 = vadd.f32 0.0, %v3676
      %v3678 = vpop.f32.mrb[0].mxu0
      %3679 = vmatprep.mubr.f32.mxu0 0.0
      %3680 = vmatmul.mubr.f32.gmra.mrb[0].mxu0 %v3284
      %v3681 = vpop.f32.mrb[0].mxu0
      %v3682 = vadd.f32 0.0, %v3681
      %v3683 = vpop.f32.mrb[0].mxu0
      %3684 = vmatprep.mubr.f32.mxu0 0.0
      %3685 = vmatmul.mubr.f32.gmra.mrb[0].mxu0 %v3285
      %v3686 = vpop.f32.mrb[0].mxu0
      %v3687 = vadd.f32 0.0, %v3686
      %v3688 = vpop.f32.mrb[0].mxu0
      %3689 = vmatprep.mubr.f32.mxu0 0.0
      %3690 = vmatmul.mubr.f32.gmra.mrb[0].mxu0 %v3286
      %v3691 = vpop.f32.mrb[0].mxu0
      %v3692 = vadd.f32 0.0, %v3691
      %v3693 = vpop.f32.mrb[0].mxu0
      %3694 = vmatprep.mubr.f32.mxu0 0.0
      %3695 = vmatmul.mubr.f32.gmra.mrb[0].mxu0 %v3288
      %v3696 = vpop.f32.mrb[0].mxu0
      %v3697 = vadd.f32 0.0, %v3696
      %v3698 = vpop.f32.mrb[0].mxu0
      %3699 = vmatprep.mubr.f32.mxu0 0.0
      %3700 = vmatmul.mubr.f32.gmra.mrb[0].mxu0 %v3289
      %v3701 = vpop.f32.mrb[0].mxu0
      %v3702 = vadd.f32 0.0, %v3701
      %v3703 = vpop.f32.mrb[0].mxu0
      %3704 = vmatprep.mubr.f32.mxu0 0.0
      %3705 = vmatmul.mubr.f32.gmra.mrb[0].mxu0 %v3290
      %v3706 = vpop.f32.mrb[0].mxu0
      %v3707 = vadd.f32 0.0, %v3706
      %v3708 = vpop.f32.mrb[0].mxu0
      %3709 = vmatprep.mubr.f32.mxu0 0.0
      %3710 = vmatmul.mubr.f32.gmra.mrb[0].mxu0 %v3291
      %v3711 = vpop.f32.mrb[0].mxu0
      %v3712 = vadd.f32 0.0, %v3711
      %v3713 = vpop.f32.mrb[0].mxu0
      %3714 = vmatprep.mubr.f32.mxu0 0.0
      %3715 = vmatmul.mubr.f32.gmra.mrb[0].mxu0 %v3293
      %v3716 = vpop.f32.mrb[0].mxu0
      %v3717 = vadd.f32 0.0, %v3716
      %v3718 = vpop.f32.mrb[0].mxu0
      %3719 = vmatprep.mubr.f32.mxu0 0.0
      %3720 = vmatmul.mubr.f32.gmra.mrb[0].mxu0 %v3294
      %v3721 = vpop.f32.mrb[0].mxu0
      %v3722 = vadd.f32 0.0, %v3721
      %v3723 = vpop.f32.mrb[0].mxu0
      %3724 = vmatprep.mubr.f32.mxu0 0.0
      %3725 = vmatmul.mubr.f32.gmra.mrb[0].mxu0 %v3295
      %v3726 = vpop.f32.mrb[0].mxu0
      %v3727 = vadd.f32 0.0, %v3726
      %v3728 = vpop.f32.mrb[0].mxu0
      %3729 = vmatprep.mubr.f32.mxu0 0.0
      %3730 = vmatmul.mubr.f32.gmra.mrb[0].mxu0 %v3296
      %v3731 = vpop.f32.mrb[0].mxu0
      %v3732 = vadd.f32 0.0, %v3731
      %v3733 = vpop.f32.mrb[0].mxu0
      %3734 = vmatprep.mubr.f32.mxu0 0.0
      %3735 = vmatmul.mubr.f32.gmra.mrb[0].mxu0 %v3298
      %v3736 = vpop.f32.mrb[0].mxu0
      %v3737 = vadd.f32 0.0, %v3736
      %v3738 = vpop.f32.mrb[0].mxu0
      %3739 = vmatprep.mubr.f32.mxu0 0.0
      %3740 = vmatmul.mubr.f32.gmra.mrb[0].mxu0 %v3299
      %v3741 = vpop.f32.mrb[0].mxu0
      %v3742 = vadd.f32 0.0, %v3741
      %v3743 = vpop.f32.mrb[0].mxu0
      %3744 = vmatprep.mubr.f32.mxu0 0.0
      %3745 = vmatmul.mubr.f32.gmra.mrb[0].mxu0 %v3300
      %v3746 = vpop.f32.mrb[0].mxu0
      %v3747 = vadd.f32 0.0, %v3746
      %v3748 = vpop.f32.mrb[0].mxu0
      %3749 = vmatprep.mubr.f32.mxu0 0.0
      %3750 = vmatmul.mubr.f32.gmra.mrb[0].mxu0 %v3301
      %v3751 = vpop.f32.mrb[0].mxu0
      %v3752 = vadd.f32 0.0, %v3751
      %v3753 = vpop.f32.mrb[0].mxu0
      %3754 = vmatprep.mubr.f32.mxu0 0.0
      %3755 = vmatmul.mubr.f32.gmra.mrb[0].mxu0 %v3303
      %v3756 = vpop.f32.mrb[0].mxu0
      %v3757 = vadd.f32 0.0, %v3756
      %v3758 = vpop.f32.mrb[0].mxu0
      %3759 = vmatprep.mubr.f32.mxu0 0.0
      %3760 = vmatmul.mubr.f32.gmra.mrb[0].mxu0 %v3304
      %v3761 = vpop.f32.mrb[0].mxu0
      %v3762 = vadd.f32 0.0, %v3761
      %v3763 = vpop.f32.mrb[0].mxu0
      %3764 = vmatprep.mubr.f32.mxu0 0.0
      %3765 = vmatmul.mubr.f32.gmra.mrb[0].mxu0 %v3305
      %v3766 = vpop.f32.mrb[0].mxu0
      %v3767 = vadd.f32 0.0, %v3766
      %v3768 = vpop.f32.mrb[0].mxu0
      %3769 = vmatprep.mubr.f32.mxu0 0.0
      %3770 = vmatmul.mubr.f32.gmra.mrb[0].mxu0 %v3306
      %v3771 = vpop.f32.mrb[0].mxu0
      %v3772 = vadd.f32 0.0, %v3771
      %v3773 = vpop.f32.mrb[0].mxu0
      %3774 = vmatprep.mubr.f32.mxu0 0.0
      %3775 = vmatmul.mubr.f32.gmra.mrb[0].mxu0 %v3308
      %v3776 = vpop.f32.mrb[0].mxu0
      %v3777 = vadd.f32 0.0, %v3776
      %v3778 = vpop.f32.mrb[0].mxu0
      %3779 = vmatprep.mubr.f32.mxu0 0.0
      %3780 = vmatmul.mubr.f32.gmra.mrb[0].mxu0 %v3309
      %v3781 = vpop.f32.mrb[0].mxu0
      %v3782 = vadd.f32 0.0, %v3781
      %v3783 = vpop.f32.mrb[0].mxu0
      %3784 = vmatprep.mubr.f32.mxu0 0.0
      %3785 = vmatmul.mubr.f32.gmra.mrb[0].mxu0 %v3310
      %v3786 = vpop.f32.mrb[0].mxu0
      %v3787 = vadd.f32 0.0, %v3786
      %v3788 = vpop.f32.mrb[0].mxu0
      %3789 = vmatprep.mubr.f32.mxu0 0.0
      %3790 = vmatmul.mubr.f32.gmra.mrb[0].mxu0 %v3311
      %v3791 = vpop.f32.mrb[0].mxu0
      %v3792 = vadd.f32 0.0, %v3791
      %v3793 = vpop.f32.mrb[0].mxu0
      %3794 = vmatprep.mubr.f32.mxu0 0.0
      %3795 = vmatmul.mubr.f32.gmra.mrb[0].mxu0 %v3313
      %v3796 = vpop.f32.mrb[0].mxu0
      %v3797 = vadd.f32 0.0, %v3796
      %v3798 = vpop.f32.mrb[0].mxu0
      %3799 = vmatprep.mubr.f32.mxu0 0.0
      %3800 = vmatmul.mubr.f32.gmra.mrb[0].mxu0 %v3314
      %v3801 = vpop.f32.mrb[0].mxu0
      %v3802 = vadd.f32 0.0, %v3801
      %v3803 = vpop.f32.mrb[0].mxu0
      %3804 = vmatprep.mubr.f32.mxu0 0.0
      %3805 = vmatmul.mubr.f32.gmra.mrb[0].mxu0 %v3315
      %v3806 = vpop.f32.mrb[0].mxu0
      %v3807 = vadd.f32 0.0, %v3806
      %v3808 = vpop.f32.mrb[0].mxu0
      %3809 = vmatprep.mubr.f32.mxu0 0.0
      %3810 = vmatmul.mubr.f32.gmra.mrb[0].mxu0 %v3316
      %v3811 = vpop.f32.mrb[0].mxu0
      %v3812 = vadd.f32 0.0, %v3811
      %v3813 = vpop.f32.mrb[0].mxu0
      %3814 = vmatprep.mubr.f32.mxu0 0.0
      %3815 = vmatmul.mubr.f32.gmra.mrb[0].mxu0 %v3318
      %v3816 = vpop.f32.mrb[0].mxu0
      %v3817 = vadd.f32 0.0, %v3816
      %v3818 = vpop.f32.mrb[0].mxu0
      %3819 = vmatprep.mubr.f32.mxu0 0.0
      %3820 = vmatmul.mubr.f32.gmra.mrb[0].mxu0 %v3319
      %v3821 = vpop.f32.mrb[0].mxu0
      %v3822 = vadd.f32 0.0, %v3821
      %v3823 = vpop.f32.mrb[0].mxu0
      %3824 = vmatprep.mubr.f32.mxu0 0.0
      %3825 = vmatmul.mubr.f32.gmra.mrb[0].mxu0 %v3320
      %v3826 = vpop.f32.mrb[0].mxu0
      %v3827 = vadd.f32 0.0, %v3826
      %v3828 = vpop.f32.mrb[0].mxu0
      %3829 = vmatprep.mubr.f32.mxu0 0.0
      %3830 = vmatmul.mubr.f32.gmra.mrb[0].mxu0 %v3321
      %v3831 = vpop.f32.mrb[0].mxu0
      %v3832 = vadd.f32 0.0, %v3831
      %v3833 = vpop.f32.mrb[0].mxu0
      %3834 = vmatprep.mubr.f32.mxu0 0.0
      %3835 = vmatmul.mubr.f32.gmra.mrb[0].mxu0 %v3323
      %v3836 = vpop.f32.mrb[0].mxu0
      %v3837 = vadd.f32 0.0, %v3836
      %v3838 = vpop.f32.mrb[0].mxu0
      %3839 = vmatprep.mubr.f32.mxu0 0.0
      %3840 = vmatmul.mubr.f32.gmra.mrb[0].mxu0 %v3324
      %v3841 = vpop.f32.mrb[0].mxu0
      %v3842 = vadd.f32 0.0, %v3841
      %v3843 = vpop.f32.mrb[0].mxu0
      %3844 = vmatprep.mubr.f32.mxu0 0.0
      %3845 = vmatmul.mubr.f32.gmra.mrb[0].mxu0 %v3325
      %v3846 = vpop.f32.mrb[0].mxu0
      %v3847 = vadd.f32 0.0, %v3846
      %v3848 = vpop.f32.mrb[0].mxu0
      %3849 = vmatprep.mubr.f32.mxu0 0.0
      %3850 = vmatmul.mubr.f32.gmra.mrb[0].mxu0 %v3326
      %v3851 = vpop.f32.mrb[0].mxu0
      %v3852 = vadd.f32 0.0, %v3851
      %v3853 = vpop.f32.mrb[0].mxu0
      %3854 = vmatprep.mubr.f32.mxu0 0.0
      %3855 = vmatmul.mubr.f32.gmra.mrb[0].mxu0 %v3328
      %v3856 = vpop.f32.mrb[0].mxu0
      %v3857 = vadd.f32 0.0, %v3856
      %v3858 = vpop.f32.mrb[0].mxu0
      %3859 = vmatprep.mubr.f32.mxu0 0.0
      %3860 = vmatmul.mubr.f32.gmra.mrb[0].mxu0 %v3329
      %v3861 = vpop.f32.mrb[0].mxu0
      %v3862 = vadd.f32 0.0, %v3861
      %v3863 = vpop.f32.mrb[0].mxu0
      %3864 = vmatprep.mubr.f32.mxu0 0.0
      %3865 = vmatmul.mubr.f32.gmra.mrb[0].mxu0 %v3330
      %v3866 = vpop.f32.mrb[0].mxu0
      %v3867 = vadd.f32 0.0, %v3866
      %v3868 = vpop.f32.mrb[0].mxu0
      %3869 = vmatprep.mubr.f32.mxu0 0.0
      %3870 = vmatmul.mubr.f32.gmra.mrb[0].mxu0 %v3331
      %v3871 = vpop.f32.mrb[0].mxu0
      %v3872 = vadd.f32 0.0, %v3871
      %v3873 = vpop.f32.mrb[0].mxu0
      %3874 = vmatprep.mubr.f32.mxu0 0.0
      %3875 = vmatmul.mubr.f32.gmra.mrb[0].mxu0 %v3333
      %v3876 = vpop.f32.mrb[0].mxu0
      %v3877 = vadd.f32 0.0, %v3876
      %v3878 = vpop.f32.mrb[0].mxu0
      %3879 = vmatprep.mubr.f32.mxu0 0.0
      %3880 = vmatmul.mubr.f32.gmra.mrb[0].mxu0 %v3334
      %v3881 = vpop.f32.mrb[0].mxu0
      %v3882 = vadd.f32 0.0, %v3881
      %v3883 = vpop.f32.mrb[0].mxu0
      %3884 = vmatprep.mubr.f32.mxu0 0.0
      %3885 = vmatmul.mubr.f32.gmra.mrb[0].mxu0 %v3335
      %v3886 = vpop.f32.mrb[0].mxu0
      %v3887 = vadd.f32 0.0, %v3886
      %v3888 = vpop.f32.mrb[0].mxu0
      %3889 = vmatprep.mubr.f32.mxu0 0.0
      %3890 = vmatmul.mubr.f32.gmra.mrb[0].mxu0 %v3336
      %v3891 = vpop.f32.mrb[0].mxu0
      %v3892 = vadd.f32 0.0, %v3891
      %v3893 = vpop.f32.mrb[0].mxu0
      %3894 = vmatprep.mubr.f32.mxu0 0.0
      %3895 = vmatmul.mubr.f32.gmra.mrb[0].mxu0 %v3338
      %v3896 = vpop.f32.mrb[0].mxu0
      %v3897 = vadd.f32 0.0, %v3896
      %v3898 = vpop.f32.mrb[0].mxu0
      %3899 = vmatprep.mubr.f32.mxu0 0.0
      %3900 = vmatmul.mubr.f32.gmra.mrb[0].mxu0 %v3339
      %v3901 = vpop.f32.mrb[0].mxu0
      %v3902 = vadd.f32 0.0, %v3901
      %v3903 = vpop.f32.mrb[0].mxu0
      %3904 = vmatprep.mubr.f32.mxu0 0.0
      %3905 = vmatmul.mubr.f32.gmra.mrb[0].mxu0 %v3340
      %v3906 = vpop.f32.mrb[0].mxu0
      %v3907 = vadd.f32 0.0, %v3906
      %v3908 = vpop.f32.mrb[0].mxu0
      %3909 = vmatprep.mubr.f32.mxu0 0.0
      %3910 = vmatmul.mubr.f32.gmra.mrb[0].mxu0 %v3341
      %v3911 = vpop.f32.mrb[0].mxu0
      %v3912 = vadd.f32 0.0, %v3911
      %v3913 = vpop.f32.mrb[0].mxu0
      %3914 = vmatprep.mubr.f32.mxu0 0.0
      %3915 = vmatmul.mubr.f32.gmra.mrb[0].mxu0 %v3343
      %v3916 = vpop.f32.mrb[0].mxu0
      %v3917 = vadd.f32 0.0, %v3916
      %v3918 = vpop.f32.mrb[0].mxu0
      %3919 = vmatprep.mubr.f32.mxu0 0.0
      %3920 = vmatmul.mubr.f32.gmra.mrb[0].mxu0 %v3344
      %v3921 = vpop.f32.mrb[0].mxu0
      %v3922 = vadd.f32 0.0, %v3921
      %v3923 = vpop.f32.mrb[0].mxu0
      %3924 = vmatprep.mubr.f32.mxu0 0.0
      %3925 = vmatmul.mubr.f32.gmra.mrb[0].mxu0 %v3345
      %v3926 = vpop.f32.mrb[0].mxu0
      %v3927 = vadd.f32 0.0, %v3926
      %v3928 = vpop.f32.mrb[0].mxu0
      %3929 = vmatprep.mubr.f32.mxu0 0.0
      %3930 = vmatmul.mubr.f32.gmra.mrb[0].mxu0 %v3346
      %v3931 = vpop.f32.mrb[0].mxu0
      %v3932 = vadd.f32 0.0, %v3931
      %v3933 = vpop.f32.mrb[0].mxu0
      %3934 = vmatprep.mubr.f32.mxu0 0.0
      %3935 = vmatmul.mubr.f32.gmra.mrb[0].mxu0 %v3348
      %v3936 = vpop.f32.mrb[0].mxu0
      %v3937 = vadd.f32 0.0, %v3936
      %v3938 = vpop.f32.mrb[0].mxu0
      %3939 = vmatprep.mubr.f32.mxu0 0.0
      %3940 = vmatmul.mubr.f32.gmra.mrb[0].mxu0 %v3349
      %v3941 = vpop.f32.mrb[0].mxu0
      %v3942 = vadd.f32 0.0, %v3941
      %v3943 = vpop.f32.mrb[0].mxu0
      %3944 = vmatprep.mubr.f32.mxu0 0.0
      %3945 = vmatmul.mubr.f32.gmra.mrb[0].mxu0 %v3350
      %v3946 = vpop.f32.mrb[0].mxu0
      %v3947 = vadd.f32 0.0, %v3946
      %v3948 = vpop.f32.mrb[0].mxu0
      %3949 = vmatprep.mubr.f32.mxu0 0.0
      %3950 = vmatmul.mubr.f32.gmra.mrb[0].mxu0 %v3351
      %v3951 = vpop.f32.mrb[0].mxu0
      %v3952 = vadd.f32 0.0, %v3951
      %v3953 = vpop.f32.mrb[0].mxu0
      %3954 = vmatprep.mubr.f32.mxu0 0.0
      %3955 = vmatmul.mubr.f32.gmra.mrb[0].mxu0 %v3353
      %v3956 = vpop.f32.mrb[0].mxu0
      %v3957 = vadd.f32 0.0, %v3956
      %v3958 = vpop.f32.mrb[0].mxu0
      %3959 = vmatprep.mubr.f32.mxu0 0.0
      %3960 = vmatmul.mubr.f32.gmra.mrb[0].mxu0 %v3354
      %v3961 = vpop.f32.mrb[0].mxu0
      %v3962 = vadd.f32 0.0, %v3961
      %v3963 = vpop.f32.mrb[0].mxu0
      %3964 = vmatprep.mubr.f32.mxu0 0.0
      %3965 = vmatmul.mubr.f32.gmra.mrb[0].mxu0 %v3355
      %v3966 = vpop.f32.mrb[0].mxu0
      %v3967 = vadd.f32 0.0, %v3966
      %v3968 = vpop.f32.mrb[0].mxu0
      %3969 = vmatprep.mubr.f32.mxu0 0.0
      %3970 = vmatmul.mubr.f32.gmra.mrb[0].mxu0 %v3356
      %v3971 = vpop.f32.mrb[0].mxu0
      %v3972 = vadd.f32 0.0, %v3971
      %v3973 = vpop.f32.mrb[0].mxu0
      %3974 = vmatprep.mubr.f32.mxu0 0.0
      %3975 = vmatmul.mubr.f32.gmra.mrb[0].mxu0 %v3358
      %v3976 = vpop.f32.mrb[0].mxu0
      %v3977 = vadd.f32 0.0, %v3976
      %v3978 = vpop.f32.mrb[0].mxu0
      %3979 = vmatprep.mubr.f32.mxu0 0.0
      %3980 = vmatmul.mubr.f32.gmra.mrb[0].mxu0 %v3359
      %v3981 = vpop.f32.mrb[0].mxu0
      %v3982 = vadd.f32 0.0, %v3981
      %v3983 = vpop.f32.mrb[0].mxu0
      %3984 = vmatprep.mubr.f32.mxu0 0.0
      %3985 = vmatmul.mubr.f32.gmra.mrb[0].mxu0 %v3360
      %v3986 = vpop.f32.mrb[0].mxu0
      %v3987 = vadd.f32 0.0, %v3986
      %v3988 = vpop.f32.mrb[0].mxu0
      %3989 = vmatprep.mubr.f32.mxu0 0.0
      %3990 = vmatmul.mubr.f32.gmra.mrb[0].mxu0 %v3361
      %v3991 = vpop.f32.mrb[0].mxu0
      %v3992 = vadd.f32 0.0, %v3991
      %v3993 = vpop.f32.mrb[0].mxu0
      %3994 = vmatprep.mubr.f32.mxu0 0.0
      %3995 = vmatmul.mubr.f32.gmra.mrb[0].mxu0 %v3363
      %v3996 = vpop.f32.mrb[0].mxu0
      %v3997 = vadd.f32 0.0, %v3996
      %v3998 = vpop.f32.mrb[0].mxu0
      %3999 = vmatprep.mubr.f32.mxu0 0.0
      %4000 = vmatmul.mubr.f32.gmra.mrb[0].mxu0 %v3364
      %v4001 = vpop.f32.mrb[0].mxu0
      %v4002 = vadd.f32 0.0, %v4001
      %v4003 = vpop.f32.mrb[0].mxu0
      %4004 = vmatprep.mubr.f32.mxu0 0.0
      %4005 = vmatmul.mubr.f32.gmra.mrb[0].mxu0 %v3365
      %v4006 = vpop.f32.mrb[0].mxu0
      %v4007 = vadd.f32 0.0, %v4006
      %v4008 = vpop.f32.mrb[0].mxu0
      %4009 = vmatprep.mubr.f32.mxu0 0.0
      %4010 = vmatmul.mubr.f32.gmra.mrb[0].mxu0 %v3366
      %v4011 = vpop.f32.mrb[0].mxu0
      %v4012 = vadd.f32 0.0, %v4011
      %v4013 = vpop.f32.mrb[0].mxu0
      %4014 = vmatprep.mubr.f32.mxu0 0.0
      %4015 = vmatmul.mubr.f32.gmra.mrb[0].mxu0 %v3368
      %v4016 = vpop.f32.mrb[0].mxu0
      %v4017 = vadd.f32 0.0, %v4016
      %v4018 = vpop.f32.mrb[0].mxu0
      %4019 = vmatprep.mubr.f32.mxu0 0.0
      %4020 = vmatmul.mubr.f32.gmra.mrb[0].mxu0 %v3369
      %v4021 = vpop.f32.mrb[0].mxu0
      %v4022 = vadd.f32 0.0, %v4021
      %v4023 = vpop.f32.mrb[0].mxu0
      %4024 = vmatprep.mubr.f32.mxu0 0.0
      %4025 = vmatmul.mubr.f32.gmra.mrb[0].mxu0 %v3370
      %v4026 = vpop.f32.mrb[0].mxu0
      %v4027 = vadd.f32 0.0, %v4026
      %v4028 = vpop.f32.mrb[0].mxu0
      %4029 = vmatprep.mubr.f32.mxu0 0.0
      %4030 = vmatmul.mubr.f32.gmra.mrb[0].mxu0 %v3371
      %v4031 = vpop.f32.mrb[0].mxu0
      %v4032 = vadd.f32 0.0, %v4031
      %v4033 = vpop.f32.mrb[0].mxu0
      %4034 = vmatprep.mubr.f32.mxu0 0.0
      %4035 = vmatmul.mubr.f32.gmra.mrb[0].mxu0 %v3373
      %v4036 = vpop.f32.mrb[0].mxu0
      %v4037 = vadd.f32 0.0, %v4036
      %v4038 = vpop.f32.mrb[0].mxu0
      %4039 = vmatprep.mubr.f32.mxu0 0.0
      %4040 = vmatmul.mubr.f32.gmra.mrb[0].mxu0 %v3374
      %v4041 = vpop.f32.mrb[0].mxu0
      %v4042 = vadd.f32 0.0, %v4041
      %v4043 = vpop.f32.mrb[0].mxu0
      %4044 = vmatprep.mubr.f32.mxu0 0.0
      %4045 = vmatmul.mubr.f32.gmra.mrb[0].mxu0 %v3375
      %v4046 = vpop.f32.mrb[0].mxu0
      %v4047 = vadd.f32 0.0, %v4046
      %v4048 = vpop.f32.mrb[0].mxu0
      %4049 = vmatprep.mubr.f32.mxu0 0.0
      %4050 = vmatmul.mubr.f32.gmra.mrb[0].mxu0 %v3376
      %v4051 = vpop.f32.mrb[0].mxu0
      %v4052 = vadd.f32 0.0, %v4051
      %v4053 = vpop.f32.mrb[0].mxu0
      %4054 = vmatprep.mubr.f32.mxu0 0.0
      %4055 = vmatmul.mubr.f32.gmra.mrb[0].mxu0 %v3378
      %v4056 = vpop.f32.mrb[0].mxu0
      %v4057 = vadd.f32 0.0, %v4056
      %v4058 = vpop.f32.mrb[0].mxu0
      %4059 = vmatprep.mubr.f32.mxu0 0.0
      %4060 = vmatmul.mubr.f32.gmra.mrb[0].mxu0 %v3379
      %v4061 = vpop.f32.mrb[0].mxu0
      %v4062 = vadd.f32 0.0, %v4061
      %v4063 = vpop.f32.mrb[0].mxu0
      %4064 = vmatprep.mubr.f32.mxu0 0.0
      %4065 = vmatmul.mubr.f32.gmra.mrb[0].mxu0 %v3380
      %v4066 = vpop.f32.mrb[0].mxu0
      %v4067 = vadd.f32 0.0, %v4066
      %v4068 = vpop.f32.mrb[0].mxu0
      %4069 = vmatprep.mubr.f32.mxu0 0.0
      %4070 = vmatmul.mubr.f32.gmra.mrb[0].mxu0 %v3381
      %v4071 = vpop.f32.mrb[0].mxu0
      %v4072 = vadd.f32 0.0, %v4071
      %v4073 = vpop.f32.mrb[0].mxu0
      %4074 = vmatprep.mubr.f32.mxu0 0.0
      %4075 = vmatmul.mubr.f32.gmra.mrb[0].mxu0 %v3383
      %v4076 = vpop.f32.mrb[0].mxu0
      %v4077 = vadd.f32 0.0, %v4076
      %v4078 = vpop.f32.mrb[0].mxu0
      %4079 = vmatprep.mubr.f32.mxu0 0.0
      %4080 = vmatmul.mubr.f32.gmra.mrb[0].mxu0 %v3384
      %v4081 = vpop.f32.mrb[0].mxu0
      %v4082 = vadd.f32 0.0, %v4081
      %v4083 = vpop.f32.mrb[0].mxu0
      %4084 = vmatprep.mubr.f32.mxu0 0.0
      %4085 = vmatmul.mubr.f32.gmra.mrb[0].mxu0 %v3385
      %v4086 = vpop.f32.mrb[0].mxu0
      %v4087 = vadd.f32 0.0, %v4086
      %v4088 = vpop.f32.mrb[0].mxu0
      %4089 = vmatprep.mubr.f32.mxu0 0.0
      %4090 = vmatmul.mubr.f32.gmra.mrb[0].mxu0 %v3386
      %v4091 = vpop.f32.mrb[0].mxu0
      %v4092 = vadd.f32 0.0, %v4091
      %v4093 = vpop.f32.mrb[0].mxu0
      %4094 = vmatprep.mubr.f32.mxu0 0.0
      %4095 = vmatmul.mubr.f32.gmra.mrb[0].mxu0 %v3388
      %v4096 = vpop.f32.mrb[0].mxu0
      %v4097 = vadd.f32 0.0, %v4096
      %v4098 = vpop.f32.mrb[0].mxu0
      %4099 = vmatprep.mubr.f32.mxu0 0.0
      %4100 = vmatmul.mubr.f32.gmra.mrb[0].mxu0 %v3389
      %v4101 = vpop.f32.mrb[0].mxu0
      %v4102 = vadd.f32 0.0, %v4101
      %v4103 = vpop.f32.mrb[0].mxu0
      %4104 = vmatprep.mubr.f32.mxu0 0.0
      %4105 = vmatmul.mubr.f32.gmra.mrb[0].mxu0 %v3390
      %v4106 = vpop.f32.mrb[0].mxu0
      %v4107 = vadd.f32 0.0, %v4106
      %v4108 = vpop.f32.mrb[0].mxu0
      %4109 = vmatprep.mubr.f32.mxu0 0.0
      %4110 = vmatmul.mubr.f32.gmra.mrb[0].mxu0 %v3391
      %v4111 = vpop.f32.mrb[0].mxu0
      %v4112 = vadd.f32 0.0, %v4111
      %v4113 = vpop.f32.mrb[0].mxu0
      %4114 = vdwg.mxu0
      %v4115 = vadd.f32 %v3104, %v3477
      %v4116 = vadd.f32 %v3105, %v3482
      %v4117 = vadd.f32 %v3106, %v3487
      %v4118 = vadd.f32 %v3107, %v3492
      %v4119 = vadd.f32 %v3108, %v3497
      %v4120 = vadd.f32 %v3109, %v3502
      %v4121 = vadd.f32 %v3110, %v3507
      %v4122 = vadd.f32 %v3111, %v3512
      %v4123 = vadd.f32 %v3112, %v3517
      %v4124 = vadd.f32 %v3113, %v3522
      %v4125 = vadd.f32 %v3114, %v3527
      %v4126 = vadd.f32 %v3115, %v3532
      %v4127 = vadd.f32 %v3116, %v3537
      %v4128 = vadd.f32 %v3117, %v3542
      %v4129 = vadd.f32 %v3118, %v3547
      %v4130 = vadd.f32 %v3119, %v3552
      %v4131 = vadd.f32 %v3120, %v3557
      %v4132 = vadd.f32 %v3121, %v3562
      %v4133 = vadd.f32 %v3122, %v3567
      %v4134 = vadd.f32 %v3123, %v3572
      %v4135 = vadd.f32 %v3124, %v3577
      %v4136 = vadd.f32 %v3125, %v3582
      %v4137 = vadd.f32 %v3126, %v3587
      %v4138 = vadd.f32 %v3127, %v3592
      %v4139 = vadd.f32 %v3128, %v3597
      %v4140 = vadd.f32 %v3129, %v3602
      %v4141 = vadd.f32 %v3130, %v3607
      %v4142 = vadd.f32 %v3131, %v3612
      %v4143 = vadd.f32 %v3132, %v3617
      %v4144 = vadd.f32 %v3133, %v3622
      %v4145 = vadd.f32 %v3134, %v3627
      %v4146 = vadd.f32 %v3135, %v3632
      %v4147 = vadd.f32 %v3136, %v3637
      %v4148 = vadd.f32 %v3137, %v3642
      %v4149 = vadd.f32 %v3138, %v3647
      %v4150 = vadd.f32 %v3139, %v3652
      %v4151 = vadd.f32 %v3140, %v3657
      %v4152 = vadd.f32 %v3141, %v3662
      %v4153 = vadd.f32 %v3142, %v3667
      %v4154 = vadd.f32 %v3143, %v3672
      %v4155 = vadd.f32 %v3144, %v3677
      %v4156 = vadd.f32 %v3145, %v3682
      %v4157 = vadd.f32 %v3146, %v3687
      %v4158 = vadd.f32 %v3147, %v3692
      %v4159 = vadd.f32 %v3148, %v3697
      %v4160 = vadd.f32 %v3149, %v3702
      %v4161 = vadd.f32 %v3150, %v3707
      %v4162 = vadd.f32 %v3151, %v3712
      %v4163 = vadd.f32 %v3152, %v3717
      %v4164 = vadd.f32 %v3153, %v3722
      %v4165 = vadd.f32 %v3154, %v3727
      %v4166 = vadd.f32 %v3155, %v3732
      %v4167 = vadd.f32 %v3156, %v3737
      %v4168 = vadd.f32 %v3157, %v3742
      %v4169 = vadd.f32 %v3158, %v3747
      %v4170 = vadd.f32 %v3159, %v3752
      %v4171 = vadd.f32 %v3160, %v3757
      %v4172 = vadd.f32 %v3161, %v3762
      %v4173 = vadd.f32 %v3162, %v3767
      %v4174 = vadd.f32 %v3163, %v3772
      %v4175 = vadd.f32 %v3164, %v3777
      %v4176 = vadd.f32 %v3165, %v3782
      %v4177 = vadd.f32 %v3166, %v3787
      %v4178 = vadd.f32 %v3167, %v3792
      %v4179 = vadd.f32 %v3168, %v3797
      %v4180 = vadd.f32 %v3169, %v3802
      %v4181 = vadd.f32 %v3170, %v3807
      %v4182 = vadd.f32 %v3171, %v3812
      %v4183 = vadd.f32 %v3172, %v3817
      %v4184 = vadd.f32 %v3173, %v3822
      %v4185 = vadd.f32 %v3174, %v3827
      %v4186 = vadd.f32 %v3175, %v3832
      %v4187 = vadd.f32 %v3176, %v3837
      %v4188 = vadd.f32 %v3177, %v3842
      %v4189 = vadd.f32 %v3178, %v3847
      %v4190 = vadd.f32 %v3179, %v3852
      %v4191 = vadd.f32 %v3180, %v3857
      %v4192 = vadd.f32 %v3181, %v3862
      %v4193 = vadd.f32 %v3182, %v3867
      %v4194 = vadd.f32 %v3183, %v3872
      %v4195 = vadd.f32 %v3184, %v3877
      %v4196 = vadd.f32 %v3185, %v3882
      %v4197 = vadd.f32 %v3186, %v3887
      %v4198 = vadd.f32 %v3187, %v3892
      %v4199 = vadd.f32 %v3188, %v3897
      %v4200 = vadd.f32 %v3189, %v3902
      %v4201 = vadd.f32 %v3190, %v3907
      %v4202 = vadd.f32 %v3191, %v3912
      %v4203 = vadd.f32 %v3192, %v3917
      %v4204 = vadd.f32 %v3193, %v3922
      %v4205 = vadd.f32 %v3194, %v3927
      %v4206 = vadd.f32 %v3195, %v3932
      %v4207 = vadd.f32 %v3196, %v3937
      %v4208 = vadd.f32 %v3197, %v3942
      %v4209 = vadd.f32 %v3198, %v3947
      %v4210 = vadd.f32 %v3199, %v3952
      %v4211 = vadd.f32 %v3200, %v3957
      %v4212 = vadd.f32 %v3201, %v3962
      %v4213 = vadd.f32 %v3202, %v3967
      %v4214 = vadd.f32 %v3203, %v3972
      %v4215 = vadd.f32 %v3204, %v3977
      %v4216 = vadd.f32 %v3205, %v3982
      %v4217 = vadd.f32 %v3206, %v3987
      %v4218 = vadd.f32 %v3207, %v3992
      %v4219 = vadd.f32 %v3208, %v3997
      %v4220 = vadd.f32 %v3209, %v4002
      %v4221 = vadd.f32 %v3210, %v4007
      %v4222 = vadd.f32 %v3211, %v4012
      %v4223 = vadd.f32 %v3212, %v4017
      %v4224 = vadd.f32 %v3213, %v4022
      %v4225 = vadd.f32 %v3214, %v4027
      %v4226 = vadd.f32 %v3215, %v4032
      %v4227 = vadd.f32 %v3216, %v4037
      %v4228 = vadd.f32 %v3217, %v4042
      %v4229 = vadd.f32 %v3218, %v4047
      %v4230 = vadd.f32 %v3219, %v4052
      %v4231 = vadd.f32 %v3220, %v4057
      %v4232 = vadd.f32 %v3221, %v4062
      %v4233 = vadd.f32 %v3222, %v4067
      %v4234 = vadd.f32 %v3223, %v4072
      %v4235 = vadd.f32 %v3224, %v4077
      %v4236 = vadd.f32 %v3225, %v4082
      %v4237 = vadd.f32 %v3226, %v4087
      %v4238 = vadd.f32 %v3227, %v4092
      %v4239 = vadd.f32 %v3228, %v4097
      %v4240 = vadd.f32 %v3229, %v4102
      %v4241 = vadd.f32 %v3230, %v4107
      %v4242 = vadd.f32 %v3231, %v4112
      %v4243 = vrot.slane %v3233, 1
      %v4244 = vrot.slane %v3234, 1
      %v4245 = vrot.slane %v3235, 1
      %v4246 = vrot.slane %v3236, 1
      %v4247 = vrot.slane %v3237, 1
      %v4248 = vrot.slane %v3238, 1
      %v4249 = vrot.slane %v3239, 1
      %v4250 = vrot.slane %v3240, 1
      %v4251 = vrot.slane %v3241, 1
      %v4252 = vrot.slane %v3242, 1
      %v4253 = vrot.slane %v3243, 1
      %v4254 = vrot.slane %v3244, 1
      %v4255 = vrot.slane %v3245, 1
      %v4256 = vrot.slane %v3246, 1
      %v4257 = vrot.slane %v3247, 1
      %v4258 = vrot.slane %v3248, 1
      %v4259 = vrot.slane %v3249, 1
      %v4260 = vrot.slane %v3250, 1
      %v4261 = vrot.slane %v3251, 1
      %v4262 = vrot.slane %v3252, 1
      %v4263 = vrot.slane %v3253, 1
      %v4264 = vrot.slane %v3254, 1
      %v4265 = vrot.slane %v3255, 1
      %v4266 = vrot.slane %v3256, 1
      %v4267 = vrot.slane %v3257, 1
      %v4268 = vrot.slane %v3258, 1
      %v4269 = vrot.slane %v3259, 1
      %v4270 = vrot.slane %v3260, 1
      %v4271 = vrot.slane %v3261, 1
      %v4272 = vrot.slane %v3262, 1
      %v4273 = vrot.slane %v3263, 1
      %v4274 = vrot.slane %v3264, 1
      %v4275 = vrot.slane %v3265, 1
      %v4276 = vrot.slane %v3266, 1
      %v4277 = vrot.slane %v3267, 1
      %v4278 = vrot.slane %v3268, 1
      %v4279 = vrot.slane %v3269, 1
      %v4280 = vrot.slane %v3270, 1
      %v4281 = vrot.slane %v3271, 1
      %v4282 = vrot.slane %v3272, 1
      %v4283 = vrot.slane %v3273, 1
      %v4284 = vrot.slane %v3274, 1
      %v4285 = vrot.slane %v3275, 1
      %v4286 = vrot.slane %v3276, 1
      %v4287 = vrot.slane %v3277, 1
      %v4288 = vrot.slane %v3278, 1
      %v4289 = vrot.slane %v3279, 1
      %v4290 = vrot.slane %v3280, 1
      %v4291 = vrot.slane %v3281, 1
      %v4292 = vrot.slane %v3282, 1
      %v4293 = vrot.slane %v3283, 1
      %v4294 = vrot.slane %v3284, 1
      %v4295 = vrot.slane %v3285, 1
      %v4296 = vrot.slane %v3286, 1
      %v4297 = vrot.slane %v3287, 1
      %v4298 = vrot.slane %v3288, 1
      %v4299 = vrot.slane %v3289, 1
      %v4300 = vrot.slane %v3290, 1
      %v4301 = vrot.slane %v3291, 1
      %v4302 = vrot.slane %v3292, 1
      %v4303 = vrot.slane %v3293, 1
      %v4304 = vrot.slane %v3294, 1
      %v4305 = vrot.slane %v3295, 1
      %v4306 = vrot.slane %v3296, 1
      %v4307 = vrot.slane %v3297, 1
      %v4308 = vrot.slane %v3298, 1
      %v4309 = vrot.slane %v3299, 1
      %v4310 = vrot.slane %v3300, 1
      %v4311 = vrot.slane %v3301, 1
      %v4312 = vrot.slane %v3302, 1
      %v4313 = vrot.slane %v3303, 1
      %v4314 = vrot.slane %v3304, 1
      %v4315 = vrot.slane %v3305, 1
      %v4316 = vrot.slane %v3306, 1
      %v4317 = vrot.slane %v3307, 1
      %v4318 = vrot.slane %v3308, 1
      %v4319 = vrot.slane %v3309, 1
      %v4320 = vrot.slane %v3310, 1
      %v4321 = vrot.slane %v3311, 1
      %v4322 = vrot.slane %v3312, 1
      %v4323 = vrot.slane %v3313, 1
      %v4324 = vrot.slane %v3314, 1
      %v4325 = vrot.slane %v3315, 1
      %v4326 = vrot.slane %v3316, 1
      %v4327 = vrot.slane %v3317, 1
      %v4328 = vrot.slane %v3318, 1
      %v4329 = vrot.slane %v3319, 1
      %v4330 = vrot.slane %v3320, 1
      %v4331 = vrot.slane %v3321, 1
      %v4332 = vrot.slane %v3322, 1
      %v4333 = vrot.slane %v3323, 1
      %v4334 = vrot.slane %v3324, 1
      %v4335 = vrot.slane %v3325, 1
      %v4336 = vrot.slane %v3326, 1
      %v4337 = vrot.slane %v3327, 1
      %v4338 = vrot.slane %v3328, 1
      %v4339 = vrot.slane %v3329, 1
      %v4340 = vrot.slane %v3330, 1
      %v4341 = vrot.slane %v3331, 1
      %v4342 = vrot.slane %v3332, 1
      %v4343 = vrot.slane %v3333, 1
      %v4344 = vrot.slane %v3334, 1
      %v4345 = vrot.slane %v3335, 1
      %v4346 = vrot.slane %v3336, 1
      %v4347 = vrot.slane %v3337, 1
      %v4348 = vrot.slane %v3338, 1
      %v4349 = vrot.slane %v3339, 1
      %v4350 = vrot.slane %v3340, 1
      %v4351 = vrot.slane %v3341, 1
      %v4352 = vrot.slane %v3342, 1
      %v4353 = vrot.slane %v3343, 1
      %v4354 = vrot.slane %v3344, 1
      %v4355 = vrot.slane %v3345, 1
      %v4356 = vrot.slane %v3346, 1
      %v4357 = vrot.slane %v3347, 1
      %v4358 = vrot.slane %v3348, 1
      %v4359 = vrot.slane %v3349, 1
      %v4360 = vrot.slane %v3350, 1
      %v4361 = vrot.slane %v3351, 1
      %v4362 = vrot.slane %v3352, 1
      %v4363 = vrot.slane %v3353, 1
      %v4364 = vrot.slane %v3354, 1
      %v4365 = vrot.slane %v3355, 1
      %v4366 = vrot.slane %v3356, 1
      %v4367 = vrot.slane %v3357, 1
      %v4368 = vrot.slane %v3358, 1
      %v4369 = vrot.slane %v3359, 1
      %v4370 = vrot.slane %v3360, 1
      %v4371 = vrot.slane %v3361, 1
      %v4372 = vrot.slane %v3362, 1
      %v4373 = vrot.slane %v3363, 1
      %v4374 = vrot.slane %v3364, 1
      %v4375 = vrot.slane %v3365, 1
      %v4376 = vrot.slane %v3366, 1
      %v4377 = vrot.slane %v3367, 1
      %v4378 = vrot.slane %v3368, 1
      %v4379 = vrot.slane %v3369, 1
      %v4380 = vrot.slane %v3370, 1
      %v4381 = vrot.slane %v3371, 1
      %v4382 = vrot.slane %v3372, 1
      %v4383 = vrot.slane %v3373, 1
      %v4384 = vrot.slane %v3374, 1
      %v4385 = vrot.slane %v3375, 1
      %v4386 = vrot.slane %v3376, 1
      %v4387 = vrot.slane %v3377, 1
      %v4388 = vrot.slane %v3378, 1
      %v4389 = vrot.slane %v3379, 1
      %v4390 = vrot.slane %v3380, 1
      %v4391 = vrot.slane %v3381, 1
      %v4392 = vrot.slane %v3382, 1
      %v4393 = vrot.slane %v3383, 1
      %v4394 = vrot.slane %v3384, 1
      %v4395 = vrot.slane %v3385, 1
      %v4396 = vrot.slane %v3386, 1
      %v4397 = vrot.slane %v3387, 1
      %v4398 = vrot.slane %v3388, 1
      %v4399 = vrot.slane %v3389, 1
      %v4400 = vrot.slane %v3390, 1
      %v4401 = vrot.slane %v3391, 1
      %v4402 = vrot.slane %v3392, 1
      %v4403 = vsel %vm537, %v4401, %v4402
      %v4404 = vsel %vm537, %v4400, %v4401
      %v4405 = vsel %vm537, %v4399, %v4400
      %v4406 = vsel %vm537, %v4398, %v4399
      %v4407 = vsel %vm537, %v4396, %v4397
      %v4408 = vsel %vm537, %v4395, %v4396
      %v4409 = vsel %vm537, %v4394, %v4395
      %v4410 = vsel %vm537, %v4393, %v4394
      %v4411 = vsel %vm537, %v4391, %v4392
      %v4412 = vsel %vm537, %v4390, %v4391
      %v4413 = vsel %vm537, %v4389, %v4390
      %v4414 = vsel %vm537, %v4388, %v4389
      %v4415 = vsel %vm537, %v4386, %v4387
      %v4416 = vsel %vm537, %v4385, %v4386
      %v4417 = vsel %vm537, %v4384, %v4385
      %v4418 = vsel %vm537, %v4383, %v4384
      %v4419 = vsel %vm537, %v4381, %v4382
      %v4420 = vsel %vm537, %v4380, %v4381
      %v4421 = vsel %vm537, %v4379, %v4380
      %v4422 = vsel %vm537, %v4378, %v4379
      %v4423 = vsel %vm537, %v4376, %v4377
      %v4424 = vsel %vm537, %v4375, %v4376
      %v4425 = vsel %vm537, %v4374, %v4375
      %v4426 = vsel %vm537, %v4373, %v4374
      %v4427 = vsel %vm537, %v4371, %v4372
      %v4428 = vsel %vm537, %v4370, %v4371
      %v4429 = vsel %vm537, %v4369, %v4370
      %v4430 = vsel %vm537, %v4368, %v4369
      %v4431 = vsel %vm537, %v4366, %v4367
      %v4432 = vsel %vm537, %v4365, %v4366
      %v4433 = vsel %vm537, %v4364, %v4365
      %v4434 = vsel %vm537, %v4363, %v4364
      %v4435 = vsel %vm537, %v4361, %v4362
      %v4436 = vsel %vm537, %v4360, %v4361
      %v4437 = vsel %vm537, %v4359, %v4360
      %v4438 = vsel %vm537, %v4358, %v4359
      %v4439 = vsel %vm537, %v4356, %v4357
      %v4440 = vsel %vm537, %v4355, %v4356
      %v4441 = vsel %vm537, %v4354, %v4355
      %v4442 = vsel %vm537, %v4353, %v4354
      %v4443 = vsel %vm537, %v4351, %v4352
      %v4444 = vsel %vm537, %v4350, %v4351
      %v4445 = vsel %vm537, %v4349, %v4350
      %v4446 = vsel %vm537, %v4348, %v4349
      %v4447 = vsel %vm537, %v4346, %v4347
      %v4448 = vsel %vm537, %v4345, %v4346
      %v4449 = vsel %vm537, %v4344, %v4345
      %v4450 = vsel %vm537, %v4343, %v4344
      %v4451 = vsel %vm537, %v4341, %v4342
      %v4452 = vsel %vm537, %v4340, %v4341
      %v4453 = vsel %vm537, %v4339, %v4340
      %v4454 = vsel %vm537, %v4338, %v4339
      %v4455 = vsel %vm537, %v4336, %v4337
      %v4456 = vsel %vm537, %v4335, %v4336
      %v4457 = vsel %vm537, %v4334, %v4335
      %v4458 = vsel %vm537, %v4333, %v4334
      %v4459 = vsel %vm537, %v4331, %v4332
      %v4460 = vsel %vm537, %v4330, %v4331
      %v4461 = vsel %vm537, %v4329, %v4330
      %v4462 = vsel %vm537, %v4328, %v4329
      %v4463 = vsel %vm537, %v4326, %v4327
      %v4464 = vsel %vm537, %v4325, %v4326
      %v4465 = vsel %vm537, %v4324, %v4325
      %v4466 = vsel %vm537, %v4323, %v4324
      %v4467 = vsel %vm537, %v4321, %v4322
      %v4468 = vsel %vm537, %v4320, %v4321
      %v4469 = vsel %vm537, %v4319, %v4320
      %v4470 = vsel %vm537, %v4318, %v4319
      %v4471 = vsel %vm537, %v4316, %v4317
      %v4472 = vsel %vm537, %v4315, %v4316
      %v4473 = vsel %vm537, %v4314, %v4315
      %v4474 = vsel %vm537, %v4313, %v4314
      %v4475 = vsel %vm537, %v4311, %v4312
      %v4476 = vsel %vm537, %v4310, %v4311
      %v4477 = vsel %vm537, %v4309, %v4310
      %v4478 = vsel %vm537, %v4308, %v4309
      %v4479 = vsel %vm537, %v4306, %v4307
      %v4480 = vsel %vm537, %v4305, %v4306
      %v4481 = vsel %vm537, %v4304, %v4305
      %v4482 = vsel %vm537, %v4303, %v4304
      %v4483 = vsel %vm537, %v4301, %v4302
      %v4484 = vsel %vm537, %v4300, %v4301
      %v4485 = vsel %vm537, %v4299, %v4300
      %v4486 = vsel %vm537, %v4298, %v4299
      %v4487 = vsel %vm537, %v4296, %v4297
      %v4488 = vsel %vm537, %v4295, %v4296
      %v4489 = vsel %vm537, %v4294, %v4295
      %v4490 = vsel %vm537, %v4293, %v4294
      %v4491 = vsel %vm537, %v4291, %v4292
      %v4492 = vsel %vm537, %v4290, %v4291
      %v4493 = vsel %vm537, %v4289, %v4290
      %v4494 = vsel %vm537, %v4288, %v4289
      %v4495 = vsel %vm537, %v4286, %v4287
      %v4496 = vsel %vm537, %v4285, %v4286
      %v4497 = vsel %vm537, %v4284, %v4285
      %v4498 = vsel %vm537, %v4283, %v4284
      %v4499 = vsel %vm537, %v4281, %v4282
      %v4500 = vsel %vm537, %v4280, %v4281
      %v4501 = vsel %vm537, %v4279, %v4280
      %v4502 = vsel %vm537, %v4278, %v4279
      %v4503 = vsel %vm537, %v4276, %v4277
      %v4504 = vsel %vm537, %v4275, %v4276
      %v4505 = vsel %vm537, %v4274, %v4275
      %v4506 = vsel %vm537, %v4273, %v4274
      %v4507 = vsel %vm537, %v4271, %v4272
      %v4508 = vsel %vm537, %v4270, %v4271
      %v4509 = vsel %vm537, %v4269, %v4270
      %v4510 = vsel %vm537, %v4268, %v4269
      %v4511 = vsel %vm537, %v4266, %v4267
      %v4512 = vsel %vm537, %v4265, %v4266
      %v4513 = vsel %vm537, %v4264, %v4265
      %v4514 = vsel %vm537, %v4263, %v4264
      %v4515 = vsel %vm537, %v4261, %v4262
      %v4516 = vsel %vm537, %v4260, %v4261
      %v4517 = vsel %vm537, %v4259, %v4260
      %v4518 = vsel %vm537, %v4258, %v4259
      %v4519 = vsel %vm537, %v4256, %v4257
      %v4520 = vsel %vm537, %v4255, %v4256
      %v4521 = vsel %vm537, %v4254, %v4255
      %v4522 = vsel %vm537, %v4253, %v4254
      %v4523 = vsel %vm537, %v4251, %v4252
      %v4524 = vsel %vm537, %v4250, %v4251
      %v4525 = vsel %vm537, %v4249, %v4250
      %v4526 = vsel %vm537, %v4248, %v4249
      %v4527 = vsel %vm537, %v4246, %v4247
      %v4528 = vsel %vm537, %v4245, %v4246
      %v4529 = vsel %vm537, %v4244, %v4245
      %v4530 = vsel %vm537, %v4243, %v4244
      %s4531 = scalar_lea.vmem %s1, 512
      %v4532 = vld [vmem:[%s4531] sm:$0xff]
      %v4533 = vld [vmem:[%s4531 + $0x8] sm:$0xff]
      %v4534 = vld [vmem:[%s4531 + $0x10] sm:$0xff]
      %v4535 = vld [vmem:[%s4531 + $0x18] sm:$0xff]
      %v4536 = vld [vmem:[%s4531 + $0x20] sm:$0xff]
      %v4537 = vld [vmem:[%s4531 + $0x28] sm:$0xff]
      %v4538 = vld [vmem:[%s4531 + $0x30] sm:$0xff]
      %v4539 = vld [vmem:[%s4531 + $0x38] sm:$0xff]
      %v4540 = vld [vmem:[%s4531 + $0x40] sm:$0xff]
      %v4541 = vld [vmem:[%s4531 + $0x48] sm:$0xff]
      %v4542 = vld [vmem:[%s4531 + $0x50] sm:$0xff]
      %v4543 = vld [vmem:[%s4531 + $0x58] sm:$0xff]
      %v4544 = vld [vmem:[%s4531 + $0x60] sm:$0xff]
      %v4545 = vld [vmem:[%s4531 + $0x68] sm:$0xff]
      %v4546 = vld [vmem:[%s4531 + $0x70] sm:$0xff]
      %v4547 = vld [vmem:[%s4531 + $0x78] sm:$0xff]
      %4548 = vmatprep.subr.mxu0 0.0
      %4549 = vmatpush1.msra.mxu0 %v4532
      %4550 = vmatprep.subr.mxu0 0.0
      %4551 = vmatpush1.msra.mxu0 %v4533
      %4552 = vmatprep.subr.mxu0 0.0
      %4553 = vmatpush1.msra.mxu0 %v4534
      %4554 = vmatprep.subr.mxu0 0.0
      %4555 = vmatpush1.msra.mxu0 %v4535
      %4556 = vmatprep.subr.mxu0 0.0
      %4557 = vmatpush1.msra.mxu0 %v4536
      %4558 = vmatprep.subr.mxu0 0.0
      %4559 = vmatpush1.msra.mxu0 %v4537
      %4560 = vmatprep.subr.mxu0 0.0
      %4561 = vmatpush1.msra.mxu0 %v4538
      %4562 = vmatprep.subr.mxu0 0.0
      %4563 = vmatpush1.msra.mxu0 %v4539
      %4564 = vmatprep.subr.mxu0 0.0
      %4565 = vmatpush1.msra.mxu0 %v4540
      %4566 = vmatprep.subr.mxu0 0.0
      %4567 = vmatpush1.msra.mxu0 %v4541
      %4568 = vmatprep.subr.mxu0 0.0
      %4569 = vmatpush1.msra.mxu0 %v4542
      %4570 = vmatprep.subr.mxu0 0.0
      %4571 = vmatpush1.msra.mxu0 %v4543
      %4572 = vmatprep.subr.mxu0 0.0
      %4573 = vmatpush1.msra.mxu0 %v4544
      %4574 = vmatprep.subr.mxu0 0.0
      %4575 = vmatpush1.msra.mxu0 %v4545
      %4576 = vmatprep.subr.mxu0 0.0
      %4577 = vmatpush1.msra.mxu0 %v4546
      %4578 = vmatprep.subr.mxu0 0.0
      %4579 = vmatpush1.msra.mxu0 %v4547
      %4580 = vmatprep.subr.mxu0 0.0
      %4581 = vmatpush1.msra.mxu0 0.0
      %4582 = vmatprep.subr.mxu0 0.0
      %4583 = vmatpush1.msra.mxu0 0.0
      %4584 = vmatprep.subr.mxu0 0.0
      %4585 = vmatpush1.msra.mxu0 0.0
      %4586 = vmatprep.subr.mxu0 0.0
      %4587 = vmatpush1.msra.mxu0 0.0
      %4588 = vmatprep.subr.mxu0 0.0
      %4589 = vmatpush1.msra.mxu0 0.0
      %4590 = vmatprep.subr.mxu0 0.0
      %4591 = vmatpush1.msra.mxu0 0.0
      %4592 = vmatprep.subr.mxu0 0.0
      %4593 = vmatpush1.msra.mxu0 0.0
      %4594 = vmatprep.subr.mxu0 0.0
      %4595 = vmatpush1.msra.mxu0 0.0
      %4596 = vmatprep.subr.mxu0 0.0
      %4597 = vmatpush1.msra.mxu0 0.0
      %4598 = vmatprep.subr.mxu0 0.0
      %4599 = vmatpush1.msra.mxu0 0.0
      %4600 = vmatprep.subr.mxu0 0.0
      %4601 = vmatpush1.msra.mxu0 0.0
      %4602 = vmatprep.subr.mxu0 0.0
      %4603 = vmatpush1.msra.mxu0 0.0
      %4604 = vmatprep.subr.mxu0 0.0
      %4605 = vmatpush1.msra.mxu0 0.0
      %4606 = vmatprep.subr.mxu0 0.0
      %4607 = vmatpush1.msra.mxu0 0.0
      %4608 = vmatprep.subr.mxu0 0.0
      %4609 = vmatpush1.msra.mxu0 0.0
      %4610 = vmatprep.subr.mxu0 0.0
      %4611 = vmatpush1.msra.mxu0 0.0
      %4612 = vmatprep.mubr.f32.mxu0 0.0
      %4613 = vmatmul.mubr.f32.gmra.mrb[0].mxu0 %v4530
      %v4614 = vpop.f32.mrb[0].mxu0
      %v4615 = vadd.f32 0.0, %v4614
      %v4616 = vpop.f32.mrb[0].mxu0
      %4617 = vmatprep.mubr.f32.mxu0 0.0
      %4618 = vmatmul.mubr.f32.gmra.mrb[0].mxu0 %v4529
      %v4619 = vpop.f32.mrb[0].mxu0
      %v4620 = vadd.f32 0.0, %v4619
      %v4621 = vpop.f32.mrb[0].mxu0
      %4622 = vmatprep.mubr.f32.mxu0 0.0
      %4623 = vmatmul.mubr.f32.gmra.mrb[0].mxu0 %v4528
      %v4624 = vpop.f32.mrb[0].mxu0
      %v4625 = vadd.f32 0.0, %v4624
      %v4626 = vpop.f32.mrb[0].mxu0
      %4627 = vmatprep.mubr.f32.mxu0 0.0
      %4628 = vmatmul.mubr.f32.gmra.mrb[0].mxu0 %v4527
      %v4629 = vpop.f32.mrb[0].mxu0
      %v4630 = vadd.f32 0.0, %v4629
      %v4631 = vpop.f32.mrb[0].mxu0
      %4632 = vmatprep.mubr.f32.mxu0 0.0
      %4633 = vmatmul.mubr.f32.gmra.mrb[0].mxu0 %v4526
      %v4634 = vpop.f32.mrb[0].mxu0
      %v4635 = vadd.f32 0.0, %v4634
      %v4636 = vpop.f32.mrb[0].mxu0
      %4637 = vmatprep.mubr.f32.mxu0 0.0
      %4638 = vmatmul.mubr.f32.gmra.mrb[0].mxu0 %v4525
      %v4639 = vpop.f32.mrb[0].mxu0
      %v4640 = vadd.f32 0.0, %v4639
      %v4641 = vpop.f32.mrb[0].mxu0
      %4642 = vmatprep.mubr.f32.mxu0 0.0
      %4643 = vmatmul.mubr.f32.gmra.mrb[0].mxu0 %v4524
      %v4644 = vpop.f32.mrb[0].mxu0
      %v4645 = vadd.f32 0.0, %v4644
      %v4646 = vpop.f32.mrb[0].mxu0
      %4647 = vmatprep.mubr.f32.mxu0 0.0
      %4648 = vmatmul.mubr.f32.gmra.mrb[0].mxu0 %v4523
      %v4649 = vpop.f32.mrb[0].mxu0
      %v4650 = vadd.f32 0.0, %v4649
      %v4651 = vpop.f32.mrb[0].mxu0
      %4652 = vmatprep.mubr.f32.mxu0 0.0
      %4653 = vmatmul.mubr.f32.gmra.mrb[0].mxu0 %v4522
      %v4654 = vpop.f32.mrb[0].mxu0
      %v4655 = vadd.f32 0.0, %v4654
      %v4656 = vpop.f32.mrb[0].mxu0
      %4657 = vmatprep.mubr.f32.mxu0 0.0
      %4658 = vmatmul.mubr.f32.gmra.mrb[0].mxu0 %v4521
      %v4659 = vpop.f32.mrb[0].mxu0
      %v4660 = vadd.f32 0.0, %v4659
      %v4661 = vpop.f32.mrb[0].mxu0
      %4662 = vmatprep.mubr.f32.mxu0 0.0
      %4663 = vmatmul.mubr.f32.gmra.mrb[0].mxu0 %v4520
      %v4664 = vpop.f32.mrb[0].mxu0
      %v4665 = vadd.f32 0.0, %v4664
      %v4666 = vpop.f32.mrb[0].mxu0
      %4667 = vmatprep.mubr.f32.mxu0 0.0
      %4668 = vmatmul.mubr.f32.gmra.mrb[0].mxu0 %v4519
      %v4669 = vpop.f32.mrb[0].mxu0
      %v4670 = vadd.f32 0.0, %v4669
      %v4671 = vpop.f32.mrb[0].mxu0
      %4672 = vmatprep.mubr.f32.mxu0 0.0
      %4673 = vmatmul.mubr.f32.gmra.mrb[0].mxu0 %v4518
      %v4674 = vpop.f32.mrb[0].mxu0
      %v4675 = vadd.f32 0.0, %v4674
      %v4676 = vpop.f32.mrb[0].mxu0
      %4677 = vmatprep.mubr.f32.mxu0 0.0
      %4678 = vmatmul.mubr.f32.gmra.mrb[0].mxu0 %v4517
      %v4679 = vpop.f32.mrb[0].mxu0
      %v4680 = vadd.f32 0.0, %v4679
      %v4681 = vpop.f32.mrb[0].mxu0
      %4682 = vmatprep.mubr.f32.mxu0 0.0
      %4683 = vmatmul.mubr.f32.gmra.mrb[0].mxu0 %v4516
      %v4684 = vpop.f32.mrb[0].mxu0
      %v4685 = vadd.f32 0.0, %v4684
      %v4686 = vpop.f32.mrb[0].mxu0
      %4687 = vmatprep.mubr.f32.mxu0 0.0
      %4688 = vmatmul.mubr.f32.gmra.mrb[0].mxu0 %v4515
      %v4689 = vpop.f32.mrb[0].mxu0
      %v4690 = vadd.f32 0.0, %v4689
      %v4691 = vpop.f32.mrb[0].mxu0
      %4692 = vmatprep.mubr.f32.mxu0 0.0
      %4693 = vmatmul.mubr.f32.gmra.mrb[0].mxu0 %v4514
      %v4694 = vpop.f32.mrb[0].mxu0
      %v4695 = vadd.f32 0.0, %v4694
      %v4696 = vpop.f32.mrb[0].mxu0
      %4697 = vmatprep.mubr.f32.mxu0 0.0
      %4698 = vmatmul.mubr.f32.gmra.mrb[0].mxu0 %v4513
      %v4699 = vpop.f32.mrb[0].mxu0
      %v4700 = vadd.f32 0.0, %v4699
      %v4701 = vpop.f32.mrb[0].mxu0
      %4702 = vmatprep.mubr.f32.mxu0 0.0
      %4703 = vmatmul.mubr.f32.gmra.mrb[0].mxu0 %v4512
      %v4704 = vpop.f32.mrb[0].mxu0
      %v4705 = vadd.f32 0.0, %v4704
      %v4706 = vpop.f32.mrb[0].mxu0
      %4707 = vmatprep.mubr.f32.mxu0 0.0
      %4708 = vmatmul.mubr.f32.gmra.mrb[0].mxu0 %v4511
      %v4709 = vpop.f32.mrb[0].mxu0
      %v4710 = vadd.f32 0.0, %v4709
      %v4711 = vpop.f32.mrb[0].mxu0
      %4712 = vmatprep.mubr.f32.mxu0 0.0
      %4713 = vmatmul.mubr.f32.gmra.mrb[0].mxu0 %v4510
      %v4714 = vpop.f32.mrb[0].mxu0
      %v4715 = vadd.f32 0.0, %v4714
      %v4716 = vpop.f32.mrb[0].mxu0
      %4717 = vmatprep.mubr.f32.mxu0 0.0
      %4718 = vmatmul.mubr.f32.gmra.mrb[0].mxu0 %v4509
      %v4719 = vpop.f32.mrb[0].mxu0
      %v4720 = vadd.f32 0.0, %v4719
      %v4721 = vpop.f32.mrb[0].mxu0
      %4722 = vmatprep.mubr.f32.mxu0 0.0
      %4723 = vmatmul.mubr.f32.gmra.mrb[0].mxu0 %v4508
      %v4724 = vpop.f32.mrb[0].mxu0
      %v4725 = vadd.f32 0.0, %v4724
      %v4726 = vpop.f32.mrb[0].mxu0
      %4727 = vmatprep.mubr.f32.mxu0 0.0
      %4728 = vmatmul.mubr.f32.gmra.mrb[0].mxu0 %v4507
      %v4729 = vpop.f32.mrb[0].mxu0
      %v4730 = vadd.f32 0.0, %v4729
      %v4731 = vpop.f32.mrb[0].mxu0
      %4732 = vmatprep.mubr.f32.mxu0 0.0
      %4733 = vmatmul.mubr.f32.gmra.mrb[0].mxu0 %v4506
      %v4734 = vpop.f32.mrb[0].mxu0
      %v4735 = vadd.f32 0.0, %v4734
      %v4736 = vpop.f32.mrb[0].mxu0
      %4737 = vmatprep.mubr.f32.mxu0 0.0
      %4738 = vmatmul.mubr.f32.gmra.mrb[0].mxu0 %v4505
      %v4739 = vpop.f32.mrb[0].mxu0
      %v4740 = vadd.f32 0.0, %v4739
      %v4741 = vpop.f32.mrb[0].mxu0
      %4742 = vmatprep.mubr.f32.mxu0 0.0
      %4743 = vmatmul.mubr.f32.gmra.mrb[0].mxu0 %v4504
      %v4744 = vpop.f32.mrb[0].mxu0
      %v4745 = vadd.f32 0.0, %v4744
      %v4746 = vpop.f32.mrb[0].mxu0
      %4747 = vmatprep.mubr.f32.mxu0 0.0
      %4748 = vmatmul.mubr.f32.gmra.mrb[0].mxu0 %v4503
      %v4749 = vpop.f32.mrb[0].mxu0
      %v4750 = vadd.f32 0.0, %v4749
      %v4751 = vpop.f32.mrb[0].mxu0
      %4752 = vmatprep.mubr.f32.mxu0 0.0
      %4753 = vmatmul.mubr.f32.gmra.mrb[0].mxu0 %v4502
      %v4754 = vpop.f32.mrb[0].mxu0
      %v4755 = vadd.f32 0.0, %v4754
      %v4756 = vpop.f32.mrb[0].mxu0
      %4757 = vmatprep.mubr.f32.mxu0 0.0
      %4758 = vmatmul.mubr.f32.gmra.mrb[0].mxu0 %v4501
      %v4759 = vpop.f32.mrb[0].mxu0
      %v4760 = vadd.f32 0.0, %v4759
      %v4761 = vpop.f32.mrb[0].mxu0
      %4762 = vmatprep.mubr.f32.mxu0 0.0
      %4763 = vmatmul.mubr.f32.gmra.mrb[0].mxu0 %v4500
      %v4764 = vpop.f32.mrb[0].mxu0
      %v4765 = vadd.f32 0.0, %v4764
      %v4766 = vpop.f32.mrb[0].mxu0
      %4767 = vmatprep.mubr.f32.mxu0 0.0
      %4768 = vmatmul.mubr.f32.gmra.mrb[0].mxu0 %v4499
      %v4769 = vpop.f32.mrb[0].mxu0
      %v4770 = vadd.f32 0.0, %v4769
      %v4771 = vpop.f32.mrb[0].mxu0
      %4772 = vmatprep.mubr.f32.mxu0 0.0
      %4773 = vmatmul.mubr.f32.gmra.mrb[0].mxu0 %v4498
      %v4774 = vpop.f32.mrb[0].mxu0
      %v4775 = vadd.f32 0.0, %v4774
      %v4776 = vpop.f32.mrb[0].mxu0
      %4777 = vmatprep.mubr.f32.mxu0 0.0
      %4778 = vmatmul.mubr.f32.gmra.mrb[0].mxu0 %v4497
      %v4779 = vpop.f32.mrb[0].mxu0
      %v4780 = vadd.f32 0.0, %v4779
      %v4781 = vpop.f32.mrb[0].mxu0
      %4782 = vmatprep.mubr.f32.mxu0 0.0
      %4783 = vmatmul.mubr.f32.gmra.mrb[0].mxu0 %v4496
      %v4784 = vpop.f32.mrb[0].mxu0
      %v4785 = vadd.f32 0.0, %v4784
      %v4786 = vpop.f32.mrb[0].mxu0
      %4787 = vmatprep.mubr.f32.mxu0 0.0
      %4788 = vmatmul.mubr.f32.gmra.mrb[0].mxu0 %v4495
      %v4789 = vpop.f32.mrb[0].mxu0
      %v4790 = vadd.f32 0.0, %v4789
      %v4791 = vpop.f32.mrb[0].mxu0
      %4792 = vmatprep.mubr.f32.mxu0 0.0
      %4793 = vmatmul.mubr.f32.gmra.mrb[0].mxu0 %v4494
      %v4794 = vpop.f32.mrb[0].mxu0
      %v4795 = vadd.f32 0.0, %v4794
      %v4796 = vpop.f32.mrb[0].mxu0
      %4797 = vmatprep.mubr.f32.mxu0 0.0
      %4798 = vmatmul.mubr.f32.gmra.mrb[0].mxu0 %v4493
      %v4799 = vpop.f32.mrb[0].mxu0
      %v4800 = vadd.f32 0.0, %v4799
      %v4801 = vpop.f32.mrb[0].mxu0
      %4802 = vmatprep.mubr.f32.mxu0 0.0
      %4803 = vmatmul.mubr.f32.gmra.mrb[0].mxu0 %v4492
      %v4804 = vpop.f32.mrb[0].mxu0
      %v4805 = vadd.f32 0.0, %v4804
      %v4806 = vpop.f32.mrb[0].mxu0
      %4807 = vmatprep.mubr.f32.mxu0 0.0
      %4808 = vmatmul.mubr.f32.gmra.mrb[0].mxu0 %v4491
      %v4809 = vpop.f32.mrb[0].mxu0
      %v4810 = vadd.f32 0.0, %v4809
      %v4811 = vpop.f32.mrb[0].mxu0
      %4812 = vmatprep.mubr.f32.mxu0 0.0
      %4813 = vmatmul.mubr.f32.gmra.mrb[0].mxu0 %v4490
      %v4814 = vpop.f32.mrb[0].mxu0
      %v4815 = vadd.f32 0.0, %v4814
      %v4816 = vpop.f32.mrb[0].mxu0
      %4817 = vmatprep.mubr.f32.mxu0 0.0
      %4818 = vmatmul.mubr.f32.gmra.mrb[0].mxu0 %v4489
      %v4819 = vpop.f32.mrb[0].mxu0
      %v4820 = vadd.f32 0.0, %v4819
      %v4821 = vpop.f32.mrb[0].mxu0
      %4822 = vmatprep.mubr.f32.mxu0 0.0
      %4823 = vmatmul.mubr.f32.gmra.mrb[0].mxu0 %v4488
      %v4824 = vpop.f32.mrb[0].mxu0
      %v4825 = vadd.f32 0.0, %v4824
      %v4826 = vpop.f32.mrb[0].mxu0
      %4827 = vmatprep.mubr.f32.mxu0 0.0
      %4828 = vmatmul.mubr.f32.gmra.mrb[0].mxu0 %v4487
      %v4829 = vpop.f32.mrb[0].mxu0
      %v4830 = vadd.f32 0.0, %v4829
      %v4831 = vpop.f32.mrb[0].mxu0
      %4832 = vmatprep.mubr.f32.mxu0 0.0
      %4833 = vmatmul.mubr.f32.gmra.mrb[0].mxu0 %v4486
      %v4834 = vpop.f32.mrb[0].mxu0
      %v4835 = vadd.f32 0.0, %v4834
      %v4836 = vpop.f32.mrb[0].mxu0
      %4837 = vmatprep.mubr.f32.mxu0 0.0
      %4838 = vmatmul.mubr.f32.gmra.mrb[0].mxu0 %v4485
      %v4839 = vpop.f32.mrb[0].mxu0
      %v4840 = vadd.f32 0.0, %v4839
      %v4841 = vpop.f32.mrb[0].mxu0
      %4842 = vmatprep.mubr.f32.mxu0 0.0
      %4843 = vmatmul.mubr.f32.gmra.mrb[0].mxu0 %v4484
      %v4844 = vpop.f32.mrb[0].mxu0
      %v4845 = vadd.f32 0.0, %v4844
      %v4846 = vpop.f32.mrb[0].mxu0
      %4847 = vmatprep.mubr.f32.mxu0 0.0
      %4848 = vmatmul.mubr.f32.gmra.mrb[0].mxu0 %v4483
      %v4849 = vpop.f32.mrb[0].mxu0
      %v4850 = vadd.f32 0.0, %v4849
      %v4851 = vpop.f32.mrb[0].mxu0
      %4852 = vmatprep.mubr.f32.mxu0 0.0
      %4853 = vmatmul.mubr.f32.gmra.mrb[0].mxu0 %v4482
      %v4854 = vpop.f32.mrb[0].mxu0
      %v4855 = vadd.f32 0.0, %v4854
      %v4856 = vpop.f32.mrb[0].mxu0
      %4857 = vmatprep.mubr.f32.mxu0 0.0
      %4858 = vmatmul.mubr.f32.gmra.mrb[0].mxu0 %v4481
      %v4859 = vpop.f32.mrb[0].mxu0
      %v4860 = vadd.f32 0.0, %v4859
      %v4861 = vpop.f32.mrb[0].mxu0
      %4862 = vmatprep.mubr.f32.mxu0 0.0
      %4863 = vmatmul.mubr.f32.gmra.mrb[0].mxu0 %v4480
      %v4864 = vpop.f32.mrb[0].mxu0
      %v4865 = vadd.f32 0.0, %v4864
      %v4866 = vpop.f32.mrb[0].mxu0
      %4867 = vmatprep.mubr.f32.mxu0 0.0
      %4868 = vmatmul.mubr.f32.gmra.mrb[0].mxu0 %v4479
      %v4869 = vpop.f32.mrb[0].mxu0
      %v4870 = vadd.f32 0.0, %v4869
      %v4871 = vpop.f32.mrb[0].mxu0
      %4872 = vmatprep.mubr.f32.mxu0 0.0
      %4873 = vmatmul.mubr.f32.gmra.mrb[0].mxu0 %v4478
      %v4874 = vpop.f32.mrb[0].mxu0
      %v4875 = vadd.f32 0.0, %v4874
      %v4876 = vpop.f32.mrb[0].mxu0
      %4877 = vmatprep.mubr.f32.mxu0 0.0
      %4878 = vmatmul.mubr.f32.gmra.mrb[0].mxu0 %v4477
      %v4879 = vpop.f32.mrb[0].mxu0
      %v4880 = vadd.f32 0.0, %v4879
      %v4881 = vpop.f32.mrb[0].mxu0
      %4882 = vmatprep.mubr.f32.mxu0 0.0
      %4883 = vmatmul.mubr.f32.gmra.mrb[0].mxu0 %v4476
      %v4884 = vpop.f32.mrb[0].mxu0
      %v4885 = vadd.f32 0.0, %v4884
      %v4886 = vpop.f32.mrb[0].mxu0
      %4887 = vmatprep.mubr.f32.mxu0 0.0
      %4888 = vmatmul.mubr.f32.gmra.mrb[0].mxu0 %v4475
      %v4889 = vpop.f32.mrb[0].mxu0
      %v4890 = vadd.f32 0.0, %v4889
      %v4891 = vpop.f32.mrb[0].mxu0
      %4892 = vmatprep.mubr.f32.mxu0 0.0
      %4893 = vmatmul.mubr.f32.gmra.mrb[0].mxu0 %v4474
      %v4894 = vpop.f32.mrb[0].mxu0
      %v4895 = vadd.f32 0.0, %v4894
      %v4896 = vpop.f32.mrb[0].mxu0
      %4897 = vmatprep.mubr.f32.mxu0 0.0
      %4898 = vmatmul.mubr.f32.gmra.mrb[0].mxu0 %v4473
      %v4899 = vpop.f32.mrb[0].mxu0
      %v4900 = vadd.f32 0.0, %v4899
      %v4901 = vpop.f32.mrb[0].mxu0
      %4902 = vmatprep.mubr.f32.mxu0 0.0
      %4903 = vmatmul.mubr.f32.gmra.mrb[0].mxu0 %v4472
      %v4904 = vpop.f32.mrb[0].mxu0
      %v4905 = vadd.f32 0.0, %v4904
      %v4906 = vpop.f32.mrb[0].mxu0
      %4907 = vmatprep.mubr.f32.mxu0 0.0
      %4908 = vmatmul.mubr.f32.gmra.mrb[0].mxu0 %v4471
      %v4909 = vpop.f32.mrb[0].mxu0
      %v4910 = vadd.f32 0.0, %v4909
      %v4911 = vpop.f32.mrb[0].mxu0
      %4912 = vmatprep.mubr.f32.mxu0 0.0
      %4913 = vmatmul.mubr.f32.gmra.mrb[0].mxu0 %v4470
      %v4914 = vpop.f32.mrb[0].mxu0
      %v4915 = vadd.f32 0.0, %v4914
      %v4916 = vpop.f32.mrb[0].mxu0
      %4917 = vmatprep.mubr.f32.mxu0 0.0
      %4918 = vmatmul.mubr.f32.gmra.mrb[0].mxu0 %v4469
      %v4919 = vpop.f32.mrb[0].mxu0
      %v4920 = vadd.f32 0.0, %v4919
      %v4921 = vpop.f32.mrb[0].mxu0
      %4922 = vmatprep.mubr.f32.mxu0 0.0
      %4923 = vmatmul.mubr.f32.gmra.mrb[0].mxu0 %v4468
      %v4924 = vpop.f32.mrb[0].mxu0
      %v4925 = vadd.f32 0.0, %v4924
      %v4926 = vpop.f32.mrb[0].mxu0
      %4927 = vmatprep.mubr.f32.mxu0 0.0
      %4928 = vmatmul.mubr.f32.gmra.mrb[0].mxu0 %v4467
      %v4929 = vpop.f32.mrb[0].mxu0
      %v4930 = vadd.f32 0.0, %v4929
      %v4931 = vpop.f32.mrb[0].mxu0
      %4932 = vmatprep.mubr.f32.mxu0 0.0
      %4933 = vmatmul.mubr.f32.gmra.mrb[0].mxu0 %v4466
      %v4934 = vpop.f32.mrb[0].mxu0
      %v4935 = vadd.f32 0.0, %v4934
      %v4936 = vpop.f32.mrb[0].mxu0
      %4937 = vmatprep.mubr.f32.mxu0 0.0
      %4938 = vmatmul.mubr.f32.gmra.mrb[0].mxu0 %v4465
      %v4939 = vpop.f32.mrb[0].mxu0
      %v4940 = vadd.f32 0.0, %v4939
      %v4941 = vpop.f32.mrb[0].mxu0
      %4942 = vmatprep.mubr.f32.mxu0 0.0
      %4943 = vmatmul.mubr.f32.gmra.mrb[0].mxu0 %v4464
      %v4944 = vpop.f32.mrb[0].mxu0
      %v4945 = vadd.f32 0.0, %v4944
      %v4946 = vpop.f32.mrb[0].mxu0
      %4947 = vmatprep.mubr.f32.mxu0 0.0
      %4948 = vmatmul.mubr.f32.gmra.mrb[0].mxu0 %v4463
      %v4949 = vpop.f32.mrb[0].mxu0
      %v4950 = vadd.f32 0.0, %v4949
      %v4951 = vpop.f32.mrb[0].mxu0
      %4952 = vmatprep.mubr.f32.mxu0 0.0
      %4953 = vmatmul.mubr.f32.gmra.mrb[0].mxu0 %v4462
      %v4954 = vpop.f32.mrb[0].mxu0
      %v4955 = vadd.f32 0.0, %v4954
      %v4956 = vpop.f32.mrb[0].mxu0
      %4957 = vmatprep.mubr.f32.mxu0 0.0
      %4958 = vmatmul.mubr.f32.gmra.mrb[0].mxu0 %v4461
      %v4959 = vpop.f32.mrb[0].mxu0
      %v4960 = vadd.f32 0.0, %v4959
      %v4961 = vpop.f32.mrb[0].mxu0
      %4962 = vmatprep.mubr.f32.mxu0 0.0
      %4963 = vmatmul.mubr.f32.gmra.mrb[0].mxu0 %v4460
      %v4964 = vpop.f32.mrb[0].mxu0
      %v4965 = vadd.f32 0.0, %v4964
      %v4966 = vpop.f32.mrb[0].mxu0
      %4967 = vmatprep.mubr.f32.mxu0 0.0
      %4968 = vmatmul.mubr.f32.gmra.mrb[0].mxu0 %v4459
      %v4969 = vpop.f32.mrb[0].mxu0
      %v4970 = vadd.f32 0.0, %v4969
      %v4971 = vpop.f32.mrb[0].mxu0
      %4972 = vmatprep.mubr.f32.mxu0 0.0
      %4973 = vmatmul.mubr.f32.gmra.mrb[0].mxu0 %v4458
      %v4974 = vpop.f32.mrb[0].mxu0
      %v4975 = vadd.f32 0.0, %v4974
      %v4976 = vpop.f32.mrb[0].mxu0
      %4977 = vmatprep.mubr.f32.mxu0 0.0
      %4978 = vmatmul.mubr.f32.gmra.mrb[0].mxu0 %v4457
      %v4979 = vpop.f32.mrb[0].mxu0
      %v4980 = vadd.f32 0.0, %v4979
      %v4981 = vpop.f32.mrb[0].mxu0
      %4982 = vmatprep.mubr.f32.mxu0 0.0
      %4983 = vmatmul.mubr.f32.gmra.mrb[0].mxu0 %v4456
      %v4984 = vpop.f32.mrb[0].mxu0
      %v4985 = vadd.f32 0.0, %v4984
      %v4986 = vpop.f32.mrb[0].mxu0
      %4987 = vmatprep.mubr.f32.mxu0 0.0
      %4988 = vmatmul.mubr.f32.gmra.mrb[0].mxu0 %v4455
      %v4989 = vpop.f32.mrb[0].mxu0
      %v4990 = vadd.f32 0.0, %v4989
      %v4991 = vpop.f32.mrb[0].mxu0
      %4992 = vmatprep.mubr.f32.mxu0 0.0
      %4993 = vmatmul.mubr.f32.gmra.mrb[0].mxu0 %v4454
      %v4994 = vpop.f32.mrb[0].mxu0
      %v4995 = vadd.f32 0.0, %v4994
      %v4996 = vpop.f32.mrb[0].mxu0
      %4997 = vmatprep.mubr.f32.mxu0 0.0
      %4998 = vmatmul.mubr.f32.gmra.mrb[0].mxu0 %v4453
      %v4999 = vpop.f32.mrb[0].mxu0
      %v5000 = vadd.f32 0.0, %v4999
      %v5001 = vpop.f32.mrb[0].mxu0
      %5002 = vmatprep.mubr.f32.mxu0 0.0
      %5003 = vmatmul.mubr.f32.gmra.mrb[0].mxu0 %v4452
      %v5004 = vpop.f32.mrb[0].mxu0
      %v5005 = vadd.f32 0.0, %v5004
      %v5006 = vpop.f32.mrb[0].mxu0
      %5007 = vmatprep.mubr.f32.mxu0 0.0
      %5008 = vmatmul.mubr.f32.gmra.mrb[0].mxu0 %v4451
      %v5009 = vpop.f32.mrb[0].mxu0
      %v5010 = vadd.f32 0.0, %v5009
      %v5011 = vpop.f32.mrb[0].mxu0
      %5012 = vmatprep.mubr.f32.mxu0 0.0
      %5013 = vmatmul.mubr.f32.gmra.mrb[0].mxu0 %v4450
      %v5014 = vpop.f32.mrb[0].mxu0
      %v5015 = vadd.f32 0.0, %v5014
      %v5016 = vpop.f32.mrb[0].mxu0
      %5017 = vmatprep.mubr.f32.mxu0 0.0
      %5018 = vmatmul.mubr.f32.gmra.mrb[0].mxu0 %v4449
      %v5019 = vpop.f32.mrb[0].mxu0
      %v5020 = vadd.f32 0.0, %v5019
      %v5021 = vpop.f32.mrb[0].mxu0
      %5022 = vmatprep.mubr.f32.mxu0 0.0
      %5023 = vmatmul.mubr.f32.gmra.mrb[0].mxu0 %v4448
      %v5024 = vpop.f32.mrb[0].mxu0
      %v5025 = vadd.f32 0.0, %v5024
      %v5026 = vpop.f32.mrb[0].mxu0
      %5027 = vmatprep.mubr.f32.mxu0 0.0
      %5028 = vmatmul.mubr.f32.gmra.mrb[0].mxu0 %v4447
      %v5029 = vpop.f32.mrb[0].mxu0
      %v5030 = vadd.f32 0.0, %v5029
      %v5031 = vpop.f32.mrb[0].mxu0
      %5032 = vmatprep.mubr.f32.mxu0 0.0
      %5033 = vmatmul.mubr.f32.gmra.mrb[0].mxu0 %v4446
      %v5034 = vpop.f32.mrb[0].mxu0
      %v5035 = vadd.f32 0.0, %v5034
      %v5036 = vpop.f32.mrb[0].mxu0
      %5037 = vmatprep.mubr.f32.mxu0 0.0
      %5038 = vmatmul.mubr.f32.gmra.mrb[0].mxu0 %v4445
      %v5039 = vpop.f32.mrb[0].mxu0
      %v5040 = vadd.f32 0.0, %v5039
      %v5041 = vpop.f32.mrb[0].mxu0
      %5042 = vmatprep.mubr.f32.mxu0 0.0
      %5043 = vmatmul.mubr.f32.gmra.mrb[0].mxu0 %v4444
      %v5044 = vpop.f32.mrb[0].mxu0
      %v5045 = vadd.f32 0.0, %v5044
      %v5046 = vpop.f32.mrb[0].mxu0
      %5047 = vmatprep.mubr.f32.mxu0 0.0
      %5048 = vmatmul.mubr.f32.gmra.mrb[0].mxu0 %v4443
      %v5049 = vpop.f32.mrb[0].mxu0
      %v5050 = vadd.f32 0.0, %v5049
      %v5051 = vpop.f32.mrb[0].mxu0
      %5052 = vmatprep.mubr.f32.mxu0 0.0
      %5053 = vmatmul.mubr.f32.gmra.mrb[0].mxu0 %v4442
      %v5054 = vpop.f32.mrb[0].mxu0
      %v5055 = vadd.f32 0.0, %v5054
      %v5056 = vpop.f32.mrb[0].mxu0
      %5057 = vmatprep.mubr.f32.mxu0 0.0
      %5058 = vmatmul.mubr.f32.gmra.mrb[0].mxu0 %v4441
      %v5059 = vpop.f32.mrb[0].mxu0
      %v5060 = vadd.f32 0.0, %v5059
      %v5061 = vpop.f32.mrb[0].mxu0
      %5062 = vmatprep.mubr.f32.mxu0 0.0
      %5063 = vmatmul.mubr.f32.gmra.mrb[0].mxu0 %v4440
      %v5064 = vpop.f32.mrb[0].mxu0
      %v5065 = vadd.f32 0.0, %v5064
      %v5066 = vpop.f32.mrb[0].mxu0
      %5067 = vmatprep.mubr.f32.mxu0 0.0
      %5068 = vmatmul.mubr.f32.gmra.mrb[0].mxu0 %v4439
      %v5069 = vpop.f32.mrb[0].mxu0
      %v5070 = vadd.f32 0.0, %v5069
      %v5071 = vpop.f32.mrb[0].mxu0
      %5072 = vmatprep.mubr.f32.mxu0 0.0
      %5073 = vmatmul.mubr.f32.gmra.mrb[0].mxu0 %v4438
      %v5074 = vpop.f32.mrb[0].mxu0
      %v5075 = vadd.f32 0.0, %v5074
      %v5076 = vpop.f32.mrb[0].mxu0
      %5077 = vmatprep.mubr.f32.mxu0 0.0
      %5078 = vmatmul.mubr.f32.gmra.mrb[0].mxu0 %v4437
      %v5079 = vpop.f32.mrb[0].mxu0
      %v5080 = vadd.f32 0.0, %v5079
      %v5081 = vpop.f32.mrb[0].mxu0
      %5082 = vmatprep.mubr.f32.mxu0 0.0
      %5083 = vmatmul.mubr.f32.gmra.mrb[0].mxu0 %v4436
      %v5084 = vpop.f32.mrb[0].mxu0
      %v5085 = vadd.f32 0.0, %v5084
      %v5086 = vpop.f32.mrb[0].mxu0
      %5087 = vmatprep.mubr.f32.mxu0 0.0
      %5088 = vmatmul.mubr.f32.gmra.mrb[0].mxu0 %v4435
      %v5089 = vpop.f32.mrb[0].mxu0
      %v5090 = vadd.f32 0.0, %v5089
      %v5091 = vpop.f32.mrb[0].mxu0
      %5092 = vmatprep.mubr.f32.mxu0 0.0
      %5093 = vmatmul.mubr.f32.gmra.mrb[0].mxu0 %v4434
      %v5094 = vpop.f32.mrb[0].mxu0
      %v5095 = vadd.f32 0.0, %v5094
      %v5096 = vpop.f32.mrb[0].mxu0
      %5097 = vmatprep.mubr.f32.mxu0 0.0
      %5098 = vmatmul.mubr.f32.gmra.mrb[0].mxu0 %v4433
      %v5099 = vpop.f32.mrb[0].mxu0
      %v5100 = vadd.f32 0.0, %v5099
      %v5101 = vpop.f32.mrb[0].mxu0
      %5102 = vmatprep.mubr.f32.mxu0 0.0
      %5103 = vmatmul.mubr.f32.gmra.mrb[0].mxu0 %v4432
      %v5104 = vpop.f32.mrb[0].mxu0
      %v5105 = vadd.f32 0.0, %v5104
      %v5106 = vpop.f32.mrb[0].mxu0
      %5107 = vmatprep.mubr.f32.mxu0 0.0
      %5108 = vmatmul.mubr.f32.gmra.mrb[0].mxu0 %v4431
      %v5109 = vpop.f32.mrb[0].mxu0
      %v5110 = vadd.f32 0.0, %v5109
      %v5111 = vpop.f32.mrb[0].mxu0
      %5112 = vmatprep.mubr.f32.mxu0 0.0
      %5113 = vmatmul.mubr.f32.gmra.mrb[0].mxu0 %v4430
      %v5114 = vpop.f32.mrb[0].mxu0
      %v5115 = vadd.f32 0.0, %v5114
      %v5116 = vpop.f32.mrb[0].mxu0
      %5117 = vmatprep.mubr.f32.mxu0 0.0
      %5118 = vmatmul.mubr.f32.gmra.mrb[0].mxu0 %v4429
      %v5119 = vpop.f32.mrb[0].mxu0
      %v5120 = vadd.f32 0.0, %v5119
      %v5121 = vpop.f32.mrb[0].mxu0
      %5122 = vmatprep.mubr.f32.mxu0 0.0
      %5123 = vmatmul.mubr.f32.gmra.mrb[0].mxu0 %v4428
      %v5124 = vpop.f32.mrb[0].mxu0
      %v5125 = vadd.f32 0.0, %v5124
      %v5126 = vpop.f32.mrb[0].mxu0
      %5127 = vmatprep.mubr.f32.mxu0 0.0
      %5128 = vmatmul.mubr.f32.gmra.mrb[0].mxu0 %v4427
      %v5129 = vpop.f32.mrb[0].mxu0
      %v5130 = vadd.f32 0.0, %v5129
      %v5131 = vpop.f32.mrb[0].mxu0
      %5132 = vmatprep.mubr.f32.mxu0 0.0
      %5133 = vmatmul.mubr.f32.gmra.mrb[0].mxu0 %v4426
      %v5134 = vpop.f32.mrb[0].mxu0
      %v5135 = vadd.f32 0.0, %v5134
      %v5136 = vpop.f32.mrb[0].mxu0
      %5137 = vmatprep.mubr.f32.mxu0 0.0
      %5138 = vmatmul.mubr.f32.gmra.mrb[0].mxu0 %v4425
      %v5139 = vpop.f32.mrb[0].mxu0
      %v5140 = vadd.f32 0.0, %v5139
      %v5141 = vpop.f32.mrb[0].mxu0
      %5142 = vmatprep.mubr.f32.mxu0 0.0
      %5143 = vmatmul.mubr.f32.gmra.mrb[0].mxu0 %v4424
      %v5144 = vpop.f32.mrb[0].mxu0
      %v5145 = vadd.f32 0.0, %v5144
      %v5146 = vpop.f32.mrb[0].mxu0
      %5147 = vmatprep.mubr.f32.mxu0 0.0
      %5148 = vmatmul.mubr.f32.gmra.mrb[0].mxu0 %v4423
      %v5149 = vpop.f32.mrb[0].mxu0
      %v5150 = vadd.f32 0.0, %v5149
      %v5151 = vpop.f32.mrb[0].mxu0
      %5152 = vmatprep.mubr.f32.mxu0 0.0
      %5153 = vmatmul.mubr.f32.gmra.mrb[0].mxu0 %v4422
      %v5154 = vpop.f32.mrb[0].mxu0
      %v5155 = vadd.f32 0.0, %v5154
      %v5156 = vpop.f32.mrb[0].mxu0
      %5157 = vmatprep.mubr.f32.mxu0 0.0
      %5158 = vmatmul.mubr.f32.gmra.mrb[0].mxu0 %v4421
      %v5159 = vpop.f32.mrb[0].mxu0
      %v5160 = vadd.f32 0.0, %v5159
      %v5161 = vpop.f32.mrb[0].mxu0
      %5162 = vmatprep.mubr.f32.mxu0 0.0
      %5163 = vmatmul.mubr.f32.gmra.mrb[0].mxu0 %v4420
      %v5164 = vpop.f32.mrb[0].mxu0
      %v5165 = vadd.f32 0.0, %v5164
      %v5166 = vpop.f32.mrb[0].mxu0
      %5167 = vmatprep.mubr.f32.mxu0 0.0
      %5168 = vmatmul.mubr.f32.gmra.mrb[0].mxu0 %v4419
      %v5169 = vpop.f32.mrb[0].mxu0
      %v5170 = vadd.f32 0.0, %v5169
      %v5171 = vpop.f32.mrb[0].mxu0
      %5172 = vmatprep.mubr.f32.mxu0 0.0
      %5173 = vmatmul.mubr.f32.gmra.mrb[0].mxu0 %v4418
      %v5174 = vpop.f32.mrb[0].mxu0
      %v5175 = vadd.f32 0.0, %v5174
      %v5176 = vpop.f32.mrb[0].mxu0
      %5177 = vmatprep.mubr.f32.mxu0 0.0
      %5178 = vmatmul.mubr.f32.gmra.mrb[0].mxu0 %v4417
      %v5179 = vpop.f32.mrb[0].mxu0
      %v5180 = vadd.f32 0.0, %v5179
      %v5181 = vpop.f32.mrb[0].mxu0
      %5182 = vmatprep.mubr.f32.mxu0 0.0
      %5183 = vmatmul.mubr.f32.gmra.mrb[0].mxu0 %v4416
      %v5184 = vpop.f32.mrb[0].mxu0
      %v5185 = vadd.f32 0.0, %v5184
      %v5186 = vpop.f32.mrb[0].mxu0
      %5187 = vmatprep.mubr.f32.mxu0 0.0
      %5188 = vmatmul.mubr.f32.gmra.mrb[0].mxu0 %v4415
      %v5189 = vpop.f32.mrb[0].mxu0
      %v5190 = vadd.f32 0.0, %v5189
      %v5191 = vpop.f32.mrb[0].mxu0
      %5192 = vmatprep.mubr.f32.mxu0 0.0
      %5193 = vmatmul.mubr.f32.gmra.mrb[0].mxu0 %v4414
      %v5194 = vpop.f32.mrb[0].mxu0
      %v5195 = vadd.f32 0.0, %v5194
      %v5196 = vpop.f32.mrb[0].mxu0
      %5197 = vmatprep.mubr.f32.mxu0 0.0
      %5198 = vmatmul.mubr.f32.gmra.mrb[0].mxu0 %v4413
      %v5199 = vpop.f32.mrb[0].mxu0
      %v5200 = vadd.f32 0.0, %v5199
      %v5201 = vpop.f32.mrb[0].mxu0
      %5202 = vmatprep.mubr.f32.mxu0 0.0
      %5203 = vmatmul.mubr.f32.gmra.mrb[0].mxu0 %v4412
      %v5204 = vpop.f32.mrb[0].mxu0
      %v5205 = vadd.f32 0.0, %v5204
      %v5206 = vpop.f32.mrb[0].mxu0
      %5207 = vmatprep.mubr.f32.mxu0 0.0
      %5208 = vmatmul.mubr.f32.gmra.mrb[0].mxu0 %v4411
      %v5209 = vpop.f32.mrb[0].mxu0
      %v5210 = vadd.f32 0.0, %v5209
      %v5211 = vpop.f32.mrb[0].mxu0
      %5212 = vmatprep.mubr.f32.mxu0 0.0
      %5213 = vmatmul.mubr.f32.gmra.mrb[0].mxu0 %v4410
      %v5214 = vpop.f32.mrb[0].mxu0
      %v5215 = vadd.f32 0.0, %v5214
      %v5216 = vpop.f32.mrb[0].mxu0
      %5217 = vmatprep.mubr.f32.mxu0 0.0
      %5218 = vmatmul.mubr.f32.gmra.mrb[0].mxu0 %v4409
      %v5219 = vpop.f32.mrb[0].mxu0
      %v5220 = vadd.f32 0.0, %v5219
      %v5221 = vpop.f32.mrb[0].mxu0
      %5222 = vmatprep.mubr.f32.mxu0 0.0
      %5223 = vmatmul.mubr.f32.gmra.mrb[0].mxu0 %v4408
      %v5224 = vpop.f32.mrb[0].mxu0
      %v5225 = vadd.f32 0.0, %v5224
      %v5226 = vpop.f32.mrb[0].mxu0
      %5227 = vmatprep.mubr.f32.mxu0 0.0
      %5228 = vmatmul.mubr.f32.gmra.mrb[0].mxu0 %v4407
      %v5229 = vpop.f32.mrb[0].mxu0
      %v5230 = vadd.f32 0.0, %v5229
      %v5231 = vpop.f32.mrb[0].mxu0
      %5232 = vmatprep.mubr.f32.mxu0 0.0
      %5233 = vmatmul.mubr.f32.gmra.mrb[0].mxu0 %v4406
      %v5234 = vpop.f32.mrb[0].mxu0
      %v5235 = vadd.f32 0.0, %v5234
      %v5236 = vpop.f32.mrb[0].mxu0
      %5237 = vmatprep.mubr.f32.mxu0 0.0
      %5238 = vmatmul.mubr.f32.gmra.mrb[0].mxu0 %v4405
      %v5239 = vpop.f32.mrb[0].mxu0
      %v5240 = vadd.f32 0.0, %v5239
      %v5241 = vpop.f32.mrb[0].mxu0
      %5242 = vmatprep.mubr.f32.mxu0 0.0
      %5243 = vmatmul.mubr.f32.gmra.mrb[0].mxu0 %v4404
      %v5244 = vpop.f32.mrb[0].mxu0
      %v5245 = vadd.f32 0.0, %v5244
      %v5246 = vpop.f32.mrb[0].mxu0
      %5247 = vmatprep.mubr.f32.mxu0 0.0
      %5248 = vmatmul.mubr.f32.gmra.mrb[0].mxu0 %v4403
      %v5249 = vpop.f32.mrb[0].mxu0
      %v5250 = vadd.f32 0.0, %v5249
      %v5251 = vpop.f32.mrb[0].mxu0
      %5252 = vdwg.mxu0
      %v5253 = vadd.f32 %v4115, %v4615
      %v5254 = vadd.f32 %v4116, %v4620
      %v5255 = vadd.f32 %v4117, %v4625
      %v5256 = vadd.f32 %v4118, %v4630
      %v5257 = vadd.f32 %v4119, %v4635
      %v5258 = vadd.f32 %v4120, %v4640
      %v5259 = vadd.f32 %v4121, %v4645
      %v5260 = vadd.f32 %v4122, %v4650
      %v5261 = vadd.f32 %v4123, %v4655
      %v5262 = vadd.f32 %v4124, %v4660
      %v5263 = vadd.f32 %v4125, %v4665
      %v5264 = vadd.f32 %v4126, %v4670
      %v5265 = vadd.f32 %v4127, %v4675
      %v5266 = vadd.f32 %v4128, %v4680
      %v5267 = vadd.f32 %v4129, %v4685
      %v5268 = vadd.f32 %v4130, %v4690
      %v5269 = vadd.f32 %v4131, %v4695
      %v5270 = vadd.f32 %v4132, %v4700
      %v5271 = vadd.f32 %v4133, %v4705
      %v5272 = vadd.f32 %v4134, %v4710
      %v5273 = vadd.f32 %v4135, %v4715
      %v5274 = vadd.f32 %v4136, %v4720
      %v5275 = vadd.f32 %v4137, %v4725
      %v5276 = vadd.f32 %v4138, %v4730
      %v5277 = vadd.f32 %v4139, %v4735
      %v5278 = vadd.f32 %v4140, %v4740
      %v5279 = vadd.f32 %v4141, %v4745
      %v5280 = vadd.f32 %v4142, %v4750
      %v5281 = vadd.f32 %v4143, %v4755
      %v5282 = vadd.f32 %v4144, %v4760
      %v5283 = vadd.f32 %v4145, %v4765
      %v5284 = vadd.f32 %v4146, %v4770
      %v5285 = vadd.f32 %v4147, %v4775
      %v5286 = vadd.f32 %v4148, %v4780
      %v5287 = vadd.f32 %v4149, %v4785
      %v5288 = vadd.f32 %v4150, %v4790
      %v5289 = vadd.f32 %v4151, %v4795
      %v5290 = vadd.f32 %v4152, %v4800
      %v5291 = vadd.f32 %v4153, %v4805
      %v5292 = vadd.f32 %v4154, %v4810
      %v5293 = vadd.f32 %v4155, %v4815
      %v5294 = vadd.f32 %v4156, %v4820
      %v5295 = vadd.f32 %v4157, %v4825
      %v5296 = vadd.f32 %v4158, %v4830
      %v5297 = vadd.f32 %v4159, %v4835
      %v5298 = vadd.f32 %v4160, %v4840
      %v5299 = vadd.f32 %v4161, %v4845
      %v5300 = vadd.f32 %v4162, %v4850
      %v5301 = vadd.f32 %v4163, %v4855
      %v5302 = vadd.f32 %v4164, %v4860
      %v5303 = vadd.f32 %v4165, %v4865
      %v5304 = vadd.f32 %v4166, %v4870
      %v5305 = vadd.f32 %v4167, %v4875
      %v5306 = vadd.f32 %v4168, %v4880
      %v5307 = vadd.f32 %v4169, %v4885
      %v5308 = vadd.f32 %v4170, %v4890
      %v5309 = vadd.f32 %v4171, %v4895
      %v5310 = vadd.f32 %v4172, %v4900
      %v5311 = vadd.f32 %v4173, %v4905
      %v5312 = vadd.f32 %v4174, %v4910
      %v5313 = vadd.f32 %v4175, %v4915
      %v5314 = vadd.f32 %v4176, %v4920
      %v5315 = vadd.f32 %v4177, %v4925
      %v5316 = vadd.f32 %v4178, %v4930
      %v5317 = vadd.f32 %v4179, %v4935
      %v5318 = vadd.f32 %v4180, %v4940
      %v5319 = vadd.f32 %v4181, %v4945
      %v5320 = vadd.f32 %v4182, %v4950
      %v5321 = vadd.f32 %v4183, %v4955
      %v5322 = vadd.f32 %v4184, %v4960
      %v5323 = vadd.f32 %v4185, %v4965
      %v5324 = vadd.f32 %v4186, %v4970
      %v5325 = vadd.f32 %v4187, %v4975
      %v5326 = vadd.f32 %v4188, %v4980
      %v5327 = vadd.f32 %v4189, %v4985
      %v5328 = vadd.f32 %v4190, %v4990
      %v5329 = vadd.f32 %v4191, %v4995
      %v5330 = vadd.f32 %v4192, %v5000
      %v5331 = vadd.f32 %v4193, %v5005
      %v5332 = vadd.f32 %v4194, %v5010
      %v5333 = vadd.f32 %v4195, %v5015
      %v5334 = vadd.f32 %v4196, %v5020
      %v5335 = vadd.f32 %v4197, %v5025
      %v5336 = vadd.f32 %v4198, %v5030
      %v5337 = vadd.f32 %v4199, %v5035
      %v5338 = vadd.f32 %v4200, %v5040
      %v5339 = vadd.f32 %v4201, %v5045
      %v5340 = vadd.f32 %v4202, %v5050
      %v5341 = vadd.f32 %v4203, %v5055
      %v5342 = vadd.f32 %v4204, %v5060
      %v5343 = vadd.f32 %v4205, %v5065
      %v5344 = vadd.f32 %v4206, %v5070
      %v5345 = vadd.f32 %v4207, %v5075
      %v5346 = vadd.f32 %v4208, %v5080
      %v5347 = vadd.f32 %v4209, %v5085
      %v5348 = vadd.f32 %v4210, %v5090
      %v5349 = vadd.f32 %v4211, %v5095
      %v5350 = vadd.f32 %v4212, %v5100
      %v5351 = vadd.f32 %v4213, %v5105
      %v5352 = vadd.f32 %v4214, %v5110
      %v5353 = vadd.f32 %v4215, %v5115
      %v5354 = vadd.f32 %v4216, %v5120
      %v5355 = vadd.f32 %v4217, %v5125
      %v5356 = vadd.f32 %v4218, %v5130
      %v5357 = vadd.f32 %v4219, %v5135
      %v5358 = vadd.f32 %v4220, %v5140
      %v5359 = vadd.f32 %v4221, %v5145
      %v5360 = vadd.f32 %v4222, %v5150
      %v5361 = vadd.f32 %v4223, %v5155
      %v5362 = vadd.f32 %v4224, %v5160
      %v5363 = vadd.f32 %v4225, %v5165
      %v5364 = vadd.f32 %v4226, %v5170
      %v5365 = vadd.f32 %v4227, %v5175
      %v5366 = vadd.f32 %v4228, %v5180
      %v5367 = vadd.f32 %v4229, %v5185
      %v5368 = vadd.f32 %v4230, %v5190
      %v5369 = vadd.f32 %v4231, %v5195
      %v5370 = vadd.f32 %v4232, %v5200
      %v5371 = vadd.f32 %v4233, %v5205
      %v5372 = vadd.f32 %v4234, %v5210
      %v5373 = vadd.f32 %v4235, %v5215
      %v5374 = vadd.f32 %v4236, %v5220
      %v5375 = vadd.f32 %v4237, %v5225
      %v5376 = vadd.f32 %v4238, %v5230
      %v5377 = vadd.f32 %v4239, %v5235
      %v5378 = vadd.f32 %v4240, %v5240
      %v5379 = vadd.f32 %v4241, %v5245
      %v5380 = vadd.f32 %v4242, %v5250
      %v5381 = vrot.slane %v3233, 2
      %v5382 = vrot.slane %v3234, 2
      %v5383 = vrot.slane %v3235, 2
      %v5384 = vrot.slane %v3236, 2
      %v5385 = vrot.slane %v3237, 2
      %v5386 = vrot.slane %v3238, 2
      %v5387 = vrot.slane %v3239, 2
      %v5388 = vrot.slane %v3240, 2
      %v5389 = vrot.slane %v3241, 2
      %v5390 = vrot.slane %v3242, 2
      %v5391 = vrot.slane %v3243, 2
      %v5392 = vrot.slane %v3244, 2
      %v5393 = vrot.slane %v3245, 2
      %v5394 = vrot.slane %v3246, 2
      %v5395 = vrot.slane %v3247, 2
      %v5396 = vrot.slane %v3248, 2
      %v5397 = vrot.slane %v3249, 2
      %v5398 = vrot.slane %v3250, 2
      %v5399 = vrot.slane %v3251, 2
      %v5400 = vrot.slane %v3252, 2
      %v5401 = vrot.slane %v3253, 2
      %v5402 = vrot.slane %v3254, 2
      %v5403 = vrot.slane %v3255, 2
      %v5404 = vrot.slane %v3256, 2
      %v5405 = vrot.slane %v3257, 2
      %v5406 = vrot.slane %v3258, 2
      %v5407 = vrot.slane %v3259, 2
      %v5408 = vrot.slane %v3260, 2
      %v5409 = vrot.slane %v3261, 2
      %v5410 = vrot.slane %v3262, 2
      %v5411 = vrot.slane %v3263, 2
      %v5412 = vrot.slane %v3264, 2
      %v5413 = vrot.slane %v3265, 2
      %v5414 = vrot.slane %v3266, 2
      %v5415 = vrot.slane %v3267, 2
      %v5416 = vrot.slane %v3268, 2
      %v5417 = vrot.slane %v3269, 2
      %v5418 = vrot.slane %v3270, 2
      %v5419 = vrot.slane %v3271, 2
      %v5420 = vrot.slane %v3272, 2
      %v5421 = vrot.slane %v3273, 2
      %v5422 = vrot.slane %v3274, 2
      %v5423 = vrot.slane %v3275, 2
      %v5424 = vrot.slane %v3276, 2
      %v5425 = vrot.slane %v3277, 2
      %v5426 = vrot.slane %v3278, 2
      %v5427 = vrot.slane %v3279, 2
      %v5428 = vrot.slane %v3280, 2
      %v5429 = vrot.slane %v3281, 2
      %v5430 = vrot.slane %v3282, 2
      %v5431 = vrot.slane %v3283, 2
      %v5432 = vrot.slane %v3284, 2
      %v5433 = vrot.slane %v3285, 2
      %v5434 = vrot.slane %v3286, 2
      %v5435 = vrot.slane %v3287, 2
      %v5436 = vrot.slane %v3288, 2
      %v5437 = vrot.slane %v3289, 2
      %v5438 = vrot.slane %v3290, 2
      %v5439 = vrot.slane %v3291, 2
      %v5440 = vrot.slane %v3292, 2
      %v5441 = vrot.slane %v3293, 2
      %v5442 = vrot.slane %v3294, 2
      %v5443 = vrot.slane %v3295, 2
      %v5444 = vrot.slane %v3296, 2
      %v5445 = vrot.slane %v3297, 2
      %v5446 = vrot.slane %v3298, 2
      %v5447 = vrot.slane %v3299, 2
      %v5448 = vrot.slane %v3300, 2
      %v5449 = vrot.slane %v3301, 2
      %v5450 = vrot.slane %v3302, 2
      %v5451 = vrot.slane %v3303, 2
      %v5452 = vrot.slane %v3304, 2
      %v5453 = vrot.slane %v3305, 2
      %v5454 = vrot.slane %v3306, 2
      %v5455 = vrot.slane %v3307, 2
      %v5456 = vrot.slane %v3308, 2
      %v5457 = vrot.slane %v3309, 2
      %v5458 = vrot.slane %v3310, 2
      %v5459 = vrot.slane %v3311, 2
      %v5460 = vrot.slane %v3312, 2
      %v5461 = vrot.slane %v3313, 2
      %v5462 = vrot.slane %v3314, 2
      %v5463 = vrot.slane %v3315, 2
      %v5464 = vrot.slane %v3316, 2
      %v5465 = vrot.slane %v3317, 2
      %v5466 = vrot.slane %v3318, 2
      %v5467 = vrot.slane %v3319, 2
      %v5468 = vrot.slane %v3320, 2
      %v5469 = vrot.slane %v3321, 2
      %v5470 = vrot.slane %v3322, 2
      %v5471 = vrot.slane %v3323, 2
      %v5472 = vrot.slane %v3324, 2
      %v5473 = vrot.slane %v3325, 2
      %v5474 = vrot.slane %v3326, 2
      %v5475 = vrot.slane %v3327, 2
      %v5476 = vrot.slane %v3328, 2
      %v5477 = vrot.slane %v3329, 2
      %v5478 = vrot.slane %v3330, 2
      %v5479 = vrot.slane %v3331, 2
      %v5480 = vrot.slane %v3332, 2
      %v5481 = vrot.slane %v3333, 2
      %v5482 = vrot.slane %v3334, 2
      %v5483 = vrot.slane %v3335, 2
      %v5484 = vrot.slane %v3336, 2
      %v5485 = vrot.slane %v3337, 2
      %v5486 = vrot.slane %v3338, 2
      %v5487 = vrot.slane %v3339, 2
      %v5488 = vrot.slane %v3340, 2
      %v5489 = vrot.slane %v3341, 2
      %v5490 = vrot.slane %v3342, 2
      %v5491 = vrot.slane %v3343, 2
      %v5492 = vrot.slane %v3344, 2
      %v5493 = vrot.slane %v3345, 2
      %v5494 = vrot.slane %v3346, 2
      %v5495 = vrot.slane %v3347, 2
      %v5496 = vrot.slane %v3348, 2
      %v5497 = vrot.slane %v3349, 2
      %v5498 = vrot.slane %v3350, 2
      %v5499 = vrot.slane %v3351, 2
      %v5500 = vrot.slane %v3352, 2
      %v5501 = vrot.slane %v3353, 2
      %v5502 = vrot.slane %v3354, 2
      %v5503 = vrot.slane %v3355, 2
      %v5504 = vrot.slane %v3356, 2
      %v5505 = vrot.slane %v3357, 2
      %v5506 = vrot.slane %v3358, 2
      %v5507 = vrot.slane %v3359, 2
      %v5508 = vrot.slane %v3360, 2
      %v5509 = vrot.slane %v3361, 2
      %v5510 = vrot.slane %v3362, 2
      %v5511 = vrot.slane %v3363, 2
      %v5512 = vrot.slane %v3364, 2
      %v5513 = vrot.slane %v3365, 2
      %v5514 = vrot.slane %v3366, 2
      %v5515 = vrot.slane %v3367, 2
      %v5516 = vrot.slane %v3368, 2
      %v5517 = vrot.slane %v3369, 2
      %v5518 = vrot.slane %v3370, 2
      %v5519 = vrot.slane %v3371, 2
      %v5520 = vrot.slane %v3372, 2
      %v5521 = vrot.slane %v3373, 2
      %v5522 = vrot.slane %v3374, 2
      %v5523 = vrot.slane %v3375, 2
      %v5524 = vrot.slane %v3376, 2
      %v5525 = vrot.slane %v3377, 2
      %v5526 = vrot.slane %v3378, 2
      %v5527 = vrot.slane %v3379, 2
      %v5528 = vrot.slane %v3380, 2
      %v5529 = vrot.slane %v3381, 2
      %v5530 = vrot.slane %v3382, 2
      %v5531 = vrot.slane %v3383, 2
      %v5532 = vrot.slane %v3384, 2
      %v5533 = vrot.slane %v3385, 2
      %v5534 = vrot.slane %v3386, 2
      %v5535 = vrot.slane %v3387, 2
      %v5536 = vrot.slane %v3388, 2
      %v5537 = vrot.slane %v3389, 2
      %v5538 = vrot.slane %v3390, 2
      %v5539 = vrot.slane %v3391, 2
      %v5540 = vrot.slane %v3392, 2
      %v5541 = vsel %vm2253, %v5539, %v5540
      %v5542 = vsel %vm2253, %v5538, %v5539
      %v5543 = vsel %vm2253, %v5537, %v5538
      %v5544 = vsel %vm2253, %v5536, %v5537
      %v5545 = vsel %vm2253, %v5534, %v5535
      %v5546 = vsel %vm2253, %v5533, %v5534
      %v5547 = vsel %vm2253, %v5532, %v5533
      %v5548 = vsel %vm2253, %v5531, %v5532
      %v5549 = vsel %vm2253, %v5529, %v5530
      %v5550 = vsel %vm2253, %v5528, %v5529
      %v5551 = vsel %vm2253, %v5527, %v5528
      %v5552 = vsel %vm2253, %v5526, %v5527
      %v5553 = vsel %vm2253, %v5524, %v5525
      %v5554 = vsel %vm2253, %v5523, %v5524
      %v5555 = vsel %vm2253, %v5522, %v5523
      %v5556 = vsel %vm2253, %v5521, %v5522
      %v5557 = vsel %vm2253, %v5519, %v5520
      %v5558 = vsel %vm2253, %v5518, %v5519
      %v5559 = vsel %vm2253, %v5517, %v5518
      %v5560 = vsel %vm2253, %v5516, %v5517
      %v5561 = vsel %vm2253, %v5514, %v5515
      %v5562 = vsel %vm2253, %v5513, %v5514
      %v5563 = vsel %vm2253, %v5512, %v5513
      %v5564 = vsel %vm2253, %v5511, %v5512
      %v5565 = vsel %vm2253, %v5509, %v5510
      %v5566 = vsel %vm2253, %v5508, %v5509
      %v5567 = vsel %vm2253, %v5507, %v5508
      %v5568 = vsel %vm2253, %v5506, %v5507
      %v5569 = vsel %vm2253, %v5504, %v5505
      %v5570 = vsel %vm2253, %v5503, %v5504
      %v5571 = vsel %vm2253, %v5502, %v5503
      %v5572 = vsel %vm2253, %v5501, %v5502
      %v5573 = vsel %vm2253, %v5499, %v5500
      %v5574 = vsel %vm2253, %v5498, %v5499
      %v5575 = vsel %vm2253, %v5497, %v5498
      %v5576 = vsel %vm2253, %v5496, %v5497
      %v5577 = vsel %vm2253, %v5494, %v5495
      %v5578 = vsel %vm2253, %v5493, %v5494
      %v5579 = vsel %vm2253, %v5492, %v5493
      %v5580 = vsel %vm2253, %v5491, %v5492
      %v5581 = vsel %vm2253, %v5489, %v5490
      %v5582 = vsel %vm2253, %v5488, %v5489
      %v5583 = vsel %vm2253, %v5487, %v5488
      %v5584 = vsel %vm2253, %v5486, %v5487
      %v5585 = vsel %vm2253, %v5484, %v5485
      %v5586 = vsel %vm2253, %v5483, %v5484
      %v5587 = vsel %vm2253, %v5482, %v5483
      %v5588 = vsel %vm2253, %v5481, %v5482
      %v5589 = vsel %vm2253, %v5479, %v5480
      %v5590 = vsel %vm2253, %v5478, %v5479
      %v5591 = vsel %vm2253, %v5477, %v5478
      %v5592 = vsel %vm2253, %v5476, %v5477
      %v5593 = vsel %vm2253, %v5474, %v5475
      %v5594 = vsel %vm2253, %v5473, %v5474
      %v5595 = vsel %vm2253, %v5472, %v5473
      %v5596 = vsel %vm2253, %v5471, %v5472
      %v5597 = vsel %vm2253, %v5469, %v5470
      %v5598 = vsel %vm2253, %v5468, %v5469
      %v5599 = vsel %vm2253, %v5467, %v5468
      %v5600 = vsel %vm2253, %v5466, %v5467
      %v5601 = vsel %vm2253, %v5464, %v5465
      %v5602 = vsel %vm2253, %v5463, %v5464
      %v5603 = vsel %vm2253, %v5462, %v5463
      %v5604 = vsel %vm2253, %v5461, %v5462
      %v5605 = vsel %vm2253, %v5459, %v5460
      %v5606 = vsel %vm2253, %v5458, %v5459
      %v5607 = vsel %vm2253, %v5457, %v5458
      %v5608 = vsel %vm2253, %v5456, %v5457
      %v5609 = vsel %vm2253, %v5454, %v5455
      %v5610 = vsel %vm2253, %v5453, %v5454
      %v5611 = vsel %vm2253, %v5452, %v5453
      %v5612 = vsel %vm2253, %v5451, %v5452
      %v5613 = vsel %vm2253, %v5449, %v5450
      %v5614 = vsel %vm2253, %v5448, %v5449
      %v5615 = vsel %vm2253, %v5447, %v5448
      %v5616 = vsel %vm2253, %v5446, %v5447
      %v5617 = vsel %vm2253, %v5444, %v5445
      %v5618 = vsel %vm2253, %v5443, %v5444
      %v5619 = vsel %vm2253, %v5442, %v5443
      %v5620 = vsel %vm2253, %v5441, %v5442
      %v5621 = vsel %vm2253, %v5439, %v5440
      %v5622 = vsel %vm2253, %v5438, %v5439
      %v5623 = vsel %vm2253, %v5437, %v5438
      %v5624 = vsel %vm2253, %v5436, %v5437
      %v5625 = vsel %vm2253, %v5434, %v5435
      %v5626 = vsel %vm2253, %v5433, %v5434
      %v5627 = vsel %vm2253, %v5432, %v5433
      %v5628 = vsel %vm2253, %v5431, %v5432
      %v5629 = vsel %vm2253, %v5429, %v5430
      %v5630 = vsel %vm2253, %v5428, %v5429
      %v5631 = vsel %vm2253, %v5427, %v5428
      %v5632 = vsel %vm2253, %v5426, %v5427
      %v5633 = vsel %vm2253, %v5424, %v5425
      %v5634 = vsel %vm2253, %v5423, %v5424
      %v5635 = vsel %vm2253, %v5422, %v5423
      %v5636 = vsel %vm2253, %v5421, %v5422
      %v5637 = vsel %vm2253, %v5419, %v5420
      %v5638 = vsel %vm2253, %v5418, %v5419
      %v5639 = vsel %vm2253, %v5417, %v5418
      %v5640 = vsel %vm2253, %v5416, %v5417
      %v5641 = vsel %vm2253, %v5414, %v5415
      %v5642 = vsel %vm2253, %v5413, %v5414
      %v5643 = vsel %vm2253, %v5412, %v5413
      %v5644 = vsel %vm2253, %v5411, %v5412
      %v5645 = vsel %vm2253, %v5409, %v5410
      %v5646 = vsel %vm2253, %v5408, %v5409
      %v5647 = vsel %vm2253, %v5407, %v5408
      %v5648 = vsel %vm2253, %v5406, %v5407
      %v5649 = vsel %vm2253, %v5404, %v5405
      %v5650 = vsel %vm2253, %v5403, %v5404
      %v5651 = vsel %vm2253, %v5402, %v5403
      %v5652 = vsel %vm2253, %v5401, %v5402
      %v5653 = vsel %vm2253, %v5399, %v5400
      %v5654 = vsel %vm2253, %v5398, %v5399
      %v5655 = vsel %vm2253, %v5397, %v5398
      %v5656 = vsel %vm2253, %v5396, %v5397
      %v5657 = vsel %vm2253, %v5394, %v5395
      %v5658 = vsel %vm2253, %v5393, %v5394
      %v5659 = vsel %vm2253, %v5392, %v5393
      %v5660 = vsel %vm2253, %v5391, %v5392
      %v5661 = vsel %vm2253, %v5389, %v5390
      %v5662 = vsel %vm2253, %v5388, %v5389
      %v5663 = vsel %vm2253, %v5387, %v5388
      %v5664 = vsel %vm2253, %v5386, %v5387
      %v5665 = vsel %vm2253, %v5384, %v5385
      %v5666 = vsel %vm2253, %v5383, %v5384
      %v5667 = vsel %vm2253, %v5382, %v5383
      %v5668 = vsel %vm2253, %v5381, %v5382
      %s5669 = scalar_lea.vmem %s1, 640
      %v5670 = vld [vmem:[%s5669] sm:$0xff]
      %v5671 = vld [vmem:[%s5669 + $0x8] sm:$0xff]
      %v5672 = vld [vmem:[%s5669 + $0x10] sm:$0xff]
      %v5673 = vld [vmem:[%s5669 + $0x18] sm:$0xff]
      %v5674 = vld [vmem:[%s5669 + $0x20] sm:$0xff]
      %v5675 = vld [vmem:[%s5669 + $0x28] sm:$0xff]
      %v5676 = vld [vmem:[%s5669 + $0x30] sm:$0xff]
      %v5677 = vld [vmem:[%s5669 + $0x38] sm:$0xff]
      %v5678 = vld [vmem:[%s5669 + $0x40] sm:$0xff]
      %v5679 = vld [vmem:[%s5669 + $0x48] sm:$0xff]
      %v5680 = vld [vmem:[%s5669 + $0x50] sm:$0xff]
      %v5681 = vld [vmem:[%s5669 + $0x58] sm:$0xff]
      %v5682 = vld [vmem:[%s5669 + $0x60] sm:$0xff]
      %v5683 = vld [vmem:[%s5669 + $0x68] sm:$0xff]
      %v5684 = vld [vmem:[%s5669 + $0x70] sm:$0xff]
      %v5685 = vld [vmem:[%s5669 + $0x78] sm:$0xff]
      %5686 = vmatprep.subr.mxu0 0.0
      %5687 = vmatpush1.msra.mxu0 %v5670
      %5688 = vmatprep.subr.mxu0 0.0
      %5689 = vmatpush1.msra.mxu0 %v5671
      %5690 = vmatprep.subr.mxu0 0.0
      %5691 = vmatpush1.msra.mxu0 %v5672
      %5692 = vmatprep.subr.mxu0 0.0
      %5693 = vmatpush1.msra.mxu0 %v5673
      %5694 = vmatprep.subr.mxu0 0.0
      %5695 = vmatpush1.msra.mxu0 %v5674
      %5696 = vmatprep.subr.mxu0 0.0
      %5697 = vmatpush1.msra.mxu0 %v5675
      %5698 = vmatprep.subr.mxu0 0.0
      %5699 = vmatpush1.msra.mxu0 %v5676
      %5700 = vmatprep.subr.mxu0 0.0
      %5701 = vmatpush1.msra.mxu0 %v5677
      %5702 = vmatprep.subr.mxu0 0.0
      %5703 = vmatpush1.msra.mxu0 %v5678
      %5704 = vmatprep.subr.mxu0 0.0
      %5705 = vmatpush1.msra.mxu0 %v5679
      %5706 = vmatprep.subr.mxu0 0.0
      %5707 = vmatpush1.msra.mxu0 %v5680
      %5708 = vmatprep.subr.mxu0 0.0
      %5709 = vmatpush1.msra.mxu0 %v5681
      %5710 = vmatprep.subr.mxu0 0.0
      %5711 = vmatpush1.msra.mxu0 %v5682
      %5712 = vmatprep.subr.mxu0 0.0
      %5713 = vmatpush1.msra.mxu0 %v5683
      %5714 = vmatprep.subr.mxu0 0.0
      %5715 = vmatpush1.msra.mxu0 %v5684
      %5716 = vmatprep.subr.mxu0 0.0
      %5717 = vmatpush1.msra.mxu0 %v5685
      %5718 = vmatprep.subr.mxu0 0.0
      %5719 = vmatpush1.msra.mxu0 0.0
      %5720 = vmatprep.subr.mxu0 0.0
      %5721 = vmatpush1.msra.mxu0 0.0
      %5722 = vmatprep.subr.mxu0 0.0
      %5723 = vmatpush1.msra.mxu0 0.0
      %5724 = vmatprep.subr.mxu0 0.0
      %5725 = vmatpush1.msra.mxu0 0.0
      %5726 = vmatprep.subr.mxu0 0.0
      %5727 = vmatpush1.msra.mxu0 0.0
      %5728 = vmatprep.subr.mxu0 0.0
      %5729 = vmatpush1.msra.mxu0 0.0
      %5730 = vmatprep.subr.mxu0 0.0
      %5731 = vmatpush1.msra.mxu0 0.0
      %5732 = vmatprep.subr.mxu0 0.0
      %5733 = vmatpush1.msra.mxu0 0.0
      %5734 = vmatprep.subr.mxu0 0.0
      %5735 = vmatpush1.msra.mxu0 0.0
      %5736 = vmatprep.subr.mxu0 0.0
      %5737 = vmatpush1.msra.mxu0 0.0
      %5738 = vmatprep.subr.mxu0 0.0
      %5739 = vmatpush1.msra.mxu0 0.0
      %5740 = vmatprep.subr.mxu0 0.0
      %5741 = vmatpush1.msra.mxu0 0.0
      %5742 = vmatprep.subr.mxu0 0.0
      %5743 = vmatpush1.msra.mxu0 0.0
      %5744 = vmatprep.subr.mxu0 0.0
      %5745 = vmatpush1.msra.mxu0 0.0
      %5746 = vmatprep.subr.mxu0 0.0
      %5747 = vmatpush1.msra.mxu0 0.0
      %5748 = vmatprep.subr.mxu0 0.0
      %5749 = vmatpush1.msra.mxu0 0.0
      %5750 = vmatprep.mubr.f32.mxu0 0.0
      %5751 = vmatmul.mubr.f32.gmra.mrb[0].mxu0 %v5668
      %v5752 = vpop.f32.mrb[0].mxu0
      %v5753 = vadd.f32 0.0, %v5752
      %v5754 = vpop.f32.mrb[0].mxu0
      %5755 = vmatprep.mubr.f32.mxu0 0.0
      %5756 = vmatmul.mubr.f32.gmra.mrb[0].mxu0 %v5667
      %v5757 = vpop.f32.mrb[0].mxu0
      %v5758 = vadd.f32 0.0, %v5757
      %v5759 = vpop.f32.mrb[0].mxu0
      %5760 = vmatprep.mubr.f32.mxu0 0.0
      %5761 = vmatmul.mubr.f32.gmra.mrb[0].mxu0 %v5666
      %v5762 = vpop.f32.mrb[0].mxu0
      %v5763 = vadd.f32 0.0, %v5762
      %v5764 = vpop.f32.mrb[0].mxu0
      %5765 = vmatprep.mubr.f32.mxu0 0.0
      %5766 = vmatmul.mubr.f32.gmra.mrb[0].mxu0 %v5665
      %v5767 = vpop.f32.mrb[0].mxu0
      %v5768 = vadd.f32 0.0, %v5767
      %v5769 = vpop.f32.mrb[0].mxu0
      %5770 = vmatprep.mubr.f32.mxu0 0.0
      %5771 = vmatmul.mubr.f32.gmra.mrb[0].mxu0 %v5664
      %v5772 = vpop.f32.mrb[0].mxu0
      %v5773 = vadd.f32 0.0, %v5772
      %v5774 = vpop.f32.mrb[0].mxu0
      %5775 = vmatprep.mubr.f32.mxu0 0.0
      %5776 = vmatmul.mubr.f32.gmra.mrb[0].mxu0 %v5663
      %v5777 = vpop.f32.mrb[0].mxu0
      %v5778 = vadd.f32 0.0, %v5777
      %v5779 = vpop.f32.mrb[0].mxu0
      %5780 = vmatprep.mubr.f32.mxu0 0.0
      %5781 = vmatmul.mubr.f32.gmra.mrb[0].mxu0 %v5662
      %v5782 = vpop.f32.mrb[0].mxu0
      %v5783 = vadd.f32 0.0, %v5782
      %v5784 = vpop.f32.mrb[0].mxu0
      %5785 = vmatprep.mubr.f32.mxu0 0.0
      %5786 = vmatmul.mubr.f32.gmra.mrb[0].mxu0 %v5661
      %v5787 = vpop.f32.mrb[0].mxu0
      %v5788 = vadd.f32 0.0, %v5787
      %v5789 = vpop.f32.mrb[0].mxu0
      %5790 = vmatprep.mubr.f32.mxu0 0.0
      %5791 = vmatmul.mubr.f32.gmra.mrb[0].mxu0 %v5660
      %v5792 = vpop.f32.mrb[0].mxu0
      %v5793 = vadd.f32 0.0, %v5792
      %v5794 = vpop.f32.mrb[0].mxu0
      %5795 = vmatprep.mubr.f32.mxu0 0.0
      %5796 = vmatmul.mubr.f32.gmra.mrb[0].mxu0 %v5659
      %v5797 = vpop.f32.mrb[0].mxu0
      %v5798 = vadd.f32 0.0, %v5797
      %v5799 = vpop.f32.mrb[0].mxu0
      %5800 = vmatprep.mubr.f32.mxu0 0.0
      %5801 = vmatmul.mubr.f32.gmra.mrb[0].mxu0 %v5658
      %v5802 = vpop.f32.mrb[0].mxu0
      %v5803 = vadd.f32 0.0, %v5802
      %v5804 = vpop.f32.mrb[0].mxu0
      %5805 = vmatprep.mubr.f32.mxu0 0.0
      %5806 = vmatmul.mubr.f32.gmra.mrb[0].mxu0 %v5657
      %v5807 = vpop.f32.mrb[0].mxu0
      %v5808 = vadd.f32 0.0, %v5807
      %v5809 = vpop.f32.mrb[0].mxu0
      %5810 = vmatprep.mubr.f32.mxu0 0.0
      %5811 = vmatmul.mubr.f32.gmra.mrb[0].mxu0 %v5656
      %v5812 = vpop.f32.mrb[0].mxu0
      %v5813 = vadd.f32 0.0, %v5812
      %v5814 = vpop.f32.mrb[0].mxu0
      %5815 = vmatprep.mubr.f32.mxu0 0.0
      %5816 = vmatmul.mubr.f32.gmra.mrb[0].mxu0 %v5655
      %v5817 = vpop.f32.mrb[0].mxu0
      %v5818 = vadd.f32 0.0, %v5817
      %v5819 = vpop.f32.mrb[0].mxu0
      %5820 = vmatprep.mubr.f32.mxu0 0.0
      %5821 = vmatmul.mubr.f32.gmra.mrb[0].mxu0 %v5654
      %v5822 = vpop.f32.mrb[0].mxu0
      %v5823 = vadd.f32 0.0, %v5822
      %v5824 = vpop.f32.mrb[0].mxu0
      %5825 = vmatprep.mubr.f32.mxu0 0.0
      %5826 = vmatmul.mubr.f32.gmra.mrb[0].mxu0 %v5653
      %v5827 = vpop.f32.mrb[0].mxu0
      %v5828 = vadd.f32 0.0, %v5827
      %v5829 = vpop.f32.mrb[0].mxu0
      %5830 = vmatprep.mubr.f32.mxu0 0.0
      %5831 = vmatmul.mubr.f32.gmra.mrb[0].mxu0 %v5652
      %v5832 = vpop.f32.mrb[0].mxu0
      %v5833 = vadd.f32 0.0, %v5832
      %v5834 = vpop.f32.mrb[0].mxu0
      %5835 = vmatprep.mubr.f32.mxu0 0.0
      %5836 = vmatmul.mubr.f32.gmra.mrb[0].mxu0 %v5651
      %v5837 = vpop.f32.mrb[0].mxu0
      %v5838 = vadd.f32 0.0, %v5837
      %v5839 = vpop.f32.mrb[0].mxu0
      %5840 = vmatprep.mubr.f32.mxu0 0.0
      %5841 = vmatmul.mubr.f32.gmra.mrb[0].mxu0 %v5650
      %v5842 = vpop.f32.mrb[0].mxu0
      %v5843 = vadd.f32 0.0, %v5842
      %v5844 = vpop.f32.mrb[0].mxu0
      %5845 = vmatprep.mubr.f32.mxu0 0.0
      %5846 = vmatmul.mubr.f32.gmra.mrb[0].mxu0 %v5649
      %v5847 = vpop.f32.mrb[0].mxu0
      %v5848 = vadd.f32 0.0, %v5847
      %v5849 = vpop.f32.mrb[0].mxu0
      %5850 = vmatprep.mubr.f32.mxu0 0.0
      %5851 = vmatmul.mubr.f32.gmra.mrb[0].mxu0 %v5648
      %v5852 = vpop.f32.mrb[0].mxu0
      %v5853 = vadd.f32 0.0, %v5852
      %v5854 = vpop.f32.mrb[0].mxu0
      %5855 = vmatprep.mubr.f32.mxu0 0.0
      %5856 = vmatmul.mubr.f32.gmra.mrb[0].mxu0 %v5647
      %v5857 = vpop.f32.mrb[0].mxu0
      %v5858 = vadd.f32 0.0, %v5857
      %v5859 = vpop.f32.mrb[0].mxu0
      %5860 = vmatprep.mubr.f32.mxu0 0.0
      %5861 = vmatmul.mubr.f32.gmra.mrb[0].mxu0 %v5646
      %v5862 = vpop.f32.mrb[0].mxu0
      %v5863 = vadd.f32 0.0, %v5862
      %v5864 = vpop.f32.mrb[0].mxu0
      %5865 = vmatprep.mubr.f32.mxu0 0.0
      %5866 = vmatmul.mubr.f32.gmra.mrb[0].mxu0 %v5645
      %v5867 = vpop.f32.mrb[0].mxu0
      %v5868 = vadd.f32 0.0, %v5867
      %v5869 = vpop.f32.mrb[0].mxu0
      %5870 = vmatprep.mubr.f32.mxu0 0.0
      %5871 = vmatmul.mubr.f32.gmra.mrb[0].mxu0 %v5644
      %v5872 = vpop.f32.mrb[0].mxu0
      %v5873 = vadd.f32 0.0, %v5872
      %v5874 = vpop.f32.mrb[0].mxu0
      %5875 = vmatprep.mubr.f32.mxu0 0.0
      %5876 = vmatmul.mubr.f32.gmra.mrb[0].mxu0 %v5643
      %v5877 = vpop.f32.mrb[0].mxu0
      %v5878 = vadd.f32 0.0, %v5877
      %v5879 = vpop.f32.mrb[0].mxu0
      %5880 = vmatprep.mubr.f32.mxu0 0.0
      %5881 = vmatmul.mubr.f32.gmra.mrb[0].mxu0 %v5642
      %v5882 = vpop.f32.mrb[0].mxu0
      %v5883 = vadd.f32 0.0, %v5882
      %v5884 = vpop.f32.mrb[0].mxu0
      %5885 = vmatprep.mubr.f32.mxu0 0.0
      %5886 = vmatmul.mubr.f32.gmra.mrb[0].mxu0 %v5641
      %v5887 = vpop.f32.mrb[0].mxu0
      %v5888 = vadd.f32 0.0, %v5887
      %v5889 = vpop.f32.mrb[0].mxu0
      %5890 = vmatprep.mubr.f32.mxu0 0.0
      %5891 = vmatmul.mubr.f32.gmra.mrb[0].mxu0 %v5640
      %v5892 = vpop.f32.mrb[0].mxu0
      %v5893 = vadd.f32 0.0, %v5892
      %v5894 = vpop.f32.mrb[0].mxu0
      %5895 = vmatprep.mubr.f32.mxu0 0.0
      %5896 = vmatmul.mubr.f32.gmra.mrb[0].mxu0 %v5639
      %v5897 = vpop.f32.mrb[0].mxu0
      %v5898 = vadd.f32 0.0, %v5897
      %v5899 = vpop.f32.mrb[0].mxu0
      %5900 = vmatprep.mubr.f32.mxu0 0.0
      %5901 = vmatmul.mubr.f32.gmra.mrb[0].mxu0 %v5638
      %v5902 = vpop.f32.mrb[0].mxu0
      %v5903 = vadd.f32 0.0, %v5902
      %v5904 = vpop.f32.mrb[0].mxu0
      %5905 = vmatprep.mubr.f32.mxu0 0.0
      %5906 = vmatmul.mubr.f32.gmra.mrb[0].mxu0 %v5637
      %v5907 = vpop.f32.mrb[0].mxu0
      %v5908 = vadd.f32 0.0, %v5907
      %v5909 = vpop.f32.mrb[0].mxu0
      %5910 = vmatprep.mubr.f32.mxu0 0.0
      %5911 = vmatmul.mubr.f32.gmra.mrb[0].mxu0 %v5636
      %v5912 = vpop.f32.mrb[0].mxu0
      %v5913 = vadd.f32 0.0, %v5912
      %v5914 = vpop.f32.mrb[0].mxu0
      %5915 = vmatprep.mubr.f32.mxu0 0.0
      %5916 = vmatmul.mubr.f32.gmra.mrb[0].mxu0 %v5635
      %v5917 = vpop.f32.mrb[0].mxu0
      %v5918 = vadd.f32 0.0, %v5917
      %v5919 = vpop.f32.mrb[0].mxu0
      %5920 = vmatprep.mubr.f32.mxu0 0.0
      %5921 = vmatmul.mubr.f32.gmra.mrb[0].mxu0 %v5634
      %v5922 = vpop.f32.mrb[0].mxu0
      %v5923 = vadd.f32 0.0, %v5922
      %v5924 = vpop.f32.mrb[0].mxu0
      %5925 = vmatprep.mubr.f32.mxu0 0.0
      %5926 = vmatmul.mubr.f32.gmra.mrb[0].mxu0 %v5633
      %v5927 = vpop.f32.mrb[0].mxu0
      %v5928 = vadd.f32 0.0, %v5927
      %v5929 = vpop.f32.mrb[0].mxu0
      %5930 = vmatprep.mubr.f32.mxu0 0.0
      %5931 = vmatmul.mubr.f32.gmra.mrb[0].mxu0 %v5632
      %v5932 = vpop.f32.mrb[0].mxu0
      %v5933 = vadd.f32 0.0, %v5932
      %v5934 = vpop.f32.mrb[0].mxu0
      %5935 = vmatprep.mubr.f32.mxu0 0.0
      %5936 = vmatmul.mubr.f32.gmra.mrb[0].mxu0 %v5631
      %v5937 = vpop.f32.mrb[0].mxu0
      %v5938 = vadd.f32 0.0, %v5937
      %v5939 = vpop.f32.mrb[0].mxu0
      %5940 = vmatprep.mubr.f32.mxu0 0.0
      %5941 = vmatmul.mubr.f32.gmra.mrb[0].mxu0 %v5630
      %v5942 = vpop.f32.mrb[0].mxu0
      %v5943 = vadd.f32 0.0, %v5942
      %v5944 = vpop.f32.mrb[0].mxu0
      %5945 = vmatprep.mubr.f32.mxu0 0.0
      %5946 = vmatmul.mubr.f32.gmra.mrb[0].mxu0 %v5629
      %v5947 = vpop.f32.mrb[0].mxu0
      %v5948 = vadd.f32 0.0, %v5947
      %v5949 = vpop.f32.mrb[0].mxu0
      %5950 = vmatprep.mubr.f32.mxu0 0.0
      %5951 = vmatmul.mubr.f32.gmra.mrb[0].mxu0 %v5628
      %v5952 = vpop.f32.mrb[0].mxu0
      %v5953 = vadd.f32 0.0, %v5952
      %v5954 = vpop.f32.mrb[0].mxu0
      %5955 = vmatprep.mubr.f32.mxu0 0.0
      %5956 = vmatmul.mubr.f32.gmra.mrb[0].mxu0 %v5627
      %v5957 = vpop.f32.mrb[0].mxu0
      %v5958 = vadd.f32 0.0, %v5957
      %v5959 = vpop.f32.mrb[0].mxu0
      %5960 = vmatprep.mubr.f32.mxu0 0.0
      %5961 = vmatmul.mubr.f32.gmra.mrb[0].mxu0 %v5626
      %v5962 = vpop.f32.mrb[0].mxu0
      %v5963 = vadd.f32 0.0, %v5962
      %v5964 = vpop.f32.mrb[0].mxu0
      %5965 = vmatprep.mubr.f32.mxu0 0.0
      %5966 = vmatmul.mubr.f32.gmra.mrb[0].mxu0 %v5625
      %v5967 = vpop.f32.mrb[0].mxu0
      %v5968 = vadd.f32 0.0, %v5967
      %v5969 = vpop.f32.mrb[0].mxu0
      %5970 = vmatprep.mubr.f32.mxu0 0.0
      %5971 = vmatmul.mubr.f32.gmra.mrb[0].mxu0 %v5624
      %v5972 = vpop.f32.mrb[0].mxu0
      %v5973 = vadd.f32 0.0, %v5972
      %v5974 = vpop.f32.mrb[0].mxu0
      %5975 = vmatprep.mubr.f32.mxu0 0.0
      %5976 = vmatmul.mubr.f32.gmra.mrb[0].mxu0 %v5623
      %v5977 = vpop.f32.mrb[0].mxu0
      %v5978 = vadd.f32 0.0, %v5977
      %v5979 = vpop.f32.mrb[0].mxu0
      %5980 = vmatprep.mubr.f32.mxu0 0.0
      %5981 = vmatmul.mubr.f32.gmra.mrb[0].mxu0 %v5622
      %v5982 = vpop.f32.mrb[0].mxu0
      %v5983 = vadd.f32 0.0, %v5982
      %v5984 = vpop.f32.mrb[0].mxu0
      %5985 = vmatprep.mubr.f32.mxu0 0.0
      %5986 = vmatmul.mubr.f32.gmra.mrb[0].mxu0 %v5621
      %v5987 = vpop.f32.mrb[0].mxu0
      %v5988 = vadd.f32 0.0, %v5987
      %v5989 = vpop.f32.mrb[0].mxu0
      %5990 = vmatprep.mubr.f32.mxu0 0.0
      %5991 = vmatmul.mubr.f32.gmra.mrb[0].mxu0 %v5620
      %v5992 = vpop.f32.mrb[0].mxu0
      %v5993 = vadd.f32 0.0, %v5992
      %v5994 = vpop.f32.mrb[0].mxu0
      %5995 = vmatprep.mubr.f32.mxu0 0.0
      %5996 = vmatmul.mubr.f32.gmra.mrb[0].mxu0 %v5619
      %v5997 = vpop.f32.mrb[0].mxu0
      %v5998 = vadd.f32 0.0, %v5997
      %v5999 = vpop.f32.mrb[0].mxu0
      %6000 = vmatprep.mubr.f32.mxu0 0.0
      %6001 = vmatmul.mubr.f32.gmra.mrb[0].mxu0 %v5618
      %v6002 = vpop.f32.mrb[0].mxu0
      %v6003 = vadd.f32 0.0, %v6002
      %v6004 = vpop.f32.mrb[0].mxu0
      %6005 = vmatprep.mubr.f32.mxu0 0.0
      %6006 = vmatmul.mubr.f32.gmra.mrb[0].mxu0 %v5617
      %v6007 = vpop.f32.mrb[0].mxu0
      %v6008 = vadd.f32 0.0, %v6007
      %v6009 = vpop.f32.mrb[0].mxu0
      %6010 = vmatprep.mubr.f32.mxu0 0.0
      %6011 = vmatmul.mubr.f32.gmra.mrb[0].mxu0 %v5616
      %v6012 = vpop.f32.mrb[0].mxu0
      %v6013 = vadd.f32 0.0, %v6012
      %v6014 = vpop.f32.mrb[0].mxu0
      %6015 = vmatprep.mubr.f32.mxu0 0.0
      %6016 = vmatmul.mubr.f32.gmra.mrb[0].mxu0 %v5615
      %v6017 = vpop.f32.mrb[0].mxu0
      %v6018 = vadd.f32 0.0, %v6017
      %v6019 = vpop.f32.mrb[0].mxu0
      %6020 = vmatprep.mubr.f32.mxu0 0.0
      %6021 = vmatmul.mubr.f32.gmra.mrb[0].mxu0 %v5614
      %v6022 = vpop.f32.mrb[0].mxu0
      %v6023 = vadd.f32 0.0, %v6022
      %v6024 = vpop.f32.mrb[0].mxu0
      %6025 = vmatprep.mubr.f32.mxu0 0.0
      %6026 = vmatmul.mubr.f32.gmra.mrb[0].mxu0 %v5613
      %v6027 = vpop.f32.mrb[0].mxu0
      %v6028 = vadd.f32 0.0, %v6027
      %v6029 = vpop.f32.mrb[0].mxu0
      %6030 = vmatprep.mubr.f32.mxu0 0.0
      %6031 = vmatmul.mubr.f32.gmra.mrb[0].mxu0 %v5612
      %v6032 = vpop.f32.mrb[0].mxu0
      %v6033 = vadd.f32 0.0, %v6032
      %v6034 = vpop.f32.mrb[0].mxu0
      %6035 = vmatprep.mubr.f32.mxu0 0.0
      %6036 = vmatmul.mubr.f32.gmra.mrb[0].mxu0 %v5611
      %v6037 = vpop.f32.mrb[0].mxu0
      %v6038 = vadd.f32 0.0, %v6037
      %v6039 = vpop.f32.mrb[0].mxu0
      %6040 = vmatprep.mubr.f32.mxu0 0.0
      %6041 = vmatmul.mubr.f32.gmra.mrb[0].mxu0 %v5610
      %v6042 = vpop.f32.mrb[0].mxu0
      %v6043 = vadd.f32 0.0, %v6042
      %v6044 = vpop.f32.mrb[0].mxu0
      %6045 = vmatprep.mubr.f32.mxu0 0.0
      %6046 = vmatmul.mubr.f32.gmra.mrb[0].mxu0 %v5609
      %v6047 = vpop.f32.mrb[0].mxu0
      %v6048 = vadd.f32 0.0, %v6047
      %v6049 = vpop.f32.mrb[0].mxu0
      %6050 = vmatprep.mubr.f32.mxu0 0.0
      %6051 = vmatmul.mubr.f32.gmra.mrb[0].mxu0 %v5608
      %v6052 = vpop.f32.mrb[0].mxu0
      %v6053 = vadd.f32 0.0, %v6052
      %v6054 = vpop.f32.mrb[0].mxu0
      %6055 = vmatprep.mubr.f32.mxu0 0.0
      %6056 = vmatmul.mubr.f32.gmra.mrb[0].mxu0 %v5607
      %v6057 = vpop.f32.mrb[0].mxu0
      %v6058 = vadd.f32 0.0, %v6057
      %v6059 = vpop.f32.mrb[0].mxu0
      %6060 = vmatprep.mubr.f32.mxu0 0.0
      %6061 = vmatmul.mubr.f32.gmra.mrb[0].mxu0 %v5606
      %v6062 = vpop.f32.mrb[0].mxu0
      %v6063 = vadd.f32 0.0, %v6062
      %v6064 = vpop.f32.mrb[0].mxu0
      %6065 = vmatprep.mubr.f32.mxu0 0.0
      %6066 = vmatmul.mubr.f32.gmra.mrb[0].mxu0 %v5605
      %v6067 = vpop.f32.mrb[0].mxu0
      %v6068 = vadd.f32 0.0, %v6067
      %v6069 = vpop.f32.mrb[0].mxu0
      %6070 = vmatprep.mubr.f32.mxu0 0.0
      %6071 = vmatmul.mubr.f32.gmra.mrb[0].mxu0 %v5604
      %v6072 = vpop.f32.mrb[0].mxu0
      %v6073 = vadd.f32 0.0, %v6072
      %v6074 = vpop.f32.mrb[0].mxu0
      %6075 = vmatprep.mubr.f32.mxu0 0.0
      %6076 = vmatmul.mubr.f32.gmra.mrb[0].mxu0 %v5603
      %v6077 = vpop.f32.mrb[0].mxu0
      %v6078 = vadd.f32 0.0, %v6077
      %v6079 = vpop.f32.mrb[0].mxu0
      %6080 = vmatprep.mubr.f32.mxu0 0.0
      %6081 = vmatmul.mubr.f32.gmra.mrb[0].mxu0 %v5602
      %v6082 = vpop.f32.mrb[0].mxu0
      %v6083 = vadd.f32 0.0, %v6082
      %v6084 = vpop.f32.mrb[0].mxu0
      %6085 = vmatprep.mubr.f32.mxu0 0.0
      %6086 = vmatmul.mubr.f32.gmra.mrb[0].mxu0 %v5601
      %v6087 = vpop.f32.mrb[0].mxu0
      %v6088 = vadd.f32 0.0, %v6087
      %v6089 = vpop.f32.mrb[0].mxu0
      %6090 = vmatprep.mubr.f32.mxu0 0.0
      %6091 = vmatmul.mubr.f32.gmra.mrb[0].mxu0 %v5600
      %v6092 = vpop.f32.mrb[0].mxu0
      %v6093 = vadd.f32 0.0, %v6092
      %v6094 = vpop.f32.mrb[0].mxu0
      %6095 = vmatprep.mubr.f32.mxu0 0.0
      %6096 = vmatmul.mubr.f32.gmra.mrb[0].mxu0 %v5599
      %v6097 = vpop.f32.mrb[0].mxu0
      %v6098 = vadd.f32 0.0, %v6097
      %v6099 = vpop.f32.mrb[0].mxu0
      %6100 = vmatprep.mubr.f32.mxu0 0.0
      %6101 = vmatmul.mubr.f32.gmra.mrb[0].mxu0 %v5598
      %v6102 = vpop.f32.mrb[0].mxu0
      %v6103 = vadd.f32 0.0, %v6102
      %v6104 = vpop.f32.mrb[0].mxu0
      %6105 = vmatprep.mubr.f32.mxu0 0.0
      %6106 = vmatmul.mubr.f32.gmra.mrb[0].mxu0 %v5597
      %v6107 = vpop.f32.mrb[0].mxu0
      %v6108 = vadd.f32 0.0, %v6107
      %v6109 = vpop.f32.mrb[0].mxu0
      %6110 = vmatprep.mubr.f32.mxu0 0.0
      %6111 = vmatmul.mubr.f32.gmra.mrb[0].mxu0 %v5596
      %v6112 = vpop.f32.mrb[0].mxu0
      %v6113 = vadd.f32 0.0, %v6112
      %v6114 = vpop.f32.mrb[0].mxu0
      %6115 = vmatprep.mubr.f32.mxu0 0.0
      %6116 = vmatmul.mubr.f32.gmra.mrb[0].mxu0 %v5595
      %v6117 = vpop.f32.mrb[0].mxu0
      %v6118 = vadd.f32 0.0, %v6117
      %v6119 = vpop.f32.mrb[0].mxu0
      %6120 = vmatprep.mubr.f32.mxu0 0.0
      %6121 = vmatmul.mubr.f32.gmra.mrb[0].mxu0 %v5594
      %v6122 = vpop.f32.mrb[0].mxu0
      %v6123 = vadd.f32 0.0, %v6122
      %v6124 = vpop.f32.mrb[0].mxu0
      %6125 = vmatprep.mubr.f32.mxu0 0.0
      %6126 = vmatmul.mubr.f32.gmra.mrb[0].mxu0 %v5593
      %v6127 = vpop.f32.mrb[0].mxu0
      %v6128 = vadd.f32 0.0, %v6127
      %v6129 = vpop.f32.mrb[0].mxu0
      %6130 = vmatprep.mubr.f32.mxu0 0.0
      %6131 = vmatmul.mubr.f32.gmra.mrb[0].mxu0 %v5592
      %v6132 = vpop.f32.mrb[0].mxu0
      %v6133 = vadd.f32 0.0, %v6132
      %v6134 = vpop.f32.mrb[0].mxu0
      %6135 = vmatprep.mubr.f32.mxu0 0.0
      %6136 = vmatmul.mubr.f32.gmra.mrb[0].mxu0 %v5591
      %v6137 = vpop.f32.mrb[0].mxu0
      %v6138 = vadd.f32 0.0, %v6137
      %v6139 = vpop.f32.mrb[0].mxu0
      %6140 = vmatprep.mubr.f32.mxu0 0.0
      %6141 = vmatmul.mubr.f32.gmra.mrb[0].mxu0 %v5590
      %v6142 = vpop.f32.mrb[0].mxu0
      %v6143 = vadd.f32 0.0, %v6142
      %v6144 = vpop.f32.mrb[0].mxu0
      %6145 = vmatprep.mubr.f32.mxu0 0.0
      %6146 = vmatmul.mubr.f32.gmra.mrb[0].mxu0 %v5589
      %v6147 = vpop.f32.mrb[0].mxu0
      %v6148 = vadd.f32 0.0, %v6147
      %v6149 = vpop.f32.mrb[0].mxu0
      %6150 = vmatprep.mubr.f32.mxu0 0.0
      %6151 = vmatmul.mubr.f32.gmra.mrb[0].mxu0 %v5588
      %v6152 = vpop.f32.mrb[0].mxu0
      %v6153 = vadd.f32 0.0, %v6152
      %v6154 = vpop.f32.mrb[0].mxu0
      %6155 = vmatprep.mubr.f32.mxu0 0.0
      %6156 = vmatmul.mubr.f32.gmra.mrb[0].mxu0 %v5587
      %v6157 = vpop.f32.mrb[0].mxu0
      %v6158 = vadd.f32 0.0, %v6157
      %v6159 = vpop.f32.mrb[0].mxu0
      %6160 = vmatprep.mubr.f32.mxu0 0.0
      %6161 = vmatmul.mubr.f32.gmra.mrb[0].mxu0 %v5586
      %v6162 = vpop.f32.mrb[0].mxu0
      %v6163 = vadd.f32 0.0, %v6162
      %v6164 = vpop.f32.mrb[0].mxu0
      %6165 = vmatprep.mubr.f32.mxu0 0.0
      %6166 = vmatmul.mubr.f32.gmra.mrb[0].mxu0 %v5585
      %v6167 = vpop.f32.mrb[0].mxu0
      %v6168 = vadd.f32 0.0, %v6167
      %v6169 = vpop.f32.mrb[0].mxu0
      %6170 = vmatprep.mubr.f32.mxu0 0.0
      %6171 = vmatmul.mubr.f32.gmra.mrb[0].mxu0 %v5584
      %v6172 = vpop.f32.mrb[0].mxu0
      %v6173 = vadd.f32 0.0, %v6172
      %v6174 = vpop.f32.mrb[0].mxu0
      %6175 = vmatprep.mubr.f32.mxu0 0.0
      %6176 = vmatmul.mubr.f32.gmra.mrb[0].mxu0 %v5583
      %v6177 = vpop.f32.mrb[0].mxu0
      %v6178 = vadd.f32 0.0, %v6177
      %v6179 = vpop.f32.mrb[0].mxu0
      %6180 = vmatprep.mubr.f32.mxu0 0.0
      %6181 = vmatmul.mubr.f32.gmra.mrb[0].mxu0 %v5582
      %v6182 = vpop.f32.mrb[0].mxu0
      %v6183 = vadd.f32 0.0, %v6182
      %v6184 = vpop.f32.mrb[0].mxu0
      %6185 = vmatprep.mubr.f32.mxu0 0.0
      %6186 = vmatmul.mubr.f32.gmra.mrb[0].mxu0 %v5581
      %v6187 = vpop.f32.mrb[0].mxu0
      %v6188 = vadd.f32 0.0, %v6187
      %v6189 = vpop.f32.mrb[0].mxu0
      %6190 = vmatprep.mubr.f32.mxu0 0.0
      %6191 = vmatmul.mubr.f32.gmra.mrb[0].mxu0 %v5580
      %v6192 = vpop.f32.mrb[0].mxu0
      %v6193 = vadd.f32 0.0, %v6192
      %v6194 = vpop.f32.mrb[0].mxu0
      %6195 = vmatprep.mubr.f32.mxu0 0.0
      %6196 = vmatmul.mubr.f32.gmra.mrb[0].mxu0 %v5579
      %v6197 = vpop.f32.mrb[0].mxu0
      %v6198 = vadd.f32 0.0, %v6197
      %v6199 = vpop.f32.mrb[0].mxu0
      %6200 = vmatprep.mubr.f32.mxu0 0.0
      %6201 = vmatmul.mubr.f32.gmra.mrb[0].mxu0 %v5578
      %v6202 = vpop.f32.mrb[0].mxu0
      %v6203 = vadd.f32 0.0, %v6202
      %v6204 = vpop.f32.mrb[0].mxu0
      %6205 = vmatprep.mubr.f32.mxu0 0.0
      %6206 = vmatmul.mubr.f32.gmra.mrb[0].mxu0 %v5577
      %v6207 = vpop.f32.mrb[0].mxu0
      %v6208 = vadd.f32 0.0, %v6207
      %v6209 = vpop.f32.mrb[0].mxu0
      %6210 = vmatprep.mubr.f32.mxu0 0.0
      %6211 = vmatmul.mubr.f32.gmra.mrb[0].mxu0 %v5576
      %v6212 = vpop.f32.mrb[0].mxu0
      %v6213 = vadd.f32 0.0, %v6212
      %v6214 = vpop.f32.mrb[0].mxu0
      %6215 = vmatprep.mubr.f32.mxu0 0.0
      %6216 = vmatmul.mubr.f32.gmra.mrb[0].mxu0 %v5575
      %v6217 = vpop.f32.mrb[0].mxu0
      %v6218 = vadd.f32 0.0, %v6217
      %v6219 = vpop.f32.mrb[0].mxu0
      %6220 = vmatprep.mubr.f32.mxu0 0.0
      %6221 = vmatmul.mubr.f32.gmra.mrb[0].mxu0 %v5574
      %v6222 = vpop.f32.mrb[0].mxu0
      %v6223 = vadd.f32 0.0, %v6222
      %v6224 = vpop.f32.mrb[0].mxu0
      %6225 = vmatprep.mubr.f32.mxu0 0.0
      %6226 = vmatmul.mubr.f32.gmra.mrb[0].mxu0 %v5573
      %v6227 = vpop.f32.mrb[0].mxu0
      %v6228 = vadd.f32 0.0, %v6227
      %v6229 = vpop.f32.mrb[0].mxu0
      %6230 = vmatprep.mubr.f32.mxu0 0.0
      %6231 = vmatmul.mubr.f32.gmra.mrb[0].mxu0 %v5572
      %v6232 = vpop.f32.mrb[0].mxu0
      %v6233 = vadd.f32 0.0, %v6232
      %v6234 = vpop.f32.mrb[0].mxu0
      %6235 = vmatprep.mubr.f32.mxu0 0.0
      %6236 = vmatmul.mubr.f32.gmra.mrb[0].mxu0 %v5571
      %v6237 = vpop.f32.mrb[0].mxu0
      %v6238 = vadd.f32 0.0, %v6237
      %v6239 = vpop.f32.mrb[0].mxu0
      %6240 = vmatprep.mubr.f32.mxu0 0.0
      %6241 = vmatmul.mubr.f32.gmra.mrb[0].mxu0 %v5570
      %v6242 = vpop.f32.mrb[0].mxu0
      %v6243 = vadd.f32 0.0, %v6242
      %v6244 = vpop.f32.mrb[0].mxu0
      %6245 = vmatprep.mubr.f32.mxu0 0.0
      %6246 = vmatmul.mubr.f32.gmra.mrb[0].mxu0 %v5569
      %v6247 = vpop.f32.mrb[0].mxu0
      %v6248 = vadd.f32 0.0, %v6247
      %v6249 = vpop.f32.mrb[0].mxu0
      %6250 = vmatprep.mubr.f32.mxu0 0.0
      %6251 = vmatmul.mubr.f32.gmra.mrb[0].mxu0 %v5568
      %v6252 = vpop.f32.mrb[0].mxu0
      %v6253 = vadd.f32 0.0, %v6252
      %v6254 = vpop.f32.mrb[0].mxu0
      %6255 = vmatprep.mubr.f32.mxu0 0.0
      %6256 = vmatmul.mubr.f32.gmra.mrb[0].mxu0 %v5567
      %v6257 = vpop.f32.mrb[0].mxu0
      %v6258 = vadd.f32 0.0, %v6257
      %v6259 = vpop.f32.mrb[0].mxu0
      %6260 = vmatprep.mubr.f32.mxu0 0.0
      %6261 = vmatmul.mubr.f32.gmra.mrb[0].mxu0 %v5566
      %v6262 = vpop.f32.mrb[0].mxu0
      %v6263 = vadd.f32 0.0, %v6262
      %v6264 = vpop.f32.mrb[0].mxu0
      %6265 = vmatprep.mubr.f32.mxu0 0.0
      %6266 = vmatmul.mubr.f32.gmra.mrb[0].mxu0 %v5565
      %v6267 = vpop.f32.mrb[0].mxu0
      %v6268 = vadd.f32 0.0, %v6267
      %v6269 = vpop.f32.mrb[0].mxu0
      %6270 = vmatprep.mubr.f32.mxu0 0.0
      %6271 = vmatmul.mubr.f32.gmra.mrb[0].mxu0 %v5564
      %v6272 = vpop.f32.mrb[0].mxu0
      %v6273 = vadd.f32 0.0, %v6272
      %v6274 = vpop.f32.mrb[0].mxu0
      %6275 = vmatprep.mubr.f32.mxu0 0.0
      %6276 = vmatmul.mubr.f32.gmra.mrb[0].mxu0 %v5563
      %v6277 = vpop.f32.mrb[0].mxu0
      %v6278 = vadd.f32 0.0, %v6277
      %v6279 = vpop.f32.mrb[0].mxu0
      %6280 = vmatprep.mubr.f32.mxu0 0.0
      %6281 = vmatmul.mubr.f32.gmra.mrb[0].mxu0 %v5562
      %v6282 = vpop.f32.mrb[0].mxu0
      %v6283 = vadd.f32 0.0, %v6282
      %v6284 = vpop.f32.mrb[0].mxu0
      %6285 = vmatprep.mubr.f32.mxu0 0.0
      %6286 = vmatmul.mubr.f32.gmra.mrb[0].mxu0 %v5561
      %v6287 = vpop.f32.mrb[0].mxu0
      %v6288 = vadd.f32 0.0, %v6287
      %v6289 = vpop.f32.mrb[0].mxu0
      %6290 = vmatprep.mubr.f32.mxu0 0.0
      %6291 = vmatmul.mubr.f32.gmra.mrb[0].mxu0 %v5560
      %v6292 = vpop.f32.mrb[0].mxu0
      %v6293 = vadd.f32 0.0, %v6292
      %v6294 = vpop.f32.mrb[0].mxu0
      %6295 = vmatprep.mubr.f32.mxu0 0.0
      %6296 = vmatmul.mubr.f32.gmra.mrb[0].mxu0 %v5559
      %v6297 = vpop.f32.mrb[0].mxu0
      %v6298 = vadd.f32 0.0, %v6297
      %v6299 = vpop.f32.mrb[0].mxu0
      %6300 = vmatprep.mubr.f32.mxu0 0.0
      %6301 = vmatmul.mubr.f32.gmra.mrb[0].mxu0 %v5558
      %v6302 = vpop.f32.mrb[0].mxu0
      %v6303 = vadd.f32 0.0, %v6302
      %v6304 = vpop.f32.mrb[0].mxu0
      %6305 = vmatprep.mubr.f32.mxu0 0.0
      %6306 = vmatmul.mubr.f32.gmra.mrb[0].mxu0 %v5557
      %v6307 = vpop.f32.mrb[0].mxu0
      %v6308 = vadd.f32 0.0, %v6307
      %v6309 = vpop.f32.mrb[0].mxu0
      %6310 = vmatprep.mubr.f32.mxu0 0.0
      %6311 = vmatmul.mubr.f32.gmra.mrb[0].mxu0 %v5556
      %v6312 = vpop.f32.mrb[0].mxu0
      %v6313 = vadd.f32 0.0, %v6312
      %v6314 = vpop.f32.mrb[0].mxu0
      %6315 = vmatprep.mubr.f32.mxu0 0.0
      %6316 = vmatmul.mubr.f32.gmra.mrb[0].mxu0 %v5555
      %v6317 = vpop.f32.mrb[0].mxu0
      %v6318 = vadd.f32 0.0, %v6317
      %v6319 = vpop.f32.mrb[0].mxu0
      %6320 = vmatprep.mubr.f32.mxu0 0.0
      %6321 = vmatmul.mubr.f32.gmra.mrb[0].mxu0 %v5554
      %v6322 = vpop.f32.mrb[0].mxu0
      %v6323 = vadd.f32 0.0, %v6322
      %v6324 = vpop.f32.mrb[0].mxu0
      %6325 = vmatprep.mubr.f32.mxu0 0.0
      %6326 = vmatmul.mubr.f32.gmra.mrb[0].mxu0 %v5553
      %v6327 = vpop.f32.mrb[0].mxu0
      %v6328 = vadd.f32 0.0, %v6327
      %v6329 = vpop.f32.mrb[0].mxu0
      %6330 = vmatprep.mubr.f32.mxu0 0.0
      %6331 = vmatmul.mubr.f32.gmra.mrb[0].mxu0 %v5552
      %v6332 = vpop.f32.mrb[0].mxu0
      %v6333 = vadd.f32 0.0, %v6332
      %v6334 = vpop.f32.mrb[0].mxu0
      %6335 = vmatprep.mubr.f32.mxu0 0.0
      %6336 = vmatmul.mubr.f32.gmra.mrb[0].mxu0 %v5551
      %v6337 = vpop.f32.mrb[0].mxu0
      %v6338 = vadd.f32 0.0, %v6337
      %v6339 = vpop.f32.mrb[0].mxu0
      %6340 = vmatprep.mubr.f32.mxu0 0.0
      %6341 = vmatmul.mubr.f32.gmra.mrb[0].mxu0 %v5550
      %v6342 = vpop.f32.mrb[0].mxu0
      %v6343 = vadd.f32 0.0, %v6342
      %v6344 = vpop.f32.mrb[0].mxu0
      %6345 = vmatprep.mubr.f32.mxu0 0.0
      %6346 = vmatmul.mubr.f32.gmra.mrb[0].mxu0 %v5549
      %v6347 = vpop.f32.mrb[0].mxu0
      %v6348 = vadd.f32 0.0, %v6347
      %v6349 = vpop.f32.mrb[0].mxu0
      %6350 = vmatprep.mubr.f32.mxu0 0.0
      %6351 = vmatmul.mubr.f32.gmra.mrb[0].mxu0 %v5548
      %v6352 = vpop.f32.mrb[0].mxu0
      %v6353 = vadd.f32 0.0, %v6352
      %v6354 = vpop.f32.mrb[0].mxu0
      %6355 = vmatprep.mubr.f32.mxu0 0.0
      %6356 = vmatmul.mubr.f32.gmra.mrb[0].mxu0 %v5547
      %v6357 = vpop.f32.mrb[0].mxu0
      %v6358 = vadd.f32 0.0, %v6357
      %v6359 = vpop.f32.mrb[0].mxu0
      %6360 = vmatprep.mubr.f32.mxu0 0.0
      %6361 = vmatmul.mubr.f32.gmra.mrb[0].mxu0 %v5546
      %v6362 = vpop.f32.mrb[0].mxu0
      %v6363 = vadd.f32 0.0, %v6362
      %v6364 = vpop.f32.mrb[0].mxu0
      %6365 = vmatprep.mubr.f32.mxu0 0.0
      %6366 = vmatmul.mubr.f32.gmra.mrb[0].mxu0 %v5545
      %v6367 = vpop.f32.mrb[0].mxu0
      %v6368 = vadd.f32 0.0, %v6367
      %v6369 = vpop.f32.mrb[0].mxu0
      %6370 = vmatprep.mubr.f32.mxu0 0.0
      %6371 = vmatmul.mubr.f32.gmra.mrb[0].mxu0 %v5544
      %v6372 = vpop.f32.mrb[0].mxu0
      %v6373 = vadd.f32 0.0, %v6372
      %v6374 = vpop.f32.mrb[0].mxu0
      %6375 = vmatprep.mubr.f32.mxu0 0.0
      %6376 = vmatmul.mubr.f32.gmra.mrb[0].mxu0 %v5543
      %v6377 = vpop.f32.mrb[0].mxu0
      %v6378 = vadd.f32 0.0, %v6377
      %v6379 = vpop.f32.mrb[0].mxu0
      %6380 = vmatprep.mubr.f32.mxu0 0.0
      %6381 = vmatmul.mubr.f32.gmra.mrb[0].mxu0 %v5542
      %v6382 = vpop.f32.mrb[0].mxu0
      %v6383 = vadd.f32 0.0, %v6382
      %v6384 = vpop.f32.mrb[0].mxu0
      %6385 = vmatprep.mubr.f32.mxu0 0.0
      %6386 = vmatmul.mubr.f32.gmra.mrb[0].mxu0 %v5541
      %v6387 = vpop.f32.mrb[0].mxu0
      %v6388 = vadd.f32 0.0, %v6387
      %v6389 = vpop.f32.mrb[0].mxu0
      %6390 = vdwg.mxu0
      %v6391 = vadd.f32 %v5253, %v5753
      %v6392 = vadd.f32 %v5254, %v5758
      %v6393 = vadd.f32 %v5255, %v5763
      %v6394 = vadd.f32 %v5256, %v5768
      %v6395 = vadd.f32 %v5257, %v5773
      %v6396 = vadd.f32 %v5258, %v5778
      %v6397 = vadd.f32 %v5259, %v5783
      %v6398 = vadd.f32 %v5260, %v5788
      %v6399 = vadd.f32 %v5261, %v5793
      %v6400 = vadd.f32 %v5262, %v5798
      %v6401 = vadd.f32 %v5263, %v5803
      %v6402 = vadd.f32 %v5264, %v5808
      %v6403 = vadd.f32 %v5265, %v5813
      %v6404 = vadd.f32 %v5266, %v5818
      %v6405 = vadd.f32 %v5267, %v5823
      %v6406 = vadd.f32 %v5268, %v5828
      %v6407 = vadd.f32 %v5269, %v5833
      %v6408 = vadd.f32 %v5270, %v5838
      %v6409 = vadd.f32 %v5271, %v5843
      %v6410 = vadd.f32 %v5272, %v5848
      %v6411 = vadd.f32 %v5273, %v5853
      %v6412 = vadd.f32 %v5274, %v5858
      %v6413 = vadd.f32 %v5275, %v5863
      %v6414 = vadd.f32 %v5276, %v5868
      %v6415 = vadd.f32 %v5277, %v5873
      %v6416 = vadd.f32 %v5278, %v5878
      %v6417 = vadd.f32 %v5279, %v5883
      %v6418 = vadd.f32 %v5280, %v5888
      %v6419 = vadd.f32 %v5281, %v5893
      %v6420 = vadd.f32 %v5282, %v5898
      %v6421 = vadd.f32 %v5283, %v5903
      %v6422 = vadd.f32 %v5284, %v5908
      %v6423 = vadd.f32 %v5285, %v5913
      %v6424 = vadd.f32 %v5286, %v5918
      %v6425 = vadd.f32 %v5287, %v5923
      %v6426 = vadd.f32 %v5288, %v5928
      %v6427 = vadd.f32 %v5289, %v5933
      %v6428 = vadd.f32 %v5290, %v5938
      %v6429 = vadd.f32 %v5291, %v5943
      %v6430 = vadd.f32 %v5292, %v5948
      %v6431 = vadd.f32 %v5293, %v5953
      %v6432 = vadd.f32 %v5294, %v5958
      %v6433 = vadd.f32 %v5295, %v5963
      %v6434 = vadd.f32 %v5296, %v5968
      %v6435 = vadd.f32 %v5297, %v5973
      %v6436 = vadd.f32 %v5298, %v5978
      %v6437 = vadd.f32 %v5299, %v5983
      %v6438 = vadd.f32 %v5300, %v5988
      %v6439 = vadd.f32 %v5301, %v5993
      %v6440 = vadd.f32 %v5302, %v5998
      %v6441 = vadd.f32 %v5303, %v6003
      %v6442 = vadd.f32 %v5304, %v6008
      %v6443 = vadd.f32 %v5305, %v6013
      %v6444 = vadd.f32 %v5306, %v6018
      %v6445 = vadd.f32 %v5307, %v6023
      %v6446 = vadd.f32 %v5308, %v6028
      %v6447 = vadd.f32 %v5309, %v6033
      %v6448 = vadd.f32 %v5310, %v6038
      %v6449 = vadd.f32 %v5311, %v6043
      %v6450 = vadd.f32 %v5312, %v6048
      %v6451 = vadd.f32 %v5313, %v6053
      %v6452 = vadd.f32 %v5314, %v6058
      %v6453 = vadd.f32 %v5315, %v6063
      %v6454 = vadd.f32 %v5316, %v6068
      %v6455 = vadd.f32 %v5317, %v6073
      %v6456 = vadd.f32 %v5318, %v6078
      %v6457 = vadd.f32 %v5319, %v6083
      %v6458 = vadd.f32 %v5320, %v6088
      %v6459 = vadd.f32 %v5321, %v6093
      %v6460 = vadd.f32 %v5322, %v6098
      %v6461 = vadd.f32 %v5323, %v6103
      %v6462 = vadd.f32 %v5324, %v6108
      %v6463 = vadd.f32 %v5325, %v6113
      %v6464 = vadd.f32 %v5326, %v6118
      %v6465 = vadd.f32 %v5327, %v6123
      %v6466 = vadd.f32 %v5328, %v6128
      %v6467 = vadd.f32 %v5329, %v6133
      %v6468 = vadd.f32 %v5330, %v6138
      %v6469 = vadd.f32 %v5331, %v6143
      %v6470 = vadd.f32 %v5332, %v6148
      %v6471 = vadd.f32 %v5333, %v6153
      %v6472 = vadd.f32 %v5334, %v6158
      %v6473 = vadd.f32 %v5335, %v6163
      %v6474 = vadd.f32 %v5336, %v6168
      %v6475 = vadd.f32 %v5337, %v6173
      %v6476 = vadd.f32 %v5338, %v6178
      %v6477 = vadd.f32 %v5339, %v6183
      %v6478 = vadd.f32 %v5340, %v6188
      %v6479 = vadd.f32 %v5341, %v6193
      %v6480 = vadd.f32 %v5342, %v6198
      %v6481 = vadd.f32 %v5343, %v6203
      %v6482 = vadd.f32 %v5344, %v6208
      %v6483 = vadd.f32 %v5345, %v6213
      %v6484 = vadd.f32 %v5346, %v6218
      %v6485 = vadd.f32 %v5347, %v6223
      %v6486 = vadd.f32 %v5348, %v6228
      %v6487 = vadd.f32 %v5349, %v6233
      %v6488 = vadd.f32 %v5350, %v6238
      %v6489 = vadd.f32 %v5351, %v6243
      %v6490 = vadd.f32 %v5352, %v6248
      %v6491 = vadd.f32 %v5353, %v6253
      %v6492 = vadd.f32 %v5354, %v6258
      %v6493 = vadd.f32 %v5355, %v6263
      %v6494 = vadd.f32 %v5356, %v6268
      %v6495 = vadd.f32 %v5357, %v6273
      %v6496 = vadd.f32 %v5358, %v6278
      %v6497 = vadd.f32 %v5359, %v6283
      %v6498 = vadd.f32 %v5360, %v6288
      %v6499 = vadd.f32 %v5361, %v6293
      %v6500 = vadd.f32 %v5362, %v6298
      %v6501 = vadd.f32 %v5363, %v6303
      %v6502 = vadd.f32 %v5364, %v6308
      %v6503 = vadd.f32 %v5365, %v6313
      %v6504 = vadd.f32 %v5366, %v6318
      %v6505 = vadd.f32 %v5367, %v6323
      %v6506 = vadd.f32 %v5368, %v6328
      %v6507 = vadd.f32 %v5369, %v6333
      %v6508 = vadd.f32 %v5370, %v6338
      %v6509 = vadd.f32 %v5371, %v6343
      %v6510 = vadd.f32 %v5372, %v6348
      %v6511 = vadd.f32 %v5373, %v6353
      %v6512 = vadd.f32 %v5374, %v6358
      %v6513 = vadd.f32 %v5375, %v6363
      %v6514 = vadd.f32 %v5376, %v6368
      %v6515 = vadd.f32 %v5377, %v6373
      %v6516 = vadd.f32 %v5378, %v6378
      %v6517 = vadd.f32 %v5379, %v6383
      %v6518 = vadd.f32 %v5380, %v6388
      %s6519 = scalar_lea.vmem %s193, 80
      %v6520 = vld [vmem:[%s6519] sm:$0xff]
      %v6521 = vld [vmem:[%s6519 + $0x8] sm:$0xff]
      %v6522 = vld [vmem:[%s6519 + $0x10] sm:$0xff]
      %v6523 = vld [vmem:[%s6519 + $0x18] sm:$0xff]
      %v6524 = vld [vmem:[%s6519 + $0x20] sm:$0xff]
      %v6525 = vld [vmem:[%s6519 + $0x28] sm:$0xff]
      %v6526 = vld [vmem:[%s6519 + $0x30] sm:$0xff]
      %v6527 = vld [vmem:[%s6519 + $0x38] sm:$0xff]
      %v6528 = vld [vmem:[%s6519 + $0x40] sm:$0xff]
      %v6529 = vld [vmem:[%s6519 + $0x48] sm:$0xff]
      %v6530 = vld [vmem:[%s6519 + $0x50] sm:$0xff]
      %v6531 = vld [vmem:[%s6519 + $0x58] sm:$0xff]
      %v6532 = vld [vmem:[%s6519 + $0x60] sm:$0xff]
      %v6533 = vld [vmem:[%s6519 + $0x68] sm:$0xff]
      %v6534 = vld [vmem:[%s6519 + $0x70] sm:$0xff]
      %v6535 = vld [vmem:[%s6519 + $0x78] sm:$0xff]
      %v6536 = vld [vmem:[%s6519 + $0x80] sm:$0xff]
      %v6537 = vld [vmem:[%s6519 + $0x88] sm:$0xff]
      %v6538 = vld [vmem:[%s6519 + $0x90] sm:$0xff]
      %v6539 = vld [vmem:[%s6519 + $0x98] sm:$0xff]
      %v6540 = vld [vmem:[%s6519 + $0xa0] sm:$0xff]
      %v6541 = vld [vmem:[%s6519 + $0xa8] sm:$0xff]
      %v6542 = vld [vmem:[%s6519 + $0xb0] sm:$0xff]
      %v6543 = vld [vmem:[%s6519 + $0xb8] sm:$0xff]
      %v6544 = vld [vmem:[%s6519 + $0xc0] sm:$0xff]
      %v6545 = vld [vmem:[%s6519 + $0xc8] sm:$0xff]
      %v6546 = vld [vmem:[%s6519 + $0xd0] sm:$0xff]
      %v6547 = vld [vmem:[%s6519 + $0xd8] sm:$0xff]
      %v6548 = vld [vmem:[%s6519 + $0xe0] sm:$0xff]
      %v6549 = vld [vmem:[%s6519 + $0xe8] sm:$0xff]
      %v6550 = vld [vmem:[%s6519 + $0xf0] sm:$0xff]
      %v6551 = vld [vmem:[%s6519 + $0xf8] sm:$0xff]
      %v6552 = vld [vmem:[%s6519 + $0x100] sm:$0xff]
      %v6553 = vld [vmem:[%s6519 + $0x108] sm:$0xff]
      %v6554 = vld [vmem:[%s6519 + $0x110] sm:$0xff]
      %v6555 = vld [vmem:[%s6519 + $0x118] sm:$0xff]
      %v6556 = vld [vmem:[%s6519 + $0x120] sm:$0xff]
      %v6557 = vld [vmem:[%s6519 + $0x128] sm:$0xff]
      %v6558 = vld [vmem:[%s6519 + $0x130] sm:$0xff]
      %v6559 = vld [vmem:[%s6519 + $0x138] sm:$0xff]
      %v6560 = vld [vmem:[%s6519 + $0x140] sm:$0xff]
      %v6561 = vld [vmem:[%s6519 + $0x148] sm:$0xff]
      %v6562 = vld [vmem:[%s6519 + $0x150] sm:$0xff]
      %v6563 = vld [vmem:[%s6519 + $0x158] sm:$0xff]
      %v6564 = vld [vmem:[%s6519 + $0x160] sm:$0xff]
      %v6565 = vld [vmem:[%s6519 + $0x168] sm:$0xff]
      %v6566 = vld [vmem:[%s6519 + $0x170] sm:$0xff]
      %v6567 = vld [vmem:[%s6519 + $0x178] sm:$0xff]
      %v6568 = vld [vmem:[%s6519 + $0x180] sm:$0xff]
      %v6569 = vld [vmem:[%s6519 + $0x188] sm:$0xff]
      %v6570 = vld [vmem:[%s6519 + $0x190] sm:$0xff]
      %v6571 = vld [vmem:[%s6519 + $0x198] sm:$0xff]
      %v6572 = vld [vmem:[%s6519 + $0x1a0] sm:$0xff]
      %v6573 = vld [vmem:[%s6519 + $0x1a8] sm:$0xff]
      %v6574 = vld [vmem:[%s6519 + $0x1b0] sm:$0xff]
      %v6575 = vld [vmem:[%s6519 + $0x1b8] sm:$0xff]
      %v6576 = vld [vmem:[%s6519 + $0x1c0] sm:$0xff]
      %v6577 = vld [vmem:[%s6519 + $0x1c8] sm:$0xff]
      %v6578 = vld [vmem:[%s6519 + $0x1d0] sm:$0xff]
      %v6579 = vld [vmem:[%s6519 + $0x1d8] sm:$0xff]
      %v6580 = vld [vmem:[%s6519 + $0x1e0] sm:$0xff]
      %v6581 = vld [vmem:[%s6519 + $0x1e8] sm:$0xff]
      %v6582 = vld [vmem:[%s6519 + $0x1f0] sm:$0xff]
      %v6583 = vld [vmem:[%s6519 + $0x1f8] sm:$0xff]
      %v6584 = vld [vmem:[%s6519 + $0x200] sm:$0xff]
      %v6585 = vld [vmem:[%s6519 + $0x208] sm:$0xff]
      %v6586 = vld [vmem:[%s6519 + $0x210] sm:$0xff]
      %v6587 = vld [vmem:[%s6519 + $0x218] sm:$0xff]
      %v6588 = vld [vmem:[%s6519 + $0x220] sm:$0xff]
      %v6589 = vld [vmem:[%s6519 + $0x228] sm:$0xff]
      %v6590 = vld [vmem:[%s6519 + $0x230] sm:$0xff]
      %v6591 = vld [vmem:[%s6519 + $0x238] sm:$0xff]
      %v6592 = vld [vmem:[%s6519 + $0x240] sm:$0xff]
      %v6593 = vld [vmem:[%s6519 + $0x248] sm:$0xff]
      %v6594 = vld [vmem:[%s6519 + $0x250] sm:$0xff]
      %v6595 = vld [vmem:[%s6519 + $0x258] sm:$0xff]
      %v6596 = vld [vmem:[%s6519 + $0x260] sm:$0xff]
      %v6597 = vld [vmem:[%s6519 + $0x268] sm:$0xff]
      %v6598 = vld [vmem:[%s6519 + $0x270] sm:$0xff]
      %v6599 = vld [vmem:[%s6519 + $0x278] sm:$0xff]
      %v6600 = vld [vmem:[%s6519 + $0x280] sm:$0xff]
      %v6601 = vld [vmem:[%s6519 + $0x288] sm:$0xff]
      %v6602 = vld [vmem:[%s6519 + $0x290] sm:$0xff]
      %v6603 = vld [vmem:[%s6519 + $0x298] sm:$0xff]
      %v6604 = vld [vmem:[%s6519 + $0x2a0] sm:$0xff]
      %v6605 = vld [vmem:[%s6519 + $0x2a8] sm:$0xff]
      %v6606 = vld [vmem:[%s6519 + $0x2b0] sm:$0xff]
      %v6607 = vld [vmem:[%s6519 + $0x2b8] sm:$0xff]
      %v6608 = vld [vmem:[%s6519 + $0x2c0] sm:$0xff]
      %v6609 = vld [vmem:[%s6519 + $0x2c8] sm:$0xff]
      %v6610 = vld [vmem:[%s6519 + $0x2d0] sm:$0xff]
      %v6611 = vld [vmem:[%s6519 + $0x2d8] sm:$0xff]
      %v6612 = vld [vmem:[%s6519 + $0x2e0] sm:$0xff]
      %v6613 = vld [vmem:[%s6519 + $0x2e8] sm:$0xff]
      %v6614 = vld [vmem:[%s6519 + $0x2f0] sm:$0xff]
      %v6615 = vld [vmem:[%s6519 + $0x2f8] sm:$0xff]
      %v6616 = vld [vmem:[%s6519 + $0x300] sm:$0xff]
      %v6617 = vld [vmem:[%s6519 + $0x308] sm:$0xff]
      %v6618 = vld [vmem:[%s6519 + $0x310] sm:$0xff]
      %v6619 = vld [vmem:[%s6519 + $0x318] sm:$0xff]
      %v6620 = vld [vmem:[%s6519 + $0x320] sm:$0xff]
      %v6621 = vld [vmem:[%s6519 + $0x328] sm:$0xff]
      %v6622 = vld [vmem:[%s6519 + $0x330] sm:$0xff]
      %v6623 = vld [vmem:[%s6519 + $0x338] sm:$0xff]
      %v6624 = vld [vmem:[%s6519 + $0x340] sm:$0xff]
      %v6625 = vld [vmem:[%s6519 + $0x348] sm:$0xff]
      %v6626 = vld [vmem:[%s6519 + $0x350] sm:$0xff]
      %v6627 = vld [vmem:[%s6519 + $0x358] sm:$0xff]
      %v6628 = vld [vmem:[%s6519 + $0x360] sm:$0xff]
      %v6629 = vld [vmem:[%s6519 + $0x368] sm:$0xff]
      %v6630 = vld [vmem:[%s6519 + $0x370] sm:$0xff]
      %v6631 = vld [vmem:[%s6519 + $0x378] sm:$0xff]
      %v6632 = vld [vmem:[%s6519 + $0x380] sm:$0xff]
      %v6633 = vld [vmem:[%s6519 + $0x388] sm:$0xff]
      %v6634 = vld [vmem:[%s6519 + $0x390] sm:$0xff]
      %v6635 = vld [vmem:[%s6519 + $0x398] sm:$0xff]
      %v6636 = vld [vmem:[%s6519 + $0x3a0] sm:$0xff]
      %v6637 = vld [vmem:[%s6519 + $0x3a8] sm:$0xff]
      %v6638 = vld [vmem:[%s6519 + $0x3b0] sm:$0xff]
      %v6639 = vld [vmem:[%s6519 + $0x3b8] sm:$0xff]
      %v6640 = vld [vmem:[%s6519 + $0x3c0] sm:$0xff]
      %v6641 = vld [vmem:[%s6519 + $0x3c8] sm:$0xff]
      %v6642 = vld [vmem:[%s6519 + $0x3d0] sm:$0xff]
      %v6643 = vld [vmem:[%s6519 + $0x3d8] sm:$0xff]
      %v6644 = vld [vmem:[%s6519 + $0x3e0] sm:$0xff]
      %v6645 = vld [vmem:[%s6519 + $0x3e8] sm:$0xff]
      %v6646 = vld [vmem:[%s6519 + $0x3f0] sm:$0xff]
      %v6647 = vld [vmem:[%s6519 + $0x3f8] sm:$0xff]
      %v6648 = vld [vmem:[%s6519 + $0x400] sm:$0xff]
      %v6649 = vld [vmem:[%s6519 + $0x408] sm:$0xff]
      %v6650 = vld [vmem:[%s6519 + $0x410] sm:$0xff]
      %v6651 = vld [vmem:[%s6519 + $0x418] sm:$0xff]
      %v6652 = vld [vmem:[%s6519 + $0x420] sm:$0xff]
      %v6653 = vld [vmem:[%s6519 + $0x428] sm:$0xff]
      %v6654 = vld [vmem:[%s6519 + $0x430] sm:$0xff]
      %v6655 = vld [vmem:[%s6519 + $0x438] sm:$0xff]
      %v6656 = vld [vmem:[%s6519 + $0x440] sm:$0xff]
      %v6657 = vld [vmem:[%s6519 + $0x448] sm:$0xff]
      %v6658 = vld [vmem:[%s6519 + $0x450] sm:$0xff]
      %v6659 = vld [vmem:[%s6519 + $0x458] sm:$0xff]
      %v6660 = vld [vmem:[%s6519 + $0x460] sm:$0xff]
      %v6661 = vld [vmem:[%s6519 + $0x468] sm:$0xff]
      %v6662 = vld [vmem:[%s6519 + $0x470] sm:$0xff]
      %v6663 = vld [vmem:[%s6519 + $0x478] sm:$0xff]
      %v6664 = vld [vmem:[%s6519 + $0x480] sm:$0xff]
      %v6665 = vld [vmem:[%s6519 + $0x488] sm:$0xff]
      %v6666 = vld [vmem:[%s6519 + $0x490] sm:$0xff]
      %v6667 = vld [vmem:[%s6519 + $0x498] sm:$0xff]
      %v6668 = vld [vmem:[%s6519 + $0x4a0] sm:$0xff]
      %v6669 = vld [vmem:[%s6519 + $0x4a8] sm:$0xff]
      %v6670 = vld [vmem:[%s6519 + $0x4b0] sm:$0xff]
      %v6671 = vld [vmem:[%s6519 + $0x4b8] sm:$0xff]
      %v6672 = vld [vmem:[%s6519 + $0x4c0] sm:$0xff]
      %v6673 = vld [vmem:[%s6519 + $0x4c8] sm:$0xff]
      %v6674 = vld [vmem:[%s6519 + $0x4d0] sm:$0xff]
      %v6675 = vld [vmem:[%s6519 + $0x4d8] sm:$0xff]
      %v6676 = vld [vmem:[%s6519 + $0x4e0] sm:$0xff]
      %v6677 = vld [vmem:[%s6519 + $0x4e8] sm:$0xff]
      %v6678 = vld [vmem:[%s6519 + $0x4f0] sm:$0xff]
      %v6679 = vld [vmem:[%s6519 + $0x4f8] sm:$0xff]
      %s6680 = scalar_lea.vmem %s1, 768
      %v6681 = vld [vmem:[%s6680] sm:$0xff]
      %v6682 = vld [vmem:[%s6680 + $0x8] sm:$0xff]
      %v6683 = vld [vmem:[%s6680 + $0x10] sm:$0xff]
      %v6684 = vld [vmem:[%s6680 + $0x18] sm:$0xff]
      %v6685 = vld [vmem:[%s6680 + $0x20] sm:$0xff]
      %v6686 = vld [vmem:[%s6680 + $0x28] sm:$0xff]
      %v6687 = vld [vmem:[%s6680 + $0x30] sm:$0xff]
      %v6688 = vld [vmem:[%s6680 + $0x38] sm:$0xff]
      %v6689 = vld [vmem:[%s6680 + $0x40] sm:$0xff]
      %v6690 = vld [vmem:[%s6680 + $0x48] sm:$0xff]
      %v6691 = vld [vmem:[%s6680 + $0x50] sm:$0xff]
      %v6692 = vld [vmem:[%s6680 + $0x58] sm:$0xff]
      %v6693 = vld [vmem:[%s6680 + $0x60] sm:$0xff]
      %v6694 = vld [vmem:[%s6680 + $0x68] sm:$0xff]
      %v6695 = vld [vmem:[%s6680 + $0x70] sm:$0xff]
      %v6696 = vld [vmem:[%s6680 + $0x78] sm:$0xff]
      %6697 = vmatprep.subr.mxu0 0.0
      %6698 = vmatpush1.msra.mxu0 %v6681
      %6699 = vmatprep.subr.mxu0 0.0
      %6700 = vmatpush1.msra.mxu0 %v6682
      %6701 = vmatprep.subr.mxu0 0.0
      %6702 = vmatpush1.msra.mxu0 %v6683
      %6703 = vmatprep.subr.mxu0 0.0
      %6704 = vmatpush1.msra.mxu0 %v6684
      %6705 = vmatprep.subr.mxu0 0.0
      %6706 = vmatpush1.msra.mxu0 %v6685
      %6707 = vmatprep.subr.mxu0 0.0
      %6708 = vmatpush1.msra.mxu0 %v6686
      %6709 = vmatprep.subr.mxu0 0.0
      %6710 = vmatpush1.msra.mxu0 %v6687
      %6711 = vmatprep.subr.mxu0 0.0
      %6712 = vmatpush1.msra.mxu0 %v6688
      %6713 = vmatprep.subr.mxu0 0.0
      %6714 = vmatpush1.msra.mxu0 %v6689
      %6715 = vmatprep.subr.mxu0 0.0
      %6716 = vmatpush1.msra.mxu0 %v6690
      %6717 = vmatprep.subr.mxu0 0.0
      %6718 = vmatpush1.msra.mxu0 %v6691
      %6719 = vmatprep.subr.mxu0 0.0
      %6720 = vmatpush1.msra.mxu0 %v6692
      %6721 = vmatprep.subr.mxu0 0.0
      %6722 = vmatpush1.msra.mxu0 %v6693
      %6723 = vmatprep.subr.mxu0 0.0
      %6724 = vmatpush1.msra.mxu0 %v6694
      %6725 = vmatprep.subr.mxu0 0.0
      %6726 = vmatpush1.msra.mxu0 %v6695
      %6727 = vmatprep.subr.mxu0 0.0
      %6728 = vmatpush1.msra.mxu0 %v6696
      %6729 = vmatprep.subr.mxu0 0.0
      %6730 = vmatpush1.msra.mxu0 0.0
      %6731 = vmatprep.subr.mxu0 0.0
      %6732 = vmatpush1.msra.mxu0 0.0
      %6733 = vmatprep.subr.mxu0 0.0
      %6734 = vmatpush1.msra.mxu0 0.0
      %6735 = vmatprep.subr.mxu0 0.0
      %6736 = vmatpush1.msra.mxu0 0.0
      %6737 = vmatprep.subr.mxu0 0.0
      %6738 = vmatpush1.msra.mxu0 0.0
      %6739 = vmatprep.subr.mxu0 0.0
      %6740 = vmatpush1.msra.mxu0 0.0
      %6741 = vmatprep.subr.mxu0 0.0
      %6742 = vmatpush1.msra.mxu0 0.0
      %6743 = vmatprep.subr.mxu0 0.0
      %6744 = vmatpush1.msra.mxu0 0.0
      %6745 = vmatprep.subr.mxu0 0.0
      %6746 = vmatpush1.msra.mxu0 0.0
      %6747 = vmatprep.subr.mxu0 0.0
      %6748 = vmatpush1.msra.mxu0 0.0
      %6749 = vmatprep.subr.mxu0 0.0
      %6750 = vmatpush1.msra.mxu0 0.0
      %6751 = vmatprep.subr.mxu0 0.0
      %6752 = vmatpush1.msra.mxu0 0.0
      %6753 = vmatprep.subr.mxu0 0.0
      %6754 = vmatpush1.msra.mxu0 0.0
      %6755 = vmatprep.subr.mxu0 0.0
      %6756 = vmatpush1.msra.mxu0 0.0
      %6757 = vmatprep.subr.mxu0 0.0
      %6758 = vmatpush1.msra.mxu0 0.0
      %6759 = vmatprep.subr.mxu0 0.0
      %6760 = vmatpush1.msra.mxu0 0.0
      %6761 = vmatprep.mubr.f32.mxu0 0.0
      %6762 = vmatmul.mubr.f32.gmra.mrb[0].mxu0 %v6520
      %v6763 = vpop.f32.mrb[0].mxu0
      %v6764 = vadd.f32 0.0, %v6763
      %v6765 = vpop.f32.mrb[0].mxu0
      %6766 = vmatprep.mubr.f32.mxu0 0.0
      %6767 = vmatmul.mubr.f32.gmra.mrb[0].mxu0 %v6521
      %v6768 = vpop.f32.mrb[0].mxu0
      %v6769 = vadd.f32 0.0, %v6768
      %v6770 = vpop.f32.mrb[0].mxu0
      %6771 = vmatprep.mubr.f32.mxu0 0.0
      %6772 = vmatmul.mubr.f32.gmra.mrb[0].mxu0 %v6522
      %v6773 = vpop.f32.mrb[0].mxu0
      %v6774 = vadd.f32 0.0, %v6773
      %v6775 = vpop.f32.mrb[0].mxu0
      %6776 = vmatprep.mubr.f32.mxu0 0.0
      %6777 = vmatmul.mubr.f32.gmra.mrb[0].mxu0 %v6523
      %v6778 = vpop.f32.mrb[0].mxu0
      %v6779 = vadd.f32 0.0, %v6778
      %v6780 = vpop.f32.mrb[0].mxu0
      %6781 = vmatprep.mubr.f32.mxu0 0.0
      %6782 = vmatmul.mubr.f32.gmra.mrb[0].mxu0 %v6525
      %v6783 = vpop.f32.mrb[0].mxu0
      %v6784 = vadd.f32 0.0, %v6783
      %v6785 = vpop.f32.mrb[0].mxu0
      %6786 = vmatprep.mubr.f32.mxu0 0.0
      %6787 = vmatmul.mubr.f32.gmra.mrb[0].mxu0 %v6526
      %v6788 = vpop.f32.mrb[0].mxu0
      %v6789 = vadd.f32 0.0, %v6788
      %v6790 = vpop.f32.mrb[0].mxu0
      %6791 = vmatprep.mubr.f32.mxu0 0.0
      %6792 = vmatmul.mubr.f32.gmra.mrb[0].mxu0 %v6527
      %v6793 = vpop.f32.mrb[0].mxu0
      %v6794 = vadd.f32 0.0, %v6793
      %v6795 = vpop.f32.mrb[0].mxu0
      %6796 = vmatprep.mubr.f32.mxu0 0.0
      %6797 = vmatmul.mubr.f32.gmra.mrb[0].mxu0 %v6528
      %v6798 = vpop.f32.mrb[0].mxu0
      %v6799 = vadd.f32 0.0, %v6798
      %v6800 = vpop.f32.mrb[0].mxu0
      %6801 = vmatprep.mubr.f32.mxu0 0.0
      %6802 = vmatmul.mubr.f32.gmra.mrb[0].mxu0 %v6530
      %v6803 = vpop.f32.mrb[0].mxu0
      %v6804 = vadd.f32 0.0, %v6803
      %v6805 = vpop.f32.mrb[0].mxu0
      %6806 = vmatprep.mubr.f32.mxu0 0.0
      %6807 = vmatmul.mubr.f32.gmra.mrb[0].mxu0 %v6531
      %v6808 = vpop.f32.mrb[0].mxu0
      %v6809 = vadd.f32 0.0, %v6808
      %v6810 = vpop.f32.mrb[0].mxu0
      %6811 = vmatprep.mubr.f32.mxu0 0.0
      %6812 = vmatmul.mubr.f32.gmra.mrb[0].mxu0 %v6532
      %v6813 = vpop.f32.mrb[0].mxu0
      %v6814 = vadd.f32 0.0, %v6813
      %v6815 = vpop.f32.mrb[0].mxu0
      %6816 = vmatprep.mubr.f32.mxu0 0.0
      %6817 = vmatmul.mubr.f32.gmra.mrb[0].mxu0 %v6533
      %v6818 = vpop.f32.mrb[0].mxu0
      %v6819 = vadd.f32 0.0, %v6818
      %v6820 = vpop.f32.mrb[0].mxu0
      %6821 = vmatprep.mubr.f32.mxu0 0.0
      %6822 = vmatmul.mubr.f32.gmra.mrb[0].mxu0 %v6535
      %v6823 = vpop.f32.mrb[0].mxu0
      %v6824 = vadd.f32 0.0, %v6823
      %v6825 = vpop.f32.mrb[0].mxu0
      %6826 = vmatprep.mubr.f32.mxu0 0.0
      %6827 = vmatmul.mubr.f32.gmra.mrb[0].mxu0 %v6536
      %v6828 = vpop.f32.mrb[0].mxu0
      %v6829 = vadd.f32 0.0, %v6828
      %v6830 = vpop.f32.mrb[0].mxu0
      %6831 = vmatprep.mubr.f32.mxu0 0.0
      %6832 = vmatmul.mubr.f32.gmra.mrb[0].mxu0 %v6537
      %v6833 = vpop.f32.mrb[0].mxu0
      %v6834 = vadd.f32 0.0, %v6833
      %v6835 = vpop.f32.mrb[0].mxu0
      %6836 = vmatprep.mubr.f32.mxu0 0.0
      %6837 = vmatmul.mubr.f32.gmra.mrb[0].mxu0 %v6538
      %v6838 = vpop.f32.mrb[0].mxu0
      %v6839 = vadd.f32 0.0, %v6838
      %v6840 = vpop.f32.mrb[0].mxu0
      %6841 = vmatprep.mubr.f32.mxu0 0.0
      %6842 = vmatmul.mubr.f32.gmra.mrb[0].mxu0 %v6540
      %v6843 = vpop.f32.mrb[0].mxu0
      %v6844 = vadd.f32 0.0, %v6843
      %v6845 = vpop.f32.mrb[0].mxu0
      %6846 = vmatprep.mubr.f32.mxu0 0.0
      %6847 = vmatmul.mubr.f32.gmra.mrb[0].mxu0 %v6541
      %v6848 = vpop.f32.mrb[0].mxu0
      %v6849 = vadd.f32 0.0, %v6848
      %v6850 = vpop.f32.mrb[0].mxu0
      %6851 = vmatprep.mubr.f32.mxu0 0.0
      %6852 = vmatmul.mubr.f32.gmra.mrb[0].mxu0 %v6542
      %v6853 = vpop.f32.mrb[0].mxu0
      %v6854 = vadd.f32 0.0, %v6853
      %v6855 = vpop.f32.mrb[0].mxu0
      %6856 = vmatprep.mubr.f32.mxu0 0.0
      %6857 = vmatmul.mubr.f32.gmra.mrb[0].mxu0 %v6543
      %v6858 = vpop.f32.mrb[0].mxu0
      %v6859 = vadd.f32 0.0, %v6858
      %v6860 = vpop.f32.mrb[0].mxu0
      %6861 = vmatprep.mubr.f32.mxu0 0.0
      %6862 = vmatmul.mubr.f32.gmra.mrb[0].mxu0 %v6545
      %v6863 = vpop.f32.mrb[0].mxu0
      %v6864 = vadd.f32 0.0, %v6863
      %v6865 = vpop.f32.mrb[0].mxu0
      %6866 = vmatprep.mubr.f32.mxu0 0.0
      %6867 = vmatmul.mubr.f32.gmra.mrb[0].mxu0 %v6546
      %v6868 = vpop.f32.mrb[0].mxu0
      %v6869 = vadd.f32 0.0, %v6868
      %v6870 = vpop.f32.mrb[0].mxu0
      %6871 = vmatprep.mubr.f32.mxu0 0.0
      %6872 = vmatmul.mubr.f32.gmra.mrb[0].mxu0 %v6547
      %v6873 = vpop.f32.mrb[0].mxu0
      %v6874 = vadd.f32 0.0, %v6873
      %v6875 = vpop.f32.mrb[0].mxu0
      %6876 = vmatprep.mubr.f32.mxu0 0.0
      %6877 = vmatmul.mubr.f32.gmra.mrb[0].mxu0 %v6548
      %v6878 = vpop.f32.mrb[0].mxu0
      %v6879 = vadd.f32 0.0, %v6878
      %v6880 = vpop.f32.mrb[0].mxu0
      %6881 = vmatprep.mubr.f32.mxu0 0.0
      %6882 = vmatmul.mubr.f32.gmra.mrb[0].mxu0 %v6550
      %v6883 = vpop.f32.mrb[0].mxu0
      %v6884 = vadd.f32 0.0, %v6883
      %v6885 = vpop.f32.mrb[0].mxu0
      %6886 = vmatprep.mubr.f32.mxu0 0.0
      %6887 = vmatmul.mubr.f32.gmra.mrb[0].mxu0 %v6551
      %v6888 = vpop.f32.mrb[0].mxu0
      %v6889 = vadd.f32 0.0, %v6888
      %v6890 = vpop.f32.mrb[0].mxu0
      %6891 = vmatprep.mubr.f32.mxu0 0.0
      %6892 = vmatmul.mubr.f32.gmra.mrb[0].mxu0 %v6552
      %v6893 = vpop.f32.mrb[0].mxu0
      %v6894 = vadd.f32 0.0, %v6893
      %v6895 = vpop.f32.mrb[0].mxu0
      %6896 = vmatprep.mubr.f32.mxu0 0.0
      %6897 = vmatmul.mubr.f32.gmra.mrb[0].mxu0 %v6553
      %v6898 = vpop.f32.mrb[0].mxu0
      %v6899 = vadd.f32 0.0, %v6898
      %v6900 = vpop.f32.mrb[0].mxu0
      %6901 = vmatprep.mubr.f32.mxu0 0.0
      %6902 = vmatmul.mubr.f32.gmra.mrb[0].mxu0 %v6555
      %v6903 = vpop.f32.mrb[0].mxu0
      %v6904 = vadd.f32 0.0, %v6903
      %v6905 = vpop.f32.mrb[0].mxu0
      %6906 = vmatprep.mubr.f32.mxu0 0.0
      %6907 = vmatmul.mubr.f32.gmra.mrb[0].mxu0 %v6556
      %v6908 = vpop.f32.mrb[0].mxu0
      %v6909 = vadd.f32 0.0, %v6908
      %v6910 = vpop.f32.mrb[0].mxu0
      %6911 = vmatprep.mubr.f32.mxu0 0.0
      %6912 = vmatmul.mubr.f32.gmra.mrb[0].mxu0 %v6557
      %v6913 = vpop.f32.mrb[0].mxu0
      %v6914 = vadd.f32 0.0, %v6913
      %v6915 = vpop.f32.mrb[0].mxu0
      %6916 = vmatprep.mubr.f32.mxu0 0.0
      %6917 = vmatmul.mubr.f32.gmra.mrb[0].mxu0 %v6558
      %v6918 = vpop.f32.mrb[0].mxu0
      %v6919 = vadd.f32 0.0, %v6918
      %v6920 = vpop.f32.mrb[0].mxu0
      %6921 = vmatprep.mubr.f32.mxu0 0.0
      %6922 = vmatmul.mubr.f32.gmra.mrb[0].mxu0 %v6560
      %v6923 = vpop.f32.mrb[0].mxu0
      %v6924 = vadd.f32 0.0, %v6923
      %v6925 = vpop.f32.mrb[0].mxu0
      %6926 = vmatprep.mubr.f32.mxu0 0.0
      %6927 = vmatmul.mubr.f32.gmra.mrb[0].mxu0 %v6561
      %v6928 = vpop.f32.mrb[0].mxu0
      %v6929 = vadd.f32 0.0, %v6928
      %v6930 = vpop.f32.mrb[0].mxu0
      %6931 = vmatprep.mubr.f32.mxu0 0.0
      %6932 = vmatmul.mubr.f32.gmra.mrb[0].mxu0 %v6562
      %v6933 = vpop.f32.mrb[0].mxu0
      %v6934 = vadd.f32 0.0, %v6933
      %v6935 = vpop.f32.mrb[0].mxu0
      %6936 = vmatprep.mubr.f32.mxu0 0.0
      %6937 = vmatmul.mubr.f32.gmra.mrb[0].mxu0 %v6563
      %v6938 = vpop.f32.mrb[0].mxu0
      %v6939 = vadd.f32 0.0, %v6938
      %v6940 = vpop.f32.mrb[0].mxu0
      %6941 = vmatprep.mubr.f32.mxu0 0.0
      %6942 = vmatmul.mubr.f32.gmra.mrb[0].mxu0 %v6565
      %v6943 = vpop.f32.mrb[0].mxu0
      %v6944 = vadd.f32 0.0, %v6943
      %v6945 = vpop.f32.mrb[0].mxu0
      %6946 = vmatprep.mubr.f32.mxu0 0.0
      %6947 = vmatmul.mubr.f32.gmra.mrb[0].mxu0 %v6566
      %v6948 = vpop.f32.mrb[0].mxu0
      %v6949 = vadd.f32 0.0, %v6948
      %v6950 = vpop.f32.mrb[0].mxu0
      %6951 = vmatprep.mubr.f32.mxu0 0.0
      %6952 = vmatmul.mubr.f32.gmra.mrb[0].mxu0 %v6567
      %v6953 = vpop.f32.mrb[0].mxu0
      %v6954 = vadd.f32 0.0, %v6953
      %v6955 = vpop.f32.mrb[0].mxu0
      %6956 = vmatprep.mubr.f32.mxu0 0.0
      %6957 = vmatmul.mubr.f32.gmra.mrb[0].mxu0 %v6568
      %v6958 = vpop.f32.mrb[0].mxu0
      %v6959 = vadd.f32 0.0, %v6958
      %v6960 = vpop.f32.mrb[0].mxu0
      %6961 = vmatprep.mubr.f32.mxu0 0.0
      %6962 = vmatmul.mubr.f32.gmra.mrb[0].mxu0 %v6570
      %v6963 = vpop.f32.mrb[0].mxu0
      %v6964 = vadd.f32 0.0, %v6963
      %v6965 = vpop.f32.mrb[0].mxu0
      %6966 = vmatprep.mubr.f32.mxu0 0.0
      %6967 = vmatmul.mubr.f32.gmra.mrb[0].mxu0 %v6571
      %v6968 = vpop.f32.mrb[0].mxu0
      %v6969 = vadd.f32 0.0, %v6968
      %v6970 = vpop.f32.mrb[0].mxu0
      %6971 = vmatprep.mubr.f32.mxu0 0.0
      %6972 = vmatmul.mubr.f32.gmra.mrb[0].mxu0 %v6572
      %v6973 = vpop.f32.mrb[0].mxu0
      %v6974 = vadd.f32 0.0, %v6973
      %v6975 = vpop.f32.mrb[0].mxu0
      %6976 = vmatprep.mubr.f32.mxu0 0.0
      %6977 = vmatmul.mubr.f32.gmra.mrb[0].mxu0 %v6573
      %v6978 = vpop.f32.mrb[0].mxu0
      %v6979 = vadd.f32 0.0, %v6978
      %v6980 = vpop.f32.mrb[0].mxu0
      %6981 = vmatprep.mubr.f32.mxu0 0.0
      %6982 = vmatmul.mubr.f32.gmra.mrb[0].mxu0 %v6575
      %v6983 = vpop.f32.mrb[0].mxu0
      %v6984 = vadd.f32 0.0, %v6983
      %v6985 = vpop.f32.mrb[0].mxu0
      %6986 = vmatprep.mubr.f32.mxu0 0.0
      %6987 = vmatmul.mubr.f32.gmra.mrb[0].mxu0 %v6576
      %v6988 = vpop.f32.mrb[0].mxu0
      %v6989 = vadd.f32 0.0, %v6988
      %v6990 = vpop.f32.mrb[0].mxu0
      %6991 = vmatprep.mubr.f32.mxu0 0.0
      %6992 = vmatmul.mubr.f32.gmra.mrb[0].mxu0 %v6577
      %v6993 = vpop.f32.mrb[0].mxu0
      %v6994 = vadd.f32 0.0, %v6993
      %v6995 = vpop.f32.mrb[0].mxu0
      %6996 = vmatprep.mubr.f32.mxu0 0.0
      %6997 = vmatmul.mubr.f32.gmra.mrb[0].mxu0 %v6578
      %v6998 = vpop.f32.mrb[0].mxu0
      %v6999 = vadd.f32 0.0, %v6998
      %v7000 = vpop.f32.mrb[0].mxu0
      %7001 = vmatprep.mubr.f32.mxu0 0.0
      %7002 = vmatmul.mubr.f32.gmra.mrb[0].mxu0 %v6580
      %v7003 = vpop.f32.mrb[0].mxu0
      %v7004 = vadd.f32 0.0, %v7003
      %v7005 = vpop.f32.mrb[0].mxu0
      %7006 = vmatprep.mubr.f32.mxu0 0.0
      %7007 = vmatmul.mubr.f32.gmra.mrb[0].mxu0 %v6581
      %v7008 = vpop.f32.mrb[0].mxu0
      %v7009 = vadd.f32 0.0, %v7008
      %v7010 = vpop.f32.mrb[0].mxu0
      %7011 = vmatprep.mubr.f32.mxu0 0.0
      %7012 = vmatmul.mubr.f32.gmra.mrb[0].mxu0 %v6582
      %v7013 = vpop.f32.mrb[0].mxu0
      %v7014 = vadd.f32 0.0, %v7013
      %v7015 = vpop.f32.mrb[0].mxu0
      %7016 = vmatprep.mubr.f32.mxu0 0.0
      %7017 = vmatmul.mubr.f32.gmra.mrb[0].mxu0 %v6583
      %v7018 = vpop.f32.mrb[0].mxu0
      %v7019 = vadd.f32 0.0, %v7018
      %v7020 = vpop.f32.mrb[0].mxu0
      %7021 = vmatprep.mubr.f32.mxu0 0.0
      %7022 = vmatmul.mubr.f32.gmra.mrb[0].mxu0 %v6585
      %v7023 = vpop.f32.mrb[0].mxu0
      %v7024 = vadd.f32 0.0, %v7023
      %v7025 = vpop.f32.mrb[0].mxu0
      %7026 = vmatprep.mubr.f32.mxu0 0.0
      %7027 = vmatmul.mubr.f32.gmra.mrb[0].mxu0 %v6586
      %v7028 = vpop.f32.mrb[0].mxu0
      %v7029 = vadd.f32 0.0, %v7028
      %v7030 = vpop.f32.mrb[0].mxu0
      %7031 = vmatprep.mubr.f32.mxu0 0.0
      %7032 = vmatmul.mubr.f32.gmra.mrb[0].mxu0 %v6587
      %v7033 = vpop.f32.mrb[0].mxu0
      %v7034 = vadd.f32 0.0, %v7033
      %v7035 = vpop.f32.mrb[0].mxu0
      %7036 = vmatprep.mubr.f32.mxu0 0.0
      %7037 = vmatmul.mubr.f32.gmra.mrb[0].mxu0 %v6588
      %v7038 = vpop.f32.mrb[0].mxu0
      %v7039 = vadd.f32 0.0, %v7038
      %v7040 = vpop.f32.mrb[0].mxu0
      %7041 = vmatprep.mubr.f32.mxu0 0.0
      %7042 = vmatmul.mubr.f32.gmra.mrb[0].mxu0 %v6590
      %v7043 = vpop.f32.mrb[0].mxu0
      %v7044 = vadd.f32 0.0, %v7043
      %v7045 = vpop.f32.mrb[0].mxu0
      %7046 = vmatprep.mubr.f32.mxu0 0.0
      %7047 = vmatmul.mubr.f32.gmra.mrb[0].mxu0 %v6591
      %v7048 = vpop.f32.mrb[0].mxu0
      %v7049 = vadd.f32 0.0, %v7048
      %v7050 = vpop.f32.mrb[0].mxu0
      %7051 = vmatprep.mubr.f32.mxu0 0.0
      %7052 = vmatmul.mubr.f32.gmra.mrb[0].mxu0 %v6592
      %v7053 = vpop.f32.mrb[0].mxu0
      %v7054 = vadd.f32 0.0, %v7053
      %v7055 = vpop.f32.mrb[0].mxu0
      %7056 = vmatprep.mubr.f32.mxu0 0.0
      %7057 = vmatmul.mubr.f32.gmra.mrb[0].mxu0 %v6593
      %v7058 = vpop.f32.mrb[0].mxu0
      %v7059 = vadd.f32 0.0, %v7058
      %v7060 = vpop.f32.mrb[0].mxu0
      %7061 = vmatprep.mubr.f32.mxu0 0.0
      %7062 = vmatmul.mubr.f32.gmra.mrb[0].mxu0 %v6595
      %v7063 = vpop.f32.mrb[0].mxu0
      %v7064 = vadd.f32 0.0, %v7063
      %v7065 = vpop.f32.mrb[0].mxu0
      %7066 = vmatprep.mubr.f32.mxu0 0.0
      %7067 = vmatmul.mubr.f32.gmra.mrb[0].mxu0 %v6596
      %v7068 = vpop.f32.mrb[0].mxu0
      %v7069 = vadd.f32 0.0, %v7068
      %v7070 = vpop.f32.mrb[0].mxu0
      %7071 = vmatprep.mubr.f32.mxu0 0.0
      %7072 = vmatmul.mubr.f32.gmra.mrb[0].mxu0 %v6597
      %v7073 = vpop.f32.mrb[0].mxu0
      %v7074 = vadd.f32 0.0, %v7073
      %v7075 = vpop.f32.mrb[0].mxu0
      %7076 = vmatprep.mubr.f32.mxu0 0.0
      %7077 = vmatmul.mubr.f32.gmra.mrb[0].mxu0 %v6598
      %v7078 = vpop.f32.mrb[0].mxu0
      %v7079 = vadd.f32 0.0, %v7078
      %v7080 = vpop.f32.mrb[0].mxu0
      %7081 = vmatprep.mubr.f32.mxu0 0.0
      %7082 = vmatmul.mubr.f32.gmra.mrb[0].mxu0 %v6600
      %v7083 = vpop.f32.mrb[0].mxu0
      %v7084 = vadd.f32 0.0, %v7083
      %v7085 = vpop.f32.mrb[0].mxu0
      %7086 = vmatprep.mubr.f32.mxu0 0.0
      %7087 = vmatmul.mubr.f32.gmra.mrb[0].mxu0 %v6601
      %v7088 = vpop.f32.mrb[0].mxu0
      %v7089 = vadd.f32 0.0, %v7088
      %v7090 = vpop.f32.mrb[0].mxu0
      %7091 = vmatprep.mubr.f32.mxu0 0.0
      %7092 = vmatmul.mubr.f32.gmra.mrb[0].mxu0 %v6602
      %v7093 = vpop.f32.mrb[0].mxu0
      %v7094 = vadd.f32 0.0, %v7093
      %v7095 = vpop.f32.mrb[0].mxu0
      %7096 = vmatprep.mubr.f32.mxu0 0.0
      %7097 = vmatmul.mubr.f32.gmra.mrb[0].mxu0 %v6603
      %v7098 = vpop.f32.mrb[0].mxu0
      %v7099 = vadd.f32 0.0, %v7098
      %v7100 = vpop.f32.mrb[0].mxu0
      %7101 = vmatprep.mubr.f32.mxu0 0.0
      %7102 = vmatmul.mubr.f32.gmra.mrb[0].mxu0 %v6605
      %v7103 = vpop.f32.mrb[0].mxu0
      %v7104 = vadd.f32 0.0, %v7103
      %v7105 = vpop.f32.mrb[0].mxu0
      %7106 = vmatprep.mubr.f32.mxu0 0.0
      %7107 = vmatmul.mubr.f32.gmra.mrb[0].mxu0 %v6606
      %v7108 = vpop.f32.mrb[0].mxu0
      %v7109 = vadd.f32 0.0, %v7108
      %v7110 = vpop.f32.mrb[0].mxu0
      %7111 = vmatprep.mubr.f32.mxu0 0.0
      %7112 = vmatmul.mubr.f32.gmra.mrb[0].mxu0 %v6607
      %v7113 = vpop.f32.mrb[0].mxu0
      %v7114 = vadd.f32 0.0, %v7113
      %v7115 = vpop.f32.mrb[0].mxu0
      %7116 = vmatprep.mubr.f32.mxu0 0.0
      %7117 = vmatmul.mubr.f32.gmra.mrb[0].mxu0 %v6608
      %v7118 = vpop.f32.mrb[0].mxu0
      %v7119 = vadd.f32 0.0, %v7118
      %v7120 = vpop.f32.mrb[0].mxu0
      %7121 = vmatprep.mubr.f32.mxu0 0.0
      %7122 = vmatmul.mubr.f32.gmra.mrb[0].mxu0 %v6610
      %v7123 = vpop.f32.mrb[0].mxu0
      %v7124 = vadd.f32 0.0, %v7123
      %v7125 = vpop.f32.mrb[0].mxu0
      %7126 = vmatprep.mubr.f32.mxu0 0.0
      %7127 = vmatmul.mubr.f32.gmra.mrb[0].mxu0 %v6611
      %v7128 = vpop.f32.mrb[0].mxu0
      %v7129 = vadd.f32 0.0, %v7128
      %v7130 = vpop.f32.mrb[0].mxu0
      %7131 = vmatprep.mubr.f32.mxu0 0.0
      %7132 = vmatmul.mubr.f32.gmra.mrb[0].mxu0 %v6612
      %v7133 = vpop.f32.mrb[0].mxu0
      %v7134 = vadd.f32 0.0, %v7133
      %v7135 = vpop.f32.mrb[0].mxu0
      %7136 = vmatprep.mubr.f32.mxu0 0.0
      %7137 = vmatmul.mubr.f32.gmra.mrb[0].mxu0 %v6613
      %v7138 = vpop.f32.mrb[0].mxu0
      %v7139 = vadd.f32 0.0, %v7138
      %v7140 = vpop.f32.mrb[0].mxu0
      %7141 = vmatprep.mubr.f32.mxu0 0.0
      %7142 = vmatmul.mubr.f32.gmra.mrb[0].mxu0 %v6615
      %v7143 = vpop.f32.mrb[0].mxu0
      %v7144 = vadd.f32 0.0, %v7143
      %v7145 = vpop.f32.mrb[0].mxu0
      %7146 = vmatprep.mubr.f32.mxu0 0.0
      %7147 = vmatmul.mubr.f32.gmra.mrb[0].mxu0 %v6616
      %v7148 = vpop.f32.mrb[0].mxu0
      %v7149 = vadd.f32 0.0, %v7148
      %v7150 = vpop.f32.mrb[0].mxu0
      %7151 = vmatprep.mubr.f32.mxu0 0.0
      %7152 = vmatmul.mubr.f32.gmra.mrb[0].mxu0 %v6617
      %v7153 = vpop.f32.mrb[0].mxu0
      %v7154 = vadd.f32 0.0, %v7153
      %v7155 = vpop.f32.mrb[0].mxu0
      %7156 = vmatprep.mubr.f32.mxu0 0.0
      %7157 = vmatmul.mubr.f32.gmra.mrb[0].mxu0 %v6618
      %v7158 = vpop.f32.mrb[0].mxu0
      %v7159 = vadd.f32 0.0, %v7158
      %v7160 = vpop.f32.mrb[0].mxu0
      %7161 = vmatprep.mubr.f32.mxu0 0.0
      %7162 = vmatmul.mubr.f32.gmra.mrb[0].mxu0 %v6620
      %v7163 = vpop.f32.mrb[0].mxu0
      %v7164 = vadd.f32 0.0, %v7163
      %v7165 = vpop.f32.mrb[0].mxu0
      %7166 = vmatprep.mubr.f32.mxu0 0.0
      %7167 = vmatmul.mubr.f32.gmra.mrb[0].mxu0 %v6621
      %v7168 = vpop.f32.mrb[0].mxu0
      %v7169 = vadd.f32 0.0, %v7168
      %v7170 = vpop.f32.mrb[0].mxu0
      %7171 = vmatprep.mubr.f32.mxu0 0.0
      %7172 = vmatmul.mubr.f32.gmra.mrb[0].mxu0 %v6622
      %v7173 = vpop.f32.mrb[0].mxu0
      %v7174 = vadd.f32 0.0, %v7173
      %v7175 = vpop.f32.mrb[0].mxu0
      %7176 = vmatprep.mubr.f32.mxu0 0.0
      %7177 = vmatmul.mubr.f32.gmra.mrb[0].mxu0 %v6623
      %v7178 = vpop.f32.mrb[0].mxu0
      %v7179 = vadd.f32 0.0, %v7178
      %v7180 = vpop.f32.mrb[0].mxu0
      %7181 = vmatprep.mubr.f32.mxu0 0.0
      %7182 = vmatmul.mubr.f32.gmra.mrb[0].mxu0 %v6625
      %v7183 = vpop.f32.mrb[0].mxu0
      %v7184 = vadd.f32 0.0, %v7183
      %v7185 = vpop.f32.mrb[0].mxu0
      %7186 = vmatprep.mubr.f32.mxu0 0.0
      %7187 = vmatmul.mubr.f32.gmra.mrb[0].mxu0 %v6626
      %v7188 = vpop.f32.mrb[0].mxu0
      %v7189 = vadd.f32 0.0, %v7188
      %v7190 = vpop.f32.mrb[0].mxu0
      %7191 = vmatprep.mubr.f32.mxu0 0.0
      %7192 = vmatmul.mubr.f32.gmra.mrb[0].mxu0 %v6627
      %v7193 = vpop.f32.mrb[0].mxu0
      %v7194 = vadd.f32 0.0, %v7193
      %v7195 = vpop.f32.mrb[0].mxu0
      %7196 = vmatprep.mubr.f32.mxu0 0.0
      %7197 = vmatmul.mubr.f32.gmra.mrb[0].mxu0 %v6628
      %v7198 = vpop.f32.mrb[0].mxu0
      %v7199 = vadd.f32 0.0, %v7198
      %v7200 = vpop.f32.mrb[0].mxu0
      %7201 = vmatprep.mubr.f32.mxu0 0.0
      %7202 = vmatmul.mubr.f32.gmra.mrb[0].mxu0 %v6630
      %v7203 = vpop.f32.mrb[0].mxu0
      %v7204 = vadd.f32 0.0, %v7203
      %v7205 = vpop.f32.mrb[0].mxu0
      %7206 = vmatprep.mubr.f32.mxu0 0.0
      %7207 = vmatmul.mubr.f32.gmra.mrb[0].mxu0 %v6631
      %v7208 = vpop.f32.mrb[0].mxu0
      %v7209 = vadd.f32 0.0, %v7208
      %v7210 = vpop.f32.mrb[0].mxu0
      %7211 = vmatprep.mubr.f32.mxu0 0.0
      %7212 = vmatmul.mubr.f32.gmra.mrb[0].mxu0 %v6632
      %v7213 = vpop.f32.mrb[0].mxu0
      %v7214 = vadd.f32 0.0, %v7213
      %v7215 = vpop.f32.mrb[0].mxu0
      %7216 = vmatprep.mubr.f32.mxu0 0.0
      %7217 = vmatmul.mubr.f32.gmra.mrb[0].mxu0 %v6633
      %v7218 = vpop.f32.mrb[0].mxu0
      %v7219 = vadd.f32 0.0, %v7218
      %v7220 = vpop.f32.mrb[0].mxu0
      %7221 = vmatprep.mubr.f32.mxu0 0.0
      %7222 = vmatmul.mubr.f32.gmra.mrb[0].mxu0 %v6635
      %v7223 = vpop.f32.mrb[0].mxu0
      %v7224 = vadd.f32 0.0, %v7223
      %v7225 = vpop.f32.mrb[0].mxu0
      %7226 = vmatprep.mubr.f32.mxu0 0.0
      %7227 = vmatmul.mubr.f32.gmra.mrb[0].mxu0 %v6636
      %v7228 = vpop.f32.mrb[0].mxu0
      %v7229 = vadd.f32 0.0, %v7228
      %v7230 = vpop.f32.mrb[0].mxu0
      %7231 = vmatprep.mubr.f32.mxu0 0.0
      %7232 = vmatmul.mubr.f32.gmra.mrb[0].mxu0 %v6637
      %v7233 = vpop.f32.mrb[0].mxu0
      %v7234 = vadd.f32 0.0, %v7233
      %v7235 = vpop.f32.mrb[0].mxu0
      %7236 = vmatprep.mubr.f32.mxu0 0.0
      %7237 = vmatmul.mubr.f32.gmra.mrb[0].mxu0 %v6638
      %v7238 = vpop.f32.mrb[0].mxu0
      %v7239 = vadd.f32 0.0, %v7238
      %v7240 = vpop.f32.mrb[0].mxu0
      %7241 = vmatprep.mubr.f32.mxu0 0.0
      %7242 = vmatmul.mubr.f32.gmra.mrb[0].mxu0 %v6640
      %v7243 = vpop.f32.mrb[0].mxu0
      %v7244 = vadd.f32 0.0, %v7243
      %v7245 = vpop.f32.mrb[0].mxu0
      %7246 = vmatprep.mubr.f32.mxu0 0.0
      %7247 = vmatmul.mubr.f32.gmra.mrb[0].mxu0 %v6641
      %v7248 = vpop.f32.mrb[0].mxu0
      %v7249 = vadd.f32 0.0, %v7248
      %v7250 = vpop.f32.mrb[0].mxu0
      %7251 = vmatprep.mubr.f32.mxu0 0.0
      %7252 = vmatmul.mubr.f32.gmra.mrb[0].mxu0 %v6642
      %v7253 = vpop.f32.mrb[0].mxu0
      %v7254 = vadd.f32 0.0, %v7253
      %v7255 = vpop.f32.mrb[0].mxu0
      %7256 = vmatprep.mubr.f32.mxu0 0.0
      %7257 = vmatmul.mubr.f32.gmra.mrb[0].mxu0 %v6643
      %v7258 = vpop.f32.mrb[0].mxu0
      %v7259 = vadd.f32 0.0, %v7258
      %v7260 = vpop.f32.mrb[0].mxu0
      %7261 = vmatprep.mubr.f32.mxu0 0.0
      %7262 = vmatmul.mubr.f32.gmra.mrb[0].mxu0 %v6645
      %v7263 = vpop.f32.mrb[0].mxu0
      %v7264 = vadd.f32 0.0, %v7263
      %v7265 = vpop.f32.mrb[0].mxu0
      %7266 = vmatprep.mubr.f32.mxu0 0.0
      %7267 = vmatmul.mubr.f32.gmra.mrb[0].mxu0 %v6646
      %v7268 = vpop.f32.mrb[0].mxu0
      %v7269 = vadd.f32 0.0, %v7268
      %v7270 = vpop.f32.mrb[0].mxu0
      %7271 = vmatprep.mubr.f32.mxu0 0.0
      %7272 = vmatmul.mubr.f32.gmra.mrb[0].mxu0 %v6647
      %v7273 = vpop.f32.mrb[0].mxu0
      %v7274 = vadd.f32 0.0, %v7273
      %v7275 = vpop.f32.mrb[0].mxu0
      %7276 = vmatprep.mubr.f32.mxu0 0.0
      %7277 = vmatmul.mubr.f32.gmra.mrb[0].mxu0 %v6648
      %v7278 = vpop.f32.mrb[0].mxu0
      %v7279 = vadd.f32 0.0, %v7278
      %v7280 = vpop.f32.mrb[0].mxu0
      %7281 = vmatprep.mubr.f32.mxu0 0.0
      %7282 = vmatmul.mubr.f32.gmra.mrb[0].mxu0 %v6650
      %v7283 = vpop.f32.mrb[0].mxu0
      %v7284 = vadd.f32 0.0, %v7283
      %v7285 = vpop.f32.mrb[0].mxu0
      %7286 = vmatprep.mubr.f32.mxu0 0.0
      %7287 = vmatmul.mubr.f32.gmra.mrb[0].mxu0 %v6651
      %v7288 = vpop.f32.mrb[0].mxu0
      %v7289 = vadd.f32 0.0, %v7288
      %v7290 = vpop.f32.mrb[0].mxu0
      %7291 = vmatprep.mubr.f32.mxu0 0.0
      %7292 = vmatmul.mubr.f32.gmra.mrb[0].mxu0 %v6652
      %v7293 = vpop.f32.mrb[0].mxu0
      %v7294 = vadd.f32 0.0, %v7293
      %v7295 = vpop.f32.mrb[0].mxu0
      %7296 = vmatprep.mubr.f32.mxu0 0.0
      %7297 = vmatmul.mubr.f32.gmra.mrb[0].mxu0 %v6653
      %v7298 = vpop.f32.mrb[0].mxu0
      %v7299 = vadd.f32 0.0, %v7298
      %v7300 = vpop.f32.mrb[0].mxu0
      %7301 = vmatprep.mubr.f32.mxu0 0.0
      %7302 = vmatmul.mubr.f32.gmra.mrb[0].mxu0 %v6655
      %v7303 = vpop.f32.mrb[0].mxu0
      %v7304 = vadd.f32 0.0, %v7303
      %v7305 = vpop.f32.mrb[0].mxu0
      %7306 = vmatprep.mubr.f32.mxu0 0.0
      %7307 = vmatmul.mubr.f32.gmra.mrb[0].mxu0 %v6656
      %v7308 = vpop.f32.mrb[0].mxu0
      %v7309 = vadd.f32 0.0, %v7308
      %v7310 = vpop.f32.mrb[0].mxu0
      %7311 = vmatprep.mubr.f32.mxu0 0.0
      %7312 = vmatmul.mubr.f32.gmra.mrb[0].mxu0 %v6657
      %v7313 = vpop.f32.mrb[0].mxu0
      %v7314 = vadd.f32 0.0, %v7313
      %v7315 = vpop.f32.mrb[0].mxu0
      %7316 = vmatprep.mubr.f32.mxu0 0.0
      %7317 = vmatmul.mubr.f32.gmra.mrb[0].mxu0 %v6658
      %v7318 = vpop.f32.mrb[0].mxu0
      %v7319 = vadd.f32 0.0, %v7318
      %v7320 = vpop.f32.mrb[0].mxu0
      %7321 = vmatprep.mubr.f32.mxu0 0.0
      %7322 = vmatmul.mubr.f32.gmra.mrb[0].mxu0 %v6660
      %v7323 = vpop.f32.mrb[0].mxu0
      %v7324 = vadd.f32 0.0, %v7323
      %v7325 = vpop.f32.mrb[0].mxu0
      %7326 = vmatprep.mubr.f32.mxu0 0.0
      %7327 = vmatmul.mubr.f32.gmra.mrb[0].mxu0 %v6661
      %v7328 = vpop.f32.mrb[0].mxu0
      %v7329 = vadd.f32 0.0, %v7328
      %v7330 = vpop.f32.mrb[0].mxu0
      %7331 = vmatprep.mubr.f32.mxu0 0.0
      %7332 = vmatmul.mubr.f32.gmra.mrb[0].mxu0 %v6662
      %v7333 = vpop.f32.mrb[0].mxu0
      %v7334 = vadd.f32 0.0, %v7333
      %v7335 = vpop.f32.mrb[0].mxu0
      %7336 = vmatprep.mubr.f32.mxu0 0.0
      %7337 = vmatmul.mubr.f32.gmra.mrb[0].mxu0 %v6663
      %v7338 = vpop.f32.mrb[0].mxu0
      %v7339 = vadd.f32 0.0, %v7338
      %v7340 = vpop.f32.mrb[0].mxu0
      %7341 = vmatprep.mubr.f32.mxu0 0.0
      %7342 = vmatmul.mubr.f32.gmra.mrb[0].mxu0 %v6665
      %v7343 = vpop.f32.mrb[0].mxu0
      %v7344 = vadd.f32 0.0, %v7343
      %v7345 = vpop.f32.mrb[0].mxu0
      %7346 = vmatprep.mubr.f32.mxu0 0.0
      %7347 = vmatmul.mubr.f32.gmra.mrb[0].mxu0 %v6666
      %v7348 = vpop.f32.mrb[0].mxu0
      %v7349 = vadd.f32 0.0, %v7348
      %v7350 = vpop.f32.mrb[0].mxu0
      %7351 = vmatprep.mubr.f32.mxu0 0.0
      %7352 = vmatmul.mubr.f32.gmra.mrb[0].mxu0 %v6667
      %v7353 = vpop.f32.mrb[0].mxu0
      %v7354 = vadd.f32 0.0, %v7353
      %v7355 = vpop.f32.mrb[0].mxu0
      %7356 = vmatprep.mubr.f32.mxu0 0.0
      %7357 = vmatmul.mubr.f32.gmra.mrb[0].mxu0 %v6668
      %v7358 = vpop.f32.mrb[0].mxu0
      %v7359 = vadd.f32 0.0, %v7358
      %v7360 = vpop.f32.mrb[0].mxu0
      %7361 = vmatprep.mubr.f32.mxu0 0.0
      %7362 = vmatmul.mubr.f32.gmra.mrb[0].mxu0 %v6670
      %v7363 = vpop.f32.mrb[0].mxu0
      %v7364 = vadd.f32 0.0, %v7363
      %v7365 = vpop.f32.mrb[0].mxu0
      %7366 = vmatprep.mubr.f32.mxu0 0.0
      %7367 = vmatmul.mubr.f32.gmra.mrb[0].mxu0 %v6671
      %v7368 = vpop.f32.mrb[0].mxu0
      %v7369 = vadd.f32 0.0, %v7368
      %v7370 = vpop.f32.mrb[0].mxu0
      %7371 = vmatprep.mubr.f32.mxu0 0.0
      %7372 = vmatmul.mubr.f32.gmra.mrb[0].mxu0 %v6672
      %v7373 = vpop.f32.mrb[0].mxu0
      %v7374 = vadd.f32 0.0, %v7373
      %v7375 = vpop.f32.mrb[0].mxu0
      %7376 = vmatprep.mubr.f32.mxu0 0.0
      %7377 = vmatmul.mubr.f32.gmra.mrb[0].mxu0 %v6673
      %v7378 = vpop.f32.mrb[0].mxu0
      %v7379 = vadd.f32 0.0, %v7378
      %v7380 = vpop.f32.mrb[0].mxu0
      %7381 = vmatprep.mubr.f32.mxu0 0.0
      %7382 = vmatmul.mubr.f32.gmra.mrb[0].mxu0 %v6675
      %v7383 = vpop.f32.mrb[0].mxu0
      %v7384 = vadd.f32 0.0, %v7383
      %v7385 = vpop.f32.mrb[0].mxu0
      %7386 = vmatprep.mubr.f32.mxu0 0.0
      %7387 = vmatmul.mubr.f32.gmra.mrb[0].mxu0 %v6676
      %v7388 = vpop.f32.mrb[0].mxu0
      %v7389 = vadd.f32 0.0, %v7388
      %v7390 = vpop.f32.mrb[0].mxu0
      %7391 = vmatprep.mubr.f32.mxu0 0.0
      %7392 = vmatmul.mubr.f32.gmra.mrb[0].mxu0 %v6677
      %v7393 = vpop.f32.mrb[0].mxu0
      %v7394 = vadd.f32 0.0, %v7393
      %v7395 = vpop.f32.mrb[0].mxu0
      %7396 = vmatprep.mubr.f32.mxu0 0.0
      %7397 = vmatmul.mubr.f32.gmra.mrb[0].mxu0 %v6678
      %v7398 = vpop.f32.mrb[0].mxu0
      %v7399 = vadd.f32 0.0, %v7398
      %v7400 = vpop.f32.mrb[0].mxu0
      %7401 = vdwg.mxu0
      %v7402 = vadd.f32 %v6391, %v6764
      %v7403 = vadd.f32 %v6392, %v6769
      %v7404 = vadd.f32 %v6393, %v6774
      %v7405 = vadd.f32 %v6394, %v6779
      %v7406 = vadd.f32 %v6395, %v6784
      %v7407 = vadd.f32 %v6396, %v6789
      %v7408 = vadd.f32 %v6397, %v6794
      %v7409 = vadd.f32 %v6398, %v6799
      %v7410 = vadd.f32 %v6399, %v6804
      %v7411 = vadd.f32 %v6400, %v6809
      %v7412 = vadd.f32 %v6401, %v6814
      %v7413 = vadd.f32 %v6402, %v6819
      %v7414 = vadd.f32 %v6403, %v6824
      %v7415 = vadd.f32 %v6404, %v6829
      %v7416 = vadd.f32 %v6405, %v6834
      %v7417 = vadd.f32 %v6406, %v6839
      %v7418 = vadd.f32 %v6407, %v6844
      %v7419 = vadd.f32 %v6408, %v6849
      %v7420 = vadd.f32 %v6409, %v6854
      %v7421 = vadd.f32 %v6410, %v6859
      %v7422 = vadd.f32 %v6411, %v6864
      %v7423 = vadd.f32 %v6412, %v6869
      %v7424 = vadd.f32 %v6413, %v6874
      %v7425 = vadd.f32 %v6414, %v6879
      %v7426 = vadd.f32 %v6415, %v6884
      %v7427 = vadd.f32 %v6416, %v6889
      %v7428 = vadd.f32 %v6417, %v6894
      %v7429 = vadd.f32 %v6418, %v6899
      %v7430 = vadd.f32 %v6419, %v6904
      %v7431 = vadd.f32 %v6420, %v6909
      %v7432 = vadd.f32 %v6421, %v6914
      %v7433 = vadd.f32 %v6422, %v6919
      %v7434 = vadd.f32 %v6423, %v6924
      %v7435 = vadd.f32 %v6424, %v6929
      %v7436 = vadd.f32 %v6425, %v6934
      %v7437 = vadd.f32 %v6426, %v6939
      %v7438 = vadd.f32 %v6427, %v6944
      %v7439 = vadd.f32 %v6428, %v6949
      %v7440 = vadd.f32 %v6429, %v6954
      %v7441 = vadd.f32 %v6430, %v6959
      %v7442 = vadd.f32 %v6431, %v6964
      %v7443 = vadd.f32 %v6432, %v6969
      %v7444 = vadd.f32 %v6433, %v6974
      %v7445 = vadd.f32 %v6434, %v6979
      %v7446 = vadd.f32 %v6435, %v6984
      %v7447 = vadd.f32 %v6436, %v6989
      %v7448 = vadd.f32 %v6437, %v6994
      %v7449 = vadd.f32 %v6438, %v6999
      %v7450 = vadd.f32 %v6439, %v7004
      %v7451 = vadd.f32 %v6440, %v7009
      %v7452 = vadd.f32 %v6441, %v7014
      %v7453 = vadd.f32 %v6442, %v7019
      %v7454 = vadd.f32 %v6443, %v7024
      %v7455 = vadd.f32 %v6444, %v7029
      %v7456 = vadd.f32 %v6445, %v7034
      %v7457 = vadd.f32 %v6446, %v7039
      %v7458 = vadd.f32 %v6447, %v7044
      %v7459 = vadd.f32 %v6448, %v7049
      %v7460 = vadd.f32 %v6449, %v7054
      %v7461 = vadd.f32 %v6450, %v7059
      %v7462 = vadd.f32 %v6451, %v7064
      %v7463 = vadd.f32 %v6452, %v7069
      %v7464 = vadd.f32 %v6453, %v7074
      %v7465 = vadd.f32 %v6454, %v7079
      %v7466 = vadd.f32 %v6455, %v7084
      %v7467 = vadd.f32 %v6456, %v7089
      %v7468 = vadd.f32 %v6457, %v7094
      %v7469 = vadd.f32 %v6458, %v7099
      %v7470 = vadd.f32 %v6459, %v7104
      %v7471 = vadd.f32 %v6460, %v7109
      %v7472 = vadd.f32 %v6461, %v7114
      %v7473 = vadd.f32 %v6462, %v7119
      %v7474 = vadd.f32 %v6463, %v7124
      %v7475 = vadd.f32 %v6464, %v7129
      %v7476 = vadd.f32 %v6465, %v7134
      %v7477 = vadd.f32 %v6466, %v7139
      %v7478 = vadd.f32 %v6467, %v7144
      %v7479 = vadd.f32 %v6468, %v7149
      %v7480 = vadd.f32 %v6469, %v7154
      %v7481 = vadd.f32 %v6470, %v7159
      %v7482 = vadd.f32 %v6471, %v7164
      %v7483 = vadd.f32 %v6472, %v7169
      %v7484 = vadd.f32 %v6473, %v7174
      %v7485 = vadd.f32 %v6474, %v7179
      %v7486 = vadd.f32 %v6475, %v7184
      %v7487 = vadd.f32 %v6476, %v7189
      %v7488 = vadd.f32 %v6477, %v7194
      %v7489 = vadd.f32 %v6478, %v7199
      %v7490 = vadd.f32 %v6479, %v7204
      %v7491 = vadd.f32 %v6480, %v7209
      %v7492 = vadd.f32 %v6481, %v7214
      %v7493 = vadd.f32 %v6482, %v7219
      %v7494 = vadd.f32 %v6483, %v7224
      %v7495 = vadd.f32 %v6484, %v7229
      %v7496 = vadd.f32 %v6485, %v7234
      %v7497 = vadd.f32 %v6486, %v7239
      %v7498 = vadd.f32 %v6487, %v7244
      %v7499 = vadd.f32 %v6488, %v7249
      %v7500 = vadd.f32 %v6489, %v7254
      %v7501 = vadd.f32 %v6490, %v7259
      %v7502 = vadd.f32 %v6491, %v7264
      %v7503 = vadd.f32 %v6492, %v7269
      %v7504 = vadd.f32 %v6493, %v7274
      %v7505 = vadd.f32 %v6494, %v7279
      %v7506 = vadd.f32 %v6495, %v7284
      %v7507 = vadd.f32 %v6496, %v7289
      %v7508 = vadd.f32 %v6497, %v7294
      %v7509 = vadd.f32 %v6498, %v7299
      %v7510 = vadd.f32 %v6499, %v7304
      %v7511 = vadd.f32 %v6500, %v7309
      %v7512 = vadd.f32 %v6501, %v7314
      %v7513 = vadd.f32 %v6502, %v7319
      %v7514 = vadd.f32 %v6503, %v7324
      %v7515 = vadd.f32 %v6504, %v7329
      %v7516 = vadd.f32 %v6505, %v7334
      %v7517 = vadd.f32 %v6506, %v7339
      %v7518 = vadd.f32 %v6507, %v7344
      %v7519 = vadd.f32 %v6508, %v7349
      %v7520 = vadd.f32 %v6509, %v7354
      %v7521 = vadd.f32 %v6510, %v7359
      %v7522 = vadd.f32 %v6511, %v7364
      %v7523 = vadd.f32 %v6512, %v7369
      %v7524 = vadd.f32 %v6513, %v7374
      %v7525 = vadd.f32 %v6514, %v7379
      %v7526 = vadd.f32 %v6515, %v7384
      %v7527 = vadd.f32 %v6516, %v7389
      %v7528 = vadd.f32 %v6517, %v7394
      %v7529 = vadd.f32 %v6518, %v7399
      %v7530 = vrot.slane %v6520, 1
      %v7531 = vrot.slane %v6521, 1
      %v7532 = vrot.slane %v6522, 1
      %v7533 = vrot.slane %v6523, 1
      %v7534 = vrot.slane %v6524, 1
      %v7535 = vrot.slane %v6525, 1
      %v7536 = vrot.slane %v6526, 1
      %v7537 = vrot.slane %v6527, 1
      %v7538 = vrot.slane %v6528, 1
      %v7539 = vrot.slane %v6529, 1
      %v7540 = vrot.slane %v6530, 1
      %v7541 = vrot.slane %v6531, 1
      %v7542 = vrot.slane %v6532, 1
      %v7543 = vrot.slane %v6533, 1
      %v7544 = vrot.slane %v6534, 1
      %v7545 = vrot.slane %v6535, 1
      %v7546 = vrot.slane %v6536, 1
      %v7547 = vrot.slane %v6537, 1
      %v7548 = vrot.slane %v6538, 1
      %v7549 = vrot.slane %v6539, 1
      %v7550 = vrot.slane %v6540, 1
      %v7551 = vrot.slane %v6541, 1
      %v7552 = vrot.slane %v6542, 1
      %v7553 = vrot.slane %v6543, 1
      %v7554 = vrot.slane %v6544, 1
      %v7555 = vrot.slane %v6545, 1
      %v7556 = vrot.slane %v6546, 1
      %v7557 = vrot.slane %v6547, 1
      %v7558 = vrot.slane %v6548, 1
      %v7559 = vrot.slane %v6549, 1
      %v7560 = vrot.slane %v6550, 1
      %v7561 = vrot.slane %v6551, 1
      %v7562 = vrot.slane %v6552, 1
      %v7563 = vrot.slane %v6553, 1
      %v7564 = vrot.slane %v6554, 1
      %v7565 = vrot.slane %v6555, 1
      %v7566 = vrot.slane %v6556, 1
      %v7567 = vrot.slane %v6557, 1
      %v7568 = vrot.slane %v6558, 1
      %v7569 = vrot.slane %v6559, 1
      %v7570 = vrot.slane %v6560, 1
      %v7571 = vrot.slane %v6561, 1
      %v7572 = vrot.slane %v6562, 1
      %v7573 = vrot.slane %v6563, 1
      %v7574 = vrot.slane %v6564, 1
      %v7575 = vrot.slane %v6565, 1
      %v7576 = vrot.slane %v6566, 1
      %v7577 = vrot.slane %v6567, 1
      %v7578 = vrot.slane %v6568, 1
      %v7579 = vrot.slane %v6569, 1
      %v7580 = vrot.slane %v6570, 1
      %v7581 = vrot.slane %v6571, 1
      %v7582 = vrot.slane %v6572, 1
      %v7583 = vrot.slane %v6573, 1
      %v7584 = vrot.slane %v6574, 1
      %v7585 = vrot.slane %v6575, 1
      %v7586 = vrot.slane %v6576, 1
      %v7587 = vrot.slane %v6577, 1
      %v7588 = vrot.slane %v6578, 1
      %v7589 = vrot.slane %v6579, 1
      %v7590 = vrot.slane %v6580, 1
      %v7591 = vrot.slane %v6581, 1
      %v7592 = vrot.slane %v6582, 1
      %v7593 = vrot.slane %v6583, 1
      %v7594 = vrot.slane %v6584, 1
      %v7595 = vrot.slane %v6585, 1
      %v7596 = vrot.slane %v6586, 1
      %v7597 = vrot.slane %v6587, 1
      %v7598 = vrot.slane %v6588, 1
      %v7599 = vrot.slane %v6589, 1
      %v7600 = vrot.slane %v6590, 1
      %v7601 = vrot.slane %v6591, 1
      %v7602 = vrot.slane %v6592, 1
      %v7603 = vrot.slane %v6593, 1
      %v7604 = vrot.slane %v6594, 1
      %v7605 = vrot.slane %v6595, 1
      %v7606 = vrot.slane %v6596, 1
      %v7607 = vrot.slane %v6597, 1
      %v7608 = vrot.slane %v6598, 1
      %v7609 = vrot.slane %v6599, 1
      %v7610 = vrot.slane %v6600, 1
      %v7611 = vrot.slane %v6601, 1
      %v7612 = vrot.slane %v6602, 1
      %v7613 = vrot.slane %v6603, 1
      %v7614 = vrot.slane %v6604, 1
      %v7615 = vrot.slane %v6605, 1
      %v7616 = vrot.slane %v6606, 1
      %v7617 = vrot.slane %v6607, 1
      %v7618 = vrot.slane %v6608, 1
      %v7619 = vrot.slane %v6609, 1
      %v7620 = vrot.slane %v6610, 1
      %v7621 = vrot.slane %v6611, 1
      %v7622 = vrot.slane %v6612, 1
      %v7623 = vrot.slane %v6613, 1
      %v7624 = vrot.slane %v6614, 1
      %v7625 = vrot.slane %v6615, 1
      %v7626 = vrot.slane %v6616, 1
      %v7627 = vrot.slane %v6617, 1
      %v7628 = vrot.slane %v6618, 1
      %v7629 = vrot.slane %v6619, 1
      %v7630 = vrot.slane %v6620, 1
      %v7631 = vrot.slane %v6621, 1
      %v7632 = vrot.slane %v6622, 1
      %v7633 = vrot.slane %v6623, 1
      %v7634 = vrot.slane %v6624, 1
      %v7635 = vrot.slane %v6625, 1
      %v7636 = vrot.slane %v6626, 1
      %v7637 = vrot.slane %v6627, 1
      %v7638 = vrot.slane %v6628, 1
      %v7639 = vrot.slane %v6629, 1
      %v7640 = vrot.slane %v6630, 1
      %v7641 = vrot.slane %v6631, 1
      %v7642 = vrot.slane %v6632, 1
      %v7643 = vrot.slane %v6633, 1
      %v7644 = vrot.slane %v6634, 1
      %v7645 = vrot.slane %v6635, 1
      %v7646 = vrot.slane %v6636, 1
      %v7647 = vrot.slane %v6637, 1
      %v7648 = vrot.slane %v6638, 1
      %v7649 = vrot.slane %v6639, 1
      %v7650 = vrot.slane %v6640, 1
      %v7651 = vrot.slane %v6641, 1
      %v7652 = vrot.slane %v6642, 1
      %v7653 = vrot.slane %v6643, 1
      %v7654 = vrot.slane %v6644, 1
      %v7655 = vrot.slane %v6645, 1
      %v7656 = vrot.slane %v6646, 1
      %v7657 = vrot.slane %v6647, 1
      %v7658 = vrot.slane %v6648, 1
      %v7659 = vrot.slane %v6649, 1
      %v7660 = vrot.slane %v6650, 1
      %v7661 = vrot.slane %v6651, 1
      %v7662 = vrot.slane %v6652, 1
      %v7663 = vrot.slane %v6653, 1
      %v7664 = vrot.slane %v6654, 1
      %v7665 = vrot.slane %v6655, 1
      %v7666 = vrot.slane %v6656, 1
      %v7667 = vrot.slane %v6657, 1
      %v7668 = vrot.slane %v6658, 1
      %v7669 = vrot.slane %v6659, 1
      %v7670 = vrot.slane %v6660, 1
      %v7671 = vrot.slane %v6661, 1
      %v7672 = vrot.slane %v6662, 1
      %v7673 = vrot.slane %v6663, 1
      %v7674 = vrot.slane %v6664, 1
      %v7675 = vrot.slane %v6665, 1
      %v7676 = vrot.slane %v6666, 1
      %v7677 = vrot.slane %v6667, 1
      %v7678 = vrot.slane %v6668, 1
      %v7679 = vrot.slane %v6669, 1
      %v7680 = vrot.slane %v6670, 1
      %v7681 = vrot.slane %v6671, 1
      %v7682 = vrot.slane %v6672, 1
      %v7683 = vrot.slane %v6673, 1
      %v7684 = vrot.slane %v6674, 1
      %v7685 = vrot.slane %v6675, 1
      %v7686 = vrot.slane %v6676, 1
      %v7687 = vrot.slane %v6677, 1
      %v7688 = vrot.slane %v6678, 1
      %v7689 = vrot.slane %v6679, 1
      %v7690 = vsel %vm537, %v7688, %v7689
      %v7691 = vsel %vm537, %v7687, %v7688
      %v7692 = vsel %vm537, %v7686, %v7687
      %v7693 = vsel %vm537, %v7685, %v7686
      %v7694 = vsel %vm537, %v7683, %v7684
      %v7695 = vsel %vm537, %v7682, %v7683
      %v7696 = vsel %vm537, %v7681, %v7682
      %v7697 = vsel %vm537, %v7680, %v7681
      %v7698 = vsel %vm537, %v7678, %v7679
      %v7699 = vsel %vm537, %v7677, %v7678
      %v7700 = vsel %vm537, %v7676, %v7677
      %v7701 = vsel %vm537, %v7675, %v7676
      %v7702 = vsel %vm537, %v7673, %v7674
      %v7703 = vsel %vm537, %v7672, %v7673
      %v7704 = vsel %vm537, %v7671, %v7672
      %v7705 = vsel %vm537, %v7670, %v7671
      %v7706 = vsel %vm537, %v7668, %v7669
      %v7707 = vsel %vm537, %v7667, %v7668
      %v7708 = vsel %vm537, %v7666, %v7667
      %v7709 = vsel %vm537, %v7665, %v7666
      %v7710 = vsel %vm537, %v7663, %v7664
      %v7711 = vsel %vm537, %v7662, %v7663
      %v7712 = vsel %vm537, %v7661, %v7662
      %v7713 = vsel %vm537, %v7660, %v7661
      %v7714 = vsel %vm537, %v7658, %v7659
      %v7715 = vsel %vm537, %v7657, %v7658
      %v7716 = vsel %vm537, %v7656, %v7657
      %v7717 = vsel %vm537, %v7655, %v7656
      %v7718 = vsel %vm537, %v7653, %v7654
      %v7719 = vsel %vm537, %v7652, %v7653
      %v7720 = vsel %vm537, %v7651, %v7652
      %v7721 = vsel %vm537, %v7650, %v7651
      %v7722 = vsel %vm537, %v7648, %v7649
      %v7723 = vsel %vm537, %v7647, %v7648
      %v7724 = vsel %vm537, %v7646, %v7647
      %v7725 = vsel %vm537, %v7645, %v7646
      %v7726 = vsel %vm537, %v7643, %v7644
      %v7727 = vsel %vm537, %v7642, %v7643
      %v7728 = vsel %vm537, %v7641, %v7642
      %v7729 = vsel %vm537, %v7640, %v7641
      %v7730 = vsel %vm537, %v7638, %v7639
      %v7731 = vsel %vm537, %v7637, %v7638
      %v7732 = vsel %vm537, %v7636, %v7637
      %v7733 = vsel %vm537, %v7635, %v7636
      %v7734 = vsel %vm537, %v7633, %v7634
      %v7735 = vsel %vm537, %v7632, %v7633
      %v7736 = vsel %vm537, %v7631, %v7632
      %v7737 = vsel %vm537, %v7630, %v7631
      %v7738 = vsel %vm537, %v7628, %v7629
      %v7739 = vsel %vm537, %v7627, %v7628
      %v7740 = vsel %vm537, %v7626, %v7627
      %v7741 = vsel %vm537, %v7625, %v7626
      %v7742 = vsel %vm537, %v7623, %v7624
      %v7743 = vsel %vm537, %v7622, %v7623
      %v7744 = vsel %vm537, %v7621, %v7622
      %v7745 = vsel %vm537, %v7620, %v7621
      %v7746 = vsel %vm537, %v7618, %v7619
      %v7747 = vsel %vm537, %v7617, %v7618
      %v7748 = vsel %vm537, %v7616, %v7617
      %v7749 = vsel %vm537, %v7615, %v7616
      %v7750 = vsel %vm537, %v7613, %v7614
      %v7751 = vsel %vm537, %v7612, %v7613
      %v7752 = vsel %vm537, %v7611, %v7612
      %v7753 = vsel %vm537, %v7610, %v7611
      %v7754 = vsel %vm537, %v7608, %v7609
      %v7755 = vsel %vm537, %v7607, %v7608
      %v7756 = vsel %vm537, %v7606, %v7607
      %v7757 = vsel %vm537, %v7605, %v7606
      %v7758 = vsel %vm537, %v7603, %v7604
      %v7759 = vsel %vm537, %v7602, %v7603
      %v7760 = vsel %vm537, %v7601, %v7602
      %v7761 = vsel %vm537, %v7600, %v7601
      %v7762 = vsel %vm537, %v7598, %v7599
      %v7763 = vsel %vm537, %v7597, %v7598
      %v7764 = vsel %vm537, %v7596, %v7597
      %v7765 = vsel %vm537, %v7595, %v7596
      %v7766 = vsel %vm537, %v7593, %v7594
      %v7767 = vsel %vm537, %v7592, %v7593
      %v7768 = vsel %vm537, %v7591, %v7592
      %v7769 = vsel %vm537, %v7590, %v7591
      %v7770 = vsel %vm537, %v7588, %v7589
      %v7771 = vsel %vm537, %v7587, %v7588
      %v7772 = vsel %vm537, %v7586, %v7587
      %v7773 = vsel %vm537, %v7585, %v7586
      %v7774 = vsel %vm537, %v7583, %v7584
      %v7775 = vsel %vm537, %v7582, %v7583
      %v7776 = vsel %vm537, %v7581, %v7582
      %v7777 = vsel %vm537, %v7580, %v7581
      %v7778 = vsel %vm537, %v7578, %v7579
      %v7779 = vsel %vm537, %v7577, %v7578
      %v7780 = vsel %vm537, %v7576, %v7577
      %v7781 = vsel %vm537, %v7575, %v7576
      %v7782 = vsel %vm537, %v7573, %v7574
      %v7783 = vsel %vm537, %v7572, %v7573
      %v7784 = vsel %vm537, %v7571, %v7572
      %v7785 = vsel %vm537, %v7570, %v7571
      %v7786 = vsel %vm537, %v7568, %v7569
      %v7787 = vsel %vm537, %v7567, %v7568
      %v7788 = vsel %vm537, %v7566, %v7567
      %v7789 = vsel %vm537, %v7565, %v7566
      %v7790 = vsel %vm537, %v7563, %v7564
      %v7791 = vsel %vm537, %v7562, %v7563
      %v7792 = vsel %vm537, %v7561, %v7562
      %v7793 = vsel %vm537, %v7560, %v7561
      %v7794 = vsel %vm537, %v7558, %v7559
      %v7795 = vsel %vm537, %v7557, %v7558
      %v7796 = vsel %vm537, %v7556, %v7557
      %v7797 = vsel %vm537, %v7555, %v7556
      %v7798 = vsel %vm537, %v7553, %v7554
      %v7799 = vsel %vm537, %v7552, %v7553
      %v7800 = vsel %vm537, %v7551, %v7552
      %v7801 = vsel %vm537, %v7550, %v7551
      %v7802 = vsel %vm537, %v7548, %v7549
      %v7803 = vsel %vm537, %v7547, %v7548
      %v7804 = vsel %vm537, %v7546, %v7547
      %v7805 = vsel %vm537, %v7545, %v7546
      %v7806 = vsel %vm537, %v7543, %v7544
      %v7807 = vsel %vm537, %v7542, %v7543
      %v7808 = vsel %vm537, %v7541, %v7542
      %v7809 = vsel %vm537, %v7540, %v7541
      %v7810 = vsel %vm537, %v7538, %v7539
      %v7811 = vsel %vm537, %v7537, %v7538
      %v7812 = vsel %vm537, %v7536, %v7537
      %v7813 = vsel %vm537, %v7535, %v7536
      %v7814 = vsel %vm537, %v7533, %v7534
      %v7815 = vsel %vm537, %v7532, %v7533
      %v7816 = vsel %vm537, %v7531, %v7532
      %v7817 = vsel %vm537, %v7530, %v7531
      %s7818 = scalar_lea.vmem %s1, 896
      %v7819 = vld [vmem:[%s7818] sm:$0xff]
      %v7820 = vld [vmem:[%s7818 + $0x8] sm:$0xff]
      %v7821 = vld [vmem:[%s7818 + $0x10] sm:$0xff]
      %v7822 = vld [vmem:[%s7818 + $0x18] sm:$0xff]
      %v7823 = vld [vmem:[%s7818 + $0x20] sm:$0xff]
      %v7824 = vld [vmem:[%s7818 + $0x28] sm:$0xff]
      %v7825 = vld [vmem:[%s7818 + $0x30] sm:$0xff]
      %v7826 = vld [vmem:[%s7818 + $0x38] sm:$0xff]
      %v7827 = vld [vmem:[%s7818 + $0x40] sm:$0xff]
      %v7828 = vld [vmem:[%s7818 + $0x48] sm:$0xff]
      %v7829 = vld [vmem:[%s7818 + $0x50] sm:$0xff]
      %v7830 = vld [vmem:[%s7818 + $0x58] sm:$0xff]
      %v7831 = vld [vmem:[%s7818 + $0x60] sm:$0xff]
      %v7832 = vld [vmem:[%s7818 + $0x68] sm:$0xff]
      %v7833 = vld [vmem:[%s7818 + $0x70] sm:$0xff]
      %v7834 = vld [vmem:[%s7818 + $0x78] sm:$0xff]
      %7835 = vmatprep.subr.mxu0 0.0
      %7836 = vmatpush1.msra.mxu0 %v7819
      %7837 = vmatprep.subr.mxu0 0.0
      %7838 = vmatpush1.msra.mxu0 %v7820
      %7839 = vmatprep.subr.mxu0 0.0
      %7840 = vmatpush1.msra.mxu0 %v7821
      %7841 = vmatprep.subr.mxu0 0.0
      %7842 = vmatpush1.msra.mxu0 %v7822
      %7843 = vmatprep.subr.mxu0 0.0
      %7844 = vmatpush1.msra.mxu0 %v7823
      %7845 = vmatprep.subr.mxu0 0.0
      %7846 = vmatpush1.msra.mxu0 %v7824
      %7847 = vmatprep.subr.mxu0 0.0
      %7848 = vmatpush1.msra.mxu0 %v7825
      %7849 = vmatprep.subr.mxu0 0.0
      %7850 = vmatpush1.msra.mxu0 %v7826
      %7851 = vmatprep.subr.mxu0 0.0
      %7852 = vmatpush1.msra.mxu0 %v7827
      %7853 = vmatprep.subr.mxu0 0.0
      %7854 = vmatpush1.msra.mxu0 %v7828
      %7855 = vmatprep.subr.mxu0 0.0
      %7856 = vmatpush1.msra.mxu0 %v7829
      %7857 = vmatprep.subr.mxu0 0.0
      %7858 = vmatpush1.msra.mxu0 %v7830
      %7859 = vmatprep.subr.mxu0 0.0
      %7860 = vmatpush1.msra.mxu0 %v7831
      %7861 = vmatprep.subr.mxu0 0.0
      %7862 = vmatpush1.msra.mxu0 %v7832
      %7863 = vmatprep.subr.mxu0 0.0
      %7864 = vmatpush1.msra.mxu0 %v7833
      %7865 = vmatprep.subr.mxu0 0.0
      %7866 = vmatpush1.msra.mxu0 %v7834
      %7867 = vmatprep.subr.mxu0 0.0
      %7868 = vmatpush1.msra.mxu0 0.0
      %7869 = vmatprep.subr.mxu0 0.0
      %7870 = vmatpush1.msra.mxu0 0.0
      %7871 = vmatprep.subr.mxu0 0.0
      %7872 = vmatpush1.msra.mxu0 0.0
      %7873 = vmatprep.subr.mxu0 0.0
      %7874 = vmatpush1.msra.mxu0 0.0
      %7875 = vmatprep.subr.mxu0 0.0
      %7876 = vmatpush1.msra.mxu0 0.0
      %7877 = vmatprep.subr.mxu0 0.0
      %7878 = vmatpush1.msra.mxu0 0.0
      %7879 = vmatprep.subr.mxu0 0.0
      %7880 = vmatpush1.msra.mxu0 0.0
      %7881 = vmatprep.subr.mxu0 0.0
      %7882 = vmatpush1.msra.mxu0 0.0
      %7883 = vmatprep.subr.mxu0 0.0
      %7884 = vmatpush1.msra.mxu0 0.0
      %7885 = vmatprep.subr.mxu0 0.0
      %7886 = vmatpush1.msra.mxu0 0.0
      %7887 = vmatprep.subr.mxu0 0.0
      %7888 = vmatpush1.msra.mxu0 0.0
      %7889 = vmatprep.subr.mxu0 0.0
      %7890 = vmatpush1.msra.mxu0 0.0
      %7891 = vmatprep.subr.mxu0 0.0
      %7892 = vmatpush1.msra.mxu0 0.0
      %7893 = vmatprep.subr.mxu0 0.0
      %7894 = vmatpush1.msra.mxu0 0.0
      %7895 = vmatprep.subr.mxu0 0.0
      %7896 = vmatpush1.msra.mxu0 0.0
      %7897 = vmatprep.subr.mxu0 0.0
      %7898 = vmatpush1.msra.mxu0 0.0
      %7899 = vmatprep.mubr.f32.mxu0 0.0
      %7900 = vmatmul.mubr.f32.gmra.mrb[0].mxu0 %v7817
      %v7901 = vpop.f32.mrb[0].mxu0
      %v7902 = vadd.f32 0.0, %v7901
      %v7903 = vpop.f32.mrb[0].mxu0
      %7904 = vmatprep.mubr.f32.mxu0 0.0
      %7905 = vmatmul.mubr.f32.gmra.mrb[0].mxu0 %v7816
      %v7906 = vpop.f32.mrb[0].mxu0
      %v7907 = vadd.f32 0.0, %v7906
      %v7908 = vpop.f32.mrb[0].mxu0
      %7909 = vmatprep.mubr.f32.mxu0 0.0
      %7910 = vmatmul.mubr.f32.gmra.mrb[0].mxu0 %v7815
      %v7911 = vpop.f32.mrb[0].mxu0
      %v7912 = vadd.f32 0.0, %v7911
      %v7913 = vpop.f32.mrb[0].mxu0
      %7914 = vmatprep.mubr.f32.mxu0 0.0
      %7915 = vmatmul.mubr.f32.gmra.mrb[0].mxu0 %v7814
      %v7916 = vpop.f32.mrb[0].mxu0
      %v7917 = vadd.f32 0.0, %v7916
      %v7918 = vpop.f32.mrb[0].mxu0
      %7919 = vmatprep.mubr.f32.mxu0 0.0
      %7920 = vmatmul.mubr.f32.gmra.mrb[0].mxu0 %v7813
      %v7921 = vpop.f32.mrb[0].mxu0
      %v7922 = vadd.f32 0.0, %v7921
      %v7923 = vpop.f32.mrb[0].mxu0
      %7924 = vmatprep.mubr.f32.mxu0 0.0
      %7925 = vmatmul.mubr.f32.gmra.mrb[0].mxu0 %v7812
      %v7926 = vpop.f32.mrb[0].mxu0
      %v7927 = vadd.f32 0.0, %v7926
      %v7928 = vpop.f32.mrb[0].mxu0
      %7929 = vmatprep.mubr.f32.mxu0 0.0
      %7930 = vmatmul.mubr.f32.gmra.mrb[0].mxu0 %v7811
      %v7931 = vpop.f32.mrb[0].mxu0
      %v7932 = vadd.f32 0.0, %v7931
      %v7933 = vpop.f32.mrb[0].mxu0
      %7934 = vmatprep.mubr.f32.mxu0 0.0
      %7935 = vmatmul.mubr.f32.gmra.mrb[0].mxu0 %v7810
      %v7936 = vpop.f32.mrb[0].mxu0
      %v7937 = vadd.f32 0.0, %v7936
      %v7938 = vpop.f32.mrb[0].mxu0
      %7939 = vmatprep.mubr.f32.mxu0 0.0
      %7940 = vmatmul.mubr.f32.gmra.mrb[0].mxu0 %v7809
      %v7941 = vpop.f32.mrb[0].mxu0
      %v7942 = vadd.f32 0.0, %v7941
      %v7943 = vpop.f32.mrb[0].mxu0
      %7944 = vmatprep.mubr.f32.mxu0 0.0
      %7945 = vmatmul.mubr.f32.gmra.mrb[0].mxu0 %v7808
      %v7946 = vpop.f32.mrb[0].mxu0
      %v7947 = vadd.f32 0.0, %v7946
      %v7948 = vpop.f32.mrb[0].mxu0
      %7949 = vmatprep.mubr.f32.mxu0 0.0
      %7950 = vmatmul.mubr.f32.gmra.mrb[0].mxu0 %v7807
      %v7951 = vpop.f32.mrb[0].mxu0
      %v7952 = vadd.f32 0.0, %v7951
      %v7953 = vpop.f32.mrb[0].mxu0
      %7954 = vmatprep.mubr.f32.mxu0 0.0
      %7955 = vmatmul.mubr.f32.gmra.mrb[0].mxu0 %v7806
      %v7956 = vpop.f32.mrb[0].mxu0
      %v7957 = vadd.f32 0.0, %v7956
      %v7958 = vpop.f32.mrb[0].mxu0
      %7959 = vmatprep.mubr.f32.mxu0 0.0
      %7960 = vmatmul.mubr.f32.gmra.mrb[0].mxu0 %v7805
      %v7961 = vpop.f32.mrb[0].mxu0
      %v7962 = vadd.f32 0.0, %v7961
      %v7963 = vpop.f32.mrb[0].mxu0
      %7964 = vmatprep.mubr.f32.mxu0 0.0
      %7965 = vmatmul.mubr.f32.gmra.mrb[0].mxu0 %v7804
      %v7966 = vpop.f32.mrb[0].mxu0
      %v7967 = vadd.f32 0.0, %v7966
      %v7968 = vpop.f32.mrb[0].mxu0
      %7969 = vmatprep.mubr.f32.mxu0 0.0
      %7970 = vmatmul.mubr.f32.gmra.mrb[0].mxu0 %v7803
      %v7971 = vpop.f32.mrb[0].mxu0
      %v7972 = vadd.f32 0.0, %v7971
      %v7973 = vpop.f32.mrb[0].mxu0
      %7974 = vmatprep.mubr.f32.mxu0 0.0
      %7975 = vmatmul.mubr.f32.gmra.mrb[0].mxu0 %v7802
      %v7976 = vpop.f32.mrb[0].mxu0
      %v7977 = vadd.f32 0.0, %v7976
      %v7978 = vpop.f32.mrb[0].mxu0
      %7979 = vmatprep.mubr.f32.mxu0 0.0
      %7980 = vmatmul.mubr.f32.gmra.mrb[0].mxu0 %v7801
      %v7981 = vpop.f32.mrb[0].mxu0
      %v7982 = vadd.f32 0.0, %v7981
      %v7983 = vpop.f32.mrb[0].mxu0
      %7984 = vmatprep.mubr.f32.mxu0 0.0
      %7985 = vmatmul.mubr.f32.gmra.mrb[0].mxu0 %v7800
      %v7986 = vpop.f32.mrb[0].mxu0
      %v7987 = vadd.f32 0.0, %v7986
      %v7988 = vpop.f32.mrb[0].mxu0
      %7989 = vmatprep.mubr.f32.mxu0 0.0
      %7990 = vmatmul.mubr.f32.gmra.mrb[0].mxu0 %v7799
      %v7991 = vpop.f32.mrb[0].mxu0
      %v7992 = vadd.f32 0.0, %v7991
      %v7993 = vpop.f32.mrb[0].mxu0
      %7994 = vmatprep.mubr.f32.mxu0 0.0
      %7995 = vmatmul.mubr.f32.gmra.mrb[0].mxu0 %v7798
      %v7996 = vpop.f32.mrb[0].mxu0
      %v7997 = vadd.f32 0.0, %v7996
      %v7998 = vpop.f32.mrb[0].mxu0
      %7999 = vmatprep.mubr.f32.mxu0 0.0
      %8000 = vmatmul.mubr.f32.gmra.mrb[0].mxu0 %v7797
      %v8001 = vpop.f32.mrb[0].mxu0
      %v8002 = vadd.f32 0.0, %v8001
      %v8003 = vpop.f32.mrb[0].mxu0
      %8004 = vmatprep.mubr.f32.mxu0 0.0
      %8005 = vmatmul.mubr.f32.gmra.mrb[0].mxu0 %v7796
      %v8006 = vpop.f32.mrb[0].mxu0
      %v8007 = vadd.f32 0.0, %v8006
      %v8008 = vpop.f32.mrb[0].mxu0
      %8009 = vmatprep.mubr.f32.mxu0 0.0
      %8010 = vmatmul.mubr.f32.gmra.mrb[0].mxu0 %v7795
      %v8011 = vpop.f32.mrb[0].mxu0
      %v8012 = vadd.f32 0.0, %v8011
      %v8013 = vpop.f32.mrb[0].mxu0
      %8014 = vmatprep.mubr.f32.mxu0 0.0
      %8015 = vmatmul.mubr.f32.gmra.mrb[0].mxu0 %v7794
      %v8016 = vpop.f32.mrb[0].mxu0
      %v8017 = vadd.f32 0.0, %v8016
      %v8018 = vpop.f32.mrb[0].mxu0
      %8019 = vmatprep.mubr.f32.mxu0 0.0
      %8020 = vmatmul.mubr.f32.gmra.mrb[0].mxu0 %v7793
      %v8021 = vpop.f32.mrb[0].mxu0
      %v8022 = vadd.f32 0.0, %v8021
      %v8023 = vpop.f32.mrb[0].mxu0
      %8024 = vmatprep.mubr.f32.mxu0 0.0
      %8025 = vmatmul.mubr.f32.gmra.mrb[0].mxu0 %v7792
      %v8026 = vpop.f32.mrb[0].mxu0
      %v8027 = vadd.f32 0.0, %v8026
      %v8028 = vpop.f32.mrb[0].mxu0
      %8029 = vmatprep.mubr.f32.mxu0 0.0
      %8030 = vmatmul.mubr.f32.gmra.mrb[0].mxu0 %v7791
      %v8031 = vpop.f32.mrb[0].mxu0
      %v8032 = vadd.f32 0.0, %v8031
      %v8033 = vpop.f32.mrb[0].mxu0
      %8034 = vmatprep.mubr.f32.mxu0 0.0
      %8035 = vmatmul.mubr.f32.gmra.mrb[0].mxu0 %v7790
      %v8036 = vpop.f32.mrb[0].mxu0
      %v8037 = vadd.f32 0.0, %v8036
      %v8038 = vpop.f32.mrb[0].mxu0
      %8039 = vmatprep.mubr.f32.mxu0 0.0
      %8040 = vmatmul.mubr.f32.gmra.mrb[0].mxu0 %v7789
      %v8041 = vpop.f32.mrb[0].mxu0
      %v8042 = vadd.f32 0.0, %v8041
      %v8043 = vpop.f32.mrb[0].mxu0
      %8044 = vmatprep.mubr.f32.mxu0 0.0
      %8045 = vmatmul.mubr.f32.gmra.mrb[0].mxu0 %v7788
      %v8046 = vpop.f32.mrb[0].mxu0
      %v8047 = vadd.f32 0.0, %v8046
      %v8048 = vpop.f32.mrb[0].mxu0
      %8049 = vmatprep.mubr.f32.mxu0 0.0
      %8050 = vmatmul.mubr.f32.gmra.mrb[0].mxu0 %v7787
      %v8051 = vpop.f32.mrb[0].mxu0
      %v8052 = vadd.f32 0.0, %v8051
      %v8053 = vpop.f32.mrb[0].mxu0
      %8054 = vmatprep.mubr.f32.mxu0 0.0
      %8055 = vmatmul.mubr.f32.gmra.mrb[0].mxu0 %v7786
      %v8056 = vpop.f32.mrb[0].mxu0
      %v8057 = vadd.f32 0.0, %v8056
      %v8058 = vpop.f32.mrb[0].mxu0
      %8059 = vmatprep.mubr.f32.mxu0 0.0
      %8060 = vmatmul.mubr.f32.gmra.mrb[0].mxu0 %v7785
      %v8061 = vpop.f32.mrb[0].mxu0
      %v8062 = vadd.f32 0.0, %v8061
      %v8063 = vpop.f32.mrb[0].mxu0
      %8064 = vmatprep.mubr.f32.mxu0 0.0
      %8065 = vmatmul.mubr.f32.gmra.mrb[0].mxu0 %v7784
      %v8066 = vpop.f32.mrb[0].mxu0
      %v8067 = vadd.f32 0.0, %v8066
      %v8068 = vpop.f32.mrb[0].mxu0
      %8069 = vmatprep.mubr.f32.mxu0 0.0
      %8070 = vmatmul.mubr.f32.gmra.mrb[0].mxu0 %v7783
      %v8071 = vpop.f32.mrb[0].mxu0
      %v8072 = vadd.f32 0.0, %v8071
      %v8073 = vpop.f32.mrb[0].mxu0
      %8074 = vmatprep.mubr.f32.mxu0 0.0
      %8075 = vmatmul.mubr.f32.gmra.mrb[0].mxu0 %v7782
      %v8076 = vpop.f32.mrb[0].mxu0
      %v8077 = vadd.f32 0.0, %v8076
      %v8078 = vpop.f32.mrb[0].mxu0
      %8079 = vmatprep.mubr.f32.mxu0 0.0
      %8080 = vmatmul.mubr.f32.gmra.mrb[0].mxu0 %v7781
      %v8081 = vpop.f32.mrb[0].mxu0
      %v8082 = vadd.f32 0.0, %v8081
      %v8083 = vpop.f32.mrb[0].mxu0
      %8084 = vmatprep.mubr.f32.mxu0 0.0
      %8085 = vmatmul.mubr.f32.gmra.mrb[0].mxu0 %v7780
      %v8086 = vpop.f32.mrb[0].mxu0
      %v8087 = vadd.f32 0.0, %v8086
      %v8088 = vpop.f32.mrb[0].mxu0
      %8089 = vmatprep.mubr.f32.mxu0 0.0
      %8090 = vmatmul.mubr.f32.gmra.mrb[0].mxu0 %v7779
      %v8091 = vpop.f32.mrb[0].mxu0
      %v8092 = vadd.f32 0.0, %v8091
      %v8093 = vpop.f32.mrb[0].mxu0
      %8094 = vmatprep.mubr.f32.mxu0 0.0
      %8095 = vmatmul.mubr.f32.gmra.mrb[0].mxu0 %v7778
      %v8096 = vpop.f32.mrb[0].mxu0
      %v8097 = vadd.f32 0.0, %v8096
      %v8098 = vpop.f32.mrb[0].mxu0
      %8099 = vmatprep.mubr.f32.mxu0 0.0
      %8100 = vmatmul.mubr.f32.gmra.mrb[0].mxu0 %v7777
      %v8101 = vpop.f32.mrb[0].mxu0
      %v8102 = vadd.f32 0.0, %v8101
      %v8103 = vpop.f32.mrb[0].mxu0
      %8104 = vmatprep.mubr.f32.mxu0 0.0
      %8105 = vmatmul.mubr.f32.gmra.mrb[0].mxu0 %v7776
      %v8106 = vpop.f32.mrb[0].mxu0
      %v8107 = vadd.f32 0.0, %v8106
      %v8108 = vpop.f32.mrb[0].mxu0
      %8109 = vmatprep.mubr.f32.mxu0 0.0
      %8110 = vmatmul.mubr.f32.gmra.mrb[0].mxu0 %v7775
      %v8111 = vpop.f32.mrb[0].mxu0
      %v8112 = vadd.f32 0.0, %v8111
      %v8113 = vpop.f32.mrb[0].mxu0
      %8114 = vmatprep.mubr.f32.mxu0 0.0
      %8115 = vmatmul.mubr.f32.gmra.mrb[0].mxu0 %v7774
      %v8116 = vpop.f32.mrb[0].mxu0
      %v8117 = vadd.f32 0.0, %v8116
      %v8118 = vpop.f32.mrb[0].mxu0
      %8119 = vmatprep.mubr.f32.mxu0 0.0
      %8120 = vmatmul.mubr.f32.gmra.mrb[0].mxu0 %v7773
      %v8121 = vpop.f32.mrb[0].mxu0
      %v8122 = vadd.f32 0.0, %v8121
      %v8123 = vpop.f32.mrb[0].mxu0
      %8124 = vmatprep.mubr.f32.mxu0 0.0
      %8125 = vmatmul.mubr.f32.gmra.mrb[0].mxu0 %v7772
      %v8126 = vpop.f32.mrb[0].mxu0
      %v8127 = vadd.f32 0.0, %v8126
      %v8128 = vpop.f32.mrb[0].mxu0
      %8129 = vmatprep.mubr.f32.mxu0 0.0
      %8130 = vmatmul.mubr.f32.gmra.mrb[0].mxu0 %v7771
      %v8131 = vpop.f32.mrb[0].mxu0
      %v8132 = vadd.f32 0.0, %v8131
      %v8133 = vpop.f32.mrb[0].mxu0
      %8134 = vmatprep.mubr.f32.mxu0 0.0
      %8135 = vmatmul.mubr.f32.gmra.mrb[0].mxu0 %v7770
      %v8136 = vpop.f32.mrb[0].mxu0
      %v8137 = vadd.f32 0.0, %v8136
      %v8138 = vpop.f32.mrb[0].mxu0
      %8139 = vmatprep.mubr.f32.mxu0 0.0
      %8140 = vmatmul.mubr.f32.gmra.mrb[0].mxu0 %v7769
      %v8141 = vpop.f32.mrb[0].mxu0
      %v8142 = vadd.f32 0.0, %v8141
      %v8143 = vpop.f32.mrb[0].mxu0
      %8144 = vmatprep.mubr.f32.mxu0 0.0
      %8145 = vmatmul.mubr.f32.gmra.mrb[0].mxu0 %v7768
      %v8146 = vpop.f32.mrb[0].mxu0
      %v8147 = vadd.f32 0.0, %v8146
      %v8148 = vpop.f32.mrb[0].mxu0
      %8149 = vmatprep.mubr.f32.mxu0 0.0
      %8150 = vmatmul.mubr.f32.gmra.mrb[0].mxu0 %v7767
      %v8151 = vpop.f32.mrb[0].mxu0
      %v8152 = vadd.f32 0.0, %v8151
      %v8153 = vpop.f32.mrb[0].mxu0
      %8154 = vmatprep.mubr.f32.mxu0 0.0
      %8155 = vmatmul.mubr.f32.gmra.mrb[0].mxu0 %v7766
      %v8156 = vpop.f32.mrb[0].mxu0
      %v8157 = vadd.f32 0.0, %v8156
      %v8158 = vpop.f32.mrb[0].mxu0
      %8159 = vmatprep.mubr.f32.mxu0 0.0
      %8160 = vmatmul.mubr.f32.gmra.mrb[0].mxu0 %v7765
      %v8161 = vpop.f32.mrb[0].mxu0
      %v8162 = vadd.f32 0.0, %v8161
      %v8163 = vpop.f32.mrb[0].mxu0
      %8164 = vmatprep.mubr.f32.mxu0 0.0
      %8165 = vmatmul.mubr.f32.gmra.mrb[0].mxu0 %v7764
      %v8166 = vpop.f32.mrb[0].mxu0
      %v8167 = vadd.f32 0.0, %v8166
      %v8168 = vpop.f32.mrb[0].mxu0
      %8169 = vmatprep.mubr.f32.mxu0 0.0
      %8170 = vmatmul.mubr.f32.gmra.mrb[0].mxu0 %v7763
      %v8171 = vpop.f32.mrb[0].mxu0
      %v8172 = vadd.f32 0.0, %v8171
      %v8173 = vpop.f32.mrb[0].mxu0
      %8174 = vmatprep.mubr.f32.mxu0 0.0
      %8175 = vmatmul.mubr.f32.gmra.mrb[0].mxu0 %v7762
      %v8176 = vpop.f32.mrb[0].mxu0
      %v8177 = vadd.f32 0.0, %v8176
      %v8178 = vpop.f32.mrb[0].mxu0
      %8179 = vmatprep.mubr.f32.mxu0 0.0
      %8180 = vmatmul.mubr.f32.gmra.mrb[0].mxu0 %v7761
      %v8181 = vpop.f32.mrb[0].mxu0
      %v8182 = vadd.f32 0.0, %v8181
      %v8183 = vpop.f32.mrb[0].mxu0
      %8184 = vmatprep.mubr.f32.mxu0 0.0
      %8185 = vmatmul.mubr.f32.gmra.mrb[0].mxu0 %v7760
      %v8186 = vpop.f32.mrb[0].mxu0
      %v8187 = vadd.f32 0.0, %v8186
      %v8188 = vpop.f32.mrb[0].mxu0
      %8189 = vmatprep.mubr.f32.mxu0 0.0
      %8190 = vmatmul.mubr.f32.gmra.mrb[0].mxu0 %v7759
      %v8191 = vpop.f32.mrb[0].mxu0
      %v8192 = vadd.f32 0.0, %v8191
      %v8193 = vpop.f32.mrb[0].mxu0
      %8194 = vmatprep.mubr.f32.mxu0 0.0
      %8195 = vmatmul.mubr.f32.gmra.mrb[0].mxu0 %v7758
      %v8196 = vpop.f32.mrb[0].mxu0
      %v8197 = vadd.f32 0.0, %v8196
      %v8198 = vpop.f32.mrb[0].mxu0
      %8199 = vmatprep.mubr.f32.mxu0 0.0
      %8200 = vmatmul.mubr.f32.gmra.mrb[0].mxu0 %v7757
      %v8201 = vpop.f32.mrb[0].mxu0
      %v8202 = vadd.f32 0.0, %v8201
      %v8203 = vpop.f32.mrb[0].mxu0
      %8204 = vmatprep.mubr.f32.mxu0 0.0
      %8205 = vmatmul.mubr.f32.gmra.mrb[0].mxu0 %v7756
      %v8206 = vpop.f32.mrb[0].mxu0
      %v8207 = vadd.f32 0.0, %v8206
      %v8208 = vpop.f32.mrb[0].mxu0
      %8209 = vmatprep.mubr.f32.mxu0 0.0
      %8210 = vmatmul.mubr.f32.gmra.mrb[0].mxu0 %v7755
      %v8211 = vpop.f32.mrb[0].mxu0
      %v8212 = vadd.f32 0.0, %v8211
      %v8213 = vpop.f32.mrb[0].mxu0
      %8214 = vmatprep.mubr.f32.mxu0 0.0
      %8215 = vmatmul.mubr.f32.gmra.mrb[0].mxu0 %v7754
      %v8216 = vpop.f32.mrb[0].mxu0
      %v8217 = vadd.f32 0.0, %v8216
      %v8218 = vpop.f32.mrb[0].mxu0
      %8219 = vmatprep.mubr.f32.mxu0 0.0
      %8220 = vmatmul.mubr.f32.gmra.mrb[0].mxu0 %v7753
      %v8221 = vpop.f32.mrb[0].mxu0
      %v8222 = vadd.f32 0.0, %v8221
      %v8223 = vpop.f32.mrb[0].mxu0
      %8224 = vmatprep.mubr.f32.mxu0 0.0
      %8225 = vmatmul.mubr.f32.gmra.mrb[0].mxu0 %v7752
      %v8226 = vpop.f32.mrb[0].mxu0
      %v8227 = vadd.f32 0.0, %v8226
      %v8228 = vpop.f32.mrb[0].mxu0
      %8229 = vmatprep.mubr.f32.mxu0 0.0
      %8230 = vmatmul.mubr.f32.gmra.mrb[0].mxu0 %v7751
      %v8231 = vpop.f32.mrb[0].mxu0
      %v8232 = vadd.f32 0.0, %v8231
      %v8233 = vpop.f32.mrb[0].mxu0
      %8234 = vmatprep.mubr.f32.mxu0 0.0
      %8235 = vmatmul.mubr.f32.gmra.mrb[0].mxu0 %v7750
      %v8236 = vpop.f32.mrb[0].mxu0
      %v8237 = vadd.f32 0.0, %v8236
      %v8238 = vpop.f32.mrb[0].mxu0
      %8239 = vmatprep.mubr.f32.mxu0 0.0
      %8240 = vmatmul.mubr.f32.gmra.mrb[0].mxu0 %v7749
      %v8241 = vpop.f32.mrb[0].mxu0
      %v8242 = vadd.f32 0.0, %v8241
      %v8243 = vpop.f32.mrb[0].mxu0
      %8244 = vmatprep.mubr.f32.mxu0 0.0
      %8245 = vmatmul.mubr.f32.gmra.mrb[0].mxu0 %v7748
      %v8246 = vpop.f32.mrb[0].mxu0
      %v8247 = vadd.f32 0.0, %v8246
      %v8248 = vpop.f32.mrb[0].mxu0
      %8249 = vmatprep.mubr.f32.mxu0 0.0
      %8250 = vmatmul.mubr.f32.gmra.mrb[0].mxu0 %v7747
      %v8251 = vpop.f32.mrb[0].mxu0
      %v8252 = vadd.f32 0.0, %v8251
      %v8253 = vpop.f32.mrb[0].mxu0
      %8254 = vmatprep.mubr.f32.mxu0 0.0
      %8255 = vmatmul.mubr.f32.gmra.mrb[0].mxu0 %v7746
      %v8256 = vpop.f32.mrb[0].mxu0
      %v8257 = vadd.f32 0.0, %v8256
      %v8258 = vpop.f32.mrb[0].mxu0
      %8259 = vmatprep.mubr.f32.mxu0 0.0
      %8260 = vmatmul.mubr.f32.gmra.mrb[0].mxu0 %v7745
      %v8261 = vpop.f32.mrb[0].mxu0
      %v8262 = vadd.f32 0.0, %v8261
      %v8263 = vpop.f32.mrb[0].mxu0
      %8264 = vmatprep.mubr.f32.mxu0 0.0
      %8265 = vmatmul.mubr.f32.gmra.mrb[0].mxu0 %v7744
      %v8266 = vpop.f32.mrb[0].mxu0
      %v8267 = vadd.f32 0.0, %v8266
      %v8268 = vpop.f32.mrb[0].mxu0
      %8269 = vmatprep.mubr.f32.mxu0 0.0
      %8270 = vmatmul.mubr.f32.gmra.mrb[0].mxu0 %v7743
      %v8271 = vpop.f32.mrb[0].mxu0
      %v8272 = vadd.f32 0.0, %v8271
      %v8273 = vpop.f32.mrb[0].mxu0
      %8274 = vmatprep.mubr.f32.mxu0 0.0
      %8275 = vmatmul.mubr.f32.gmra.mrb[0].mxu0 %v7742
      %v8276 = vpop.f32.mrb[0].mxu0
      %v8277 = vadd.f32 0.0, %v8276
      %v8278 = vpop.f32.mrb[0].mxu0
      %8279 = vmatprep.mubr.f32.mxu0 0.0
      %8280 = vmatmul.mubr.f32.gmra.mrb[0].mxu0 %v7741
      %v8281 = vpop.f32.mrb[0].mxu0
      %v8282 = vadd.f32 0.0, %v8281
      %v8283 = vpop.f32.mrb[0].mxu0
      %8284 = vmatprep.mubr.f32.mxu0 0.0
      %8285 = vmatmul.mubr.f32.gmra.mrb[0].mxu0 %v7740
      %v8286 = vpop.f32.mrb[0].mxu0
      %v8287 = vadd.f32 0.0, %v8286
      %v8288 = vpop.f32.mrb[0].mxu0
      %8289 = vmatprep.mubr.f32.mxu0 0.0
      %8290 = vmatmul.mubr.f32.gmra.mrb[0].mxu0 %v7739
      %v8291 = vpop.f32.mrb[0].mxu0
      %v8292 = vadd.f32 0.0, %v8291
      %v8293 = vpop.f32.mrb[0].mxu0
      %8294 = vmatprep.mubr.f32.mxu0 0.0
      %8295 = vmatmul.mubr.f32.gmra.mrb[0].mxu0 %v7738
      %v8296 = vpop.f32.mrb[0].mxu0
      %v8297 = vadd.f32 0.0, %v8296
      %v8298 = vpop.f32.mrb[0].mxu0
      %8299 = vmatprep.mubr.f32.mxu0 0.0
      %8300 = vmatmul.mubr.f32.gmra.mrb[0].mxu0 %v7737
      %v8301 = vpop.f32.mrb[0].mxu0
      %v8302 = vadd.f32 0.0, %v8301
      %v8303 = vpop.f32.mrb[0].mxu0
      %8304 = vmatprep.mubr.f32.mxu0 0.0
      %8305 = vmatmul.mubr.f32.gmra.mrb[0].mxu0 %v7736
      %v8306 = vpop.f32.mrb[0].mxu0
      %v8307 = vadd.f32 0.0, %v8306
      %v8308 = vpop.f32.mrb[0].mxu0
      %8309 = vmatprep.mubr.f32.mxu0 0.0
      %8310 = vmatmul.mubr.f32.gmra.mrb[0].mxu0 %v7735
      %v8311 = vpop.f32.mrb[0].mxu0
      %v8312 = vadd.f32 0.0, %v8311
      %v8313 = vpop.f32.mrb[0].mxu0
      %8314 = vmatprep.mubr.f32.mxu0 0.0
      %8315 = vmatmul.mubr.f32.gmra.mrb[0].mxu0 %v7734
      %v8316 = vpop.f32.mrb[0].mxu0
      %v8317 = vadd.f32 0.0, %v8316
      %v8318 = vpop.f32.mrb[0].mxu0
      %8319 = vmatprep.mubr.f32.mxu0 0.0
      %8320 = vmatmul.mubr.f32.gmra.mrb[0].mxu0 %v7733
      %v8321 = vpop.f32.mrb[0].mxu0
      %v8322 = vadd.f32 0.0, %v8321
      %v8323 = vpop.f32.mrb[0].mxu0
      %8324 = vmatprep.mubr.f32.mxu0 0.0
      %8325 = vmatmul.mubr.f32.gmra.mrb[0].mxu0 %v7732
      %v8326 = vpop.f32.mrb[0].mxu0
      %v8327 = vadd.f32 0.0, %v8326
      %v8328 = vpop.f32.mrb[0].mxu0
      %8329 = vmatprep.mubr.f32.mxu0 0.0
      %8330 = vmatmul.mubr.f32.gmra.mrb[0].mxu0 %v7731
      %v8331 = vpop.f32.mrb[0].mxu0
      %v8332 = vadd.f32 0.0, %v8331
      %v8333 = vpop.f32.mrb[0].mxu0
      %8334 = vmatprep.mubr.f32.mxu0 0.0
      %8335 = vmatmul.mubr.f32.gmra.mrb[0].mxu0 %v7730
      %v8336 = vpop.f32.mrb[0].mxu0
      %v8337 = vadd.f32 0.0, %v8336
      %v8338 = vpop.f32.mrb[0].mxu0
      %8339 = vmatprep.mubr.f32.mxu0 0.0
      %8340 = vmatmul.mubr.f32.gmra.mrb[0].mxu0 %v7729
      %v8341 = vpop.f32.mrb[0].mxu0
      %v8342 = vadd.f32 0.0, %v8341
      %v8343 = vpop.f32.mrb[0].mxu0
      %8344 = vmatprep.mubr.f32.mxu0 0.0
      %8345 = vmatmul.mubr.f32.gmra.mrb[0].mxu0 %v7728
      %v8346 = vpop.f32.mrb[0].mxu0
      %v8347 = vadd.f32 0.0, %v8346
      %v8348 = vpop.f32.mrb[0].mxu0
      %8349 = vmatprep.mubr.f32.mxu0 0.0
      %8350 = vmatmul.mubr.f32.gmra.mrb[0].mxu0 %v7727
      %v8351 = vpop.f32.mrb[0].mxu0
      %v8352 = vadd.f32 0.0, %v8351
      %v8353 = vpop.f32.mrb[0].mxu0
      %8354 = vmatprep.mubr.f32.mxu0 0.0
      %8355 = vmatmul.mubr.f32.gmra.mrb[0].mxu0 %v7726
      %v8356 = vpop.f32.mrb[0].mxu0
      %v8357 = vadd.f32 0.0, %v8356
      %v8358 = vpop.f32.mrb[0].mxu0
      %8359 = vmatprep.mubr.f32.mxu0 0.0
      %8360 = vmatmul.mubr.f32.gmra.mrb[0].mxu0 %v7725
      %v8361 = vpop.f32.mrb[0].mxu0
      %v8362 = vadd.f32 0.0, %v8361
      %v8363 = vpop.f32.mrb[0].mxu0
      %8364 = vmatprep.mubr.f32.mxu0 0.0
      %8365 = vmatmul.mubr.f32.gmra.mrb[0].mxu0 %v7724
      %v8366 = vpop.f32.mrb[0].mxu0
      %v8367 = vadd.f32 0.0, %v8366
      %v8368 = vpop.f32.mrb[0].mxu0
      %8369 = vmatprep.mubr.f32.mxu0 0.0
      %8370 = vmatmul.mubr.f32.gmra.mrb[0].mxu0 %v7723
      %v8371 = vpop.f32.mrb[0].mxu0
      %v8372 = vadd.f32 0.0, %v8371
      %v8373 = vpop.f32.mrb[0].mxu0
      %8374 = vmatprep.mubr.f32.mxu0 0.0
      %8375 = vmatmul.mubr.f32.gmra.mrb[0].mxu0 %v7722
      %v8376 = vpop.f32.mrb[0].mxu0
      %v8377 = vadd.f32 0.0, %v8376
      %v8378 = vpop.f32.mrb[0].mxu0
      %8379 = vmatprep.mubr.f32.mxu0 0.0
      %8380 = vmatmul.mubr.f32.gmra.mrb[0].mxu0 %v7721
      %v8381 = vpop.f32.mrb[0].mxu0
      %v8382 = vadd.f32 0.0, %v8381
      %v8383 = vpop.f32.mrb[0].mxu0
      %8384 = vmatprep.mubr.f32.mxu0 0.0
      %8385 = vmatmul.mubr.f32.gmra.mrb[0].mxu0 %v7720
      %v8386 = vpop.f32.mrb[0].mxu0
      %v8387 = vadd.f32 0.0, %v8386
      %v8388 = vpop.f32.mrb[0].mxu0
      %8389 = vmatprep.mubr.f32.mxu0 0.0
      %8390 = vmatmul.mubr.f32.gmra.mrb[0].mxu0 %v7719
      %v8391 = vpop.f32.mrb[0].mxu0
      %v8392 = vadd.f32 0.0, %v8391
      %v8393 = vpop.f32.mrb[0].mxu0
      %8394 = vmatprep.mubr.f32.mxu0 0.0
      %8395 = vmatmul.mubr.f32.gmra.mrb[0].mxu0 %v7718
      %v8396 = vpop.f32.mrb[0].mxu0
      %v8397 = vadd.f32 0.0, %v8396
      %v8398 = vpop.f32.mrb[0].mxu0
      %8399 = vmatprep.mubr.f32.mxu0 0.0
      %8400 = vmatmul.mubr.f32.gmra.mrb[0].mxu0 %v7717
      %v8401 = vpop.f32.mrb[0].mxu0
      %v8402 = vadd.f32 0.0, %v8401
      %v8403 = vpop.f32.mrb[0].mxu0
      %8404 = vmatprep.mubr.f32.mxu0 0.0
      %8405 = vmatmul.mubr.f32.gmra.mrb[0].mxu0 %v7716
      %v8406 = vpop.f32.mrb[0].mxu0
      %v8407 = vadd.f32 0.0, %v8406
      %v8408 = vpop.f32.mrb[0].mxu0
      %8409 = vmatprep.mubr.f32.mxu0 0.0
      %8410 = vmatmul.mubr.f32.gmra.mrb[0].mxu0 %v7715
      %v8411 = vpop.f32.mrb[0].mxu0
      %v8412 = vadd.f32 0.0, %v8411
      %v8413 = vpop.f32.mrb[0].mxu0
      %8414 = vmatprep.mubr.f32.mxu0 0.0
      %8415 = vmatmul.mubr.f32.gmra.mrb[0].mxu0 %v7714
      %v8416 = vpop.f32.mrb[0].mxu0
      %v8417 = vadd.f32 0.0, %v8416
      %v8418 = vpop.f32.mrb[0].mxu0
      %8419 = vmatprep.mubr.f32.mxu0 0.0
      %8420 = vmatmul.mubr.f32.gmra.mrb[0].mxu0 %v7713
      %v8421 = vpop.f32.mrb[0].mxu0
      %v8422 = vadd.f32 0.0, %v8421
      %v8423 = vpop.f32.mrb[0].mxu0
      %8424 = vmatprep.mubr.f32.mxu0 0.0
      %8425 = vmatmul.mubr.f32.gmra.mrb[0].mxu0 %v7712
      %v8426 = vpop.f32.mrb[0].mxu0
      %v8427 = vadd.f32 0.0, %v8426
      %v8428 = vpop.f32.mrb[0].mxu0
      %8429 = vmatprep.mubr.f32.mxu0 0.0
      %8430 = vmatmul.mubr.f32.gmra.mrb[0].mxu0 %v7711
      %v8431 = vpop.f32.mrb[0].mxu0
      %v8432 = vadd.f32 0.0, %v8431
      %v8433 = vpop.f32.mrb[0].mxu0
      %8434 = vmatprep.mubr.f32.mxu0 0.0
      %8435 = vmatmul.mubr.f32.gmra.mrb[0].mxu0 %v7710
      %v8436 = vpop.f32.mrb[0].mxu0
      %v8437 = vadd.f32 0.0, %v8436
      %v8438 = vpop.f32.mrb[0].mxu0
      %8439 = vmatprep.mubr.f32.mxu0 0.0
      %8440 = vmatmul.mubr.f32.gmra.mrb[0].mxu0 %v7709
      %v8441 = vpop.f32.mrb[0].mxu0
      %v8442 = vadd.f32 0.0, %v8441
      %v8443 = vpop.f32.mrb[0].mxu0
      %8444 = vmatprep.mubr.f32.mxu0 0.0
      %8445 = vmatmul.mubr.f32.gmra.mrb[0].mxu0 %v7708
      %v8446 = vpop.f32.mrb[0].mxu0
      %v8447 = vadd.f32 0.0, %v8446
      %v8448 = vpop.f32.mrb[0].mxu0
      %8449 = vmatprep.mubr.f32.mxu0 0.0
      %8450 = vmatmul.mubr.f32.gmra.mrb[0].mxu0 %v7707
      %v8451 = vpop.f32.mrb[0].mxu0
      %v8452 = vadd.f32 0.0, %v8451
      %v8453 = vpop.f32.mrb[0].mxu0
      %8454 = vmatprep.mubr.f32.mxu0 0.0
      %8455 = vmatmul.mubr.f32.gmra.mrb[0].mxu0 %v7706
      %v8456 = vpop.f32.mrb[0].mxu0
      %v8457 = vadd.f32 0.0, %v8456
      %v8458 = vpop.f32.mrb[0].mxu0
      %8459 = vmatprep.mubr.f32.mxu0 0.0
      %8460 = vmatmul.mubr.f32.gmra.mrb[0].mxu0 %v7705
      %v8461 = vpop.f32.mrb[0].mxu0
      %v8462 = vadd.f32 0.0, %v8461
      %v8463 = vpop.f32.mrb[0].mxu0
      %8464 = vmatprep.mubr.f32.mxu0 0.0
      %8465 = vmatmul.mubr.f32.gmra.mrb[0].mxu0 %v7704
      %v8466 = vpop.f32.mrb[0].mxu0
      %v8467 = vadd.f32 0.0, %v8466
      %v8468 = vpop.f32.mrb[0].mxu0
      %8469 = vmatprep.mubr.f32.mxu0 0.0
      %8470 = vmatmul.mubr.f32.gmra.mrb[0].mxu0 %v7703
      %v8471 = vpop.f32.mrb[0].mxu0
      %v8472 = vadd.f32 0.0, %v8471
      %v8473 = vpop.f32.mrb[0].mxu0
      %8474 = vmatprep.mubr.f32.mxu0 0.0
      %8475 = vmatmul.mubr.f32.gmra.mrb[0].mxu0 %v7702
      %v8476 = vpop.f32.mrb[0].mxu0
      %v8477 = vadd.f32 0.0, %v8476
      %v8478 = vpop.f32.mrb[0].mxu0
      %8479 = vmatprep.mubr.f32.mxu0 0.0
      %8480 = vmatmul.mubr.f32.gmra.mrb[0].mxu0 %v7701
      %v8481 = vpop.f32.mrb[0].mxu0
      %v8482 = vadd.f32 0.0, %v8481
      %v8483 = vpop.f32.mrb[0].mxu0
      %8484 = vmatprep.mubr.f32.mxu0 0.0
      %8485 = vmatmul.mubr.f32.gmra.mrb[0].mxu0 %v7700
      %v8486 = vpop.f32.mrb[0].mxu0
      %v8487 = vadd.f32 0.0, %v8486
      %v8488 = vpop.f32.mrb[0].mxu0
      %8489 = vmatprep.mubr.f32.mxu0 0.0
      %8490 = vmatmul.mubr.f32.gmra.mrb[0].mxu0 %v7699
      %v8491 = vpop.f32.mrb[0].mxu0
      %v8492 = vadd.f32 0.0, %v8491
      %v8493 = vpop.f32.mrb[0].mxu0
      %8494 = vmatprep.mubr.f32.mxu0 0.0
      %8495 = vmatmul.mubr.f32.gmra.mrb[0].mxu0 %v7698
      %v8496 = vpop.f32.mrb[0].mxu0
      %v8497 = vadd.f32 0.0, %v8496
      %v8498 = vpop.f32.mrb[0].mxu0
      %8499 = vmatprep.mubr.f32.mxu0 0.0
      %8500 = vmatmul.mubr.f32.gmra.mrb[0].mxu0 %v7697
      %v8501 = vpop.f32.mrb[0].mxu0
      %v8502 = vadd.f32 0.0, %v8501
      %v8503 = vpop.f32.mrb[0].mxu0
      %8504 = vmatprep.mubr.f32.mxu0 0.0
      %8505 = vmatmul.mubr.f32.gmra.mrb[0].mxu0 %v7696
      %v8506 = vpop.f32.mrb[0].mxu0
      %v8507 = vadd.f32 0.0, %v8506
      %v8508 = vpop.f32.mrb[0].mxu0
      %8509 = vmatprep.mubr.f32.mxu0 0.0
      %8510 = vmatmul.mubr.f32.gmra.mrb[0].mxu0 %v7695
      %v8511 = vpop.f32.mrb[0].mxu0
      %v8512 = vadd.f32 0.0, %v8511
      %v8513 = vpop.f32.mrb[0].mxu0
      %8514 = vmatprep.mubr.f32.mxu0 0.0
      %8515 = vmatmul.mubr.f32.gmra.mrb[0].mxu0 %v7694
      %v8516 = vpop.f32.mrb[0].mxu0
      %v8517 = vadd.f32 0.0, %v8516
      %v8518 = vpop.f32.mrb[0].mxu0
      %8519 = vmatprep.mubr.f32.mxu0 0.0
      %8520 = vmatmul.mubr.f32.gmra.mrb[0].mxu0 %v7693
      %v8521 = vpop.f32.mrb[0].mxu0
      %v8522 = vadd.f32 0.0, %v8521
      %v8523 = vpop.f32.mrb[0].mxu0
      %8524 = vmatprep.mubr.f32.mxu0 0.0
      %8525 = vmatmul.mubr.f32.gmra.mrb[0].mxu0 %v7692
      %v8526 = vpop.f32.mrb[0].mxu0
      %v8527 = vadd.f32 0.0, %v8526
      %v8528 = vpop.f32.mrb[0].mxu0
      %8529 = vmatprep.mubr.f32.mxu0 0.0
      %8530 = vmatmul.mubr.f32.gmra.mrb[0].mxu0 %v7691
      %v8531 = vpop.f32.mrb[0].mxu0
      %v8532 = vadd.f32 0.0, %v8531
      %v8533 = vpop.f32.mrb[0].mxu0
      %8534 = vmatprep.mubr.f32.mxu0 0.0
      %8535 = vmatmul.mubr.f32.gmra.mrb[0].mxu0 %v7690
      %v8536 = vpop.f32.mrb[0].mxu0
      %v8537 = vadd.f32 0.0, %v8536
      %v8538 = vpop.f32.mrb[0].mxu0
      %8539 = vdwg.mxu0
      %v8540 = vadd.f32 %v7402, %v7902
      %v8541 = vadd.f32 %v7403, %v7907
      %v8542 = vadd.f32 %v7404, %v7912
      %v8543 = vadd.f32 %v7405, %v7917
      %v8544 = vadd.f32 %v7406, %v7922
      %v8545 = vadd.f32 %v7407, %v7927
      %v8546 = vadd.f32 %v7408, %v7932
      %v8547 = vadd.f32 %v7409, %v7937
      %v8548 = vadd.f32 %v7410, %v7942
      %v8549 = vadd.f32 %v7411, %v7947
      %v8550 = vadd.f32 %v7412, %v7952
      %v8551 = vadd.f32 %v7413, %v7957
      %v8552 = vadd.f32 %v7414, %v7962
      %v8553 = vadd.f32 %v7415, %v7967
      %v8554 = vadd.f32 %v7416, %v7972
      %v8555 = vadd.f32 %v7417, %v7977
      %v8556 = vadd.f32 %v7418, %v7982
      %v8557 = vadd.f32 %v7419, %v7987
      %v8558 = vadd.f32 %v7420, %v7992
      %v8559 = vadd.f32 %v7421, %v7997
      %v8560 = vadd.f32 %v7422, %v8002
      %v8561 = vadd.f32 %v7423, %v8007
      %v8562 = vadd.f32 %v7424, %v8012
      %v8563 = vadd.f32 %v7425, %v8017
      %v8564 = vadd.f32 %v7426, %v8022
      %v8565 = vadd.f32 %v7427, %v8027
      %v8566 = vadd.f32 %v7428, %v8032
      %v8567 = vadd.f32 %v7429, %v8037
      %v8568 = vadd.f32 %v7430, %v8042
      %v8569 = vadd.f32 %v7431, %v8047
      %v8570 = vadd.f32 %v7432, %v8052
      %v8571 = vadd.f32 %v7433, %v8057
      %v8572 = vadd.f32 %v7434, %v8062
      %v8573 = vadd.f32 %v7435, %v8067
      %v8574 = vadd.f32 %v7436, %v8072
      %v8575 = vadd.f32 %v7437, %v8077
      %v8576 = vadd.f32 %v7438, %v8082
      %v8577 = vadd.f32 %v7439, %v8087
      %v8578 = vadd.f32 %v7440, %v8092
      %v8579 = vadd.f32 %v7441, %v8097
      %v8580 = vadd.f32 %v7442, %v8102
      %v8581 = vadd.f32 %v7443, %v8107
      %v8582 = vadd.f32 %v7444, %v8112
      %v8583 = vadd.f32 %v7445, %v8117
      %v8584 = vadd.f32 %v7446, %v8122
      %v8585 = vadd.f32 %v7447, %v8127
      %v8586 = vadd.f32 %v7448, %v8132
      %v8587 = vadd.f32 %v7449, %v8137
      %v8588 = vadd.f32 %v7450, %v8142
      %v8589 = vadd.f32 %v7451, %v8147
      %v8590 = vadd.f32 %v7452, %v8152
      %v8591 = vadd.f32 %v7453, %v8157
      %v8592 = vadd.f32 %v7454, %v8162
      %v8593 = vadd.f32 %v7455, %v8167
      %v8594 = vadd.f32 %v7456, %v8172
      %v8595 = vadd.f32 %v7457, %v8177
      %v8596 = vadd.f32 %v7458, %v8182
      %v8597 = vadd.f32 %v7459, %v8187
      %v8598 = vadd.f32 %v7460, %v8192
      %v8599 = vadd.f32 %v7461, %v8197
      %v8600 = vadd.f32 %v7462, %v8202
      %v8601 = vadd.f32 %v7463, %v8207
      %v8602 = vadd.f32 %v7464, %v8212
      %v8603 = vadd.f32 %v7465, %v8217
      %v8604 = vadd.f32 %v7466, %v8222
      %v8605 = vadd.f32 %v7467, %v8227
      %v8606 = vadd.f32 %v7468, %v8232
      %v8607 = vadd.f32 %v7469, %v8237
      %v8608 = vadd.f32 %v7470, %v8242
      %v8609 = vadd.f32 %v7471, %v8247
      %v8610 = vadd.f32 %v7472, %v8252
      %v8611 = vadd.f32 %v7473, %v8257
      %v8612 = vadd.f32 %v7474, %v8262
      %v8613 = vadd.f32 %v7475, %v8267
      %v8614 = vadd.f32 %v7476, %v8272
      %v8615 = vadd.f32 %v7477, %v8277
      %v8616 = vadd.f32 %v7478, %v8282
      %v8617 = vadd.f32 %v7479, %v8287
      %v8618 = vadd.f32 %v7480, %v8292
      %v8619 = vadd.f32 %v7481, %v8297
      %v8620 = vadd.f32 %v7482, %v8302
      %v8621 = vadd.f32 %v7483, %v8307
      %v8622 = vadd.f32 %v7484, %v8312
      %v8623 = vadd.f32 %v7485, %v8317
      %v8624 = vadd.f32 %v7486, %v8322
      %v8625 = vadd.f32 %v7487, %v8327
      %v8626 = vadd.f32 %v7488, %v8332
      %v8627 = vadd.f32 %v7489, %v8337
      %v8628 = vadd.f32 %v7490, %v8342
      %v8629 = vadd.f32 %v7491, %v8347
      %v8630 = vadd.f32 %v7492, %v8352
      %v8631 = vadd.f32 %v7493, %v8357
      %v8632 = vadd.f32 %v7494, %v8362
      %v8633 = vadd.f32 %v7495, %v8367
      %v8634 = vadd.f32 %v7496, %v8372
      %v8635 = vadd.f32 %v7497, %v8377
      %v8636 = vadd.f32 %v7498, %v8382
      %v8637 = vadd.f32 %v7499, %v8387
      %v8638 = vadd.f32 %v7500, %v8392
      %v8639 = vadd.f32 %v7501, %v8397
      %v8640 = vadd.f32 %v7502, %v8402
      %v8641 = vadd.f32 %v7503, %v8407
      %v8642 = vadd.f32 %v7504, %v8412
      %v8643 = vadd.f32 %v7505, %v8417
      %v8644 = vadd.f32 %v7506, %v8422
      %v8645 = vadd.f32 %v7507, %v8427
      %v8646 = vadd.f32 %v7508, %v8432
      %v8647 = vadd.f32 %v7509, %v8437
      %v8648 = vadd.f32 %v7510, %v8442
      %v8649 = vadd.f32 %v7511, %v8447
      %v8650 = vadd.f32 %v7512, %v8452
      %v8651 = vadd.f32 %v7513, %v8457
      %v8652 = vadd.f32 %v7514, %v8462
      %v8653 = vadd.f32 %v7515, %v8467
      %v8654 = vadd.f32 %v7516, %v8472
      %v8655 = vadd.f32 %v7517, %v8477
      %v8656 = vadd.f32 %v7518, %v8482
      %v8657 = vadd.f32 %v7519, %v8487
      %v8658 = vadd.f32 %v7520, %v8492
      %v8659 = vadd.f32 %v7521, %v8497
      %v8660 = vadd.f32 %v7522, %v8502
      %v8661 = vadd.f32 %v7523, %v8507
      %v8662 = vadd.f32 %v7524, %v8512
      %v8663 = vadd.f32 %v7525, %v8517
      %v8664 = vadd.f32 %v7526, %v8522
      %v8665 = vadd.f32 %v7527, %v8527
      %v8666 = vadd.f32 %v7528, %v8532
      %v8667 = vadd.f32 %v7529, %v8537
      %v8668 = vrot.slane %v6520, 2
      %v8669 = vrot.slane %v6521, 2
      %v8670 = vrot.slane %v6522, 2
      %v8671 = vrot.slane %v6523, 2
      %v8672 = vrot.slane %v6524, 2
      %v8673 = vrot.slane %v6525, 2
      %v8674 = vrot.slane %v6526, 2
      %v8675 = vrot.slane %v6527, 2
      %v8676 = vrot.slane %v6528, 2
      %v8677 = vrot.slane %v6529, 2
      %v8678 = vrot.slane %v6530, 2
      %v8679 = vrot.slane %v6531, 2
      %v8680 = vrot.slane %v6532, 2
      %v8681 = vrot.slane %v6533, 2
      %v8682 = vrot.slane %v6534, 2
      %v8683 = vrot.slane %v6535, 2
      %v8684 = vrot.slane %v6536, 2
      %v8685 = vrot.slane %v6537, 2
      %v8686 = vrot.slane %v6538, 2
      %v8687 = vrot.slane %v6539, 2
      %v8688 = vrot.slane %v6540, 2
      %v8689 = vrot.slane %v6541, 2
      %v8690 = vrot.slane %v6542, 2
      %v8691 = vrot.slane %v6543, 2
      %v8692 = vrot.slane %v6544, 2
      %v8693 = vrot.slane %v6545, 2
      %v8694 = vrot.slane %v6546, 2
      %v8695 = vrot.slane %v6547, 2
      %v8696 = vrot.slane %v6548, 2
      %v8697 = vrot.slane %v6549, 2
      %v8698 = vrot.slane %v6550, 2
      %v8699 = vrot.slane %v6551, 2
      %v8700 = vrot.slane %v6552, 2
      %v8701 = vrot.slane %v6553, 2
      %v8702 = vrot.slane %v6554, 2
      %v8703 = vrot.slane %v6555, 2
      %v8704 = vrot.slane %v6556, 2
      %v8705 = vrot.slane %v6557, 2
      %v8706 = vrot.slane %v6558, 2
      %v8707 = vrot.slane %v6559, 2
      %v8708 = vrot.slane %v6560, 2
      %v8709 = vrot.slane %v6561, 2
      %v8710 = vrot.slane %v6562, 2
      %v8711 = vrot.slane %v6563, 2
      %v8712 = vrot.slane %v6564, 2
      %v8713 = vrot.slane %v6565, 2
      %v8714 = vrot.slane %v6566, 2
      %v8715 = vrot.slane %v6567, 2
      %v8716 = vrot.slane %v6568, 2
      %v8717 = vrot.slane %v6569, 2
      %v8718 = vrot.slane %v6570, 2
      %v8719 = vrot.slane %v6571, 2
      %v8720 = vrot.slane %v6572, 2
      %v8721 = vrot.slane %v6573, 2
      %v8722 = vrot.slane %v6574, 2
      %v8723 = vrot.slane %v6575, 2
      %v8724 = vrot.slane %v6576, 2
      %v8725 = vrot.slane %v6577, 2
      %v8726 = vrot.slane %v6578, 2
      %v8727 = vrot.slane %v6579, 2
      %v8728 = vrot.slane %v6580, 2
      %v8729 = vrot.slane %v6581, 2
      %v8730 = vrot.slane %v6582, 2
      %v8731 = vrot.slane %v6583, 2
      %v8732 = vrot.slane %v6584, 2
      %v8733 = vrot.slane %v6585, 2
      %v8734 = vrot.slane %v6586, 2
      %v8735 = vrot.slane %v6587, 2
      %v8736 = vrot.slane %v6588, 2
      %v8737 = vrot.slane %v6589, 2
      %v8738 = vrot.slane %v6590, 2
      %v8739 = vrot.slane %v6591, 2
      %v8740 = vrot.slane %v6592, 2
      %v8741 = vrot.slane %v6593, 2
      %v8742 = vrot.slane %v6594, 2
      %v8743 = vrot.slane %v6595, 2
      %v8744 = vrot.slane %v6596, 2
      %v8745 = vrot.slane %v6597, 2
      %v8746 = vrot.slane %v6598, 2
      %v8747 = vrot.slane %v6599, 2
      %v8748 = vrot.slane %v6600, 2
      %v8749 = vrot.slane %v6601, 2
      %v8750 = vrot.slane %v6602, 2
      %v8751 = vrot.slane %v6603, 2
      %v8752 = vrot.slane %v6604, 2
      %v8753 = vrot.slane %v6605, 2
      %v8754 = vrot.slane %v6606, 2
      %v8755 = vrot.slane %v6607, 2
      %v8756 = vrot.slane %v6608, 2
      %v8757 = vrot.slane %v6609, 2
      %v8758 = vrot.slane %v6610, 2
      %v8759 = vrot.slane %v6611, 2
      %v8760 = vrot.slane %v6612, 2
      %v8761 = vrot.slane %v6613, 2
      %v8762 = vrot.slane %v6614, 2
      %v8763 = vrot.slane %v6615, 2
      %v8764 = vrot.slane %v6616, 2
      %v8765 = vrot.slane %v6617, 2
      %v8766 = vrot.slane %v6618, 2
      %v8767 = vrot.slane %v6619, 2
      %v8768 = vrot.slane %v6620, 2
      %v8769 = vrot.slane %v6621, 2
      %v8770 = vrot.slane %v6622, 2
      %v8771 = vrot.slane %v6623, 2
      %v8772 = vrot.slane %v6624, 2
      %v8773 = vrot.slane %v6625, 2
      %v8774 = vrot.slane %v6626, 2
      %v8775 = vrot.slane %v6627, 2
      %v8776 = vrot.slane %v6628, 2
      %v8777 = vrot.slane %v6629, 2
      %v8778 = vrot.slane %v6630, 2
      %v8779 = vrot.slane %v6631, 2
      %v8780 = vrot.slane %v6632, 2
      %v8781 = vrot.slane %v6633, 2
      %v8782 = vrot.slane %v6634, 2
      %v8783 = vrot.slane %v6635, 2
      %v8784 = vrot.slane %v6636, 2
      %v8785 = vrot.slane %v6637, 2
      %v8786 = vrot.slane %v6638, 2
      %v8787 = vrot.slane %v6639, 2
      %v8788 = vrot.slane %v6640, 2
      %v8789 = vrot.slane %v6641, 2
      %v8790 = vrot.slane %v6642, 2
      %v8791 = vrot.slane %v6643, 2
      %v8792 = vrot.slane %v6644, 2
      %v8793 = vrot.slane %v6645, 2
      %v8794 = vrot.slane %v6646, 2
      %v8795 = vrot.slane %v6647, 2
      %v8796 = vrot.slane %v6648, 2
      %v8797 = vrot.slane %v6649, 2
      %v8798 = vrot.slane %v6650, 2
      %v8799 = vrot.slane %v6651, 2
      %v8800 = vrot.slane %v6652, 2
      %v8801 = vrot.slane %v6653, 2
      %v8802 = vrot.slane %v6654, 2
      %v8803 = vrot.slane %v6655, 2
      %v8804 = vrot.slane %v6656, 2
      %v8805 = vrot.slane %v6657, 2
      %v8806 = vrot.slane %v6658, 2
      %v8807 = vrot.slane %v6659, 2
      %v8808 = vrot.slane %v6660, 2
      %v8809 = vrot.slane %v6661, 2
      %v8810 = vrot.slane %v6662, 2
      %v8811 = vrot.slane %v6663, 2
      %v8812 = vrot.slane %v6664, 2
      %v8813 = vrot.slane %v6665, 2
      %v8814 = vrot.slane %v6666, 2
      %v8815 = vrot.slane %v6667, 2
      %v8816 = vrot.slane %v6668, 2
      %v8817 = vrot.slane %v6669, 2
      %v8818 = vrot.slane %v6670, 2
      %v8819 = vrot.slane %v6671, 2
      %v8820 = vrot.slane %v6672, 2
      %v8821 = vrot.slane %v6673, 2
      %v8822 = vrot.slane %v6674, 2
      %v8823 = vrot.slane %v6675, 2
      %v8824 = vrot.slane %v6676, 2
      %v8825 = vrot.slane %v6677, 2
      %v8826 = vrot.slane %v6678, 2
      %v8827 = vrot.slane %v6679, 2
      %v8828 = vsel %vm2253, %v8826, %v8827
      %v8829 = vsel %vm2253, %v8825, %v8826
      %v8830 = vsel %vm2253, %v8824, %v8825
      %v8831 = vsel %vm2253, %v8823, %v8824
      %v8832 = vsel %vm2253, %v8821, %v8822
      %v8833 = vsel %vm2253, %v8820, %v8821
      %v8834 = vsel %vm2253, %v8819, %v8820
      %v8835 = vsel %vm2253, %v8818, %v8819
      %v8836 = vsel %vm2253, %v8816, %v8817
      %v8837 = vsel %vm2253, %v8815, %v8816
      %v8838 = vsel %vm2253, %v8814, %v8815
      %v8839 = vsel %vm2253, %v8813, %v8814
      %v8840 = vsel %vm2253, %v8811, %v8812
      %v8841 = vsel %vm2253, %v8810, %v8811
      %v8842 = vsel %vm2253, %v8809, %v8810
      %v8843 = vsel %vm2253, %v8808, %v8809
      %v8844 = vsel %vm2253, %v8806, %v8807
      %v8845 = vsel %vm2253, %v8805, %v8806
      %v8846 = vsel %vm2253, %v8804, %v8805
      %v8847 = vsel %vm2253, %v8803, %v8804
      %v8848 = vsel %vm2253, %v8801, %v8802
      %v8849 = vsel %vm2253, %v8800, %v8801
      %v8850 = vsel %vm2253, %v8799, %v8800
      %v8851 = vsel %vm2253, %v8798, %v8799
      %v8852 = vsel %vm2253, %v8796, %v8797
      %v8853 = vsel %vm2253, %v8795, %v8796
      %v8854 = vsel %vm2253, %v8794, %v8795
      %v8855 = vsel %vm2253, %v8793, %v8794
      %v8856 = vsel %vm2253, %v8791, %v8792
      %v8857 = vsel %vm2253, %v8790, %v8791
      %v8858 = vsel %vm2253, %v8789, %v8790
      %v8859 = vsel %vm2253, %v8788, %v8789
      %v8860 = vsel %vm2253, %v8786, %v8787
      %v8861 = vsel %vm2253, %v8785, %v8786
      %v8862 = vsel %vm2253, %v8784, %v8785
      %v8863 = vsel %vm2253, %v8783, %v8784
      %v8864 = vsel %vm2253, %v8781, %v8782
      %v8865 = vsel %vm2253, %v8780, %v8781
      %v8866 = vsel %vm2253, %v8779, %v8780
      %v8867 = vsel %vm2253, %v8778, %v8779
      %v8868 = vsel %vm2253, %v8776, %v8777
      %v8869 = vsel %vm2253, %v8775, %v8776
      %v8870 = vsel %vm2253, %v8774, %v8775
      %v8871 = vsel %vm2253, %v8773, %v8774
      %v8872 = vsel %vm2253, %v8771, %v8772
      %v8873 = vsel %vm2253, %v8770, %v8771
      %v8874 = vsel %vm2253, %v8769, %v8770
      %v8875 = vsel %vm2253, %v8768, %v8769
      %v8876 = vsel %vm2253, %v8766, %v8767
      %v8877 = vsel %vm2253, %v8765, %v8766
      %v8878 = vsel %vm2253, %v8764, %v8765
      %v8879 = vsel %vm2253, %v8763, %v8764
      %v8880 = vsel %vm2253, %v8761, %v8762
      %v8881 = vsel %vm2253, %v8760, %v8761
      %v8882 = vsel %vm2253, %v8759, %v8760
      %v8883 = vsel %vm2253, %v8758, %v8759
      %v8884 = vsel %vm2253, %v8756, %v8757
      %v8885 = vsel %vm2253, %v8755, %v8756
      %v8886 = vsel %vm2253, %v8754, %v8755
      %v8887 = vsel %vm2253, %v8753, %v8754
      %v8888 = vsel %vm2253, %v8751, %v8752
      %v8889 = vsel %vm2253, %v8750, %v8751
      %v8890 = vsel %vm2253, %v8749, %v8750
      %v8891 = vsel %vm2253, %v8748, %v8749
      %v8892 = vsel %vm2253, %v8746, %v8747
      %v8893 = vsel %vm2253, %v8745, %v8746
      %v8894 = vsel %vm2253, %v8744, %v8745
      %v8895 = vsel %vm2253, %v8743, %v8744
      %v8896 = vsel %vm2253, %v8741, %v8742
      %v8897 = vsel %vm2253, %v8740, %v8741
      %v8898 = vsel %vm2253, %v8739, %v8740
      %v8899 = vsel %vm2253, %v8738, %v8739
      %v8900 = vsel %vm2253, %v8736, %v8737
      %v8901 = vsel %vm2253, %v8735, %v8736
      %v8902 = vsel %vm2253, %v8734, %v8735
      %v8903 = vsel %vm2253, %v8733, %v8734
      %v8904 = vsel %vm2253, %v8731, %v8732
      %v8905 = vsel %vm2253, %v8730, %v8731
      %v8906 = vsel %vm2253, %v8729, %v8730
      %v8907 = vsel %vm2253, %v8728, %v8729
      %v8908 = vsel %vm2253, %v8726, %v8727
      %v8909 = vsel %vm2253, %v8725, %v8726
      %v8910 = vsel %vm2253, %v8724, %v8725
      %v8911 = vsel %vm2253, %v8723, %v8724
      %v8912 = vsel %vm2253, %v8721, %v8722
      %v8913 = vsel %vm2253, %v8720, %v8721
      %v8914 = vsel %vm2253, %v8719, %v8720
      %v8915 = vsel %vm2253, %v8718, %v8719
      %v8916 = vsel %vm2253, %v8716, %v8717
      %v8917 = vsel %vm2253, %v8715, %v8716
      %v8918 = vsel %vm2253, %v8714, %v8715
      %v8919 = vsel %vm2253, %v8713, %v8714
      %v8920 = vsel %vm2253, %v8711, %v8712
      %v8921 = vsel %vm2253, %v8710, %v8711
      %v8922 = vsel %vm2253, %v8709, %v8710
      %v8923 = vsel %vm2253, %v8708, %v8709
      %v8924 = vsel %vm2253, %v8706, %v8707
      %v8925 = vsel %vm2253, %v8705, %v8706
      %v8926 = vsel %vm2253, %v8704, %v8705
      %v8927 = vsel %vm2253, %v8703, %v8704
      %v8928 = vsel %vm2253, %v8701, %v8702
      %v8929 = vsel %vm2253, %v8700, %v8701
      %v8930 = vsel %vm2253, %v8699, %v8700
      %v8931 = vsel %vm2253, %v8698, %v8699
      %v8932 = vsel %vm2253, %v8696, %v8697
      %v8933 = vsel %vm2253, %v8695, %v8696
      %v8934 = vsel %vm2253, %v8694, %v8695
      %v8935 = vsel %vm2253, %v8693, %v8694
      %v8936 = vsel %vm2253, %v8691, %v8692
      %v8937 = vsel %vm2253, %v8690, %v8691
      %v8938 = vsel %vm2253, %v8689, %v8690
      %v8939 = vsel %vm2253, %v8688, %v8689
      %v8940 = vsel %vm2253, %v8686, %v8687
      %v8941 = vsel %vm2253, %v8685, %v8686
      %v8942 = vsel %vm2253, %v8684, %v8685
      %v8943 = vsel %vm2253, %v8683, %v8684
      %v8944 = vsel %vm2253, %v8681, %v8682
      %v8945 = vsel %vm2253, %v8680, %v8681
      %v8946 = vsel %vm2253, %v8679, %v8680
      %v8947 = vsel %vm2253, %v8678, %v8679
      %v8948 = vsel %vm2253, %v8676, %v8677
      %v8949 = vsel %vm2253, %v8675, %v8676
      %v8950 = vsel %vm2253, %v8674, %v8675
      %v8951 = vsel %vm2253, %v8673, %v8674
      %v8952 = vsel %vm2253, %v8671, %v8672
      %v8953 = vsel %vm2253, %v8670, %v8671
      %v8954 = vsel %vm2253, %v8669, %v8670
      %v8955 = vsel %vm2253, %v8668, %v8669
      %s8956 = scalar_lea.vmem %s1, 1024
      %v8957 = vld [vmem:[%s8956] sm:$0xff]
      %v8958 = vld [vmem:[%s8956 + $0x8] sm:$0xff]
      %v8959 = vld [vmem:[%s8956 + $0x10] sm:$0xff]
      %v8960 = vld [vmem:[%s8956 + $0x18] sm:$0xff]
      %v8961 = vld [vmem:[%s8956 + $0x20] sm:$0xff]
      %v8962 = vld [vmem:[%s8956 + $0x28] sm:$0xff]
      %v8963 = vld [vmem:[%s8956 + $0x30] sm:$0xff]
      %v8964 = vld [vmem:[%s8956 + $0x38] sm:$0xff]
      %v8965 = vld [vmem:[%s8956 + $0x40] sm:$0xff]
      %v8966 = vld [vmem:[%s8956 + $0x48] sm:$0xff]
      %v8967 = vld [vmem:[%s8956 + $0x50] sm:$0xff]
      %v8968 = vld [vmem:[%s8956 + $0x58] sm:$0xff]
      %v8969 = vld [vmem:[%s8956 + $0x60] sm:$0xff]
      %v8970 = vld [vmem:[%s8956 + $0x68] sm:$0xff]
      %v8971 = vld [vmem:[%s8956 + $0x70] sm:$0xff]
      %v8972 = vld [vmem:[%s8956 + $0x78] sm:$0xff]
      %8973 = vmatprep.subr.mxu0 0.0
      %8974 = vmatpush1.msra.mxu0 %v8957
      %8975 = vmatprep.subr.mxu0 0.0
      %8976 = vmatpush1.msra.mxu0 %v8958
      %8977 = vmatprep.subr.mxu0 0.0
      %8978 = vmatpush1.msra.mxu0 %v8959
      %8979 = vmatprep.subr.mxu0 0.0
      %8980 = vmatpush1.msra.mxu0 %v8960
      %8981 = vmatprep.subr.mxu0 0.0
      %8982 = vmatpush1.msra.mxu0 %v8961
      %8983 = vmatprep.subr.mxu0 0.0
      %8984 = vmatpush1.msra.mxu0 %v8962
      %8985 = vmatprep.subr.mxu0 0.0
      %8986 = vmatpush1.msra.mxu0 %v8963
      %8987 = vmatprep.subr.mxu0 0.0
      %8988 = vmatpush1.msra.mxu0 %v8964
      %8989 = vmatprep.subr.mxu0 0.0
      %8990 = vmatpush1.msra.mxu0 %v8965
      %8991 = vmatprep.subr.mxu0 0.0
      %8992 = vmatpush1.msra.mxu0 %v8966
      %8993 = vmatprep.subr.mxu0 0.0
      %8994 = vmatpush1.msra.mxu0 %v8967
      %8995 = vmatprep.subr.mxu0 0.0
      %8996 = vmatpush1.msra.mxu0 %v8968
      %8997 = vmatprep.subr.mxu0 0.0
      %8998 = vmatpush1.msra.mxu0 %v8969
      %8999 = vmatprep.subr.mxu0 0.0
      %9000 = vmatpush1.msra.mxu0 %v8970
      %9001 = vmatprep.subr.mxu0 0.0
      %9002 = vmatpush1.msra.mxu0 %v8971
      %9003 = vmatprep.subr.mxu0 0.0
      %9004 = vmatpush1.msra.mxu0 %v8972
      %9005 = vmatprep.subr.mxu0 0.0
      %9006 = vmatpush1.msra.mxu0 0.0
      %9007 = vmatprep.subr.mxu0 0.0
      %9008 = vmatpush1.msra.mxu0 0.0
      %9009 = vmatprep.subr.mxu0 0.0
      %9010 = vmatpush1.msra.mxu0 0.0
      %9011 = vmatprep.subr.mxu0 0.0
      %9012 = vmatpush1.msra.mxu0 0.0
      %9013 = vmatprep.subr.mxu0 0.0
      %9014 = vmatpush1.msra.mxu0 0.0
      %9015 = vmatprep.subr.mxu0 0.0
      %9016 = vmatpush1.msra.mxu0 0.0
      %9017 = vmatprep.subr.mxu0 0.0
      %9018 = vmatpush1.msra.mxu0 0.0
      %9019 = vmatprep.subr.mxu0 0.0
      %9020 = vmatpush1.msra.mxu0 0.0
      %9021 = vmatprep.subr.mxu0 0.0
      %9022 = vmatpush1.msra.mxu0 0.0
      %9023 = vmatprep.subr.mxu0 0.0
      %9024 = vmatpush1.msra.mxu0 0.0
      %9025 = vmatprep.subr.mxu0 0.0
      %9026 = vmatpush1.msra.mxu0 0.0
      %9027 = vmatprep.subr.mxu0 0.0
      %9028 = vmatpush1.msra.mxu0 0.0
      %9029 = vmatprep.subr.mxu0 0.0
      %9030 = vmatpush1.msra.mxu0 0.0
      %9031 = vmatprep.subr.mxu0 0.0
      %9032 = vmatpush1.msra.mxu0 0.0
      %9033 = vmatprep.subr.mxu0 0.0
      %9034 = vmatpush1.msra.mxu0 0.0
      %9035 = vmatprep.subr.mxu0 0.0
      %9036 = vmatpush1.msra.mxu0 0.0
      %9037 = vmatprep.mubr.f32.mxu0 0.0
      %9038 = vmatmul.mubr.f32.gmra.mrb[0].mxu0 %v8955
      %v9039 = vpop.f32.mrb[0].mxu0
      %v9040 = vadd.f32 0.0, %v9039
      %v9041 = vpop.f32.mrb[0].mxu0
      %9042 = vmatprep.mubr.f32.mxu0 0.0
      %9043 = vmatmul.mubr.f32.gmra.mrb[0].mxu0 %v8954
      %v9044 = vpop.f32.mrb[0].mxu0
      %v9045 = vadd.f32 0.0, %v9044
      %v9046 = vpop.f32.mrb[0].mxu0
      %9047 = vmatprep.mubr.f32.mxu0 0.0
      %9048 = vmatmul.mubr.f32.gmra.mrb[0].mxu0 %v8953
      %v9049 = vpop.f32.mrb[0].mxu0
      %v9050 = vadd.f32 0.0, %v9049
      %v9051 = vpop.f32.mrb[0].mxu0
      %9052 = vmatprep.mubr.f32.mxu0 0.0
      %9053 = vmatmul.mubr.f32.gmra.mrb[0].mxu0 %v8952
      %v9054 = vpop.f32.mrb[0].mxu0
      %v9055 = vadd.f32 0.0, %v9054
      %v9056 = vpop.f32.mrb[0].mxu0
      %9057 = vmatprep.mubr.f32.mxu0 0.0
      %9058 = vmatmul.mubr.f32.gmra.mrb[0].mxu0 %v8951
      %v9059 = vpop.f32.mrb[0].mxu0
      %v9060 = vadd.f32 0.0, %v9059
      %v9061 = vpop.f32.mrb[0].mxu0
      %9062 = vmatprep.mubr.f32.mxu0 0.0
      %9063 = vmatmul.mubr.f32.gmra.mrb[0].mxu0 %v8950
      %v9064 = vpop.f32.mrb[0].mxu0
      %v9065 = vadd.f32 0.0, %v9064
      %v9066 = vpop.f32.mrb[0].mxu0
      %9067 = vmatprep.mubr.f32.mxu0 0.0
      %9068 = vmatmul.mubr.f32.gmra.mrb[0].mxu0 %v8949
      %v9069 = vpop.f32.mrb[0].mxu0
      %v9070 = vadd.f32 0.0, %v9069
      %v9071 = vpop.f32.mrb[0].mxu0
      %9072 = vmatprep.mubr.f32.mxu0 0.0
      %9073 = vmatmul.mubr.f32.gmra.mrb[0].mxu0 %v8948
      %v9074 = vpop.f32.mrb[0].mxu0
      %v9075 = vadd.f32 0.0, %v9074
      %v9076 = vpop.f32.mrb[0].mxu0
      %9077 = vmatprep.mubr.f32.mxu0 0.0
      %9078 = vmatmul.mubr.f32.gmra.mrb[0].mxu0 %v8947
      %v9079 = vpop.f32.mrb[0].mxu0
      %v9080 = vadd.f32 0.0, %v9079
      %v9081 = vpop.f32.mrb[0].mxu0
      %9082 = vmatprep.mubr.f32.mxu0 0.0
      %9083 = vmatmul.mubr.f32.gmra.mrb[0].mxu0 %v8946
      %v9084 = vpop.f32.mrb[0].mxu0
      %v9085 = vadd.f32 0.0, %v9084
      %v9086 = vpop.f32.mrb[0].mxu0
      %9087 = vmatprep.mubr.f32.mxu0 0.0
      %9088 = vmatmul.mubr.f32.gmra.mrb[0].mxu0 %v8945
      %v9089 = vpop.f32.mrb[0].mxu0
      %v9090 = vadd.f32 0.0, %v9089
      %v9091 = vpop.f32.mrb[0].mxu0
      %9092 = vmatprep.mubr.f32.mxu0 0.0
      %9093 = vmatmul.mubr.f32.gmra.mrb[0].mxu0 %v8944
      %v9094 = vpop.f32.mrb[0].mxu0
      %v9095 = vadd.f32 0.0, %v9094
      %v9096 = vpop.f32.mrb[0].mxu0
      %9097 = vmatprep.mubr.f32.mxu0 0.0
      %9098 = vmatmul.mubr.f32.gmra.mrb[0].mxu0 %v8943
      %v9099 = vpop.f32.mrb[0].mxu0
      %v9100 = vadd.f32 0.0, %v9099
      %v9101 = vpop.f32.mrb[0].mxu0
      %9102 = vmatprep.mubr.f32.mxu0 0.0
      %9103 = vmatmul.mubr.f32.gmra.mrb[0].mxu0 %v8942
      %v9104 = vpop.f32.mrb[0].mxu0
      %v9105 = vadd.f32 0.0, %v9104
      %v9106 = vpop.f32.mrb[0].mxu0
      %9107 = vmatprep.mubr.f32.mxu0 0.0
      %9108 = vmatmul.mubr.f32.gmra.mrb[0].mxu0 %v8941
      %v9109 = vpop.f32.mrb[0].mxu0
      %v9110 = vadd.f32 0.0, %v9109
      %v9111 = vpop.f32.mrb[0].mxu0
      %9112 = vmatprep.mubr.f32.mxu0 0.0
      %9113 = vmatmul.mubr.f32.gmra.mrb[0].mxu0 %v8940
      %v9114 = vpop.f32.mrb[0].mxu0
      %v9115 = vadd.f32 0.0, %v9114
      %v9116 = vpop.f32.mrb[0].mxu0
      %9117 = vmatprep.mubr.f32.mxu0 0.0
      %9118 = vmatmul.mubr.f32.gmra.mrb[0].mxu0 %v8939
      %v9119 = vpop.f32.mrb[0].mxu0
      %v9120 = vadd.f32 0.0, %v9119
      %v9121 = vpop.f32.mrb[0].mxu0
      %9122 = vmatprep.mubr.f32.mxu0 0.0
      %9123 = vmatmul.mubr.f32.gmra.mrb[0].mxu0 %v8938
      %v9124 = vpop.f32.mrb[0].mxu0
      %v9125 = vadd.f32 0.0, %v9124
      %v9126 = vpop.f32.mrb[0].mxu0
      %9127 = vmatprep.mubr.f32.mxu0 0.0
      %9128 = vmatmul.mubr.f32.gmra.mrb[0].mxu0 %v8937
      %v9129 = vpop.f32.mrb[0].mxu0
      %v9130 = vadd.f32 0.0, %v9129
      %v9131 = vpop.f32.mrb[0].mxu0
      %9132 = vmatprep.mubr.f32.mxu0 0.0
      %9133 = vmatmul.mubr.f32.gmra.mrb[0].mxu0 %v8936
      %v9134 = vpop.f32.mrb[0].mxu0
      %v9135 = vadd.f32 0.0, %v9134
      %v9136 = vpop.f32.mrb[0].mxu0
      %9137 = vmatprep.mubr.f32.mxu0 0.0
      %9138 = vmatmul.mubr.f32.gmra.mrb[0].mxu0 %v8935
      %v9139 = vpop.f32.mrb[0].mxu0
      %v9140 = vadd.f32 0.0, %v9139
      %v9141 = vpop.f32.mrb[0].mxu0
      %9142 = vmatprep.mubr.f32.mxu0 0.0
      %9143 = vmatmul.mubr.f32.gmra.mrb[0].mxu0 %v8934
      %v9144 = vpop.f32.mrb[0].mxu0
      %v9145 = vadd.f32 0.0, %v9144
      %v9146 = vpop.f32.mrb[0].mxu0
      %9147 = vmatprep.mubr.f32.mxu0 0.0
      %9148 = vmatmul.mubr.f32.gmra.mrb[0].mxu0 %v8933
      %v9149 = vpop.f32.mrb[0].mxu0
      %v9150 = vadd.f32 0.0, %v9149
      %v9151 = vpop.f32.mrb[0].mxu0
      %9152 = vmatprep.mubr.f32.mxu0 0.0
      %9153 = vmatmul.mubr.f32.gmra.mrb[0].mxu0 %v8932
      %v9154 = vpop.f32.mrb[0].mxu0
      %v9155 = vadd.f32 0.0, %v9154
      %v9156 = vpop.f32.mrb[0].mxu0
      %9157 = vmatprep.mubr.f32.mxu0 0.0
      %9158 = vmatmul.mubr.f32.gmra.mrb[0].mxu0 %v8931
      %v9159 = vpop.f32.mrb[0].mxu0
      %v9160 = vadd.f32 0.0, %v9159
      %v9161 = vpop.f32.mrb[0].mxu0
      %9162 = vmatprep.mubr.f32.mxu0 0.0
      %9163 = vmatmul.mubr.f32.gmra.mrb[0].mxu0 %v8930
      %v9164 = vpop.f32.mrb[0].mxu0
      %v9165 = vadd.f32 0.0, %v9164
      %v9166 = vpop.f32.mrb[0].mxu0
      %9167 = vmatprep.mubr.f32.mxu0 0.0
      %9168 = vmatmul.mubr.f32.gmra.mrb[0].mxu0 %v8929
      %v9169 = vpop.f32.mrb[0].mxu0
      %v9170 = vadd.f32 0.0, %v9169
      %v9171 = vpop.f32.mrb[0].mxu0
      %9172 = vmatprep.mubr.f32.mxu0 0.0
      %9173 = vmatmul.mubr.f32.gmra.mrb[0].mxu0 %v8928
      %v9174 = vpop.f32.mrb[0].mxu0
      %v9175 = vadd.f32 0.0, %v9174
      %v9176 = vpop.f32.mrb[0].mxu0
      %9177 = vmatprep.mubr.f32.mxu0 0.0
      %9178 = vmatmul.mubr.f32.gmra.mrb[0].mxu0 %v8927
      %v9179 = vpop.f32.mrb[0].mxu0
      %v9180 = vadd.f32 0.0, %v9179
      %v9181 = vpop.f32.mrb[0].mxu0
      %9182 = vmatprep.mubr.f32.mxu0 0.0
      %9183 = vmatmul.mubr.f32.gmra.mrb[0].mxu0 %v8926
      %v9184 = vpop.f32.mrb[0].mxu0
      %v9185 = vadd.f32 0.0, %v9184
      %v9186 = vpop.f32.mrb[0].mxu0
      %9187 = vmatprep.mubr.f32.mxu0 0.0
      %9188 = vmatmul.mubr.f32.gmra.mrb[0].mxu0 %v8925
      %v9189 = vpop.f32.mrb[0].mxu0
      %v9190 = vadd.f32 0.0, %v9189
      %v9191 = vpop.f32.mrb[0].mxu0
      %9192 = vmatprep.mubr.f32.mxu0 0.0
      %9193 = vmatmul.mubr.f32.gmra.mrb[0].mxu0 %v8924
      %v9194 = vpop.f32.mrb[0].mxu0
      %v9195 = vadd.f32 0.0, %v9194
      %v9196 = vpop.f32.mrb[0].mxu0
      %9197 = vmatprep.mubr.f32.mxu0 0.0
      %9198 = vmatmul.mubr.f32.gmra.mrb[0].mxu0 %v8923
      %v9199 = vpop.f32.mrb[0].mxu0
      %v9200 = vadd.f32 0.0, %v9199
      %v9201 = vpop.f32.mrb[0].mxu0
      %9202 = vmatprep.mubr.f32.mxu0 0.0
      %9203 = vmatmul.mubr.f32.gmra.mrb[0].mxu0 %v8922
      %v9204 = vpop.f32.mrb[0].mxu0
      %v9205 = vadd.f32 0.0, %v9204
      %v9206 = vpop.f32.mrb[0].mxu0
      %9207 = vmatprep.mubr.f32.mxu0 0.0
      %9208 = vmatmul.mubr.f32.gmra.mrb[0].mxu0 %v8921
      %v9209 = vpop.f32.mrb[0].mxu0
      %v9210 = vadd.f32 0.0, %v9209
      %v9211 = vpop.f32.mrb[0].mxu0
      %9212 = vmatprep.mubr.f32.mxu0 0.0
      %9213 = vmatmul.mubr.f32.gmra.mrb[0].mxu0 %v8920
      %v9214 = vpop.f32.mrb[0].mxu0
      %v9215 = vadd.f32 0.0, %v9214
      %v9216 = vpop.f32.mrb[0].mxu0
      %9217 = vmatprep.mubr.f32.mxu0 0.0
      %9218 = vmatmul.mubr.f32.gmra.mrb[0].mxu0 %v8919
      %v9219 = vpop.f32.mrb[0].mxu0
      %v9220 = vadd.f32 0.0, %v9219
      %v9221 = vpop.f32.mrb[0].mxu0
      %9222 = vmatprep.mubr.f32.mxu0 0.0
      %9223 = vmatmul.mubr.f32.gmra.mrb[0].mxu0 %v8918
      %v9224 = vpop.f32.mrb[0].mxu0
      %v9225 = vadd.f32 0.0, %v9224
      %v9226 = vpop.f32.mrb[0].mxu0
      %9227 = vmatprep.mubr.f32.mxu0 0.0
      %9228 = vmatmul.mubr.f32.gmra.mrb[0].mxu0 %v8917
      %v9229 = vpop.f32.mrb[0].mxu0
      %v9230 = vadd.f32 0.0, %v9229
      %v9231 = vpop.f32.mrb[0].mxu0
      %9232 = vmatprep.mubr.f32.mxu0 0.0
      %9233 = vmatmul.mubr.f32.gmra.mrb[0].mxu0 %v8916
      %v9234 = vpop.f32.mrb[0].mxu0
      %v9235 = vadd.f32 0.0, %v9234
      %v9236 = vpop.f32.mrb[0].mxu0
      %9237 = vmatprep.mubr.f32.mxu0 0.0
      %9238 = vmatmul.mubr.f32.gmra.mrb[0].mxu0 %v8915
      %v9239 = vpop.f32.mrb[0].mxu0
      %v9240 = vadd.f32 0.0, %v9239
      %v9241 = vpop.f32.mrb[0].mxu0
      %9242 = vmatprep.mubr.f32.mxu0 0.0
      %9243 = vmatmul.mubr.f32.gmra.mrb[0].mxu0 %v8914
      %v9244 = vpop.f32.mrb[0].mxu0
      %v9245 = vadd.f32 0.0, %v9244
      %v9246 = vpop.f32.mrb[0].mxu0
      %9247 = vmatprep.mubr.f32.mxu0 0.0
      %9248 = vmatmul.mubr.f32.gmra.mrb[0].mxu0 %v8913
      %v9249 = vpop.f32.mrb[0].mxu0
      %v9250 = vadd.f32 0.0, %v9249
      %v9251 = vpop.f32.mrb[0].mxu0
      %9252 = vmatprep.mubr.f32.mxu0 0.0
      %9253 = vmatmul.mubr.f32.gmra.mrb[0].mxu0 %v8912
      %v9254 = vpop.f32.mrb[0].mxu0
      %v9255 = vadd.f32 0.0, %v9254
      %v9256 = vpop.f32.mrb[0].mxu0
      %9257 = vmatprep.mubr.f32.mxu0 0.0
      %9258 = vmatmul.mubr.f32.gmra.mrb[0].mxu0 %v8911
      %v9259 = vpop.f32.mrb[0].mxu0
      %v9260 = vadd.f32 0.0, %v9259
      %v9261 = vpop.f32.mrb[0].mxu0
      %9262 = vmatprep.mubr.f32.mxu0 0.0
      %9263 = vmatmul.mubr.f32.gmra.mrb[0].mxu0 %v8910
      %v9264 = vpop.f32.mrb[0].mxu0
      %v9265 = vadd.f32 0.0, %v9264
      %v9266 = vpop.f32.mrb[0].mxu0
      %9267 = vmatprep.mubr.f32.mxu0 0.0
      %9268 = vmatmul.mubr.f32.gmra.mrb[0].mxu0 %v8909
      %v9269 = vpop.f32.mrb[0].mxu0
      %v9270 = vadd.f32 0.0, %v9269
      %v9271 = vpop.f32.mrb[0].mxu0
      %9272 = vmatprep.mubr.f32.mxu0 0.0
      %9273 = vmatmul.mubr.f32.gmra.mrb[0].mxu0 %v8908
      %v9274 = vpop.f32.mrb[0].mxu0
      %v9275 = vadd.f32 0.0, %v9274
      %v9276 = vpop.f32.mrb[0].mxu0
      %9277 = vmatprep.mubr.f32.mxu0 0.0
      %9278 = vmatmul.mubr.f32.gmra.mrb[0].mxu0 %v8907
      %v9279 = vpop.f32.mrb[0].mxu0
      %v9280 = vadd.f32 0.0, %v9279
      %v9281 = vpop.f32.mrb[0].mxu0
      %9282 = vmatprep.mubr.f32.mxu0 0.0
      %9283 = vmatmul.mubr.f32.gmra.mrb[0].mxu0 %v8906
      %v9284 = vpop.f32.mrb[0].mxu0
      %v9285 = vadd.f32 0.0, %v9284
      %v9286 = vpop.f32.mrb[0].mxu0
      %9287 = vmatprep.mubr.f32.mxu0 0.0
      %9288 = vmatmul.mubr.f32.gmra.mrb[0].mxu0 %v8905
      %v9289 = vpop.f32.mrb[0].mxu0
      %v9290 = vadd.f32 0.0, %v9289
      %v9291 = vpop.f32.mrb[0].mxu0
      %9292 = vmatprep.mubr.f32.mxu0 0.0
      %9293 = vmatmul.mubr.f32.gmra.mrb[0].mxu0 %v8904
      %v9294 = vpop.f32.mrb[0].mxu0
      %v9295 = vadd.f32 0.0, %v9294
      %v9296 = vpop.f32.mrb[0].mxu0
      %9297 = vmatprep.mubr.f32.mxu0 0.0
      %9298 = vmatmul.mubr.f32.gmra.mrb[0].mxu0 %v8903
      %v9299 = vpop.f32.mrb[0].mxu0
      %v9300 = vadd.f32 0.0, %v9299
      %v9301 = vpop.f32.mrb[0].mxu0
      %9302 = vmatprep.mubr.f32.mxu0 0.0
      %9303 = vmatmul.mubr.f32.gmra.mrb[0].mxu0 %v8902
      %v9304 = vpop.f32.mrb[0].mxu0
      %v9305 = vadd.f32 0.0, %v9304
      %v9306 = vpop.f32.mrb[0].mxu0
      %9307 = vmatprep.mubr.f32.mxu0 0.0
      %9308 = vmatmul.mubr.f32.gmra.mrb[0].mxu0 %v8901
      %v9309 = vpop.f32.mrb[0].mxu0
      %v9310 = vadd.f32 0.0, %v9309
      %v9311 = vpop.f32.mrb[0].mxu0
      %9312 = vmatprep.mubr.f32.mxu0 0.0
      %9313 = vmatmul.mubr.f32.gmra.mrb[0].mxu0 %v8900
      %v9314 = vpop.f32.mrb[0].mxu0
      %v9315 = vadd.f32 0.0, %v9314
      %v9316 = vpop.f32.mrb[0].mxu0
      %9317 = vmatprep.mubr.f32.mxu0 0.0
      %9318 = vmatmul.mubr.f32.gmra.mrb[0].mxu0 %v8899
      %v9319 = vpop.f32.mrb[0].mxu0
      %v9320 = vadd.f32 0.0, %v9319
      %v9321 = vpop.f32.mrb[0].mxu0
      %9322 = vmatprep.mubr.f32.mxu0 0.0
      %9323 = vmatmul.mubr.f32.gmra.mrb[0].mxu0 %v8898
      %v9324 = vpop.f32.mrb[0].mxu0
      %v9325 = vadd.f32 0.0, %v9324
      %v9326 = vpop.f32.mrb[0].mxu0
      %9327 = vmatprep.mubr.f32.mxu0 0.0
      %9328 = vmatmul.mubr.f32.gmra.mrb[0].mxu0 %v8897
      %v9329 = vpop.f32.mrb[0].mxu0
      %v9330 = vadd.f32 0.0, %v9329
      %v9331 = vpop.f32.mrb[0].mxu0
      %9332 = vmatprep.mubr.f32.mxu0 0.0
      %9333 = vmatmul.mubr.f32.gmra.mrb[0].mxu0 %v8896
      %v9334 = vpop.f32.mrb[0].mxu0
      %v9335 = vadd.f32 0.0, %v9334
      %v9336 = vpop.f32.mrb[0].mxu0
      %9337 = vmatprep.mubr.f32.mxu0 0.0
      %9338 = vmatmul.mubr.f32.gmra.mrb[0].mxu0 %v8895
      %v9339 = vpop.f32.mrb[0].mxu0
      %v9340 = vadd.f32 0.0, %v9339
      %v9341 = vpop.f32.mrb[0].mxu0
      %9342 = vmatprep.mubr.f32.mxu0 0.0
      %9343 = vmatmul.mubr.f32.gmra.mrb[0].mxu0 %v8894
      %v9344 = vpop.f32.mrb[0].mxu0
      %v9345 = vadd.f32 0.0, %v9344
      %v9346 = vpop.f32.mrb[0].mxu0
      %9347 = vmatprep.mubr.f32.mxu0 0.0
      %9348 = vmatmul.mubr.f32.gmra.mrb[0].mxu0 %v8893
      %v9349 = vpop.f32.mrb[0].mxu0
      %v9350 = vadd.f32 0.0, %v9349
      %v9351 = vpop.f32.mrb[0].mxu0
      %9352 = vmatprep.mubr.f32.mxu0 0.0
      %9353 = vmatmul.mubr.f32.gmra.mrb[0].mxu0 %v8892
      %v9354 = vpop.f32.mrb[0].mxu0
      %v9355 = vadd.f32 0.0, %v9354
      %v9356 = vpop.f32.mrb[0].mxu0
      %9357 = vmatprep.mubr.f32.mxu0 0.0
      %9358 = vmatmul.mubr.f32.gmra.mrb[0].mxu0 %v8891
      %v9359 = vpop.f32.mrb[0].mxu0
      %v9360 = vadd.f32 0.0, %v9359
      %v9361 = vpop.f32.mrb[0].mxu0
      %9362 = vmatprep.mubr.f32.mxu0 0.0
      %9363 = vmatmul.mubr.f32.gmra.mrb[0].mxu0 %v8890
      %v9364 = vpop.f32.mrb[0].mxu0
      %v9365 = vadd.f32 0.0, %v9364
      %v9366 = vpop.f32.mrb[0].mxu0
      %9367 = vmatprep.mubr.f32.mxu0 0.0
      %9368 = vmatmul.mubr.f32.gmra.mrb[0].mxu0 %v8889
      %v9369 = vpop.f32.mrb[0].mxu0
      %v9370 = vadd.f32 0.0, %v9369
      %v9371 = vpop.f32.mrb[0].mxu0
      %9372 = vmatprep.mubr.f32.mxu0 0.0
      %9373 = vmatmul.mubr.f32.gmra.mrb[0].mxu0 %v8888
      %v9374 = vpop.f32.mrb[0].mxu0
      %v9375 = vadd.f32 0.0, %v9374
      %v9376 = vpop.f32.mrb[0].mxu0
      %9377 = vmatprep.mubr.f32.mxu0 0.0
      %9378 = vmatmul.mubr.f32.gmra.mrb[0].mxu0 %v8887
      %v9379 = vpop.f32.mrb[0].mxu0
      %v9380 = vadd.f32 0.0, %v9379
      %v9381 = vpop.f32.mrb[0].mxu0
      %9382 = vmatprep.mubr.f32.mxu0 0.0
      %9383 = vmatmul.mubr.f32.gmra.mrb[0].mxu0 %v8886
      %v9384 = vpop.f32.mrb[0].mxu0
      %v9385 = vadd.f32 0.0, %v9384
      %v9386 = vpop.f32.mrb[0].mxu0
      %9387 = vmatprep.mubr.f32.mxu0 0.0
      %9388 = vmatmul.mubr.f32.gmra.mrb[0].mxu0 %v8885
      %v9389 = vpop.f32.mrb[0].mxu0
      %v9390 = vadd.f32 0.0, %v9389
      %v9391 = vpop.f32.mrb[0].mxu0
      %9392 = vmatprep.mubr.f32.mxu0 0.0
      %9393 = vmatmul.mubr.f32.gmra.mrb[0].mxu0 %v8884
      %v9394 = vpop.f32.mrb[0].mxu0
      %v9395 = vadd.f32 0.0, %v9394
      %v9396 = vpop.f32.mrb[0].mxu0
      %9397 = vmatprep.mubr.f32.mxu0 0.0
      %9398 = vmatmul.mubr.f32.gmra.mrb[0].mxu0 %v8883
      %v9399 = vpop.f32.mrb[0].mxu0
      %v9400 = vadd.f32 0.0, %v9399
      %v9401 = vpop.f32.mrb[0].mxu0
      %9402 = vmatprep.mubr.f32.mxu0 0.0
      %9403 = vmatmul.mubr.f32.gmra.mrb[0].mxu0 %v8882
      %v9404 = vpop.f32.mrb[0].mxu0
      %v9405 = vadd.f32 0.0, %v9404
      %v9406 = vpop.f32.mrb[0].mxu0
      %9407 = vmatprep.mubr.f32.mxu0 0.0
      %9408 = vmatmul.mubr.f32.gmra.mrb[0].mxu0 %v8881
      %v9409 = vpop.f32.mrb[0].mxu0
      %v9410 = vadd.f32 0.0, %v9409
      %v9411 = vpop.f32.mrb[0].mxu0
      %9412 = vmatprep.mubr.f32.mxu0 0.0
      %9413 = vmatmul.mubr.f32.gmra.mrb[0].mxu0 %v8880
      %v9414 = vpop.f32.mrb[0].mxu0
      %v9415 = vadd.f32 0.0, %v9414
      %v9416 = vpop.f32.mrb[0].mxu0
      %9417 = vmatprep.mubr.f32.mxu0 0.0
      %9418 = vmatmul.mubr.f32.gmra.mrb[0].mxu0 %v8879
      %v9419 = vpop.f32.mrb[0].mxu0
      %v9420 = vadd.f32 0.0, %v9419
      %v9421 = vpop.f32.mrb[0].mxu0
      %9422 = vmatprep.mubr.f32.mxu0 0.0
      %9423 = vmatmul.mubr.f32.gmra.mrb[0].mxu0 %v8878
      %v9424 = vpop.f32.mrb[0].mxu0
      %v9425 = vadd.f32 0.0, %v9424
      %v9426 = vpop.f32.mrb[0].mxu0
      %9427 = vmatprep.mubr.f32.mxu0 0.0
      %9428 = vmatmul.mubr.f32.gmra.mrb[0].mxu0 %v8877
      %v9429 = vpop.f32.mrb[0].mxu0
      %v9430 = vadd.f32 0.0, %v9429
      %v9431 = vpop.f32.mrb[0].mxu0
      %9432 = vmatprep.mubr.f32.mxu0 0.0
      %9433 = vmatmul.mubr.f32.gmra.mrb[0].mxu0 %v8876
      %v9434 = vpop.f32.mrb[0].mxu0
      %v9435 = vadd.f32 0.0, %v9434
      %v9436 = vpop.f32.mrb[0].mxu0
      %9437 = vmatprep.mubr.f32.mxu0 0.0
      %9438 = vmatmul.mubr.f32.gmra.mrb[0].mxu0 %v8875
      %v9439 = vpop.f32.mrb[0].mxu0
      %v9440 = vadd.f32 0.0, %v9439
      %v9441 = vpop.f32.mrb[0].mxu0
      %9442 = vmatprep.mubr.f32.mxu0 0.0
      %9443 = vmatmul.mubr.f32.gmra.mrb[0].mxu0 %v8874
      %v9444 = vpop.f32.mrb[0].mxu0
      %v9445 = vadd.f32 0.0, %v9444
      %v9446 = vpop.f32.mrb[0].mxu0
      %9447 = vmatprep.mubr.f32.mxu0 0.0
      %9448 = vmatmul.mubr.f32.gmra.mrb[0].mxu0 %v8873
      %v9449 = vpop.f32.mrb[0].mxu0
      %v9450 = vadd.f32 0.0, %v9449
      %v9451 = vpop.f32.mrb[0].mxu0
      %9452 = vmatprep.mubr.f32.mxu0 0.0
      %9453 = vmatmul.mubr.f32.gmra.mrb[0].mxu0 %v8872
      %v9454 = vpop.f32.mrb[0].mxu0
      %v9455 = vadd.f32 0.0, %v9454
      %v9456 = vpop.f32.mrb[0].mxu0
      %9457 = vmatprep.mubr.f32.mxu0 0.0
      %9458 = vmatmul.mubr.f32.gmra.mrb[0].mxu0 %v8871
      %v9459 = vpop.f32.mrb[0].mxu0
      %v9460 = vadd.f32 0.0, %v9459
      %v9461 = vpop.f32.mrb[0].mxu0
      %9462 = vmatprep.mubr.f32.mxu0 0.0
      %9463 = vmatmul.mubr.f32.gmra.mrb[0].mxu0 %v8870
      %v9464 = vpop.f32.mrb[0].mxu0
      %v9465 = vadd.f32 0.0, %v9464
      %v9466 = vpop.f32.mrb[0].mxu0
      %9467 = vmatprep.mubr.f32.mxu0 0.0
      %9468 = vmatmul.mubr.f32.gmra.mrb[0].mxu0 %v8869
      %v9469 = vpop.f32.mrb[0].mxu0
      %v9470 = vadd.f32 0.0, %v9469
      %v9471 = vpop.f32.mrb[0].mxu0
      %9472 = vmatprep.mubr.f32.mxu0 0.0
      %9473 = vmatmul.mubr.f32.gmra.mrb[0].mxu0 %v8868
      %v9474 = vpop.f32.mrb[0].mxu0
      %v9475 = vadd.f32 0.0, %v9474
      %v9476 = vpop.f32.mrb[0].mxu0
      %9477 = vmatprep.mubr.f32.mxu0 0.0
      %9478 = vmatmul.mubr.f32.gmra.mrb[0].mxu0 %v8867
      %v9479 = vpop.f32.mrb[0].mxu0
      %v9480 = vadd.f32 0.0, %v9479
      %v9481 = vpop.f32.mrb[0].mxu0
      %9482 = vmatprep.mubr.f32.mxu0 0.0
      %9483 = vmatmul.mubr.f32.gmra.mrb[0].mxu0 %v8866
      %v9484 = vpop.f32.mrb[0].mxu0
      %v9485 = vadd.f32 0.0, %v9484
      %v9486 = vpop.f32.mrb[0].mxu0
      %9487 = vmatprep.mubr.f32.mxu0 0.0
      %9488 = vmatmul.mubr.f32.gmra.mrb[0].mxu0 %v8865
      %v9489 = vpop.f32.mrb[0].mxu0
      %v9490 = vadd.f32 0.0, %v9489
      %v9491 = vpop.f32.mrb[0].mxu0
      %9492 = vmatprep.mubr.f32.mxu0 0.0
      %9493 = vmatmul.mubr.f32.gmra.mrb[0].mxu0 %v8864
      %v9494 = vpop.f32.mrb[0].mxu0
      %v9495 = vadd.f32 0.0, %v9494
      %v9496 = vpop.f32.mrb[0].mxu0
      %9497 = vmatprep.mubr.f32.mxu0 0.0
      %9498 = vmatmul.mubr.f32.gmra.mrb[0].mxu0 %v8863
      %v9499 = vpop.f32.mrb[0].mxu0
      %v9500 = vadd.f32 0.0, %v9499
      %v9501 = vpop.f32.mrb[0].mxu0
      %9502 = vmatprep.mubr.f32.mxu0 0.0
      %9503 = vmatmul.mubr.f32.gmra.mrb[0].mxu0 %v8862
      %v9504 = vpop.f32.mrb[0].mxu0
      %v9505 = vadd.f32 0.0, %v9504
      %v9506 = vpop.f32.mrb[0].mxu0
      %9507 = vmatprep.mubr.f32.mxu0 0.0
      %9508 = vmatmul.mubr.f32.gmra.mrb[0].mxu0 %v8861
      %v9509 = vpop.f32.mrb[0].mxu0
      %v9510 = vadd.f32 0.0, %v9509
      %v9511 = vpop.f32.mrb[0].mxu0
      %9512 = vmatprep.mubr.f32.mxu0 0.0
      %9513 = vmatmul.mubr.f32.gmra.mrb[0].mxu0 %v8860
      %v9514 = vpop.f32.mrb[0].mxu0
      %v9515 = vadd.f32 0.0, %v9514
      %v9516 = vpop.f32.mrb[0].mxu0
      %9517 = vmatprep.mubr.f32.mxu0 0.0
      %9518 = vmatmul.mubr.f32.gmra.mrb[0].mxu0 %v8859
      %v9519 = vpop.f32.mrb[0].mxu0
      %v9520 = vadd.f32 0.0, %v9519
      %v9521 = vpop.f32.mrb[0].mxu0
      %9522 = vmatprep.mubr.f32.mxu0 0.0
      %9523 = vmatmul.mubr.f32.gmra.mrb[0].mxu0 %v8858
      %v9524 = vpop.f32.mrb[0].mxu0
      %v9525 = vadd.f32 0.0, %v9524
      %v9526 = vpop.f32.mrb[0].mxu0
      %9527 = vmatprep.mubr.f32.mxu0 0.0
      %9528 = vmatmul.mubr.f32.gmra.mrb[0].mxu0 %v8857
      %v9529 = vpop.f32.mrb[0].mxu0
      %v9530 = vadd.f32 0.0, %v9529
      %v9531 = vpop.f32.mrb[0].mxu0
      %9532 = vmatprep.mubr.f32.mxu0 0.0
      %9533 = vmatmul.mubr.f32.gmra.mrb[0].mxu0 %v8856
      %v9534 = vpop.f32.mrb[0].mxu0
      %v9535 = vadd.f32 0.0, %v9534
      %v9536 = vpop.f32.mrb[0].mxu0
      %9537 = vmatprep.mubr.f32.mxu0 0.0
      %9538 = vmatmul.mubr.f32.gmra.mrb[0].mxu0 %v8855
      %v9539 = vpop.f32.mrb[0].mxu0
      %v9540 = vadd.f32 0.0, %v9539
      %v9541 = vpop.f32.mrb[0].mxu0
      %9542 = vmatprep.mubr.f32.mxu0 0.0
      %9543 = vmatmul.mubr.f32.gmra.mrb[0].mxu0 %v8854
      %v9544 = vpop.f32.mrb[0].mxu0
      %v9545 = vadd.f32 0.0, %v9544
      %v9546 = vpop.f32.mrb[0].mxu0
      %9547 = vmatprep.mubr.f32.mxu0 0.0
      %9548 = vmatmul.mubr.f32.gmra.mrb[0].mxu0 %v8853
      %v9549 = vpop.f32.mrb[0].mxu0
      %v9550 = vadd.f32 0.0, %v9549
      %v9551 = vpop.f32.mrb[0].mxu0
      %9552 = vmatprep.mubr.f32.mxu0 0.0
      %9553 = vmatmul.mubr.f32.gmra.mrb[0].mxu0 %v8852
      %v9554 = vpop.f32.mrb[0].mxu0
      %v9555 = vadd.f32 0.0, %v9554
      %v9556 = vpop.f32.mrb[0].mxu0
      %9557 = vmatprep.mubr.f32.mxu0 0.0
      %9558 = vmatmul.mubr.f32.gmra.mrb[0].mxu0 %v8851
      %v9559 = vpop.f32.mrb[0].mxu0
      %v9560 = vadd.f32 0.0, %v9559
      %v9561 = vpop.f32.mrb[0].mxu0
      %9562 = vmatprep.mubr.f32.mxu0 0.0
      %9563 = vmatmul.mubr.f32.gmra.mrb[0].mxu0 %v8850
      %v9564 = vpop.f32.mrb[0].mxu0
      %v9565 = vadd.f32 0.0, %v9564
      %v9566 = vpop.f32.mrb[0].mxu0
      %9567 = vmatprep.mubr.f32.mxu0 0.0
      %9568 = vmatmul.mubr.f32.gmra.mrb[0].mxu0 %v8849
      %v9569 = vpop.f32.mrb[0].mxu0
      %v9570 = vadd.f32 0.0, %v9569
      %v9571 = vpop.f32.mrb[0].mxu0
      %9572 = vmatprep.mubr.f32.mxu0 0.0
      %9573 = vmatmul.mubr.f32.gmra.mrb[0].mxu0 %v8848
      %v9574 = vpop.f32.mrb[0].mxu0
      %v9575 = vadd.f32 0.0, %v9574
      %v9576 = vpop.f32.mrb[0].mxu0
      %9577 = vmatprep.mubr.f32.mxu0 0.0
      %9578 = vmatmul.mubr.f32.gmra.mrb[0].mxu0 %v8847
      %v9579 = vpop.f32.mrb[0].mxu0
      %v9580 = vadd.f32 0.0, %v9579
      %v9581 = vpop.f32.mrb[0].mxu0
      %9582 = vmatprep.mubr.f32.mxu0 0.0
      %9583 = vmatmul.mubr.f32.gmra.mrb[0].mxu0 %v8846
      %v9584 = vpop.f32.mrb[0].mxu0
      %v9585 = vadd.f32 0.0, %v9584
      %v9586 = vpop.f32.mrb[0].mxu0
      %9587 = vmatprep.mubr.f32.mxu0 0.0
      %9588 = vmatmul.mubr.f32.gmra.mrb[0].mxu0 %v8845
      %v9589 = vpop.f32.mrb[0].mxu0
      %v9590 = vadd.f32 0.0, %v9589
      %v9591 = vpop.f32.mrb[0].mxu0
      %9592 = vmatprep.mubr.f32.mxu0 0.0
      %9593 = vmatmul.mubr.f32.gmra.mrb[0].mxu0 %v8844
      %v9594 = vpop.f32.mrb[0].mxu0
      %v9595 = vadd.f32 0.0, %v9594
      %v9596 = vpop.f32.mrb[0].mxu0
      %9597 = vmatprep.mubr.f32.mxu0 0.0
      %9598 = vmatmul.mubr.f32.gmra.mrb[0].mxu0 %v8843
      %v9599 = vpop.f32.mrb[0].mxu0
      %v9600 = vadd.f32 0.0, %v9599
      %v9601 = vpop.f32.mrb[0].mxu0
      %9602 = vmatprep.mubr.f32.mxu0 0.0
      %9603 = vmatmul.mubr.f32.gmra.mrb[0].mxu0 %v8842
      %v9604 = vpop.f32.mrb[0].mxu0
      %v9605 = vadd.f32 0.0, %v9604
      %v9606 = vpop.f32.mrb[0].mxu0
      %9607 = vmatprep.mubr.f32.mxu0 0.0
      %9608 = vmatmul.mubr.f32.gmra.mrb[0].mxu0 %v8841
      %v9609 = vpop.f32.mrb[0].mxu0
      %v9610 = vadd.f32 0.0, %v9609
      %v9611 = vpop.f32.mrb[0].mxu0
      %9612 = vmatprep.mubr.f32.mxu0 0.0
      %9613 = vmatmul.mubr.f32.gmra.mrb[0].mxu0 %v8840
      %v9614 = vpop.f32.mrb[0].mxu0
      %v9615 = vadd.f32 0.0, %v9614
      %v9616 = vpop.f32.mrb[0].mxu0
      %9617 = vmatprep.mubr.f32.mxu0 0.0
      %9618 = vmatmul.mubr.f32.gmra.mrb[0].mxu0 %v8839
      %v9619 = vpop.f32.mrb[0].mxu0
      %v9620 = vadd.f32 0.0, %v9619
      %v9621 = vpop.f32.mrb[0].mxu0
      %9622 = vmatprep.mubr.f32.mxu0 0.0
      %9623 = vmatmul.mubr.f32.gmra.mrb[0].mxu0 %v8838
      %v9624 = vpop.f32.mrb[0].mxu0
      %v9625 = vadd.f32 0.0, %v9624
      %v9626 = vpop.f32.mrb[0].mxu0
      %9627 = vmatprep.mubr.f32.mxu0 0.0
      %9628 = vmatmul.mubr.f32.gmra.mrb[0].mxu0 %v8837
      %v9629 = vpop.f32.mrb[0].mxu0
      %v9630 = vadd.f32 0.0, %v9629
      %v9631 = vpop.f32.mrb[0].mxu0
      %9632 = vmatprep.mubr.f32.mxu0 0.0
      %9633 = vmatmul.mubr.f32.gmra.mrb[0].mxu0 %v8836
      %v9634 = vpop.f32.mrb[0].mxu0
      %v9635 = vadd.f32 0.0, %v9634
      %v9636 = vpop.f32.mrb[0].mxu0
      %9637 = vmatprep.mubr.f32.mxu0 0.0
      %9638 = vmatmul.mubr.f32.gmra.mrb[0].mxu0 %v8835
      %v9639 = vpop.f32.mrb[0].mxu0
      %v9640 = vadd.f32 0.0, %v9639
      %v9641 = vpop.f32.mrb[0].mxu0
      %9642 = vmatprep.mubr.f32.mxu0 0.0
      %9643 = vmatmul.mubr.f32.gmra.mrb[0].mxu0 %v8834
      %v9644 = vpop.f32.mrb[0].mxu0
      %v9645 = vadd.f32 0.0, %v9644
      %v9646 = vpop.f32.mrb[0].mxu0
      %9647 = vmatprep.mubr.f32.mxu0 0.0
      %9648 = vmatmul.mubr.f32.gmra.mrb[0].mxu0 %v8833
      %v9649 = vpop.f32.mrb[0].mxu0
      %v9650 = vadd.f32 0.0, %v9649
      %v9651 = vpop.f32.mrb[0].mxu0
      %9652 = vmatprep.mubr.f32.mxu0 0.0
      %9653 = vmatmul.mubr.f32.gmra.mrb[0].mxu0 %v8832
      %v9654 = vpop.f32.mrb[0].mxu0
      %v9655 = vadd.f32 0.0, %v9654
      %v9656 = vpop.f32.mrb[0].mxu0
      %9657 = vmatprep.mubr.f32.mxu0 0.0
      %9658 = vmatmul.mubr.f32.gmra.mrb[0].mxu0 %v8831
      %v9659 = vpop.f32.mrb[0].mxu0
      %v9660 = vadd.f32 0.0, %v9659
      %v9661 = vpop.f32.mrb[0].mxu0
      %9662 = vmatprep.mubr.f32.mxu0 0.0
      %9663 = vmatmul.mubr.f32.gmra.mrb[0].mxu0 %v8830
      %v9664 = vpop.f32.mrb[0].mxu0
      %v9665 = vadd.f32 0.0, %v9664
      %v9666 = vpop.f32.mrb[0].mxu0
      %9667 = vmatprep.mubr.f32.mxu0 0.0
      %9668 = vmatmul.mubr.f32.gmra.mrb[0].mxu0 %v8829
      %v9669 = vpop.f32.mrb[0].mxu0
      %v9670 = vadd.f32 0.0, %v9669
      %v9671 = vpop.f32.mrb[0].mxu0
      %9672 = vmatprep.mubr.f32.mxu0 0.0
      %9673 = vmatmul.mubr.f32.gmra.mrb[0].mxu0 %v8828
      %v9674 = vpop.f32.mrb[0].mxu0
      %v9675 = vadd.f32 0.0, %v9674
      %v9676 = vpop.f32.mrb[0].mxu0
      %9677 = vdwg.mxu0
      %v9678 = vadd.f32 %v8540, %v9040
      %v9679 = vadd.f32 %v8541, %v9045
      %v9680 = vadd.f32 %v8542, %v9050
      %v9681 = vadd.f32 %v8543, %v9055
      %v9682 = vadd.f32 %v8544, %v9060
      %v9683 = vadd.f32 %v8545, %v9065
      %v9684 = vadd.f32 %v8546, %v9070
      %v9685 = vadd.f32 %v8547, %v9075
      %v9686 = vadd.f32 %v8548, %v9080
      %v9687 = vadd.f32 %v8549, %v9085
      %v9688 = vadd.f32 %v8550, %v9090
      %v9689 = vadd.f32 %v8551, %v9095
      %v9690 = vadd.f32 %v8552, %v9100
      %v9691 = vadd.f32 %v8553, %v9105
      %v9692 = vadd.f32 %v8554, %v9110
      %v9693 = vadd.f32 %v8555, %v9115
      %v9694 = vadd.f32 %v8556, %v9120
      %v9695 = vadd.f32 %v8557, %v9125
      %v9696 = vadd.f32 %v8558, %v9130
      %v9697 = vadd.f32 %v8559, %v9135
      %v9698 = vadd.f32 %v8560, %v9140
      %v9699 = vadd.f32 %v8561, %v9145
      %v9700 = vadd.f32 %v8562, %v9150
      %v9701 = vadd.f32 %v8563, %v9155
      %v9702 = vadd.f32 %v8564, %v9160
      %v9703 = vadd.f32 %v8565, %v9165
      %v9704 = vadd.f32 %v8566, %v9170
      %v9705 = vadd.f32 %v8567, %v9175
      %v9706 = vadd.f32 %v8568, %v9180
      %v9707 = vadd.f32 %v8569, %v9185
      %v9708 = vadd.f32 %v8570, %v9190
      %v9709 = vadd.f32 %v8571, %v9195
      %v9710 = vadd.f32 %v8572, %v9200
      %v9711 = vadd.f32 %v8573, %v9205
      %v9712 = vadd.f32 %v8574, %v9210
      %v9713 = vadd.f32 %v8575, %v9215
      %v9714 = vadd.f32 %v8576, %v9220
      %v9715 = vadd.f32 %v8577, %v9225
      %v9716 = vadd.f32 %v8578, %v9230
      %v9717 = vadd.f32 %v8579, %v9235
      %v9718 = vadd.f32 %v8580, %v9240
      %v9719 = vadd.f32 %v8581, %v9245
      %v9720 = vadd.f32 %v8582, %v9250
      %v9721 = vadd.f32 %v8583, %v9255
      %v9722 = vadd.f32 %v8584, %v9260
      %v9723 = vadd.f32 %v8585, %v9265
      %v9724 = vadd.f32 %v8586, %v9270
      %v9725 = vadd.f32 %v8587, %v9275
      %v9726 = vadd.f32 %v8588, %v9280
      %v9727 = vadd.f32 %v8589, %v9285
      %v9728 = vadd.f32 %v8590, %v9290
      %v9729 = vadd.f32 %v8591, %v9295
      %v9730 = vadd.f32 %v8592, %v9300
      %v9731 = vadd.f32 %v8593, %v9305
      %v9732 = vadd.f32 %v8594, %v9310
      %v9733 = vadd.f32 %v8595, %v9315
      %v9734 = vadd.f32 %v8596, %v9320
      %v9735 = vadd.f32 %v8597, %v9325
      %v9736 = vadd.f32 %v8598, %v9330
      %v9737 = vadd.f32 %v8599, %v9335
      %v9738 = vadd.f32 %v8600, %v9340
      %v9739 = vadd.f32 %v8601, %v9345
      %v9740 = vadd.f32 %v8602, %v9350
      %v9741 = vadd.f32 %v8603, %v9355
      %v9742 = vadd.f32 %v8604, %v9360
      %v9743 = vadd.f32 %v8605, %v9365
      %v9744 = vadd.f32 %v8606, %v9370
      %v9745 = vadd.f32 %v8607, %v9375
      %v9746 = vadd.f32 %v8608, %v9380
      %v9747 = vadd.f32 %v8609, %v9385
      %v9748 = vadd.f32 %v8610, %v9390
      %v9749 = vadd.f32 %v8611, %v9395
      %v9750 = vadd.f32 %v8612, %v9400
      %v9751 = vadd.f32 %v8613, %v9405
      %v9752 = vadd.f32 %v8614, %v9410
      %v9753 = vadd.f32 %v8615, %v9415
      %v9754 = vadd.f32 %v8616, %v9420
      %v9755 = vadd.f32 %v8617, %v9425
      %v9756 = vadd.f32 %v8618, %v9430
      %v9757 = vadd.f32 %v8619, %v9435
      %v9758 = vadd.f32 %v8620, %v9440
      %v9759 = vadd.f32 %v8621, %v9445
      %v9760 = vadd.f32 %v8622, %v9450
      %v9761 = vadd.f32 %v8623, %v9455
      %v9762 = vadd.f32 %v8624, %v9460
      %v9763 = vadd.f32 %v8625, %v9465
      %v9764 = vadd.f32 %v8626, %v9470
      %v9765 = vadd.f32 %v8627, %v9475
      %v9766 = vadd.f32 %v8628, %v9480
      %v9767 = vadd.f32 %v8629, %v9485
      %v9768 = vadd.f32 %v8630, %v9490
      %v9769 = vadd.f32 %v8631, %v9495
      %v9770 = vadd.f32 %v8632, %v9500
      %v9771 = vadd.f32 %v8633, %v9505
      %v9772 = vadd.f32 %v8634, %v9510
      %v9773 = vadd.f32 %v8635, %v9515
      %v9774 = vadd.f32 %v8636, %v9520
      %v9775 = vadd.f32 %v8637, %v9525
      %v9776 = vadd.f32 %v8638, %v9530
      %v9777 = vadd.f32 %v8639, %v9535
      %v9778 = vadd.f32 %v8640, %v9540
      %v9779 = vadd.f32 %v8641, %v9545
      %v9780 = vadd.f32 %v8642, %v9550
      %v9781 = vadd.f32 %v8643, %v9555
      %v9782 = vadd.f32 %v8644, %v9560
      %v9783 = vadd.f32 %v8645, %v9565
      %v9784 = vadd.f32 %v8646, %v9570
      %v9785 = vadd.f32 %v8647, %v9575
      %v9786 = vadd.f32 %v8648, %v9580
      %v9787 = vadd.f32 %v8649, %v9585
      %v9788 = vadd.f32 %v8650, %v9590
      %v9789 = vadd.f32 %v8651, %v9595
      %v9790 = vadd.f32 %v8652, %v9600
      %v9791 = vadd.f32 %v8653, %v9605
      %v9792 = vadd.f32 %v8654, %v9610
      %v9793 = vadd.f32 %v8655, %v9615
      %v9794 = vadd.f32 %v8656, %v9620
      %v9795 = vadd.f32 %v8657, %v9625
      %v9796 = vadd.f32 %v8658, %v9630
      %v9797 = vadd.f32 %v8659, %v9635
      %v9798 = vadd.f32 %v8660, %v9640
      %v9799 = vadd.f32 %v8661, %v9645
      %v9800 = vadd.f32 %v8662, %v9650
      %v9801 = vadd.f32 %v8663, %v9655
      %v9802 = vadd.f32 %v8664, %v9660
      %v9803 = vadd.f32 %v8665, %v9665
      %v9804 = vadd.f32 %v8666, %v9670
      %v9805 = vadd.f32 %v8667, %v9675
      %v9806 = vld [vmem:[%s2] sm:$0x1]
      %v9808 = vlaneseq
      %v9809 = vshrl.u32 %v9808, 7
      %v9810 = vsub.s32 0, %v9809
      %v9811 = vrot.slane %v9806, %v9810
      %v9813 = vadd.f32 %v9678, %v9811
      %v9814 = vadd.f32 %v9679, %v9811
      %v9815 = vadd.f32 %v9680, %v9811
      %v9816 = vadd.f32 %v9681, %v9811
      %v9817 = vadd.f32 %v9682, %v9811
      %v9818 = vadd.f32 %v9683, %v9811
      %v9819 = vadd.f32 %v9684, %v9811
      %v9820 = vadd.f32 %v9685, %v9811
      %v9821 = vadd.f32 %v9686, %v9811
      %v9822 = vadd.f32 %v9687, %v9811
      %v9823 = vadd.f32 %v9688, %v9811
      %v9824 = vadd.f32 %v9689, %v9811
      %v9825 = vadd.f32 %v9690, %v9811
      %v9826 = vadd.f32 %v9691, %v9811
      %v9827 = vadd.f32 %v9692, %v9811
      %v9828 = vadd.f32 %v9693, %v9811
      %v9829 = vadd.f32 %v9694, %v9811
      %v9830 = vadd.f32 %v9695, %v9811
      %v9831 = vadd.f32 %v9696, %v9811
      %v9832 = vadd.f32 %v9697, %v9811
      %v9833 = vadd.f32 %v9698, %v9811
      %v9834 = vadd.f32 %v9699, %v9811
      %v9835 = vadd.f32 %v9700, %v9811
      %v9836 = vadd.f32 %v9701, %v9811
      %v9837 = vadd.f32 %v9702, %v9811
      %v9838 = vadd.f32 %v9703, %v9811
      %v9839 = vadd.f32 %v9704, %v9811
      %v9840 = vadd.f32 %v9705, %v9811
      %v9841 = vadd.f32 %v9706, %v9811
      %v9842 = vadd.f32 %v9707, %v9811
      %v9843 = vadd.f32 %v9708, %v9811
      %v9844 = vadd.f32 %v9709, %v9811
      %v9845 = vadd.f32 %v9710, %v9811
      %v9846 = vadd.f32 %v9711, %v9811
      %v9847 = vadd.f32 %v9712, %v9811
      %v9848 = vadd.f32 %v9713, %v9811
      %v9849 = vadd.f32 %v9714, %v9811
      %v9850 = vadd.f32 %v9715, %v9811
      %v9851 = vadd.f32 %v9716, %v9811
      %v9852 = vadd.f32 %v9717, %v9811
      %v9853 = vadd.f32 %v9718, %v9811
      %v9854 = vadd.f32 %v9719, %v9811
      %v9855 = vadd.f32 %v9720, %v9811
      %v9856 = vadd.f32 %v9721, %v9811
      %v9857 = vadd.f32 %v9722, %v9811
      %v9858 = vadd.f32 %v9723, %v9811
      %v9859 = vadd.f32 %v9724, %v9811
      %v9860 = vadd.f32 %v9725, %v9811
      %v9861 = vadd.f32 %v9726, %v9811
      %v9862 = vadd.f32 %v9727, %v9811
      %v9863 = vadd.f32 %v9728, %v9811
      %v9864 = vadd.f32 %v9729, %v9811
      %v9865 = vadd.f32 %v9730, %v9811
      %v9866 = vadd.f32 %v9731, %v9811
      %v9867 = vadd.f32 %v9732, %v9811
      %v9868 = vadd.f32 %v9733, %v9811
      %v9869 = vadd.f32 %v9734, %v9811
      %v9870 = vadd.f32 %v9735, %v9811
      %v9871 = vadd.f32 %v9736, %v9811
      %v9872 = vadd.f32 %v9737, %v9811
      %v9873 = vadd.f32 %v9738, %v9811
      %v9874 = vadd.f32 %v9739, %v9811
      %v9875 = vadd.f32 %v9740, %v9811
      %v9876 = vadd.f32 %v9741, %v9811
      %v9877 = vadd.f32 %v9742, %v9811
      %v9878 = vadd.f32 %v9743, %v9811
      %v9879 = vadd.f32 %v9744, %v9811
      %v9880 = vadd.f32 %v9745, %v9811
      %v9881 = vadd.f32 %v9746, %v9811
      %v9882 = vadd.f32 %v9747, %v9811
      %v9883 = vadd.f32 %v9748, %v9811
      %v9884 = vadd.f32 %v9749, %v9811
      %v9885 = vadd.f32 %v9750, %v9811
      %v9886 = vadd.f32 %v9751, %v9811
      %v9887 = vadd.f32 %v9752, %v9811
      %v9888 = vadd.f32 %v9753, %v9811
      %v9889 = vadd.f32 %v9754, %v9811
      %v9890 = vadd.f32 %v9755, %v9811
      %v9891 = vadd.f32 %v9756, %v9811
      %v9892 = vadd.f32 %v9757, %v9811
      %v9893 = vadd.f32 %v9758, %v9811
      %v9894 = vadd.f32 %v9759, %v9811
      %v9895 = vadd.f32 %v9760, %v9811
      %v9896 = vadd.f32 %v9761, %v9811
      %v9897 = vadd.f32 %v9762, %v9811
      %v9898 = vadd.f32 %v9763, %v9811
      %v9899 = vadd.f32 %v9764, %v9811
      %v9900 = vadd.f32 %v9765, %v9811
      %v9901 = vadd.f32 %v9766, %v9811
      %v9902 = vadd.f32 %v9767, %v9811
      %v9903 = vadd.f32 %v9768, %v9811
      %v9904 = vadd.f32 %v9769, %v9811
      %v9905 = vadd.f32 %v9770, %v9811
      %v9906 = vadd.f32 %v9771, %v9811
      %v9907 = vadd.f32 %v9772, %v9811
      %v9908 = vadd.f32 %v9773, %v9811
      %v9909 = vadd.f32 %v9774, %v9811
      %v9910 = vadd.f32 %v9775, %v9811
      %v9911 = vadd.f32 %v9776, %v9811
      %v9912 = vadd.f32 %v9777, %v9811
      %v9913 = vadd.f32 %v9778, %v9811
      %v9914 = vadd.f32 %v9779, %v9811
      %v9915 = vadd.f32 %v9780, %v9811
      %v9916 = vadd.f32 %v9781, %v9811
      %v9917 = vadd.f32 %v9782, %v9811
      %v9918 = vadd.f32 %v9783, %v9811
      %v9919 = vadd.f32 %v9784, %v9811
      %v9920 = vadd.f32 %v9785, %v9811
      %v9921 = vadd.f32 %v9786, %v9811
      %v9922 = vadd.f32 %v9787, %v9811
      %v9923 = vadd.f32 %v9788, %v9811
      %v9924 = vadd.f32 %v9789, %v9811
      %v9925 = vadd.f32 %v9790, %v9811
      %v9926 = vadd.f32 %v9791, %v9811
      %v9927 = vadd.f32 %v9792, %v9811
      %v9928 = vadd.f32 %v9793, %v9811
      %v9929 = vadd.f32 %v9794, %v9811
      %v9930 = vadd.f32 %v9795, %v9811
      %v9931 = vadd.f32 %v9796, %v9811
      %v9932 = vadd.f32 %v9797, %v9811
      %v9933 = vadd.f32 %v9798, %v9811
      %v9934 = vadd.f32 %v9799, %v9811
      %v9935 = vadd.f32 %v9800, %v9811
      %v9936 = vadd.f32 %v9801, %v9811
      %v9937 = vadd.f32 %v9802, %v9811
      %v9938 = vadd.f32 %v9803, %v9811
      %v9939 = vadd.f32 %v9804, %v9811
      %v9940 = vadd.f32 %v9805, %v9811
      %s9941 = sld [smem:[#allocation2]]
      %vm9942 = vcmp.gt.f32.partialorder %v9813, 0.0
      %vm9943 = vcmp.gt.f32.partialorder %v9814, 0.0
      %vm9944 = vcmp.gt.f32.partialorder %v9815, 0.0
      %vm9945 = vcmp.gt.f32.partialorder %v9816, 0.0
      %vm9946 = vcmp.gt.f32.partialorder %v9817, 0.0
      %vm9947 = vcmp.gt.f32.partialorder %v9818, 0.0
      %vm9948 = vcmp.gt.f32.partialorder %v9819, 0.0
      %vm9949 = vcmp.gt.f32.partialorder %v9820, 0.0
      %vm9950 = vcmp.gt.f32.partialorder %v9821, 0.0
      %vm9951 = vcmp.gt.f32.partialorder %v9822, 0.0
      %vm9952 = vcmp.gt.f32.partialorder %v9823, 0.0
      %vm9953 = vcmp.gt.f32.partialorder %v9824, 0.0
      %vm9954 = vcmp.gt.f32.partialorder %v9825, 0.0
      %vm9955 = vcmp.gt.f32.partialorder %v9826, 0.0
      %vm9956 = vcmp.gt.f32.partialorder %v9827, 0.0
      %vm9957 = vcmp.gt.f32.partialorder %v9828, 0.0
      %vm9958 = vcmp.gt.f32.partialorder %v9829, 0.0
      %vm9959 = vcmp.gt.f32.partialorder %v9830, 0.0
      %vm9960 = vcmp.gt.f32.partialorder %v9831, 0.0
      %vm9961 = vcmp.gt.f32.partialorder %v9832, 0.0
      %vm9962 = vcmp.gt.f32.partialorder %v9833, 0.0
      %vm9963 = vcmp.gt.f32.partialorder %v9834, 0.0
      %vm9964 = vcmp.gt.f32.partialorder %v9835, 0.0
      %vm9965 = vcmp.gt.f32.partialorder %v9836, 0.0
      %vm9966 = vcmp.gt.f32.partialorder %v9837, 0.0
      %vm9967 = vcmp.gt.f32.partialorder %v9838, 0.0
      %vm9968 = vcmp.gt.f32.partialorder %v9839, 0.0
      %vm9969 = vcmp.gt.f32.partialorder %v9840, 0.0
      %vm9970 = vcmp.gt.f32.partialorder %v9841, 0.0
      %vm9971 = vcmp.gt.f32.partialorder %v9842, 0.0
      %vm9972 = vcmp.gt.f32.partialorder %v9843, 0.0
      %vm9973 = vcmp.gt.f32.partialorder %v9844, 0.0
      %vm9974 = vcmp.gt.f32.partialorder %v9845, 0.0
      %vm9975 = vcmp.gt.f32.partialorder %v9846, 0.0
      %vm9976 = vcmp.gt.f32.partialorder %v9847, 0.0
      %vm9977 = vcmp.gt.f32.partialorder %v9848, 0.0
      %vm9978 = vcmp.gt.f32.partialorder %v9849, 0.0
      %vm9979 = vcmp.gt.f32.partialorder %v9850, 0.0
      %vm9980 = vcmp.gt.f32.partialorder %v9851, 0.0
      %vm9981 = vcmp.gt.f32.partialorder %v9852, 0.0
      %vm9982 = vcmp.gt.f32.partialorder %v9853, 0.0
      %vm9983 = vcmp.gt.f32.partialorder %v9854, 0.0
      %vm9984 = vcmp.gt.f32.partialorder %v9855, 0.0
      %vm9985 = vcmp.gt.f32.partialorder %v9856, 0.0
      %vm9986 = vcmp.gt.f32.partialorder %v9857, 0.0
      %vm9987 = vcmp.gt.f32.partialorder %v9858, 0.0
      %vm9988 = vcmp.gt.f32.partialorder %v9859, 0.0
      %vm9989 = vcmp.gt.f32.partialorder %v9860, 0.0
      %vm9990 = vcmp.gt.f32.partialorder %v9861, 0.0
      %vm9991 = vcmp.gt.f32.partialorder %v9862, 0.0
      %vm9992 = vcmp.gt.f32.partialorder %v9863, 0.0
      %vm9993 = vcmp.gt.f32.partialorder %v9864, 0.0
      %vm9994 = vcmp.gt.f32.partialorder %v9865, 0.0
      %vm9995 = vcmp.gt.f32.partialorder %v9866, 0.0
      %vm9996 = vcmp.gt.f32.partialorder %v9867, 0.0
      %vm9997 = vcmp.gt.f32.partialorder %v9868, 0.0
      %vm9998 = vcmp.gt.f32.partialorder %v9869, 0.0
      %vm9999 = vcmp.gt.f32.partialorder %v9870, 0.0
      %vm10000 = vcmp.gt.f32.partialorder %v9871, 0.0
      %vm10001 = vcmp.gt.f32.partialorder %v9872, 0.0
      %vm10002 = vcmp.gt.f32.partialorder %v9873, 0.0
      %vm10003 = vcmp.gt.f32.partialorder %v9874, 0.0
      %vm10004 = vcmp.gt.f32.partialorder %v9875, 0.0
      %vm10005 = vcmp.gt.f32.partialorder %v9876, 0.0
      %vm10006 = vcmp.gt.f32.partialorder %v9877, 0.0
      %vm10007 = vcmp.gt.f32.partialorder %v9878, 0.0
      %vm10008 = vcmp.gt.f32.partialorder %v9879, 0.0
      %vm10009 = vcmp.gt.f32.partialorder %v9880, 0.0
      %vm10010 = vcmp.gt.f32.partialorder %v9881, 0.0
      %vm10011 = vcmp.gt.f32.partialorder %v9882, 0.0
      %vm10012 = vcmp.gt.f32.partialorder %v9883, 0.0
      %vm10013 = vcmp.gt.f32.partialorder %v9884, 0.0
      %vm10014 = vcmp.gt.f32.partialorder %v9885, 0.0
      %vm10015 = vcmp.gt.f32.partialorder %v9886, 0.0
      %vm10016 = vcmp.gt.f32.partialorder %v9887, 0.0
      %vm10017 = vcmp.gt.f32.partialorder %v9888, 0.0
      %vm10018 = vcmp.gt.f32.partialorder %v9889, 0.0
      %vm10019 = vcmp.gt.f32.partialorder %v9890, 0.0
      %vm10020 = vcmp.gt.f32.partialorder %v9891, 0.0
      %vm10021 = vcmp.gt.f32.partialorder %v9892, 0.0
      %vm10022 = vcmp.gt.f32.partialorder %v9893, 0.0
      %vm10023 = vcmp.gt.f32.partialorder %v9894, 0.0
      %vm10024 = vcmp.gt.f32.partialorder %v9895, 0.0
      %vm10025 = vcmp.gt.f32.partialorder %v9896, 0.0
      %vm10026 = vcmp.gt.f32.partialorder %v9897, 0.0
      %vm10027 = vcmp.gt.f32.partialorder %v9898, 0.0
      %vm10028 = vcmp.gt.f32.partialorder %v9899, 0.0
      %vm10029 = vcmp.gt.f32.partialorder %v9900, 0.0
      %vm10030 = vcmp.gt.f32.partialorder %v9901, 0.0
      %vm10031 = vcmp.gt.f32.partialorder %v9902, 0.0
      %vm10032 = vcmp.gt.f32.partialorder %v9903, 0.0
      %vm10033 = vcmp.gt.f32.partialorder %v9904, 0.0
      %vm10034 = vcmp.gt.f32.partialorder %v9905, 0.0
      %vm10035 = vcmp.gt.f32.partialorder %v9906, 0.0
      %vm10036 = vcmp.gt.f32.partialorder %v9907, 0.0
      %vm10037 = vcmp.gt.f32.partialorder %v9908, 0.0
      %vm10038 = vcmp.gt.f32.partialorder %v9909, 0.0
      %vm10039 = vcmp.gt.f32.partialorder %v9910, 0.0
      %vm10040 = vcmp.gt.f32.partialorder %v9911, 0.0
      %vm10041 = vcmp.gt.f32.partialorder %v9912, 0.0
      %vm10042 = vcmp.gt.f32.partialorder %v9913, 0.0
      %vm10043 = vcmp.gt.f32.partialorder %v9914, 0.0
      %vm10044 = vcmp.gt.f32.partialorder %v9915, 0.0
      %vm10045 = vcmp.gt.f32.partialorder %v9916, 0.0
      %vm10046 = vcmp.gt.f32.partialorder %v9917, 0.0
      %vm10047 = vcmp.gt.f32.partialorder %v9918, 0.0
      %vm10048 = vcmp.gt.f32.partialorder %v9919, 0.0
      %vm10049 = vcmp.gt.f32.partialorder %v9920, 0.0
      %vm10050 = vcmp.gt.f32.partialorder %v9921, 0.0
      %vm10051 = vcmp.gt.f32.partialorder %v9922, 0.0
      %vm10052 = vcmp.gt.f32.partialorder %v9923, 0.0
      %vm10053 = vcmp.gt.f32.partialorder %v9924, 0.0
      %vm10054 = vcmp.gt.f32.partialorder %v9925, 0.0
      %vm10055 = vcmp.gt.f32.partialorder %v9926, 0.0
      %vm10056 = vcmp.gt.f32.partialorder %v9927, 0.0
      %vm10057 = vcmp.gt.f32.partialorder %v9928, 0.0
      %vm10058 = vcmp.gt.f32.partialorder %v9929, 0.0
      %vm10059 = vcmp.gt.f32.partialorder %v9930, 0.0
      %vm10060 = vcmp.gt.f32.partialorder %v9931, 0.0
      %vm10061 = vcmp.gt.f32.partialorder %v9932, 0.0
      %vm10062 = vcmp.gt.f32.partialorder %v9933, 0.0
      %vm10063 = vcmp.gt.f32.partialorder %v9934, 0.0
      %vm10064 = vcmp.gt.f32.partialorder %v9935, 0.0
      %vm10065 = vcmp.gt.f32.partialorder %v9936, 0.0
      %vm10066 = vcmp.gt.f32.partialorder %v9937, 0.0
      %vm10067 = vcmp.gt.f32.partialorder %v9938, 0.0
      %vm10068 = vcmp.gt.f32.partialorder %v9939, 0.0
      %vm10069 = vcmp.gt.f32.partialorder %v9940, 0.0
      %v10070 = vstv %s9941
      %v10071 = vmul.f32 %v10070, %v9813
      %v10072 = vmul.f32 %v10070, %v9814
      %v10073 = vmul.f32 %v10070, %v9815
      %v10074 = vmul.f32 %v10070, %v9816
      %v10075 = vmul.f32 %v10070, %v9817
      %v10076 = vmul.f32 %v10070, %v9818
      %v10077 = vmul.f32 %v10070, %v9819
      %v10078 = vmul.f32 %v10070, %v9820
      %v10079 = vmul.f32 %v10070, %v9821
      %v10080 = vmul.f32 %v10070, %v9822
      %v10081 = vmul.f32 %v10070, %v9823
      %v10082 = vmul.f32 %v10070, %v9824
      %v10083 = vmul.f32 %v10070, %v9825
      %v10084 = vmul.f32 %v10070, %v9826
      %v10085 = vmul.f32 %v10070, %v9827
      %v10086 = vmul.f32 %v10070, %v9828
      %v10087 = vmul.f32 %v10070, %v9829
      %v10088 = vmul.f32 %v10070, %v9830
      %v10089 = vmul.f32 %v10070, %v9831
      %v10090 = vmul.f32 %v10070, %v9832
      %v10091 = vmul.f32 %v10070, %v9833
      %v10092 = vmul.f32 %v10070, %v9834
      %v10093 = vmul.f32 %v10070, %v9835
      %v10094 = vmul.f32 %v10070, %v9836
      %v10095 = vmul.f32 %v10070, %v9837
      %v10096 = vmul.f32 %v10070, %v9838
      %v10097 = vmul.f32 %v10070, %v9839
      %v10098 = vmul.f32 %v10070, %v9840
      %v10099 = vmul.f32 %v10070, %v9841
      %v10100 = vmul.f32 %v10070, %v9842
      %v10101 = vmul.f32 %v10070, %v9843
      %v10102 = vmul.f32 %v10070, %v9844
      %v10103 = vmul.f32 %v10070, %v9845
      %v10104 = vmul.f32 %v10070, %v9846
      %v10105 = vmul.f32 %v10070, %v9847
      %v10106 = vmul.f32 %v10070, %v9848
      %v10107 = vmul.f32 %v10070, %v9849
      %v10108 = vmul.f32 %v10070, %v9850
      %v10109 = vmul.f32 %v10070, %v9851
      %v10110 = vmul.f32 %v10070, %v9852
      %v10111 = vmul.f32 %v10070, %v9853
      %v10112 = vmul.f32 %v10070, %v9854
      %v10113 = vmul.f32 %v10070, %v9855
      %v10114 = vmul.f32 %v10070, %v9856
      %v10115 = vmul.f32 %v10070, %v9857
      %v10116 = vmul.f32 %v10070, %v9858
      %v10117 = vmul.f32 %v10070, %v9859
      %v10118 = vmul.f32 %v10070, %v9860
      %v10119 = vmul.f32 %v10070, %v9861
      %v10120 = vmul.f32 %v10070, %v9862
      %v10121 = vmul.f32 %v10070, %v9863
      %v10122 = vmul.f32 %v10070, %v9864
      %v10123 = vmul.f32 %v10070, %v9865
      %v10124 = vmul.f32 %v10070, %v9866
      %v10125 = vmul.f32 %v10070, %v9867
      %v10126 = vmul.f32 %v10070, %v9868
      %v10127 = vmul.f32 %v10070, %v9869
      %v10128 = vmul.f32 %v10070, %v9870
      %v10129 = vmul.f32 %v10070, %v9871
      %v10130 = vmul.f32 %v10070, %v9872
      %v10131 = vmul.f32 %v10070, %v9873
      %v10132 = vmul.f32 %v10070, %v9874
      %v10133 = vmul.f32 %v10070, %v9875
      %v10134 = vmul.f32 %v10070, %v9876
      %v10135 = vmul.f32 %v10070, %v9877
      %v10136 = vmul.f32 %v10070, %v9878
      %v10137 = vmul.f32 %v10070, %v9879
      %v10138 = vmul.f32 %v10070, %v9880
      %v10139 = vmul.f32 %v10070, %v9881
      %v10140 = vmul.f32 %v10070, %v9882
      %v10141 = vmul.f32 %v10070, %v9883
      %v10142 = vmul.f32 %v10070, %v9884
      %v10143 = vmul.f32 %v10070, %v9885
      %v10144 = vmul.f32 %v10070, %v9886
      %v10145 = vmul.f32 %v10070, %v9887
      %v10146 = vmul.f32 %v10070, %v9888
      %v10147 = vmul.f32 %v10070, %v9889
      %v10148 = vmul.f32 %v10070, %v9890
      %v10149 = vmul.f32 %v10070, %v9891
      %v10150 = vmul.f32 %v10070, %v9892
      %v10151 = vmul.f32 %v10070, %v9893
      %v10152 = vmul.f32 %v10070, %v9894
      %v10153 = vmul.f32 %v10070, %v9895
      %v10154 = vmul.f32 %v10070, %v9896
      %v10155 = vmul.f32 %v10070, %v9897
      %v10156 = vmul.f32 %v10070, %v9898
      %v10157 = vmul.f32 %v10070, %v9899
      %v10158 = vmul.f32 %v10070, %v9900
      %v10159 = vmul.f32 %v10070, %v9901
      %v10160 = vmul.f32 %v10070, %v9902
      %v10161 = vmul.f32 %v10070, %v9903
      %v10162 = vmul.f32 %v10070, %v9904
      %v10163 = vmul.f32 %v10070, %v9905
      %v10164 = vmul.f32 %v10070, %v9906
      %v10165 = vmul.f32 %v10070, %v9907
      %v10166 = vmul.f32 %v10070, %v9908
      %v10167 = vmul.f32 %v10070, %v9909
      %v10168 = vmul.f32 %v10070, %v9910
      %v10169 = vmul.f32 %v10070, %v9911
      %v10170 = vmul.f32 %v10070, %v9912
      %v10171 = vmul.f32 %v10070, %v9913
      %v10172 = vmul.f32 %v10070, %v9914
      %v10173 = vmul.f32 %v10070, %v9915
      %v10174 = vmul.f32 %v10070, %v9916
      %v10175 = vmul.f32 %v10070, %v9917
      %v10176 = vmul.f32 %v10070, %v9918
      %v10177 = vmul.f32 %v10070, %v9919
      %v10178 = vmul.f32 %v10070, %v9920
      %v10179 = vmul.f32 %v10070, %v9921
      %v10180 = vmul.f32 %v10070, %v9922
      %v10181 = vmul.f32 %v10070, %v9923
      %v10182 = vmul.f32 %v10070, %v9924
      %v10183 = vmul.f32 %v10070, %v9925
      %v10184 = vmul.f32 %v10070, %v9926
      %v10185 = vmul.f32 %v10070, %v9927
      %v10186 = vmul.f32 %v10070, %v9928
      %v10187 = vmul.f32 %v10070, %v9929
      %v10188 = vmul.f32 %v10070, %v9930
      %v10189 = vmul.f32 %v10070, %v9931
      %v10190 = vmul.f32 %v10070, %v9932
      %v10191 = vmul.f32 %v10070, %v9933
      %v10192 = vmul.f32 %v10070, %v9934
      %v10193 = vmul.f32 %v10070, %v9935
      %v10194 = vmul.f32 %v10070, %v9936
      %v10195 = vmul.f32 %v10070, %v9937
      %v10196 = vmul.f32 %v10070, %v9938
      %v10197 = vmul.f32 %v10070, %v9939
      %v10198 = vmul.f32 %v10070, %v9940
      %v10199 = vsel %vm9942, %v9813, %v10071
      %v10200 = vsel %vm9943, %v9814, %v10072
      %v10201 = vsel %vm9944, %v9815, %v10073
      %v10202 = vsel %vm9945, %v9816, %v10074
      %v10203 = vsel %vm9946, %v9817, %v10075
      %v10204 = vsel %vm9947, %v9818, %v10076
      %v10205 = vsel %vm9948, %v9819, %v10077
      %v10206 = vsel %vm9949, %v9820, %v10078
      %v10207 = vsel %vm9950, %v9821, %v10079
      %v10208 = vsel %vm9951, %v9822, %v10080
      %v10209 = vsel %vm9952, %v9823, %v10081
      %v10210 = vsel %vm9953, %v9824, %v10082
      %v10211 = vsel %vm9954, %v9825, %v10083
      %v10212 = vsel %vm9955, %v9826, %v10084
      %v10213 = vsel %vm9956, %v9827, %v10085
      %v10214 = vsel %vm9957, %v9828, %v10086
      %v10215 = vsel %vm9958, %v9829, %v10087
      %v10216 = vsel %vm9959, %v9830, %v10088
      %v10217 = vsel %vm9960, %v9831, %v10089
      %v10218 = vsel %vm9961, %v9832, %v10090
      %v10219 = vsel %vm9962, %v9833, %v10091
      %v10220 = vsel %vm9963, %v9834, %v10092
      %v10221 = vsel %vm9964, %v9835, %v10093
      %v10222 = vsel %vm9965, %v9836, %v10094
      %v10223 = vsel %vm9966, %v9837, %v10095
      %v10224 = vsel %vm9967, %v9838, %v10096
      %v10225 = vsel %vm9968, %v9839, %v10097
      %v10226 = vsel %vm9969, %v9840, %v10098
      %v10227 = vsel %vm9970, %v9841, %v10099
      %v10228 = vsel %vm9971, %v9842, %v10100
      %v10229 = vsel %vm9972, %v9843, %v10101
      %v10230 = vsel %vm9973, %v9844, %v10102
      %v10231 = vsel %vm9974, %v9845, %v10103
      %v10232 = vsel %vm9975, %v9846, %v10104
      %v10233 = vsel %vm9976, %v9847, %v10105
      %v10234 = vsel %vm9977, %v9848, %v10106
      %v10235 = vsel %vm9978, %v9849, %v10107
      %v10236 = vsel %vm9979, %v9850, %v10108
      %v10237 = vsel %vm9980, %v9851, %v10109
      %v10238 = vsel %vm9981, %v9852, %v10110
      %v10239 = vsel %vm9982, %v9853, %v10111
      %v10240 = vsel %vm9983, %v9854, %v10112
      %v10241 = vsel %vm9984, %v9855, %v10113
      %v10242 = vsel %vm9985, %v9856, %v10114
      %v10243 = vsel %vm9986, %v9857, %v10115
      %v10244 = vsel %vm9987, %v9858, %v10116
      %v10245 = vsel %vm9988, %v9859, %v10117
      %v10246 = vsel %vm9989, %v9860, %v10118
      %v10247 = vsel %vm9990, %v9861, %v10119
      %v10248 = vsel %vm9991, %v9862, %v10120
      %v10249 = vsel %vm9992, %v9863, %v10121
      %v10250 = vsel %vm9993, %v9864, %v10122
      %v10251 = vsel %vm9994, %v9865, %v10123
      %v10252 = vsel %vm9995, %v9866, %v10124
      %v10253 = vsel %vm9996, %v9867, %v10125
      %v10254 = vsel %vm9997, %v9868, %v10126
      %v10255 = vsel %vm9998, %v9869, %v10127
      %v10256 = vsel %vm9999, %v9870, %v10128
      %v10257 = vsel %vm10000, %v9871, %v10129
      %v10258 = vsel %vm10001, %v9872, %v10130
      %v10259 = vsel %vm10002, %v9873, %v10131
      %v10260 = vsel %vm10003, %v9874, %v10132
      %v10261 = vsel %vm10004, %v9875, %v10133
      %v10262 = vsel %vm10005, %v9876, %v10134
      %v10263 = vsel %vm10006, %v9877, %v10135
      %v10264 = vsel %vm10007, %v9878, %v10136
      %v10265 = vsel %vm10008, %v9879, %v10137
      %v10266 = vsel %vm10009, %v9880, %v10138
      %v10267 = vsel %vm10010, %v9881, %v10139
      %v10268 = vsel %vm10011, %v9882, %v10140
      %v10269 = vsel %vm10012, %v9883, %v10141
      %v10270 = vsel %vm10013, %v9884, %v10142
      %v10271 = vsel %vm10014, %v9885, %v10143
      %v10272 = vsel %vm10015, %v9886, %v10144
      %v10273 = vsel %vm10016, %v9887, %v10145
      %v10274 = vsel %vm10017, %v9888, %v10146
      %v10275 = vsel %vm10018, %v9889, %v10147
      %v10276 = vsel %vm10019, %v9890, %v10148
      %v10277 = vsel %vm10020, %v9891, %v10149
      %v10278 = vsel %vm10021, %v9892, %v10150
      %v10279 = vsel %vm10022, %v9893, %v10151
      %v10280 = vsel %vm10023, %v9894, %v10152
      %v10281 = vsel %vm10024, %v9895, %v10153
      %v10282 = vsel %vm10025, %v9896, %v10154
      %v10283 = vsel %vm10026, %v9897, %v10155
      %v10284 = vsel %vm10027, %v9898, %v10156
      %v10285 = vsel %vm10028, %v9899, %v10157
      %v10286 = vsel %vm10029, %v9900, %v10158
      %v10287 = vsel %vm10030, %v9901, %v10159
      %v10288 = vsel %vm10031, %v9902, %v10160
      %v10289 = vsel %vm10032, %v9903, %v10161
      %v10290 = vsel %vm10033, %v9904, %v10162
      %v10291 = vsel %vm10034, %v9905, %v10163
      %v10292 = vsel %vm10035, %v9906, %v10164
      %v10293 = vsel %vm10036, %v9907, %v10165
      %v10294 = vsel %vm10037, %v9908, %v10166
      %v10295 = vsel %vm10038, %v9909, %v10167
      %v10296 = vsel %vm10039, %v9910, %v10168
      %v10297 = vsel %vm10040, %v9911, %v10169
      %v10298 = vsel %vm10041, %v9912, %v10170
      %v10299 = vsel %vm10042, %v9913, %v10171
      %v10300 = vsel %vm10043, %v9914, %v10172
      %v10301 = vsel %vm10044, %v9915, %v10173
      %v10302 = vsel %vm10045, %v9916, %v10174
      %v10303 = vsel %vm10046, %v9917, %v10175
      %v10304 = vsel %vm10047, %v9918, %v10176
      %v10305 = vsel %vm10048, %v9919, %v10177
      %v10306 = vsel %vm10049, %v9920, %v10178
      %v10307 = vsel %vm10050, %v9921, %v10179
      %v10308 = vsel %vm10051, %v9922, %v10180
      %v10309 = vsel %vm10052, %v9923, %v10181
      %v10310 = vsel %vm10053, %v9924, %v10182
      %v10311 = vsel %vm10054, %v9925, %v10183
      %v10312 = vsel %vm10055, %v9926, %v10184
      %v10313 = vsel %vm10056, %v9927, %v10185
      %v10314 = vsel %vm10057, %v9928, %v10186
      %v10315 = vsel %vm10058, %v9929, %v10187
      %v10316 = vsel %vm10059, %v9930, %v10188
      %v10317 = vsel %vm10060, %v9931, %v10189
      %v10318 = vsel %vm10061, %v9932, %v10190
      %v10319 = vsel %vm10062, %v9933, %v10191
      %v10320 = vsel %vm10063, %v9934, %v10192
      %v10321 = vsel %vm10064, %v9935, %v10193
      %v10322 = vsel %vm10065, %v9936, %v10194
      %v10323 = vsel %vm10066, %v9937, %v10195
      %v10324 = vsel %vm10067, %v9938, %v10196
      %v10325 = vsel %vm10068, %v9939, %v10197
      %v10326 = vsel %vm10069, %v9940, %v10198
      %10327 = vst [vmem:[%s198] sm:$0xff] %v10199
      %10328 = vst [vmem:[%s198 + $0x8] sm:$0xff] %v10200
      %10329 = vst [vmem:[%s198 + $0x10] sm:$0xff] %v10201
      %10330 = vst [vmem:[%s198 + $0x18] sm:$0xff] %v10202
      %10331 = vst [vmem:[%s198 + $0x20] sm:$0xff] %v10203
      %10332 = vst [vmem:[%s198 + $0x28] sm:$0xff] %v10204
      %10333 = vst [vmem:[%s198 + $0x30] sm:$0xff] %v10205
      %10334 = vst [vmem:[%s198 + $0x38] sm:$0xff] %v10206
      %10335 = vst [vmem:[%s198 + $0x40] sm:$0xff] %v10207
      %10336 = vst [vmem:[%s198 + $0x48] sm:$0xff] %v10208
      %10337 = vst [vmem:[%s198 + $0x50] sm:$0xff] %v10209
      %10338 = vst [vmem:[%s198 + $0x58] sm:$0xff] %v10210
      %10339 = vst [vmem:[%s198 + $0x60] sm:$0xff] %v10211
      %10340 = vst [vmem:[%s198 + $0x68] sm:$0xff] %v10212
      %10341 = vst [vmem:[%s198 + $0x70] sm:$0xff] %v10213
      %10342 = vst [vmem:[%s198 + $0x78] sm:$0xff] %v10214
      %10343 = vst [vmem:[%s198 + $0x80] sm:$0xff] %v10215
      %10344 = vst [vmem:[%s198 + $0x88] sm:$0xff] %v10216
      %10345 = vst [vmem:[%s198 + $0x90] sm:$0xff] %v10217
      %10346 = vst [vmem:[%s198 + $0x98] sm:$0xff] %v10218
      %10347 = vst [vmem:[%s198 + $0xa0] sm:$0xff] %v10219
      %10348 = vst [vmem:[%s198 + $0xa8] sm:$0xff] %v10220
      %10349 = vst [vmem:[%s198 + $0xb0] sm:$0xff] %v10221
      %10350 = vst [vmem:[%s198 + $0xb8] sm:$0xff] %v10222
      %10351 = vst [vmem:[%s198 + $0xc0] sm:$0xff] %v10223
      %10352 = vst [vmem:[%s198 + $0xc8] sm:$0xff] %v10224
      %10353 = vst [vmem:[%s198 + $0xd0] sm:$0xff] %v10225
      %10354 = vst [vmem:[%s198 + $0xd8] sm:$0xff] %v10226
      %10355 = vst [vmem:[%s198 + $0xe0] sm:$0xff] %v10227
      %10356 = vst [vmem:[%s198 + $0xe8] sm:$0xff] %v10228
      %10357 = vst [vmem:[%s198 + $0xf0] sm:$0xff] %v10229
      %10358 = vst [vmem:[%s198 + $0xf8] sm:$0xff] %v10230
      %10359 = vst [vmem:[%s198 + $0x100] sm:$0xff] %v10231
      %10360 = vst [vmem:[%s198 + $0x108] sm:$0xff] %v10232
      %10361 = vst [vmem:[%s198 + $0x110] sm:$0xff] %v10233
      %10362 = vst [vmem:[%s198 + $0x118] sm:$0xff] %v10234
      %10363 = vst [vmem:[%s198 + $0x120] sm:$0xff] %v10235
      %10364 = vst [vmem:[%s198 + $0x128] sm:$0xff] %v10236
      %10365 = vst [vmem:[%s198 + $0x130] sm:$0xff] %v10237
      %10366 = vst [vmem:[%s198 + $0x138] sm:$0xff] %v10238
      %10367 = vst [vmem:[%s198 + $0x140] sm:$0xff] %v10239
      %10368 = vst [vmem:[%s198 + $0x148] sm:$0xff] %v10240
      %10369 = vst [vmem:[%s198 + $0x150] sm:$0xff] %v10241
      %10370 = vst [vmem:[%s198 + $0x158] sm:$0xff] %v10242
      %10371 = vst [vmem:[%s198 + $0x160] sm:$0xff] %v10243
      %10372 = vst [vmem:[%s198 + $0x168] sm:$0xff] %v10244
      %10373 = vst [vmem:[%s198 + $0x170] sm:$0xff] %v10245
      %10374 = vst [vmem:[%s198 + $0x178] sm:$0xff] %v10246
      %10375 = vst [vmem:[%s198 + $0x180] sm:$0xff] %v10247
      %10376 = vst [vmem:[%s198 + $0x188] sm:$0xff] %v10248
      %10377 = vst [vmem:[%s198 + $0x190] sm:$0xff] %v10249
      %10378 = vst [vmem:[%s198 + $0x198] sm:$0xff] %v10250
      %10379 = vst [vmem:[%s198 + $0x1a0] sm:$0xff] %v10251
      %10380 = vst [vmem:[%s198 + $0x1a8] sm:$0xff] %v10252
      %10381 = vst [vmem:[%s198 + $0x1b0] sm:$0xff] %v10253
      %10382 = vst [vmem:[%s198 + $0x1b8] sm:$0xff] %v10254
      %10383 = vst [vmem:[%s198 + $0x1c0] sm:$0xff] %v10255
      %10384 = vst [vmem:[%s198 + $0x1c8] sm:$0xff] %v10256
      %10385 = vst [vmem:[%s198 + $0x1d0] sm:$0xff] %v10257
      %10386 = vst [vmem:[%s198 + $0x1d8] sm:$0xff] %v10258
      %10387 = vst [vmem:[%s198 + $0x1e0] sm:$0xff] %v10259
      %10388 = vst [vmem:[%s198 + $0x1e8] sm:$0xff] %v10260
      %10389 = vst [vmem:[%s198 + $0x1f0] sm:$0xff] %v10261
      %10390 = vst [vmem:[%s198 + $0x1f8] sm:$0xff] %v10262
      %10391 = vst [vmem:[%s198 + $0x200] sm:$0xff] %v10263
      %10392 = vst [vmem:[%s198 + $0x208] sm:$0xff] %v10264
      %10393 = vst [vmem:[%s198 + $0x210] sm:$0xff] %v10265
      %10394 = vst [vmem:[%s198 + $0x218] sm:$0xff] %v10266
      %10395 = vst [vmem:[%s198 + $0x220] sm:$0xff] %v10267
      %10396 = vst [vmem:[%s198 + $0x228] sm:$0xff] %v10268
      %10397 = vst [vmem:[%s198 + $0x230] sm:$0xff] %v10269
      %10398 = vst [vmem:[%s198 + $0x238] sm:$0xff] %v10270
      %10399 = vst [vmem:[%s198 + $0x240] sm:$0xff] %v10271
      %10400 = vst [vmem:[%s198 + $0x248] sm:$0xff] %v10272
      %10401 = vst [vmem:[%s198 + $0x250] sm:$0xff] %v10273
      %10402 = vst [vmem:[%s198 + $0x258] sm:$0xff] %v10274
      %10403 = vst [vmem:[%s198 + $0x260] sm:$0xff] %v10275
      %10404 = vst [vmem:[%s198 + $0x268] sm:$0xff] %v10276
      %10405 = vst [vmem:[%s198 + $0x270] sm:$0xff] %v10277
      %10406 = vst [vmem:[%s198 + $0x278] sm:$0xff] %v10278
      %10407 = vst [vmem:[%s198 + $0x280] sm:$0xff] %v10279
      %10408 = vst [vmem:[%s198 + $0x288] sm:$0xff] %v10280
      %10409 = vst [vmem:[%s198 + $0x290] sm:$0xff] %v10281
      %10410 = vst [vmem:[%s198 + $0x298] sm:$0xff] %v10282
      %10411 = vst [vmem:[%s198 + $0x2a0] sm:$0xff] %v10283
      %10412 = vst [vmem:[%s198 + $0x2a8] sm:$0xff] %v10284
      %10413 = vst [vmem:[%s198 + $0x2b0] sm:$0xff] %v10285
      %10414 = vst [vmem:[%s198 + $0x2b8] sm:$0xff] %v10286
      %10415 = vst [vmem:[%s198 + $0x2c0] sm:$0xff] %v10287
      %10416 = vst [vmem:[%s198 + $0x2c8] sm:$0xff] %v10288
      %10417 = vst [vmem:[%s198 + $0x2d0] sm:$0xff] %v10289
      %10418 = vst [vmem:[%s198 + $0x2d8] sm:$0xff] %v10290
      %10419 = vst [vmem:[%s198 + $0x2e0] sm:$0xff] %v10291
      %10420 = vst [vmem:[%s198 + $0x2e8] sm:$0xff] %v10292
      %10421 = vst [vmem:[%s198 + $0x2f0] sm:$0xff] %v10293
      %10422 = vst [vmem:[%s198 + $0x2f8] sm:$0xff] %v10294
      %10423 = vst [vmem:[%s198 + $0x300] sm:$0xff] %v10295
      %10424 = vst [vmem:[%s198 + $0x308] sm:$0xff] %v10296
      %10425 = vst [vmem:[%s198 + $0x310] sm:$0xff] %v10297
      %10426 = vst [vmem:[%s198 + $0x318] sm:$0xff] %v10298
      %10427 = vst [vmem:[%s198 + $0x320] sm:$0xff] %v10299
      %10428 = vst [vmem:[%s198 + $0x328] sm:$0xff] %v10300
      %10429 = vst [vmem:[%s198 + $0x330] sm:$0xff] %v10301
      %10430 = vst [vmem:[%s198 + $0x338] sm:$0xff] %v10302
      %10431 = vst [vmem:[%s198 + $0x340] sm:$0xff] %v10303
      %10432 = vst [vmem:[%s198 + $0x348] sm:$0xff] %v10304
      %10433 = vst [vmem:[%s198 + $0x350] sm:$0xff] %v10305
      %10434 = vst [vmem:[%s198 + $0x358] sm:$0xff] %v10306
      %10435 = vst [vmem:[%s198 + $0x360] sm:$0xff] %v10307
      %10436 = vst [vmem:[%s198 + $0x368] sm:$0xff] %v10308
      %10437 = vst [vmem:[%s198 + $0x370] sm:$0xff] %v10309
      %10438 = vst [vmem:[%s198 + $0x378] sm:$0xff] %v10310
      %10439 = vst [vmem:[%s198 + $0x380] sm:$0xff] %v10311
      %10440 = vst [vmem:[%s198 + $0x388] sm:$0xff] %v10312
      %10441 = vst [vmem:[%s198 + $0x390] sm:$0xff] %v10313
      %10442 = vst [vmem:[%s198 + $0x398] sm:$0xff] %v10314
      %10443 = vst [vmem:[%s198 + $0x3a0] sm:$0xff] %v10315
      %10444 = vst [vmem:[%s198 + $0x3a8] sm:$0xff] %v10316
      %10445 = vst [vmem:[%s198 + $0x3b0] sm:$0xff] %v10317
      %10446 = vst [vmem:[%s198 + $0x3b8] sm:$0xff] %v10318
      %10447 = vst [vmem:[%s198 + $0x3c0] sm:$0xff] %v10319
      %10448 = vst [vmem:[%s198 + $0x3c8] sm:$0xff] %v10320
      %10449 = vst [vmem:[%s198 + $0x3d0] sm:$0xff] %v10321
      %10450 = vst [vmem:[%s198 + $0x3d8] sm:$0xff] %v10322
      %10451 = vst [vmem:[%s198 + $0x3e0] sm:$0xff] %v10323
      %10452 = vst [vmem:[%s198 + $0x3e8] sm:$0xff] %v10324
      %10453 = vst [vmem:[%s198 + $0x3f0] sm:$0xff] %v10325
      %10454 = vst [vmem:[%s198 + $0x3f8] sm:$0xff] %v10326
      %p10455 = scmp.lt.s32.totalorder %s16, 1
      %s10456 = scalar_select %p10455, %s16, 1
      %s10457 = smul.addr %s10456, 128
      %s10458 = smul.addr %s10457, 8
      %s10459 = scalar_lea.vmem %s4, %s10458
      // Predicated region
      $region37: #{a_call__.1} parent=35 // pred_check
        %p10460 = pneg %p123
      $region38: #{a_call__.1} parent=35 // pred_check_branch
        %10462 = sbr.rel (%p10460) target = $region40
      $region39: #{a_call__.1} parent=35 // pred_region
        _
      $region40: #{a_call__.1} parent=35 // pred_fallthru
        _
    $region36: #{a_call__.1} parent=5 // pred_fallthru
      _
    %p10463 = scmp.le.s32.totalorder 2, %s11
    // Predicated region
    $region41: #{a_call__.1} parent=5 // pred_check
      %p10464 = pneg %p10463
    $region42: #{a_call__.1} parent=5 // pred_check_branch
      %10466 = sbr.rel (%p10464) target = $region44
    $region43: #{a_call__.1} parent=5 // pred_region
      %s10467 = ssub.s32 %s11, 2
      // Predicated region
      $region45: #{a_call__.1} parent=43 // pred_check
        %p10468 = pneg %p129
      $region46: #{a_call__.1} parent=43 // pred_check_branch
        %10470 = sbr.rel (%p10468) target = $region48
      $region47: #{a_call__.1} parent=43 // pred_region
        %p10471 = scmp.lt.s32.totalorder %s17, 1
        %s10472 = scalar_select %p10471, %s17, 1
        %s10473 = smul.addr %s10472, 128
        %s10474 = smul.addr %s10473, 8
        %s10475 = scalar_lea.vmem %s4, %s10474
      $region48: #{a_call__.1} parent=43 // pred_fallthru
        _
    $region44: #{a_call__.1} parent=5 // pred_fallthru
      _
  $region6: #{a_call__.1} parent=0 // loop_footer
    %s15 = sadd.s32 1, %s11
  $region7: #{a_call__.1} parent=0 // loop_footer_branch
    %10 = sbr.rel target = $region3
  $region8: #{a_call__.1} parent=0 // loop_exit
    _

</llo_original>
